<compile_context>
chip_gen: v6e
topology: v6e:2x2x1
jax: 0.10.0
libtpu: 0.0.40
codegen_flags: <defaults>
</compile_context>

<pallas_src>
import jax
import jax.numpy as jnp
from jax import lax
from jax.experimental import pallas as pl
from jax.experimental.pallas import tpu as pltpu

IN_CHANNELS = 3
CHANNELS = 16          # opt.n_filters
K = 4                  # opt.k
N_BLOCKS = 3           # opt.n_blocks
EMB_DIMS = 64          # opt.emb_dims
N_CLASSES = 10         # opt.n_classes
LEAKY_SLOPE = 0.2      # gcn_lib act_layer('leakyrelu') default
OUT_PAD = 128          # lane-dense padded logits width (sliced back to N_CLASSES)
CIN_PAD = 8            # xyz input channels zero-padded to 8 lanes (exact no-op)
BT_MAX = 8             # max samples fused into one grid step


def _leaky(y):
    return jnp.where(y >= 0.0, y, LEAKY_SLOPE * y)


def _topk_onehot(score, n):
    """K iterative masked row-argmin passes -> stacked (K*n, n) one-hot gather matrix.

    int32 column indices (ties break to the lowest index, like the previous
    version, which may differ from torch.topk ordering only on exact distance
    ties).  Distance ranking stays f32.
    """
    col = lax.broadcasted_iota(jnp.int32, (n, n), 1)
    big = jnp.float32(1e30)
    pieces = []
    for _ in range(K):                                       # K=4, unrolled
        row_min = jnp.min(score, axis=1, keepdims=True)      # (n, 1) f32
        cand = jnp.where(score <= row_min, col, n)           # int32
        sel = jnp.min(cand, axis=1, keepdims=True)           # (n, 1) int32
        hit = col == sel
        pieces.append(jnp.where(hit, 1.0, 0.0))              # f32 one-hot block
        score = jnp.where(hit, big, score)                   # mask chosen neighbor
    return jnp.concatenate(pieces, axis=0)                   # (K*n, n)


def _edge_conv(conv2d, knn2d, w_a_ref, w_b_ref, b_ref, bt, n, knn_dim=None):
    """Fused DilatedKnnGraph (dilation=1, non-stochastic) + EdgeConv 'max' + relu
    over a (bt*n, C) flattened block of samples, entirely in VMEM.

    The EdgeConv weight W (2C, Cout) is pre-split wrapper-side into
    w_a = W[:C] - W[C:] and w_b = W[C:] so W@[x_i, x_j-x_i] + b ==
    x_i@w_a + x_j@w_b + b; since relu is monotone and x_i@w_a + b is constant
    over neighbors, max_k relu(.) == relu(x_i@w_a + b + max_k x_j@w_b).
    The pointwise matmuls run once over all bt*n rows (bf16 operands, f32
    accumulation); only the O(n^2) ranking and the fused (K*n, n) one-hot
    gather matmul run per sample.
    """
    w_a = w_a_ref[...]
    w_b = w_b_ref[...]
    bias = b_ref[...]
    xb = conv2d.astype(jnp.bfloat16)
    z_a = jnp.dot(xb, w_a, preferred_element_type=jnp.float32)    # (bt*n, Cout)
    z_b = jnp.dot(xb, w_b, preferred_element_type=jnp.float32)    # (bt*n, Cout)
    z_b_bf = z_b.astype(jnp.bfloat16)

    nbr_rows = []
    for b in range(bt):                                           # static unroll over fused samples
        feat = knn2d[b * n:(b + 1) * n]                           # (n, D) f32
        if knn_dim is not None and knn_dim < feat.shape[1]:
            feat = feat[:, :knn_dim]
        # per-row ranking score |x_j|^2 - 2<x_i,x_j> (row-constant |x_i|^2 dropped); f32
        sq = jnp.sum(feat * feat, axis=-1, keepdims=True)         # (n, 1)
        gram = lax.dot_general(feat, feat, (((1,), (1,)), ((), ())),
                               preferred_element_type=jnp.float32)  # (n, n)
        score = jnp.transpose(sq) - 2.0 * gram
        onehot = _topk_onehot(score, n)                           # (K*n, n) f32
        # ONE (K*n, n)@(n, Cout) MXU gather instead of K tiny ones
        g = jnp.dot(onehot.astype(jnp.bfloat16), z_b_bf[b * n:(b + 1) * n],
                    preferred_element_type=jnp.float32)           # (K*n, Cout)
        m = g[0:n]
        for j in range(1, K):
            m = jnp.maximum(m, g[j * n:(j + 1) * n])
        nbr_rows.append(m)
    nbr = nbr_rows[0] if bt == 1 else jnp.concatenate(nbr_rows, axis=0)  # (bt*n, Cout)
    return jnp.maximum(z_a + bias + nbr, 0.0)                     # act='relu', max over K


def _make_deepgcn_kernel(n_blocks, in_channels, bt, n):
    """Forward pass for one block of bt point clouds; grid=(B//bt,), weights VMEM-resident."""

    def kernel(*refs):
        out_ref = refs[-1]
        x_ref = refs[0]
        r = refs[1:-1]
        edge_p = [r[3 * i:3 * i + 3] for i in range(n_blocks)]    # (w_a, w_b, bias) per layer
        off = 3 * n_blocks
        fusion_w = r[off:off + n_blocks]                          # split fusion weight chunks
        off += n_blocks
        p1wa, p1wb, p1b, p2w, p2b, p3w, p3b = r[off:off + 7]

        # flatten the bt samples of this grid step into one (bt*n, Cin) operand
        if bt == 1:
            x2d = x_ref[0].astype(jnp.float32)
        else:
            x2d = jnp.concatenate([x_ref[b].astype(jnp.float32) for b in range(bt)],
                                  axis=0)                         # (bt*n, Cin_pad)

        # head: GraphConv2d('edge'), knn graph on xyz (zero-padded lanes are exact no-ops)
        knn_dim = 3 if in_channels > 3 else None
        wa, wb, bb = edge_p[0]
        feat = _edge_conv(x2d, x2d, wa, wb, bb, bt, n, knn_dim=knn_dim)
        feats = [feat]
        # res backbone: dynamic edge conv (knn on full features) + residual, res_scale=1
        for i in range(1, n_blocks):
            wa, wb, bb = edge_p[i]
            feat = _edge_conv(feat, feat, wa, wb, bb, bt, n) + feat
            feats.append(feat)

        # fusion 1x1 conv (bias=False) over channel-concat of feats, done as split matmuls
        fusion = jnp.dot(feats[0].astype(jnp.bfloat16), fusion_w[0][...],
                         preferred_element_type=jnp.float32)
        for i in range(1, n_blocks):
            fusion = fusion + jnp.dot(feats[i].astype(jnp.bfloat16), fusion_w[i][...],
                                      preferred_element_type=jnp.float32)
        fusion = _leaky(fusion)                                   # (bt*n, EMB)

        # adaptive max / avg pooling over the point axis, per sample
        x1r, x2r = [], []
        for b in range(bt):
            fb = fusion[b * n:(b + 1) * n]
            x1r.append(jnp.max(fb, axis=0, keepdims=True))
            x2r.append(jnp.mean(fb, axis=0, keepdims=True))
        x1 = x1r[0] if bt == 1 else jnp.concatenate(x1r, axis=0)  # (bt, EMB)
        x2 = x2r[0] if bt == 1 else jnp.concatenate(x2r, axis=0)  # (bt, EMB)

        # prediction MLP batched over the bt pooled rows;
        # concat([x1, x2]) folded into the split pred1 weights.
        # TODO(synk): Dropout2d omitted (opt.dropout=0.0, inference semantics)
        h = _leaky(jnp.dot(x1.astype(jnp.bfloat16), p1wa[...], preferred_element_type=jnp.float32)
                   + jnp.dot(x2.astype(jnp.bfloat16), p1wb[...], preferred_element_type=jnp.float32)
                   + p1b[...])
        h = _leaky(jnp.dot(h.astype(jnp.bfloat16), p2w[...],
                           preferred_element_type=jnp.float32) + p2b[...])
        logits = jnp.dot(h.astype(jnp.bfloat16), p3w[...],
                         preferred_element_type=jnp.float32) + p3b[...]
        out_ref[0] = logits                                       # (bt, OUT_PAD) lane-dense store

    return kernel


def deepgcn_forward(x_nchw, params, bt=None):
    B, Cin, N, _ = x_nchw.shape
    x = jnp.transpose(x_nchw[..., 0], (0, 2, 1))                  # (B, N, Cin) channels-last
    cpad = max(CIN_PAD, ((Cin + 7) // 8) * 8)
    x = jnp.pad(x, ((0, 0), (0, 0), (0, cpad - Cin)))             # zero-pad channels (exact)

    if bt is None:                                                # largest divisor of B <= BT_MAX
        bt = max(d for d in range(1, min(B, BT_MAX) + 1) if B % d == 0)
    assert B % bt == 0
    grid = (B // bt,)

    def split_edge_w(w):                                          # (2C, Cout) -> (Wi - Wj, Wj)
        c = w.shape[0] // 2
        return w[:c] - w[c:], w[c:]

    def as_mxu(w):                                                # bf16 MXU operands, f32 accum
        return w.astype(jnp.bfloat16)

    ins = [x]
    wa, wb = split_edge_w(params['head_w'])
    wa = jnp.pad(wa, ((0, cpad - Cin), (0, 0)))
    wb = jnp.pad(wb, ((0, cpad - Cin), (0, 0)))
    ins += [as_mxu(wa), as_mxu(wb), params['head_b']]
    for i in range(N_BLOCKS - 1):
        wa, wb = split_edge_w(params[f'block{i}_w'])
        ins += [as_mxu(wa), as_mxu(wb), params[f'block{i}_b']]
    fw = params['fusion_w']
    ins += [as_mxu(fw[i * CHANNELS:(i + 1) * CHANNELS]) for i in range(N_BLOCKS)]
    p1w = params['pred1_w']
    ins += [as_mxu(p1w[:EMB_DIMS]), as_mxu(p1w[EMB_DIMS:]), params['pred1_b'],
            as_mxu(params['pred2_w']), params['pred2_b'],
            as_mxu(jnp.pad(params['pred3_w'], ((0, 0), (0, OUT_PAD - N_CLASSES)))),
            jnp.pad(params['pred3_b'], ((0, 0), (0, OUT_PAD - N_CLASSES)))]

    in_specs = [pl.BlockSpec((bt, N, cpad), lambda b: (b, 0, 0))]
    in_specs += [pl.BlockSpec(a.shape, lambda b: (0, 0)) for a in ins[1:]]

    out = pl.pallas_call(
        _make_deepgcn_kernel(N_BLOCKS, Cin, bt, N),
        out_shape=jax.ShapeDtypeStruct((B // bt, bt, OUT_PAD), jnp.float32),
        grid=grid,
        in_specs=in_specs,
        out_specs=pl.BlockSpec((1, bt, OUT_PAD), lambda b: (b, 0, 0)),
        compiler_params=pltpu.CompilerParams(
            dimension_semantics=("parallel",)),    # v7x: shard grid steps over both TensorCores
    )(*ins)
    return out.reshape(B, OUT_PAD)[:, :N_CLASSES]                 # (B, n_classes)


def init_params(key):
    def kaiming(k, cin, cout):
        # kaiming_normal_ on a 1x1 Conv2d weight: std = sqrt(2 / fan_in)
        return ((2.0 / cin) ** 0.5) * jax.random.normal(k, (cin, cout), jnp.float32)

    n_keys = (N_BLOCKS - 1) + 5
    keys = jax.random.split(key, n_keys)
    p = {}
    fusion_dims = CHANNELS * N_BLOCKS   # 'res' block: channels + c_growth*(n_blocks-1)
    p['head_w'] = kaiming(keys[0], 2 * IN_CHANNELS, CHANNELS)
    p['head_b'] = jnp.zeros((1, CHANNELS), jnp.float32)            # head bias=False
    for i in range(N_BLOCKS - 1):
        p[f'block{i}_w'] = kaiming(keys[1 + i], 2 * CHANNELS, CHANNELS)
        p[f'block{i}_b'] = jnp.zeros((1, CHANNELS), jnp.float32)   # bias zeroed by model_init
    p['fusion_w'] = kaiming(keys[N_BLOCKS], fusion_dims, EMB_DIMS)  # fusion bias=False
    p['pred1_w'] = kaiming(keys[N_BLOCKS + 1], 2 * EMB_DIMS, 512)
    p['pred1_b'] = jnp.zeros((1, 512), jnp.float32)
    p['pred2_w'] = kaiming(keys[N_BLOCKS + 2], 512, 256)
    p['pred2_b'] = jnp.zeros((1, 256), jnp.float32)
    p['pred3_w'] = kaiming(keys[N_BLOCKS + 3], 256, N_CLASSES)
    p['pred3_b'] = jnp.zeros((1, N_CLASSES), jnp.float32)
    return p


if __name__ == "__main__":
    key = jax.random.PRNGKey(0)
    kx, kp = jax.random.split(key)
    B, N = 2, 64
    x = jax.random.normal(kx, (B, IN_CHANNELS, N, 1), jnp.float32)   # NCHW like PyTorch
    params = init_params(kp)

    fwd = jax.jit(deepgcn_forward)
    out = fwd(x, params)
    jax.block_until_ready(out)
    assert out.shape == (B, N_CLASSES), out.shape
    assert jnp.all(jnp.isfinite(out))
    print("KERNEL_OK")
</pallas_src>

<mosaic_0001>
module attributes {stable_mosaic.version = 11 : i64} {
  func.func @kernel(%arg0: i32, %arg1: memref<2x64x8xf32, #tpu.memory_space<vmem>>, %arg2: memref<8x16xbf16, #tpu.memory_space<vmem>>, %arg3: memref<8x16xbf16, #tpu.memory_space<vmem>>, %arg4: memref<1x16xf32, #tpu.memory_space<vmem>>, %arg5: memref<16x16xbf16, #tpu.memory_space<vmem>>, %arg6: memref<16x16xbf16, #tpu.memory_space<vmem>>, %arg7: memref<1x16xf32, #tpu.memory_space<vmem>>, %arg8: memref<16x16xbf16, #tpu.memory_space<vmem>>, %arg9: memref<16x16xbf16, #tpu.memory_space<vmem>>, %arg10: memref<1x16xf32, #tpu.memory_space<vmem>>, %arg11: memref<16x64xbf16, #tpu.memory_space<vmem>>, %arg12: memref<16x64xbf16, #tpu.memory_space<vmem>>, %arg13: memref<16x64xbf16, #tpu.memory_space<vmem>>, %arg14: memref<64x512xbf16, #tpu.memory_space<vmem>>, %arg15: memref<64x512xbf16, #tpu.memory_space<vmem>>, %arg16: memref<1x512xf32, #tpu.memory_space<vmem>>, %arg17: memref<512x256xbf16, #tpu.memory_space<vmem>>, %arg18: memref<1x256xf32, #tpu.memory_space<vmem>>, %arg19: memref<256x128xbf16, #tpu.memory_space<vmem>>, %arg20: memref<1x128xf32, #tpu.memory_space<vmem>>, %arg21: memref<1x2x128xf32, #tpu.memory_space<vmem>>) attributes {dimension_semantics = [#tpu.dimension_semantics<parallel>], iteration_bounds = array<i64: 1>, scalar_prefetch = 0 : i64, scratch_operands = 0 : i64, tpu.core_type = #tpu.core_type<tc>, window_params = [{transform_indices = @transform_0, window_bounds = array<i64: 2, 64, 8>}, {pipeline_mode = #tpu.pipeline_mode<synchronous>, transform_indices = @transform_1, window_bounds = array<i64: 8, 16>}, {pipeline_mode = #tpu.pipeline_mode<synchronous>, transform_indices = @transform_2, window_bounds = array<i64: 8, 16>}, {pipeline_mode = #tpu.pipeline_mode<synchronous>, transform_indices = @transform_3, window_bounds = array<i64: 1, 16>}, {pipeline_mode = #tpu.pipeline_mode<synchronous>, transform_indices = @transform_4, window_bounds = array<i64: 16, 16>}, {pipeline_mode = #tpu.pipeline_mode<synchronous>, transform_indices = @transform_5, window_bounds = array<i64: 16, 16>}, {pipeline_mode = #tpu.pipeline_mode<synchronous>, transform_indices = @transform_6, window_bounds = array<i64: 1, 16>}, {pipeline_mode = #tpu.pipeline_mode<synchronous>, transform_indices = @transform_7, window_bounds = array<i64: 16, 16>}, {pipeline_mode = #tpu.pipeline_mode<synchronous>, transform_indices = @transform_8, window_bounds = array<i64: 16, 16>}, {pipeline_mode = #tpu.pipeline_mode<synchronous>, transform_indices = @transform_9, window_bounds = array<i64: 1, 16>}, {pipeline_mode = #tpu.pipeline_mode<synchronous>, transform_indices = @transform_10, window_bounds = array<i64: 16, 64>}, {pipeline_mode = #tpu.pipeline_mode<synchronous>, transform_indices = @transform_11, window_bounds = array<i64: 16, 64>}, {pipeline_mode = #tpu.pipeline_mode<synchronous>, transform_indices = @transform_12, window_bounds = array<i64: 16, 64>}, {pipeline_mode = #tpu.pipeline_mode<synchronous>, transform_indices = @transform_13, window_bounds = array<i64: 64, 512>}, {pipeline_mode = #tpu.pipeline_mode<synchronous>, transform_indices = @transform_14, window_bounds = array<i64: 64, 512>}, {pipeline_mode = #tpu.pipeline_mode<synchronous>, transform_indices = @transform_15, window_bounds = array<i64: 1, 512>}, {pipeline_mode = #tpu.pipeline_mode<synchronous>, transform_indices = @transform_16, window_bounds = array<i64: 512, 256>}, {pipeline_mode = #tpu.pipeline_mode<synchronous>, transform_indices = @transform_17, window_bounds = array<i64: 1, 256>}, {pipeline_mode = #tpu.pipeline_mode<synchronous>, transform_indices = @transform_18, window_bounds = array<i64: 256, 128>}, {pipeline_mode = #tpu.pipeline_mode<synchronous>, transform_indices = @transform_19, window_bounds = array<i64: 1, 128>}, {transform_indices = @transform_20, window_bounds = array<i64: 1, 2, 128>}]} {
    %c0 = arith.constant 0 : index
    %c0_0 = arith.constant 0 : index
    %c0_1 = arith.constant 0 : index
    %0 = vector.load %arg1[%c0, %c0_0, %c0_1] : memref<2x64x8xf32, #tpu.memory_space<vmem>>, vector<1x64x8xf32>
    %1 = vector.shape_cast %0 : vector<1x64x8xf32> to vector<64x8xf32>
    %c1 = arith.constant 1 : index
    %c0_2 = arith.constant 0 : index
    %c0_3 = arith.constant 0 : index
    %2 = vector.load %arg1[%c1, %c0_2, %c0_3] : memref<2x64x8xf32, #tpu.memory_space<vmem>>, vector<1x64x8xf32>
    %3 = vector.shape_cast %2 : vector<1x64x8xf32> to vector<64x8xf32>
    %4 = tpu.concatenate %1, %3 in 0 : vector<64x8xf32>, vector<64x8xf32> -> vector<128x8xf32>
    %c0_4 = arith.constant 0 : index
    %c0_5 = arith.constant 0 : index
    %5 = vector.load %arg2[%c0_4, %c0_5] : memref<8x16xbf16, #tpu.memory_space<vmem>>, vector<8x16xbf16>
    %c0_6 = arith.constant 0 : index
    %c0_7 = arith.constant 0 : index
    %6 = vector.load %arg3[%c0_6, %c0_7] : memref<8x16xbf16, #tpu.memory_space<vmem>>, vector<8x16xbf16>
    %c0_8 = arith.constant 0 : index
    %c0_9 = arith.constant 0 : index
    %7 = vector.load %arg4[%c0_8, %c0_9] : memref<1x16xf32, #tpu.memory_space<vmem>>, vector<1x16xf32>
    %8 = arith.truncf %4 : vector<128x8xf32> to vector<128x8xbf16>
    %cst = arith.constant dense<0.000000e+00> : vector<128x16xf32>
    %9 = tpu.matmul %8, %5, %cst {dimension_numbers = #tpu.dot_dimension_numbers<[1], [0], [0], [1], [0, 0, 1, 1], [], []>} : vector<128x8xbf16>, vector<8x16xbf16>, vector<128x16xf32> -> vector<128x16xf32>
    %cst_10 = arith.constant dense<0.000000e+00> : vector<128x16xf32>
    %10 = tpu.matmul %8, %6, %cst_10 {dimension_numbers = #tpu.dot_dimension_numbers<[1], [0], [0], [1], [0, 0, 1, 1], [], []>} : vector<128x8xbf16>, vector<8x16xbf16>, vector<128x16xf32> -> vector<128x16xf32>
    %11 = arith.truncf %10 : vector<128x16xf32> to vector<128x16xbf16>
    %12 = vector.extract_strided_slice %4 {offsets = [0, 0], sizes = [64, 8], strides = [1, 1]} : vector<128x8xf32> to vector<64x8xf32>
    %13 = arith.mulf %12, %12 : vector<64x8xf32>
    %cst_11 = arith.constant dense<0.000000e+00> : vector<64xf32>
    %14 = vector.multi_reduction <add>, %13, %cst_11 [1] : vector<64x8xf32> to vector<64xf32>
    %15 = vector.shape_cast %14 : vector<64xf32> to vector<64x1xf32>
    %cst_12 = arith.constant dense<0.000000e+00> : vector<64x64xf32>
    %16 = tpu.matmul %12, %12, %cst_12 {dimension_numbers = #tpu.dot_dimension_numbers<[1], [1], [0], [0], [0, 0, 1, 0], [], []>} : vector<64x8xf32>, vector<64x8xf32>, vector<64x64xf32> -> vector<64x64xf32>
    %17 = tpu.transpose %15, [1, 0] : vector<64x1xf32> -> vector<1x64xf32>
    %cst_13 = arith.constant 2.000000e+00 : f32
    %18 = vector.broadcast %cst_13 : f32 to vector<64x64xf32>
    %19 = arith.mulf %18, %16 : vector<64x64xf32>
    %20 = vector.broadcast %17 : vector<1x64xf32> to vector<64x64xf32>
    %21 = arith.subf %20, %19 : vector<64x64xf32>
    %22 = tpu.iota {dimensions = array<i32: 1>} : vector<64x64xi32>
    %cst_14 = arith.constant dense<0x7F800000> : vector<64xf32>
    %23 = vector.multi_reduction <minimumf>, %21, %cst_14 [1] : vector<64x64xf32> to vector<64xf32>
    %24 = vector.shape_cast %23 : vector<64xf32> to vector<64x1xf32>
    %25 = vector.broadcast %24 : vector<64x1xf32> to vector<64x64xf32>
    %26 = arith.cmpf ole, %21, %25 : vector<64x64xf32>
    %c64_i32 = arith.constant 64 : i32
    %27 = vector.broadcast %c64_i32 : i32 to vector<64x64xi32>
    %28 = arith.select %26, %22, %27 : vector<64x64xi1>, vector<64x64xi32>
    %cst_15 = arith.constant dense<2147483647> : vector<64xi32>
    %29 = vector.multi_reduction <minsi>, %28, %cst_15 [1] : vector<64x64xi32> to vector<64xi32>
    %30 = vector.shape_cast %29 : vector<64xi32> to vector<64x1xi32>
    %31 = vector.broadcast %30 : vector<64x1xi32> to vector<64x64xi32>
    %32 = arith.cmpi eq, %22, %31 : vector<64x64xi32>
    %cst_16 = arith.constant 1.000000e+00 : f32
    %cst_17 = arith.constant 0.000000e+00 : f32
    %33 = vector.broadcast %cst_16 : f32 to vector<64x64xf32>
    %34 = vector.broadcast %cst_17 : f32 to vector<64x64xf32>
    %35 = arith.select %32, %33, %34 : vector<64x64xi1>, vector<64x64xf32>
    %cst_18 = arith.constant 1.000000e+30 : f32
    %36 = vector.broadcast %cst_18 : f32 to vector<64x64xf32>
    %37 = arith.select %32, %36, %21 : vector<64x64xi1>, vector<64x64xf32>
    %cst_19 = arith.constant dense<0x7F800000> : vector<64xf32>
    %38 = vector.multi_reduction <minimumf>, %37, %cst_19 [1] : vector<64x64xf32> to vector<64xf32>
    %39 = vector.shape_cast %38 : vector<64xf32> to vector<64x1xf32>
    %40 = vector.broadcast %39 : vector<64x1xf32> to vector<64x64xf32>
    %41 = arith.cmpf ole, %37, %40 : vector<64x64xf32>
    %c64_i32_20 = arith.constant 64 : i32
    %42 = vector.broadcast %c64_i32_20 : i32 to vector<64x64xi32>
    %43 = arith.select %41, %22, %42 : vector<64x64xi1>, vector<64x64xi32>
    %cst_21 = arith.constant dense<2147483647> : vector<64xi32>
    %44 = vector.multi_reduction <minsi>, %43, %cst_21 [1] : vector<64x64xi32> to vector<64xi32>
    %45 = vector.shape_cast %44 : vector<64xi32> to vector<64x1xi32>
    %46 = vector.broadcast %45 : vector<64x1xi32> to vector<64x64xi32>
    %47 = arith.cmpi eq, %22, %46 : vector<64x64xi32>
    %cst_22 = arith.constant 1.000000e+00 : f32
    %cst_23 = arith.constant 0.000000e+00 : f32
    %48 = vector.broadcast %cst_22 : f32 to vector<64x64xf32>
    %49 = vector.broadcast %cst_23 : f32 to vector<64x64xf32>
    %50 = arith.select %47, %48, %49 : vector<64x64xi1>, vector<64x64xf32>
    %cst_24 = arith.constant 1.000000e+30 : f32
    %51 = vector.broadcast %cst_24 : f32 to vector<64x64xf32>
    %52 = arith.select %47, %51, %37 : vector<64x64xi1>, vector<64x64xf32>
    %cst_25 = arith.constant dense<0x7F800000> : vector<64xf32>
    %53 = vector.multi_reduction <minimumf>, %52, %cst_25 [1] : vector<64x64xf32> to vector<64xf32>
    %54 = vector.shape_cast %53 : vector<64xf32> to vector<64x1xf32>
    %55 = vector.broadcast %54 : vector<64x1xf32> to vector<64x64xf32>
    %56 = arith.cmpf ole, %52, %55 : vector<64x64xf32>
    %c64_i32_26 = arith.constant 64 : i32
    %57 = vector.broadcast %c64_i32_26 : i32 to vector<64x64xi32>
    %58 = arith.select %56, %22, %57 : vector<64x64xi1>, vector<64x64xi32>
    %cst_27 = arith.constant dense<2147483647> : vector<64xi32>
    %59 = vector.multi_reduction <minsi>, %58, %cst_27 [1] : vector<64x64xi32> to vector<64xi32>
    %60 = vector.shape_cast %59 : vector<64xi32> to vector<64x1xi32>
    %61 = vector.broadcast %60 : vector<64x1xi32> to vector<64x64xi32>
    %62 = arith.cmpi eq, %22, %61 : vector<64x64xi32>
    %cst_28 = arith.constant 1.000000e+00 : f32
    %cst_29 = arith.constant 0.000000e+00 : f32
    %63 = vector.broadcast %cst_28 : f32 to vector<64x64xf32>
    %64 = vector.broadcast %cst_29 : f32 to vector<64x64xf32>
    %65 = arith.select %62, %63, %64 : vector<64x64xi1>, vector<64x64xf32>
    %cst_30 = arith.constant 1.000000e+30 : f32
    %66 = vector.broadcast %cst_30 : f32 to vector<64x64xf32>
    %67 = arith.select %62, %66, %52 : vector<64x64xi1>, vector<64x64xf32>
    %cst_31 = arith.constant dense<0x7F800000> : vector<64xf32>
    %68 = vector.multi_reduction <minimumf>, %67, %cst_31 [1] : vector<64x64xf32> to vector<64xf32>
    %69 = vector.shape_cast %68 : vector<64xf32> to vector<64x1xf32>
    %70 = vector.broadcast %69 : vector<64x1xf32> to vector<64x64xf32>
    %71 = arith.cmpf ole, %67, %70 : vector<64x64xf32>
    %c64_i32_32 = arith.constant 64 : i32
    %72 = vector.broadcast %c64_i32_32 : i32 to vector<64x64xi32>
    %73 = arith.select %71, %22, %72 : vector<64x64xi1>, vector<64x64xi32>
    %cst_33 = arith.constant dense<2147483647> : vector<64xi32>
    %74 = vector.multi_reduction <minsi>, %73, %cst_33 [1] : vector<64x64xi32> to vector<64xi32>
    %75 = vector.shape_cast %74 : vector<64xi32> to vector<64x1xi32>
    %76 = vector.broadcast %75 : vector<64x1xi32> to vector<64x64xi32>
    %77 = arith.cmpi eq, %22, %76 : vector<64x64xi32>
    %cst_34 = arith.constant 1.000000e+00 : f32
    %cst_35 = arith.constant 0.000000e+00 : f32
    %78 = vector.broadcast %cst_34 : f32 to vector<64x64xf32>
    %79 = vector.broadcast %cst_35 : f32 to vector<64x64xf32>
    %80 = arith.select %77, %78, %79 : vector<64x64xi1>, vector<64x64xf32>
    %81 = tpu.concatenate %35, %50, %65, %80 in 0 : vector<64x64xf32>, vector<64x64xf32>, vector<64x64xf32>, vector<64x64xf32> -> vector<256x64xf32>
    %82 = arith.truncf %81 : vector<256x64xf32> to vector<256x64xbf16>
    %83 = vector.extract_strided_slice %11 {offsets = [0, 0], sizes = [64, 16], strides = [1, 1]} : vector<128x16xbf16> to vector<64x16xbf16>
    %cst_36 = arith.constant dense<0.000000e+00> : vector<256x16xf32>
    %84 = tpu.matmul %82, %83, %cst_36 {dimension_numbers = #tpu.dot_dimension_numbers<[1], [0], [0], [1], [0, 0, 1, 1], [], []>} : vector<256x64xbf16>, vector<64x16xbf16>, vector<256x16xf32> -> vector<256x16xf32>
    %85 = vector.extract_strided_slice %84 {offsets = [0, 0], sizes = [64, 16], strides = [1, 1]} : vector<256x16xf32> to vector<64x16xf32>
    %86 = vector.extract_strided_slice %84 {offsets = [64, 0], sizes = [64, 16], strides = [1, 1]} : vector<256x16xf32> to vector<64x16xf32>
    %87 = arith.maximumf %85, %86 : vector<64x16xf32>
    %88 = vector.extract_strided_slice %84 {offsets = [128, 0], sizes = [64, 16], strides = [1, 1]} : vector<256x16xf32> to vector<64x16xf32>
    %89 = arith.maximumf %87, %88 : vector<64x16xf32>
    %90 = vector.extract_strided_slice %84 {offsets = [192, 0], sizes = [64, 16], strides = [1, 1]} : vector<256x16xf32> to vector<64x16xf32>
    %91 = arith.maximumf %89, %90 : vector<64x16xf32>
    %92 = vector.extract_strided_slice %4 {offsets = [64, 0], sizes = [64, 8], strides = [1, 1]} : vector<128x8xf32> to vector<64x8xf32>
    %93 = arith.mulf %92, %92 : vector<64x8xf32>
    %cst_37 = arith.constant dense<0.000000e+00> : vector<64xf32>
    %94 = vector.multi_reduction <add>, %93, %cst_37 [1] : vector<64x8xf32> to vector<64xf32>
    %95 = vector.shape_cast %94 : vector<64xf32> to vector<64x1xf32>
    %cst_38 = arith.constant dense<0.000000e+00> : vector<64x64xf32>
    %96 = tpu.matmul %92, %92, %cst_38 {dimension_numbers = #tpu.dot_dimension_numbers<[1], [1], [0], [0], [0, 0, 1, 0], [], []>} : vector<64x8xf32>, vector<64x8xf32>, vector<64x64xf32> -> vector<64x64xf32>
    %97 = tpu.transpose %95, [1, 0] : vector<64x1xf32> -> vector<1x64xf32>
    %cst_39 = arith.constant 2.000000e+00 : f32
    %98 = vector.broadcast %cst_39 : f32 to vector<64x64xf32>
    %99 = arith.mulf %98, %96 : vector<64x64xf32>
    %100 = vector.broadcast %97 : vector<1x64xf32> to vector<64x64xf32>
    %101 = arith.subf %100, %99 : vector<64x64xf32>
    %102 = tpu.iota {dimensions = array<i32: 1>} : vector<64x64xi32>
    %cst_40 = arith.constant dense<0x7F800000> : vector<64xf32>
    %103 = vector.multi_reduction <minimumf>, %101, %cst_40 [1] : vector<64x64xf32> to vector<64xf32>
    %104 = vector.shape_cast %103 : vector<64xf32> to vector<64x1xf32>
    %105 = vector.broadcast %104 : vector<64x1xf32> to vector<64x64xf32>
    %106 = arith.cmpf ole, %101, %105 : vector<64x64xf32>
    %c64_i32_41 = arith.constant 64 : i32
    %107 = vector.broadcast %c64_i32_41 : i32 to vector<64x64xi32>
    %108 = arith.select %106, %102, %107 : vector<64x64xi1>, vector<64x64xi32>
    %cst_42 = arith.constant dense<2147483647> : vector<64xi32>
    %109 = vector.multi_reduction <minsi>, %108, %cst_42 [1] : vector<64x64xi32> to vector<64xi32>
    %110 = vector.shape_cast %109 : vector<64xi32> to vector<64x1xi32>
    %111 = vector.broadcast %110 : vector<64x1xi32> to vector<64x64xi32>
    %112 = arith.cmpi eq, %102, %111 : vector<64x64xi32>
    %cst_43 = arith.constant 1.000000e+00 : f32
    %cst_44 = arith.constant 0.000000e+00 : f32
    %113 = vector.broadcast %cst_43 : f32 to vector<64x64xf32>
    %114 = vector.broadcast %cst_44 : f32 to vector<64x64xf32>
    %115 = arith.select %112, %113, %114 : vector<64x64xi1>, vector<64x64xf32>
    %cst_45 = arith.constant 1.000000e+30 : f32
    %116 = vector.broadcast %cst_45 : f32 to vector<64x64xf32>
    %117 = arith.select %112, %116, %101 : vector<64x64xi1>, vector<64x64xf32>
    %cst_46 = arith.constant dense<0x7F800000> : vector<64xf32>
    %118 = vector.multi_reduction <minimumf>, %117, %cst_46 [1] : vector<64x64xf32> to vector<64xf32>
    %119 = vector.shape_cast %118 : vector<64xf32> to vector<64x1xf32>
    %120 = vector.broadcast %119 : vector<64x1xf32> to vector<64x64xf32>
    %121 = arith.cmpf ole, %117, %120 : vector<64x64xf32>
    %c64_i32_47 = arith.constant 64 : i32
    %122 = vector.broadcast %c64_i32_47 : i32 to vector<64x64xi32>
    %123 = arith.select %121, %102, %122 : vector<64x64xi1>, vector<64x64xi32>
    %cst_48 = arith.constant dense<2147483647> : vector<64xi32>
    %124 = vector.multi_reduction <minsi>, %123, %cst_48 [1] : vector<64x64xi32> to vector<64xi32>
    %125 = vector.shape_cast %124 : vector<64xi32> to vector<64x1xi32>
    %126 = vector.broadcast %125 : vector<64x1xi32> to vector<64x64xi32>
    %127 = arith.cmpi eq, %102, %126 : vector<64x64xi32>
    %cst_49 = arith.constant 1.000000e+00 : f32
    %cst_50 = arith.constant 0.000000e+00 : f32
    %128 = vector.broadcast %cst_49 : f32 to vector<64x64xf32>
    %129 = vector.broadcast %cst_50 : f32 to vector<64x64xf32>
    %130 = arith.select %127, %128, %129 : vector<64x64xi1>, vector<64x64xf32>
    %cst_51 = arith.constant 1.000000e+30 : f32
    %131 = vector.broadcast %cst_51 : f32 to vector<64x64xf32>
    %132 = arith.select %127, %131, %117 : vector<64x64xi1>, vector<64x64xf32>
    %cst_52 = arith.constant dense<0x7F800000> : vector<64xf32>
    %133 = vector.multi_reduction <minimumf>, %132, %cst_52 [1] : vector<64x64xf32> to vector<64xf32>
    %134 = vector.shape_cast %133 : vector<64xf32> to vector<64x1xf32>
    %135 = vector.broadcast %134 : vector<64x1xf32> to vector<64x64xf32>
    %136 = arith.cmpf ole, %132, %135 : vector<64x64xf32>
    %c64_i32_53 = arith.constant 64 : i32
    %137 = vector.broadcast %c64_i32_53 : i32 to vector<64x64xi32>
    %138 = arith.select %136, %102, %137 : vector<64x64xi1>, vector<64x64xi32>
    %cst_54 = arith.constant dense<2147483647> : vector<64xi32>
    %139 = vector.multi_reduction <minsi>, %138, %cst_54 [1] : vector<64x64xi32> to vector<64xi32>
    %140 = vector.shape_cast %139 : vector<64xi32> to vector<64x1xi32>
    %141 = vector.broadcast %140 : vector<64x1xi32> to vector<64x64xi32>
    %142 = arith.cmpi eq, %102, %141 : vector<64x64xi32>
    %cst_55 = arith.constant 1.000000e+00 : f32
    %cst_56 = arith.constant 0.000000e+00 : f32
    %143 = vector.broadcast %cst_55 : f32 to vector<64x64xf32>
    %144 = vector.broadcast %cst_56 : f32 to vector<64x64xf32>
    %145 = arith.select %142, %143, %144 : vector<64x64xi1>, vector<64x64xf32>
    %cst_57 = arith.constant 1.000000e+30 : f32
    %146 = vector.broadcast %cst_57 : f32 to vector<64x64xf32>
    %147 = arith.select %142, %146, %132 : vector<64x64xi1>, vector<64x64xf32>
    %cst_58 = arith.constant dense<0x7F800000> : vector<64xf32>
    %148 = vector.multi_reduction <minimumf>, %147, %cst_58 [1] : vector<64x64xf32> to vector<64xf32>
    %149 = vector.shape_cast %148 : vector<64xf32> to vector<64x1xf32>
    %150 = vector.broadcast %149 : vector<64x1xf32> to vector<64x64xf32>
    %151 = arith.cmpf ole, %147, %150 : vector<64x64xf32>
    %c64_i32_59 = arith.constant 64 : i32
    %152 = vector.broadcast %c64_i32_59 : i32 to vector<64x64xi32>
    %153 = arith.select %151, %102, %152 : vector<64x64xi1>, vector<64x64xi32>
    %cst_60 = arith.constant dense<2147483647> : vector<64xi32>
    %154 = vector.multi_reduction <minsi>, %153, %cst_60 [1] : vector<64x64xi32> to vector<64xi32>
    %155 = vector.shape_cast %154 : vector<64xi32> to vector<64x1xi32>
    %156 = vector.broadcast %155 : vector<64x1xi32> to vector<64x64xi32>
    %157 = arith.cmpi eq, %102, %156 : vector<64x64xi32>
    %cst_61 = arith.constant 1.000000e+00 : f32
    %cst_62 = arith.constant 0.000000e+00 : f32
    %158 = vector.broadcast %cst_61 : f32 to vector<64x64xf32>
    %159 = vector.broadcast %cst_62 : f32 to vector<64x64xf32>
    %160 = arith.select %157, %158, %159 : vector<64x64xi1>, vector<64x64xf32>
    %161 = tpu.concatenate %115, %130, %145, %160 in 0 : vector<64x64xf32>, vector<64x64xf32>, vector<64x64xf32>, vector<64x64xf32> -> vector<256x64xf32>
    %162 = arith.truncf %161 : vector<256x64xf32> to vector<256x64xbf16>
    %163 = vector.extract_strided_slice %11 {offsets = [64, 0], sizes = [64, 16], strides = [1, 1]} : vector<128x16xbf16> to vector<64x16xbf16>
    %cst_63 = arith.constant dense<0.000000e+00> : vector<256x16xf32>
    %164 = tpu.matmul %162, %163, %cst_63 {dimension_numbers = #tpu.dot_dimension_numbers<[1], [0], [0], [1], [0, 0, 1, 1], [], []>} : vector<256x64xbf16>, vector<64x16xbf16>, vector<256x16xf32> -> vector<256x16xf32>
    %165 = vector.extract_strided_slice %164 {offsets = [0, 0], sizes = [64, 16], strides = [1, 1]} : vector<256x16xf32> to vector<64x16xf32>
    %166 = vector.extract_strided_slice %164 {offsets = [64, 0], sizes = [64, 16], strides = [1, 1]} : vector<256x16xf32> to vector<64x16xf32>
    %167 = arith.maximumf %165, %166 : vector<64x16xf32>
    %168 = vector.extract_strided_slice %164 {offsets = [128, 0], sizes = [64, 16], strides = [1, 1]} : vector<256x16xf32> to vector<64x16xf32>
    %169 = arith.maximumf %167, %168 : vector<64x16xf32>
    %170 = vector.extract_strided_slice %164 {offsets = [192, 0], sizes = [64, 16], strides = [1, 1]} : vector<256x16xf32> to vector<64x16xf32>
    %171 = arith.maximumf %169, %170 : vector<64x16xf32>
    %172 = tpu.concatenate %91, %171 in 0 : vector<64x16xf32>, vector<64x16xf32> -> vector<128x16xf32>
    %173 = vector.broadcast %7 : vector<1x16xf32> to vector<128x16xf32>
    %174 = arith.addf %9, %173 : vector<128x16xf32>
    %175 = arith.addf %174, %172 : vector<128x16xf32>
    %cst_64 = arith.constant 0.000000e+00 : f32
    %176 = vector.broadcast %cst_64 : f32 to vector<128x16xf32>
    %177 = arith.maximumf %175, %176 : vector<128x16xf32>
    %c0_65 = arith.constant 0 : index
    %c0_66 = arith.constant 0 : index
    %178 = vector.load %arg5[%c0_65, %c0_66] : memref<16x16xbf16, #tpu.memory_space<vmem>>, vector<16x16xbf16>
    %c0_67 = arith.constant 0 : index
    %c0_68 = arith.constant 0 : index
    %179 = vector.load %arg6[%c0_67, %c0_68] : memref<16x16xbf16, #tpu.memory_space<vmem>>, vector<16x16xbf16>
    %c0_69 = arith.constant 0 : index
    %c0_70 = arith.constant 0 : index
    %180 = vector.load %arg7[%c0_69, %c0_70] : memref<1x16xf32, #tpu.memory_space<vmem>>, vector<1x16xf32>
    %181 = arith.truncf %177 : vector<128x16xf32> to vector<128x16xbf16>
    %cst_71 = arith.constant dense<0.000000e+00> : vector<128x16xf32>
    %182 = tpu.matmul %181, %178, %cst_71 {dimension_numbers = #tpu.dot_dimension_numbers<[1], [0], [0], [1], [0, 0, 1, 1], [], []>} : vector<128x16xbf16>, vector<16x16xbf16>, vector<128x16xf32> -> vector<128x16xf32>
    %cst_72 = arith.constant dense<0.000000e+00> : vector<128x16xf32>
    %183 = tpu.matmul %181, %179, %cst_72 {dimension_numbers = #tpu.dot_dimension_numbers<[1], [0], [0], [1], [0, 0, 1, 1], [], []>} : vector<128x16xbf16>, vector<16x16xbf16>, vector<128x16xf32> -> vector<128x16xf32>
    %184 = arith.truncf %183 : vector<128x16xf32> to vector<128x16xbf16>
    %185 = vector.extract_strided_slice %177 {offsets = [0, 0], sizes = [64, 16], strides = [1, 1]} : vector<128x16xf32> to vector<64x16xf32>
    %186 = arith.mulf %185, %185 : vector<64x16xf32>
    %cst_73 = arith.constant dense<0.000000e+00> : vector<64xf32>
    %187 = vector.multi_reduction <add>, %186, %cst_73 [1] : vector<64x16xf32> to vector<64xf32>
    %188 = vector.shape_cast %187 : vector<64xf32> to vector<64x1xf32>
    %cst_74 = arith.constant dense<0.000000e+00> : vector<64x64xf32>
    %189 = tpu.matmul %185, %185, %cst_74 {dimension_numbers = #tpu.dot_dimension_numbers<[1], [1], [0], [0], [0, 0, 1, 0], [], []>} : vector<64x16xf32>, vector<64x16xf32>, vector<64x64xf32> -> vector<64x64xf32>
    %190 = tpu.transpose %188, [1, 0] : vector<64x1xf32> -> vector<1x64xf32>
    %cst_75 = arith.constant 2.000000e+00 : f32
    %191 = vector.broadcast %cst_75 : f32 to vector<64x64xf32>
    %192 = arith.mulf %191, %189 : vector<64x64xf32>
    %193 = vector.broadcast %190 : vector<1x64xf32> to vector<64x64xf32>
    %194 = arith.subf %193, %192 : vector<64x64xf32>
    %195 = tpu.iota {dimensions = array<i32: 1>} : vector<64x64xi32>
    %cst_76 = arith.constant dense<0x7F800000> : vector<64xf32>
    %196 = vector.multi_reduction <minimumf>, %194, %cst_76 [1] : vector<64x64xf32> to vector<64xf32>
    %197 = vector.shape_cast %196 : vector<64xf32> to vector<64x1xf32>
    %198 = vector.broadcast %197 : vector<64x1xf32> to vector<64x64xf32>
    %199 = arith.cmpf ole, %194, %198 : vector<64x64xf32>
    %c64_i32_77 = arith.constant 64 : i32
    %200 = vector.broadcast %c64_i32_77 : i32 to vector<64x64xi32>
    %201 = arith.select %199, %195, %200 : vector<64x64xi1>, vector<64x64xi32>
    %cst_78 = arith.constant dense<2147483647> : vector<64xi32>
    %202 = vector.multi_reduction <minsi>, %201, %cst_78 [1] : vector<64x64xi32> to vector<64xi32>
    %203 = vector.shape_cast %202 : vector<64xi32> to vector<64x1xi32>
    %204 = vector.broadcast %203 : vector<64x1xi32> to vector<64x64xi32>
    %205 = arith.cmpi eq, %195, %204 : vector<64x64xi32>
    %cst_79 = arith.constant 1.000000e+00 : f32
    %cst_80 = arith.constant 0.000000e+00 : f32
    %206 = vector.broadcast %cst_79 : f32 to vector<64x64xf32>
    %207 = vector.broadcast %cst_80 : f32 to vector<64x64xf32>
    %208 = arith.select %205, %206, %207 : vector<64x64xi1>, vector<64x64xf32>
    %cst_81 = arith.constant 1.000000e+30 : f32
    %209 = vector.broadcast %cst_81 : f32 to vector<64x64xf32>
    %210 = arith.select %205, %209, %194 : vector<64x64xi1>, vector<64x64xf32>
    %cst_82 = arith.constant dense<0x7F800000> : vector<64xf32>
    %211 = vector.multi_reduction <minimumf>, %210, %cst_82 [1] : vector<64x64xf32> to vector<64xf32>
    %212 = vector.shape_cast %211 : vector<64xf32> to vector<64x1xf32>
    %213 = vector.broadcast %212 : vector<64x1xf32> to vector<64x64xf32>
    %214 = arith.cmpf ole, %210, %213 : vector<64x64xf32>
    %c64_i32_83 = arith.constant 64 : i32
    %215 = vector.broadcast %c64_i32_83 : i32 to vector<64x64xi32>
    %216 = arith.select %214, %195, %215 : vector<64x64xi1>, vector<64x64xi32>
    %cst_84 = arith.constant dense<2147483647> : vector<64xi32>
    %217 = vector.multi_reduction <minsi>, %216, %cst_84 [1] : vector<64x64xi32> to vector<64xi32>
    %218 = vector.shape_cast %217 : vector<64xi32> to vector<64x1xi32>
    %219 = vector.broadcast %218 : vector<64x1xi32> to vector<64x64xi32>
    %220 = arith.cmpi eq, %195, %219 : vector<64x64xi32>
    %cst_85 = arith.constant 1.000000e+00 : f32
    %cst_86 = arith.constant 0.000000e+00 : f32
    %221 = vector.broadcast %cst_85 : f32 to vector<64x64xf32>
    %222 = vector.broadcast %cst_86 : f32 to vector<64x64xf32>
    %223 = arith.select %220, %221, %222 : vector<64x64xi1>, vector<64x64xf32>
    %cst_87 = arith.constant 1.000000e+30 : f32
    %224 = vector.broadcast %cst_87 : f32 to vector<64x64xf32>
    %225 = arith.select %220, %224, %210 : vector<64x64xi1>, vector<64x64xf32>
    %cst_88 = arith.constant dense<0x7F800000> : vector<64xf32>
    %226 = vector.multi_reduction <minimumf>, %225, %cst_88 [1] : vector<64x64xf32> to vector<64xf32>
    %227 = vector.shape_cast %226 : vector<64xf32> to vector<64x1xf32>
    %228 = vector.broadcast %227 : vector<64x1xf32> to vector<64x64xf32>
    %229 = arith.cmpf ole, %225, %228 : vector<64x64xf32>
    %c64_i32_89 = arith.constant 64 : i32
    %230 = vector.broadcast %c64_i32_89 : i32 to vector<64x64xi32>
    %231 = arith.select %229, %195, %230 : vector<64x64xi1>, vector<64x64xi32>
    %cst_90 = arith.constant dense<2147483647> : vector<64xi32>
    %232 = vector.multi_reduction <minsi>, %231, %cst_90 [1] : vector<64x64xi32> to vector<64xi32>
    %233 = vector.shape_cast %232 : vector<64xi32> to vector<64x1xi32>
    %234 = vector.broadcast %233 : vector<64x1xi32> to vector<64x64xi32>
    %235 = arith.cmpi eq, %195, %234 : vector<64x64xi32>
    %cst_91 = arith.constant 1.000000e+00 : f32
    %cst_92 = arith.constant 0.000000e+00 : f32
    %236 = vector.broadcast %cst_91 : f32 to vector<64x64xf32>
    %237 = vector.broadcast %cst_92 : f32 to vector<64x64xf32>
    %238 = arith.select %235, %236, %237 : vector<64x64xi1>, vector<64x64xf32>
    %cst_93 = arith.constant 1.000000e+30 : f32
    %239 = vector.broadcast %cst_93 : f32 to vector<64x64xf32>
    %240 = arith.select %235, %239, %225 : vector<64x64xi1>, vector<64x64xf32>
    %cst_94 = arith.constant dense<0x7F800000> : vector<64xf32>
    %241 = vector.multi_reduction <minimumf>, %240, %cst_94 [1] : vector<64x64xf32> to vector<64xf32>
    %242 = vector.shape_cast %241 : vector<64xf32> to vector<64x1xf32>
    %243 = vector.broadcast %242 : vector<64x1xf32> to vector<64x64xf32>
    %244 = arith.cmpf ole, %240, %243 : vector<64x64xf32>
    %c64_i32_95 = arith.constant 64 : i32
    %245 = vector.broadcast %c64_i32_95 : i32 to vector<64x64xi32>
    %246 = arith.select %244, %195, %245 : vector<64x64xi1>, vector<64x64xi32>
    %cst_96 = arith.constant dense<2147483647> : vector<64xi32>
    %247 = vector.multi_reduction <minsi>, %246, %cst_96 [1] : vector<64x64xi32> to vector<64xi32>
    %248 = vector.shape_cast %247 : vector<64xi32> to vector<64x1xi32>
    %249 = vector.broadcast %248 : vector<64x1xi32> to vector<64x64xi32>
    %250 = arith.cmpi eq, %195, %249 : vector<64x64xi32>
    %cst_97 = arith.constant 1.000000e+00 : f32
    %cst_98 = arith.constant 0.000000e+00 : f32
    %251 = vector.broadcast %cst_97 : f32 to vector<64x64xf32>
    %252 = vector.broadcast %cst_98 : f32 to vector<64x64xf32>
    %253 = arith.select %250, %251, %252 : vector<64x64xi1>, vector<64x64xf32>
    %254 = tpu.concatenate %208, %223, %238, %253 in 0 : vector<64x64xf32>, vector<64x64xf32>, vector<64x64xf32>, vector<64x64xf32> -> vector<256x64xf32>
    %255 = arith.truncf %254 : vector<256x64xf32> to vector<256x64xbf16>
    %256 = vector.extract_strided_slice %184 {offsets = [0, 0], sizes = [64, 16], strides = [1, 1]} : vector<128x16xbf16> to vector<64x16xbf16>
    %cst_99 = arith.constant dense<0.000000e+00> : vector<256x16xf32>
    %257 = tpu.matmul %255, %256, %cst_99 {dimension_numbers = #tpu.dot_dimension_numbers<[1], [0], [0], [1], [0, 0, 1, 1], [], []>} : vector<256x64xbf16>, vector<64x16xbf16>, vector<256x16xf32> -> vector<256x16xf32>
    %258 = vector.extract_strided_slice %257 {offsets = [0, 0], sizes = [64, 16], strides = [1, 1]} : vector<256x16xf32> to vector<64x16xf32>
    %259 = vector.extract_strided_slice %257 {offsets = [64, 0], sizes = [64, 16], strides = [1, 1]} : vector<256x16xf32> to vector<64x16xf32>
    %260 = arith.maximumf %258, %259 : vector<64x16xf32>
    %261 = vector.extract_strided_slice %257 {offsets = [128, 0], sizes = [64, 16], strides = [1, 1]} : vector<256x16xf32> to vector<64x16xf32>
    %262 = arith.maximumf %260, %261 : vector<64x16xf32>
    %263 = vector.extract_strided_slice %257 {offsets = [192, 0], sizes = [64, 16], strides = [1, 1]} : vector<256x16xf32> to vector<64x16xf32>
    %264 = arith.maximumf %262, %263 : vector<64x16xf32>
    %265 = vector.extract_strided_slice %177 {offsets = [64, 0], sizes = [64, 16], strides = [1, 1]} : vector<128x16xf32> to vector<64x16xf32>
    %266 = arith.mulf %265, %265 : vector<64x16xf32>
    %cst_100 = arith.constant dense<0.000000e+00> : vector<64xf32>
    %267 = vector.multi_reduction <add>, %266, %cst_100 [1] : vector<64x16xf32> to vector<64xf32>
    %268 = vector.shape_cast %267 : vector<64xf32> to vector<64x1xf32>
    %cst_101 = arith.constant dense<0.000000e+00> : vector<64x64xf32>
    %269 = tpu.matmul %265, %265, %cst_101 {dimension_numbers = #tpu.dot_dimension_numbers<[1], [1], [0], [0], [0, 0, 1, 0], [], []>} : vector<64x16xf32>, vector<64x16xf32>, vector<64x64xf32> -> vector<64x64xf32>
    %270 = tpu.transpose %268, [1, 0] : vector<64x1xf32> -> vector<1x64xf32>
    %cst_102 = arith.constant 2.000000e+00 : f32
    %271 = vector.broadcast %cst_102 : f32 to vector<64x64xf32>
    %272 = arith.mulf %271, %269 : vector<64x64xf32>
    %273 = vector.broadcast %270 : vector<1x64xf32> to vector<64x64xf32>
    %274 = arith.subf %273, %272 : vector<64x64xf32>
    %275 = tpu.iota {dimensions = array<i32: 1>} : vector<64x64xi32>
    %cst_103 = arith.constant dense<0x7F800000> : vector<64xf32>
    %276 = vector.multi_reduction <minimumf>, %274, %cst_103 [1] : vector<64x64xf32> to vector<64xf32>
    %277 = vector.shape_cast %276 : vector<64xf32> to vector<64x1xf32>
    %278 = vector.broadcast %277 : vector<64x1xf32> to vector<64x64xf32>
    %279 = arith.cmpf ole, %274, %278 : vector<64x64xf32>
    %c64_i32_104 = arith.constant 64 : i32
    %280 = vector.broadcast %c64_i32_104 : i32 to vector<64x64xi32>
    %281 = arith.select %279, %275, %280 : vector<64x64xi1>, vector<64x64xi32>
    %cst_105 = arith.constant dense<2147483647> : vector<64xi32>
    %282 = vector.multi_reduction <minsi>, %281, %cst_105 [1] : vector<64x64xi32> to vector<64xi32>
    %283 = vector.shape_cast %282 : vector<64xi32> to vector<64x1xi32>
    %284 = vector.broadcast %283 : vector<64x1xi32> to vector<64x64xi32>
    %285 = arith.cmpi eq, %275, %284 : vector<64x64xi32>
    %cst_106 = arith.constant 1.000000e+00 : f32
    %cst_107 = arith.constant 0.000000e+00 : f32
    %286 = vector.broadcast %cst_106 : f32 to vector<64x64xf32>
    %287 = vector.broadcast %cst_107 : f32 to vector<64x64xf32>
    %288 = arith.select %285, %286, %287 : vector<64x64xi1>, vector<64x64xf32>
    %cst_108 = arith.constant 1.000000e+30 : f32
    %289 = vector.broadcast %cst_108 : f32 to vector<64x64xf32>
    %290 = arith.select %285, %289, %274 : vector<64x64xi1>, vector<64x64xf32>
    %cst_109 = arith.constant dense<0x7F800000> : vector<64xf32>
    %291 = vector.multi_reduction <minimumf>, %290, %cst_109 [1] : vector<64x64xf32> to vector<64xf32>
    %292 = vector.shape_cast %291 : vector<64xf32> to vector<64x1xf32>
    %293 = vector.broadcast %292 : vector<64x1xf32> to vector<64x64xf32>
    %294 = arith.cmpf ole, %290, %293 : vector<64x64xf32>
    %c64_i32_110 = arith.constant 64 : i32
    %295 = vector.broadcast %c64_i32_110 : i32 to vector<64x64xi32>
    %296 = arith.select %294, %275, %295 : vector<64x64xi1>, vector<64x64xi32>
    %cst_111 = arith.constant dense<2147483647> : vector<64xi32>
    %297 = vector.multi_reduction <minsi>, %296, %cst_111 [1] : vector<64x64xi32> to vector<64xi32>
    %298 = vector.shape_cast %297 : vector<64xi32> to vector<64x1xi32>
    %299 = vector.broadcast %298 : vector<64x1xi32> to vector<64x64xi32>
    %300 = arith.cmpi eq, %275, %299 : vector<64x64xi32>
    %cst_112 = arith.constant 1.000000e+00 : f32
    %cst_113 = arith.constant 0.000000e+00 : f32
    %301 = vector.broadcast %cst_112 : f32 to vector<64x64xf32>
    %302 = vector.broadcast %cst_113 : f32 to vector<64x64xf32>
    %303 = arith.select %300, %301, %302 : vector<64x64xi1>, vector<64x64xf32>
    %cst_114 = arith.constant 1.000000e+30 : f32
    %304 = vector.broadcast %cst_114 : f32 to vector<64x64xf32>
    %305 = arith.select %300, %304, %290 : vector<64x64xi1>, vector<64x64xf32>
    %cst_115 = arith.constant dense<0x7F800000> : vector<64xf32>
    %306 = vector.multi_reduction <minimumf>, %305, %cst_115 [1] : vector<64x64xf32> to vector<64xf32>
    %307 = vector.shape_cast %306 : vector<64xf32> to vector<64x1xf32>
    %308 = vector.broadcast %307 : vector<64x1xf32> to vector<64x64xf32>
    %309 = arith.cmpf ole, %305, %308 : vector<64x64xf32>
    %c64_i32_116 = arith.constant 64 : i32
    %310 = vector.broadcast %c64_i32_116 : i32 to vector<64x64xi32>
    %311 = arith.select %309, %275, %310 : vector<64x64xi1>, vector<64x64xi32>
    %cst_117 = arith.constant dense<2147483647> : vector<64xi32>
    %312 = vector.multi_reduction <minsi>, %311, %cst_117 [1] : vector<64x64xi32> to vector<64xi32>
    %313 = vector.shape_cast %312 : vector<64xi32> to vector<64x1xi32>
    %314 = vector.broadcast %313 : vector<64x1xi32> to vector<64x64xi32>
    %315 = arith.cmpi eq, %275, %314 : vector<64x64xi32>
    %cst_118 = arith.constant 1.000000e+00 : f32
    %cst_119 = arith.constant 0.000000e+00 : f32
    %316 = vector.broadcast %cst_118 : f32 to vector<64x64xf32>
    %317 = vector.broadcast %cst_119 : f32 to vector<64x64xf32>
    %318 = arith.select %315, %316, %317 : vector<64x64xi1>, vector<64x64xf32>
    %cst_120 = arith.constant 1.000000e+30 : f32
    %319 = vector.broadcast %cst_120 : f32 to vector<64x64xf32>
    %320 = arith.select %315, %319, %305 : vector<64x64xi1>, vector<64x64xf32>
    %cst_121 = arith.constant dense<0x7F800000> : vector<64xf32>
    %321 = vector.multi_reduction <minimumf>, %320, %cst_121 [1] : vector<64x64xf32> to vector<64xf32>
    %322 = vector.shape_cast %321 : vector<64xf32> to vector<64x1xf32>
    %323 = vector.broadcast %322 : vector<64x1xf32> to vector<64x64xf32>
    %324 = arith.cmpf ole, %320, %323 : vector<64x64xf32>
    %c64_i32_122 = arith.constant 64 : i32
    %325 = vector.broadcast %c64_i32_122 : i32 to vector<64x64xi32>
    %326 = arith.select %324, %275, %325 : vector<64x64xi1>, vector<64x64xi32>
    %cst_123 = arith.constant dense<2147483647> : vector<64xi32>
    %327 = vector.multi_reduction <minsi>, %326, %cst_123 [1] : vector<64x64xi32> to vector<64xi32>
    %328 = vector.shape_cast %327 : vector<64xi32> to vector<64x1xi32>
    %329 = vector.broadcast %328 : vector<64x1xi32> to vector<64x64xi32>
    %330 = arith.cmpi eq, %275, %329 : vector<64x64xi32>
    %cst_124 = arith.constant 1.000000e+00 : f32
    %cst_125 = arith.constant 0.000000e+00 : f32
    %331 = vector.broadcast %cst_124 : f32 to vector<64x64xf32>
    %332 = vector.broadcast %cst_125 : f32 to vector<64x64xf32>
    %333 = arith.select %330, %331, %332 : vector<64x64xi1>, vector<64x64xf32>
    %334 = tpu.concatenate %288, %303, %318, %333 in 0 : vector<64x64xf32>, vector<64x64xf32>, vector<64x64xf32>, vector<64x64xf32> -> vector<256x64xf32>
    %335 = arith.truncf %334 : vector<256x64xf32> to vector<256x64xbf16>
    %336 = vector.extract_strided_slice %184 {offsets = [64, 0], sizes = [64, 16], strides = [1, 1]} : vector<128x16xbf16> to vector<64x16xbf16>
    %cst_126 = arith.constant dense<0.000000e+00> : vector<256x16xf32>
    %337 = tpu.matmul %335, %336, %cst_126 {dimension_numbers = #tpu.dot_dimension_numbers<[1], [0], [0], [1], [0, 0, 1, 1], [], []>} : vector<256x64xbf16>, vector<64x16xbf16>, vector<256x16xf32> -> vector<256x16xf32>
    %338 = vector.extract_strided_slice %337 {offsets = [0, 0], sizes = [64, 16], strides = [1, 1]} : vector<256x16xf32> to vector<64x16xf32>
    %339 = vector.extract_strided_slice %337 {offsets = [64, 0], sizes = [64, 16], strides = [1, 1]} : vector<256x16xf32> to vector<64x16xf32>
    %340 = arith.maximumf %338, %339 : vector<64x16xf32>
    %341 = vector.extract_strided_slice %337 {offsets = [128, 0], sizes = [64, 16], strides = [1, 1]} : vector<256x16xf32> to vector<64x16xf32>
    %342 = arith.maximumf %340, %341 : vector<64x16xf32>
    %343 = vector.extract_strided_slice %337 {offsets = [192, 0], sizes = [64, 16], strides = [1, 1]} : vector<256x16xf32> to vector<64x16xf32>
    %344 = arith.maximumf %342, %343 : vector<64x16xf32>
    %345 = tpu.concatenate %264, %344 in 0 : vector<64x16xf32>, vector<64x16xf32> -> vector<128x16xf32>
    %346 = vector.broadcast %180 : vector<1x16xf32> to vector<128x16xf32>
    %347 = arith.addf %182, %346 : vector<128x16xf32>
    %348 = arith.addf %347, %345 : vector<128x16xf32>
    %cst_127 = arith.constant 0.000000e+00 : f32
    %349 = vector.broadcast %cst_127 : f32 to vector<128x16xf32>
    %350 = arith.maximumf %348, %349 : vector<128x16xf32>
    %351 = arith.addf %350, %177 : vector<128x16xf32>
    %c0_128 = arith.constant 0 : index
    %c0_129 = arith.constant 0 : index
    %352 = vector.load %arg8[%c0_128, %c0_129] : memref<16x16xbf16, #tpu.memory_space<vmem>>, vector<16x16xbf16>
    %c0_130 = arith.constant 0 : index
    %c0_131 = arith.constant 0 : index
    %353 = vector.load %arg9[%c0_130, %c0_131] : memref<16x16xbf16, #tpu.memory_space<vmem>>, vector<16x16xbf16>
    %c0_132 = arith.constant 0 : index
    %c0_133 = arith.constant 0 : index
    %354 = vector.load %arg10[%c0_132, %c0_133] : memref<1x16xf32, #tpu.memory_space<vmem>>, vector<1x16xf32>
    %355 = arith.truncf %351 : vector<128x16xf32> to vector<128x16xbf16>
    %cst_134 = arith.constant dense<0.000000e+00> : vector<128x16xf32>
    %356 = tpu.matmul %355, %352, %cst_134 {dimension_numbers = #tpu.dot_dimension_numbers<[1], [0], [0], [1], [0, 0, 1, 1], [], []>} : vector<128x16xbf16>, vector<16x16xbf16>, vector<128x16xf32> -> vector<128x16xf32>
    %cst_135 = arith.constant dense<0.000000e+00> : vector<128x16xf32>
    %357 = tpu.matmul %355, %353, %cst_135 {dimension_numbers = #tpu.dot_dimension_numbers<[1], [0], [0], [1], [0, 0, 1, 1], [], []>} : vector<128x16xbf16>, vector<16x16xbf16>, vector<128x16xf32> -> vector<128x16xf32>
    %358 = arith.truncf %357 : vector<128x16xf32> to vector<128x16xbf16>
    %359 = vector.extract_strided_slice %351 {offsets = [0, 0], sizes = [64, 16], strides = [1, 1]} : vector<128x16xf32> to vector<64x16xf32>
    %360 = arith.mulf %359, %359 : vector<64x16xf32>
    %cst_136 = arith.constant dense<0.000000e+00> : vector<64xf32>
    %361 = vector.multi_reduction <add>, %360, %cst_136 [1] : vector<64x16xf32> to vector<64xf32>
    %362 = vector.shape_cast %361 : vector<64xf32> to vector<64x1xf32>
    %cst_137 = arith.constant dense<0.000000e+00> : vector<64x64xf32>
    %363 = tpu.matmul %359, %359, %cst_137 {dimension_numbers = #tpu.dot_dimension_numbers<[1], [1], [0], [0], [0, 0, 1, 0], [], []>} : vector<64x16xf32>, vector<64x16xf32>, vector<64x64xf32> -> vector<64x64xf32>
    %364 = tpu.transpose %362, [1, 0] : vector<64x1xf32> -> vector<1x64xf32>
    %cst_138 = arith.constant 2.000000e+00 : f32
    %365 = vector.broadcast %cst_138 : f32 to vector<64x64xf32>
    %366 = arith.mulf %365, %363 : vector<64x64xf32>
    %367 = vector.broadcast %364 : vector<1x64xf32> to vector<64x64xf32>
    %368 = arith.subf %367, %366 : vector<64x64xf32>
    %369 = tpu.iota {dimensions = array<i32: 1>} : vector<64x64xi32>
    %cst_139 = arith.constant dense<0x7F800000> : vector<64xf32>
    %370 = vector.multi_reduction <minimumf>, %368, %cst_139 [1] : vector<64x64xf32> to vector<64xf32>
    %371 = vector.shape_cast %370 : vector<64xf32> to vector<64x1xf32>
    %372 = vector.broadcast %371 : vector<64x1xf32> to vector<64x64xf32>
    %373 = arith.cmpf ole, %368, %372 : vector<64x64xf32>
    %c64_i32_140 = arith.constant 64 : i32
    %374 = vector.broadcast %c64_i32_140 : i32 to vector<64x64xi32>
    %375 = arith.select %373, %369, %374 : vector<64x64xi1>, vector<64x64xi32>
    %cst_141 = arith.constant dense<2147483647> : vector<64xi32>
    %376 = vector.multi_reduction <minsi>, %375, %cst_141 [1] : vector<64x64xi32> to vector<64xi32>
    %377 = vector.shape_cast %376 : vector<64xi32> to vector<64x1xi32>
    %378 = vector.broadcast %377 : vector<64x1xi32> to vector<64x64xi32>
    %379 = arith.cmpi eq, %369, %378 : vector<64x64xi32>
    %cst_142 = arith.constant 1.000000e+00 : f32
    %cst_143 = arith.constant 0.000000e+00 : f32
    %380 = vector.broadcast %cst_142 : f32 to vector<64x64xf32>
    %381 = vector.broadcast %cst_143 : f32 to vector<64x64xf32>
    %382 = arith.select %379, %380, %381 : vector<64x64xi1>, vector<64x64xf32>
    %cst_144 = arith.constant 1.000000e+30 : f32
    %383 = vector.broadcast %cst_144 : f32 to vector<64x64xf32>
    %384 = arith.select %379, %383, %368 : vector<64x64xi1>, vector<64x64xf32>
    %cst_145 = arith.constant dense<0x7F800000> : vector<64xf32>
    %385 = vector.multi_reduction <minimumf>, %384, %cst_145 [1] : vector<64x64xf32> to vector<64xf32>
    %386 = vector.shape_cast %385 : vector<64xf32> to vector<64x1xf32>
    %387 = vector.broadcast %386 : vector<64x1xf32> to vector<64x64xf32>
    %388 = arith.cmpf ole, %384, %387 : vector<64x64xf32>
    %c64_i32_146 = arith.constant 64 : i32
    %389 = vector.broadcast %c64_i32_146 : i32 to vector<64x64xi32>
    %390 = arith.select %388, %369, %389 : vector<64x64xi1>, vector<64x64xi32>
    %cst_147 = arith.constant dense<2147483647> : vector<64xi32>
    %391 = vector.multi_reduction <minsi>, %390, %cst_147 [1] : vector<64x64xi32> to vector<64xi32>
    %392 = vector.shape_cast %391 : vector<64xi32> to vector<64x1xi32>
    %393 = vector.broadcast %392 : vector<64x1xi32> to vector<64x64xi32>
    %394 = arith.cmpi eq, %369, %393 : vector<64x64xi32>
    %cst_148 = arith.constant 1.000000e+00 : f32
    %cst_149 = arith.constant 0.000000e+00 : f32
    %395 = vector.broadcast %cst_148 : f32 to vector<64x64xf32>
    %396 = vector.broadcast %cst_149 : f32 to vector<64x64xf32>
    %397 = arith.select %394, %395, %396 : vector<64x64xi1>, vector<64x64xf32>
    %cst_150 = arith.constant 1.000000e+30 : f32
    %398 = vector.broadcast %cst_150 : f32 to vector<64x64xf32>
    %399 = arith.select %394, %398, %384 : vector<64x64xi1>, vector<64x64xf32>
    %cst_151 = arith.constant dense<0x7F800000> : vector<64xf32>
    %400 = vector.multi_reduction <minimumf>, %399, %cst_151 [1] : vector<64x64xf32> to vector<64xf32>
    %401 = vector.shape_cast %400 : vector<64xf32> to vector<64x1xf32>
    %402 = vector.broadcast %401 : vector<64x1xf32> to vector<64x64xf32>
    %403 = arith.cmpf ole, %399, %402 : vector<64x64xf32>
    %c64_i32_152 = arith.constant 64 : i32
    %404 = vector.broadcast %c64_i32_152 : i32 to vector<64x64xi32>
    %405 = arith.select %403, %369, %404 : vector<64x64xi1>, vector<64x64xi32>
    %cst_153 = arith.constant dense<2147483647> : vector<64xi32>
    %406 = vector.multi_reduction <minsi>, %405, %cst_153 [1] : vector<64x64xi32> to vector<64xi32>
    %407 = vector.shape_cast %406 : vector<64xi32> to vector<64x1xi32>
    %408 = vector.broadcast %407 : vector<64x1xi32> to vector<64x64xi32>
    %409 = arith.cmpi eq, %369, %408 : vector<64x64xi32>
    %cst_154 = arith.constant 1.000000e+00 : f32
    %cst_155 = arith.constant 0.000000e+00 : f32
    %410 = vector.broadcast %cst_154 : f32 to vector<64x64xf32>
    %411 = vector.broadcast %cst_155 : f32 to vector<64x64xf32>
    %412 = arith.select %409, %410, %411 : vector<64x64xi1>, vector<64x64xf32>
    %cst_156 = arith.constant 1.000000e+30 : f32
    %413 = vector.broadcast %cst_156 : f32 to vector<64x64xf32>
    %414 = arith.select %409, %413, %399 : vector<64x64xi1>, vector<64x64xf32>
    %cst_157 = arith.constant dense<0x7F800000> : vector<64xf32>
    %415 = vector.multi_reduction <minimumf>, %414, %cst_157 [1] : vector<64x64xf32> to vector<64xf32>
    %416 = vector.shape_cast %415 : vector<64xf32> to vector<64x1xf32>
    %417 = vector.broadcast %416 : vector<64x1xf32> to vector<64x64xf32>
    %418 = arith.cmpf ole, %414, %417 : vector<64x64xf32>
    %c64_i32_158 = arith.constant 64 : i32
    %419 = vector.broadcast %c64_i32_158 : i32 to vector<64x64xi32>
    %420 = arith.select %418, %369, %419 : vector<64x64xi1>, vector<64x64xi32>
    %cst_159 = arith.constant dense<2147483647> : vector<64xi32>
    %421 = vector.multi_reduction <minsi>, %420, %cst_159 [1] : vector<64x64xi32> to vector<64xi32>
    %422 = vector.shape_cast %421 : vector<64xi32> to vector<64x1xi32>
    %423 = vector.broadcast %422 : vector<64x1xi32> to vector<64x64xi32>
    %424 = arith.cmpi eq, %369, %423 : vector<64x64xi32>
    %cst_160 = arith.constant 1.000000e+00 : f32
    %cst_161 = arith.constant 0.000000e+00 : f32
    %425 = vector.broadcast %cst_160 : f32 to vector<64x64xf32>
    %426 = vector.broadcast %cst_161 : f32 to vector<64x64xf32>
    %427 = arith.select %424, %425, %426 : vector<64x64xi1>, vector<64x64xf32>
    %428 = tpu.concatenate %382, %397, %412, %427 in 0 : vector<64x64xf32>, vector<64x64xf32>, vector<64x64xf32>, vector<64x64xf32> -> vector<256x64xf32>
    %429 = arith.truncf %428 : vector<256x64xf32> to vector<256x64xbf16>
    %430 = vector.extract_strided_slice %358 {offsets = [0, 0], sizes = [64, 16], strides = [1, 1]} : vector<128x16xbf16> to vector<64x16xbf16>
    %cst_162 = arith.constant dense<0.000000e+00> : vector<256x16xf32>
    %431 = tpu.matmul %429, %430, %cst_162 {dimension_numbers = #tpu.dot_dimension_numbers<[1], [0], [0], [1], [0, 0, 1, 1], [], []>} : vector<256x64xbf16>, vector<64x16xbf16>, vector<256x16xf32> -> vector<256x16xf32>
    %432 = vector.extract_strided_slice %431 {offsets = [0, 0], sizes = [64, 16], strides = [1, 1]} : vector<256x16xf32> to vector<64x16xf32>
    %433 = vector.extract_strided_slice %431 {offsets = [64, 0], sizes = [64, 16], strides = [1, 1]} : vector<256x16xf32> to vector<64x16xf32>
    %434 = arith.maximumf %432, %433 : vector<64x16xf32>
    %435 = vector.extract_strided_slice %431 {offsets = [128, 0], sizes = [64, 16], strides = [1, 1]} : vector<256x16xf32> to vector<64x16xf32>
    %436 = arith.maximumf %434, %435 : vector<64x16xf32>
    %437 = vector.extract_strided_slice %431 {offsets = [192, 0], sizes = [64, 16], strides = [1, 1]} : vector<256x16xf32> to vector<64x16xf32>
    %438 = arith.maximumf %436, %437 : vector<64x16xf32>
    %439 = vector.extract_strided_slice %351 {offsets = [64, 0], sizes = [64, 16], strides = [1, 1]} : vector<128x16xf32> to vector<64x16xf32>
    %440 = arith.mulf %439, %439 : vector<64x16xf32>
    %cst_163 = arith.constant dense<0.000000e+00> : vector<64xf32>
    %441 = vector.multi_reduction <add>, %440, %cst_163 [1] : vector<64x16xf32> to vector<64xf32>
    %442 = vector.shape_cast %441 : vector<64xf32> to vector<64x1xf32>
    %cst_164 = arith.constant dense<0.000000e+00> : vector<64x64xf32>
    %443 = tpu.matmul %439, %439, %cst_164 {dimension_numbers = #tpu.dot_dimension_numbers<[1], [1], [0], [0], [0, 0, 1, 0], [], []>} : vector<64x16xf32>, vector<64x16xf32>, vector<64x64xf32> -> vector<64x64xf32>
    %444 = tpu.transpose %442, [1, 0] : vector<64x1xf32> -> vector<1x64xf32>
    %cst_165 = arith.constant 2.000000e+00 : f32
    %445 = vector.broadcast %cst_165 : f32 to vector<64x64xf32>
    %446 = arith.mulf %445, %443 : vector<64x64xf32>
    %447 = vector.broadcast %444 : vector<1x64xf32> to vector<64x64xf32>
    %448 = arith.subf %447, %446 : vector<64x64xf32>
    %449 = tpu.iota {dimensions = array<i32: 1>} : vector<64x64xi32>
    %cst_166 = arith.constant dense<0x7F800000> : vector<64xf32>
    %450 = vector.multi_reduction <minimumf>, %448, %cst_166 [1] : vector<64x64xf32> to vector<64xf32>
    %451 = vector.shape_cast %450 : vector<64xf32> to vector<64x1xf32>
    %452 = vector.broadcast %451 : vector<64x1xf32> to vector<64x64xf32>
    %453 = arith.cmpf ole, %448, %452 : vector<64x64xf32>
    %c64_i32_167 = arith.constant 64 : i32
    %454 = vector.broadcast %c64_i32_167 : i32 to vector<64x64xi32>
    %455 = arith.select %453, %449, %454 : vector<64x64xi1>, vector<64x64xi32>
    %cst_168 = arith.constant dense<2147483647> : vector<64xi32>
    %456 = vector.multi_reduction <minsi>, %455, %cst_168 [1] : vector<64x64xi32> to vector<64xi32>
    %457 = vector.shape_cast %456 : vector<64xi32> to vector<64x1xi32>
    %458 = vector.broadcast %457 : vector<64x1xi32> to vector<64x64xi32>
    %459 = arith.cmpi eq, %449, %458 : vector<64x64xi32>
    %cst_169 = arith.constant 1.000000e+00 : f32
    %cst_170 = arith.constant 0.000000e+00 : f32
    %460 = vector.broadcast %cst_169 : f32 to vector<64x64xf32>
    %461 = vector.broadcast %cst_170 : f32 to vector<64x64xf32>
    %462 = arith.select %459, %460, %461 : vector<64x64xi1>, vector<64x64xf32>
    %cst_171 = arith.constant 1.000000e+30 : f32
    %463 = vector.broadcast %cst_171 : f32 to vector<64x64xf32>
    %464 = arith.select %459, %463, %448 : vector<64x64xi1>, vector<64x64xf32>
    %cst_172 = arith.constant dense<0x7F800000> : vector<64xf32>
    %465 = vector.multi_reduction <minimumf>, %464, %cst_172 [1] : vector<64x64xf32> to vector<64xf32>
    %466 = vector.shape_cast %465 : vector<64xf32> to vector<64x1xf32>
    %467 = vector.broadcast %466 : vector<64x1xf32> to vector<64x64xf32>
    %468 = arith.cmpf ole, %464, %467 : vector<64x64xf32>
    %c64_i32_173 = arith.constant 64 : i32
    %469 = vector.broadcast %c64_i32_173 : i32 to vector<64x64xi32>
    %470 = arith.select %468, %449, %469 : vector<64x64xi1>, vector<64x64xi32>
    %cst_174 = arith.constant dense<2147483647> : vector<64xi32>
    %471 = vector.multi_reduction <minsi>, %470, %cst_174 [1] : vector<64x64xi32> to vector<64xi32>
    %472 = vector.shape_cast %471 : vector<64xi32> to vector<64x1xi32>
    %473 = vector.broadcast %472 : vector<64x1xi32> to vector<64x64xi32>
    %474 = arith.cmpi eq, %449, %473 : vector<64x64xi32>
    %cst_175 = arith.constant 1.000000e+00 : f32
    %cst_176 = arith.constant 0.000000e+00 : f32
    %475 = vector.broadcast %cst_175 : f32 to vector<64x64xf32>
    %476 = vector.broadcast %cst_176 : f32 to vector<64x64xf32>
    %477 = arith.select %474, %475, %476 : vector<64x64xi1>, vector<64x64xf32>
    %cst_177 = arith.constant 1.000000e+30 : f32
    %478 = vector.broadcast %cst_177 : f32 to vector<64x64xf32>
    %479 = arith.select %474, %478, %464 : vector<64x64xi1>, vector<64x64xf32>
    %cst_178 = arith.constant dense<0x7F800000> : vector<64xf32>
    %480 = vector.multi_reduction <minimumf>, %479, %cst_178 [1] : vector<64x64xf32> to vector<64xf32>
    %481 = vector.shape_cast %480 : vector<64xf32> to vector<64x1xf32>
    %482 = vector.broadcast %481 : vector<64x1xf32> to vector<64x64xf32>
    %483 = arith.cmpf ole, %479, %482 : vector<64x64xf32>
    %c64_i32_179 = arith.constant 64 : i32
    %484 = vector.broadcast %c64_i32_179 : i32 to vector<64x64xi32>
    %485 = arith.select %483, %449, %484 : vector<64x64xi1>, vector<64x64xi32>
    %cst_180 = arith.constant dense<2147483647> : vector<64xi32>
    %486 = vector.multi_reduction <minsi>, %485, %cst_180 [1] : vector<64x64xi32> to vector<64xi32>
    %487 = vector.shape_cast %486 : vector<64xi32> to vector<64x1xi32>
    %488 = vector.broadcast %487 : vector<64x1xi32> to vector<64x64xi32>
    %489 = arith.cmpi eq, %449, %488 : vector<64x64xi32>
    %cst_181 = arith.constant 1.000000e+00 : f32
    %cst_182 = arith.constant 0.000000e+00 : f32
    %490 = vector.broadcast %cst_181 : f32 to vector<64x64xf32>
    %491 = vector.broadcast %cst_182 : f32 to vector<64x64xf32>
    %492 = arith.select %489, %490, %491 : vector<64x64xi1>, vector<64x64xf32>
    %cst_183 = arith.constant 1.000000e+30 : f32
    %493 = vector.broadcast %cst_183 : f32 to vector<64x64xf32>
    %494 = arith.select %489, %493, %479 : vector<64x64xi1>, vector<64x64xf32>
    %cst_184 = arith.constant dense<0x7F800000> : vector<64xf32>
    %495 = vector.multi_reduction <minimumf>, %494, %cst_184 [1] : vector<64x64xf32> to vector<64xf32>
    %496 = vector.shape_cast %495 : vector<64xf32> to vector<64x1xf32>
    %497 = vector.broadcast %496 : vector<64x1xf32> to vector<64x64xf32>
    %498 = arith.cmpf ole, %494, %497 : vector<64x64xf32>
    %c64_i32_185 = arith.constant 64 : i32
    %499 = vector.broadcast %c64_i32_185 : i32 to vector<64x64xi32>
    %500 = arith.select %498, %449, %499 : vector<64x64xi1>, vector<64x64xi32>
    %cst_186 = arith.constant dense<2147483647> : vector<64xi32>
    %501 = vector.multi_reduction <minsi>, %500, %cst_186 [1] : vector<64x64xi32> to vector<64xi32>
    %502 = vector.shape_cast %501 : vector<64xi32> to vector<64x1xi32>
    %503 = vector.broadcast %502 : vector<64x1xi32> to vector<64x64xi32>
    %504 = arith.cmpi eq, %449, %503 : vector<64x64xi32>
    %cst_187 = arith.constant 1.000000e+00 : f32
    %cst_188 = arith.constant 0.000000e+00 : f32
    %505 = vector.broadcast %cst_187 : f32 to vector<64x64xf32>
    %506 = vector.broadcast %cst_188 : f32 to vector<64x64xf32>
    %507 = arith.select %504, %505, %506 : vector<64x64xi1>, vector<64x64xf32>
    %508 = tpu.concatenate %462, %477, %492, %507 in 0 : vector<64x64xf32>, vector<64x64xf32>, vector<64x64xf32>, vector<64x64xf32> -> vector<256x64xf32>
    %509 = arith.truncf %508 : vector<256x64xf32> to vector<256x64xbf16>
    %510 = vector.extract_strided_slice %358 {offsets = [64, 0], sizes = [64, 16], strides = [1, 1]} : vector<128x16xbf16> to vector<64x16xbf16>
    %cst_189 = arith.constant dense<0.000000e+00> : vector<256x16xf32>
    %511 = tpu.matmul %509, %510, %cst_189 {dimension_numbers = #tpu.dot_dimension_numbers<[1], [0], [0], [1], [0, 0, 1, 1], [], []>} : vector<256x64xbf16>, vector<64x16xbf16>, vector<256x16xf32> -> vector<256x16xf32>
    %512 = vector.extract_strided_slice %511 {offsets = [0, 0], sizes = [64, 16], strides = [1, 1]} : vector<256x16xf32> to vector<64x16xf32>
    %513 = vector.extract_strided_slice %511 {offsets = [64, 0], sizes = [64, 16], strides = [1, 1]} : vector<256x16xf32> to vector<64x16xf32>
    %514 = arith.maximumf %512, %513 : vector<64x16xf32>
    %515 = vector.extract_strided_slice %511 {offsets = [128, 0], sizes = [64, 16], strides = [1, 1]} : vector<256x16xf32> to vector<64x16xf32>
    %516 = arith.maximumf %514, %515 : vector<64x16xf32>
    %517 = vector.extract_strided_slice %511 {offsets = [192, 0], sizes = [64, 16], strides = [1, 1]} : vector<256x16xf32> to vector<64x16xf32>
    %518 = arith.maximumf %516, %517 : vector<64x16xf32>
    %519 = tpu.concatenate %438, %518 in 0 : vector<64x16xf32>, vector<64x16xf32> -> vector<128x16xf32>
    %520 = vector.broadcast %354 : vector<1x16xf32> to vector<128x16xf32>
    %521 = arith.addf %356, %520 : vector<128x16xf32>
    %522 = arith.addf %521, %519 : vector<128x16xf32>
    %cst_190 = arith.constant 0.000000e+00 : f32
    %523 = vector.broadcast %cst_190 : f32 to vector<128x16xf32>
    %524 = arith.maximumf %522, %523 : vector<128x16xf32>
    %525 = arith.addf %524, %351 : vector<128x16xf32>
    %526 = arith.truncf %177 : vector<128x16xf32> to vector<128x16xbf16>
    %c0_191 = arith.constant 0 : index
    %c0_192 = arith.constant 0 : index
    %527 = vector.load %arg11[%c0_191, %c0_192] : memref<16x64xbf16, #tpu.memory_space<vmem>>, vector<16x64xbf16>
    %cst_193 = arith.constant dense<0.000000e+00> : vector<128x64xf32>
    %528 = tpu.matmul %526, %527, %cst_193 {dimension_numbers = #tpu.dot_dimension_numbers<[1], [0], [0], [1], [0, 0, 1, 1], [], []>} : vector<128x16xbf16>, vector<16x64xbf16>, vector<128x64xf32> -> vector<128x64xf32>
    %529 = arith.truncf %351 : vector<128x16xf32> to vector<128x16xbf16>
    %c0_194 = arith.constant 0 : index
    %c0_195 = arith.constant 0 : index
    %530 = vector.load %arg12[%c0_194, %c0_195] : memref<16x64xbf16, #tpu.memory_space<vmem>>, vector<16x64xbf16>
    %cst_196 = arith.constant dense<0.000000e+00> : vector<128x64xf32>
    %531 = tpu.matmul %529, %530, %cst_196 {dimension_numbers = #tpu.dot_dimension_numbers<[1], [0], [0], [1], [0, 0, 1, 1], [], []>} : vector<128x16xbf16>, vector<16x64xbf16>, vector<128x64xf32> -> vector<128x64xf32>
    %532 = arith.addf %528, %531 : vector<128x64xf32>
    %533 = arith.truncf %525 : vector<128x16xf32> to vector<128x16xbf16>
    %c0_197 = arith.constant 0 : index
    %c0_198 = arith.constant 0 : index
    %534 = vector.load %arg13[%c0_197, %c0_198] : memref<16x64xbf16, #tpu.memory_space<vmem>>, vector<16x64xbf16>
    %cst_199 = arith.constant dense<0.000000e+00> : vector<128x64xf32>
    %535 = tpu.matmul %533, %534, %cst_199 {dimension_numbers = #tpu.dot_dimension_numbers<[1], [0], [0], [1], [0, 0, 1, 1], [], []>} : vector<128x16xbf16>, vector<16x64xbf16>, vector<128x64xf32> -> vector<128x64xf32>
    %536 = arith.addf %532, %535 : vector<128x64xf32>
    %cst_200 = arith.constant 0.000000e+00 : f32
    %537 = vector.broadcast %cst_200 : f32 to vector<128x64xf32>
    %538 = arith.cmpf oge, %536, %537 : vector<128x64xf32>
    %cst_201 = arith.constant 2.000000e-01 : f32
    %539 = vector.broadcast %cst_201 : f32 to vector<128x64xf32>
    %540 = arith.mulf %539, %536 : vector<128x64xf32>
    %541 = arith.select %538, %536, %540 : vector<128x64xi1>, vector<128x64xf32>
    %542 = vector.extract_strided_slice %541 {offsets = [0, 0], sizes = [64, 64], strides = [1, 1]} : vector<128x64xf32> to vector<64x64xf32>
    %cst_202 = arith.constant dense<0xFF800000> : vector<64xf32>
    %543 = vector.multi_reduction <maximumf>, %542, %cst_202 [0] : vector<64x64xf32> to vector<64xf32>
    %544 = vector.shape_cast %543 : vector<64xf32> to vector<1x64xf32>
    %cst_203 = arith.constant dense<0.000000e+00> : vector<64xf32>
    %545 = vector.multi_reduction <add>, %542, %cst_203 [0] : vector<64x64xf32> to vector<64xf32>
    %546 = vector.shape_cast %545 : vector<64xf32> to vector<1x64xf32>
    %cst_204 = arith.constant 6.400000e+01 : f32
    %547 = vector.broadcast %cst_204 : f32 to vector<1x64xf32>
    %548 = arith.divf %546, %547 : vector<1x64xf32>
    %549 = vector.extract_strided_slice %541 {offsets = [64, 0], sizes = [64, 64], strides = [1, 1]} : vector<128x64xf32> to vector<64x64xf32>
    %cst_205 = arith.constant dense<0xFF800000> : vector<64xf32>
    %550 = vector.multi_reduction <maximumf>, %549, %cst_205 [0] : vector<64x64xf32> to vector<64xf32>
    %551 = vector.shape_cast %550 : vector<64xf32> to vector<1x64xf32>
    %cst_206 = arith.constant dense<0.000000e+00> : vector<64xf32>
    %552 = vector.multi_reduction <add>, %549, %cst_206 [0] : vector<64x64xf32> to vector<64xf32>
    %553 = vector.shape_cast %552 : vector<64xf32> to vector<1x64xf32>
    %cst_207 = arith.constant 6.400000e+01 : f32
    %554 = vector.broadcast %cst_207 : f32 to vector<1x64xf32>
    %555 = arith.divf %553, %554 : vector<1x64xf32>
    %556 = tpu.concatenate %544, %551 in 0 : vector<1x64xf32>, vector<1x64xf32> -> vector<2x64xf32>
    %557 = tpu.concatenate %548, %555 in 0 : vector<1x64xf32>, vector<1x64xf32> -> vector<2x64xf32>
    %558 = arith.truncf %556 : vector<2x64xf32> to vector<2x64xbf16>
    %c0_208 = arith.constant 0 : index
    %c0_209 = arith.constant 0 : index
    %559 = vector.load %arg14[%c0_208, %c0_209] : memref<64x512xbf16, #tpu.memory_space<vmem>>, vector<64x512xbf16>
    %cst_210 = arith.constant dense<0.000000e+00> : vector<2x512xf32>
    %560 = tpu.matmul %558, %559, %cst_210 {dimension_numbers = #tpu.dot_dimension_numbers<[1], [0], [0], [1], [0, 0, 1, 1], [], []>} : vector<2x64xbf16>, vector<64x512xbf16>, vector<2x512xf32> -> vector<2x512xf32>
    %561 = arith.truncf %557 : vector<2x64xf32> to vector<2x64xbf16>
    %c0_211 = arith.constant 0 : index
    %c0_212 = arith.constant 0 : index
    %562 = vector.load %arg15[%c0_211, %c0_212] : memref<64x512xbf16, #tpu.memory_space<vmem>>, vector<64x512xbf16>
    %cst_213 = arith.constant dense<0.000000e+00> : vector<2x512xf32>
    %563 = tpu.matmul %561, %562, %cst_213 {dimension_numbers = #tpu.dot_dimension_numbers<[1], [0], [0], [1], [0, 0, 1, 1], [], []>} : vector<2x64xbf16>, vector<64x512xbf16>, vector<2x512xf32> -> vector<2x512xf32>
    %564 = arith.addf %560, %563 : vector<2x512xf32>
    %c0_214 = arith.constant 0 : index
    %c0_215 = arith.constant 0 : index
    %565 = vector.load %arg16[%c0_214, %c0_215] : memref<1x512xf32, #tpu.memory_space<vmem>>, vector<1x512xf32>
    %566 = vector.broadcast %565 : vector<1x512xf32> to vector<2x512xf32>
    %567 = arith.addf %564, %566 : vector<2x512xf32>
    %cst_216 = arith.constant 0.000000e+00 : f32
    %568 = vector.broadcast %cst_216 : f32 to vector<2x512xf32>
    %569 = arith.cmpf oge, %567, %568 : vector<2x512xf32>
    %cst_217 = arith.constant 2.000000e-01 : f32
    %570 = vector.broadcast %cst_217 : f32 to vector<2x512xf32>
    %571 = arith.mulf %570, %567 : vector<2x512xf32>
    %572 = arith.select %569, %567, %571 : vector<2x512xi1>, vector<2x512xf32>
    %573 = arith.truncf %572 : vector<2x512xf32> to vector<2x512xbf16>
    %c0_218 = arith.constant 0 : index
    %c0_219 = arith.constant 0 : index
    %574 = vector.load %arg17[%c0_218, %c0_219] : memref<512x256xbf16, #tpu.memory_space<vmem>>, vector<512x256xbf16>
    %cst_220 = arith.constant dense<0.000000e+00> : vector<2x256xf32>
    %575 = tpu.matmul %573, %574, %cst_220 {dimension_numbers = #tpu.dot_dimension_numbers<[1], [0], [0], [1], [0, 0, 1, 1], [], []>} : vector<2x512xbf16>, vector<512x256xbf16>, vector<2x256xf32> -> vector<2x256xf32>
    %c0_221 = arith.constant 0 : index
    %c0_222 = arith.constant 0 : index
    %576 = vector.load %arg18[%c0_221, %c0_222] : memref<1x256xf32, #tpu.memory_space<vmem>>, vector<1x256xf32>
    %577 = vector.broadcast %576 : vector<1x256xf32> to vector<2x256xf32>
    %578 = arith.addf %575, %577 : vector<2x256xf32>
    %cst_223 = arith.constant 0.000000e+00 : f32
    %579 = vector.broadcast %cst_223 : f32 to vector<2x256xf32>
    %580 = arith.cmpf oge, %578, %579 : vector<2x256xf32>
    %cst_224 = arith.constant 2.000000e-01 : f32
    %581 = vector.broadcast %cst_224 : f32 to vector<2x256xf32>
    %582 = arith.mulf %581, %578 : vector<2x256xf32>
    %583 = arith.select %580, %578, %582 : vector<2x256xi1>, vector<2x256xf32>
    %584 = arith.truncf %583 : vector<2x256xf32> to vector<2x256xbf16>
    %c0_225 = arith.constant 0 : index
    %c0_226 = arith.constant 0 : index
    %585 = vector.load %arg19[%c0_225, %c0_226] : memref<256x128xbf16, #tpu.memory_space<vmem>>, vector<256x128xbf16>
    %cst_227 = arith.constant dense<0.000000e+00> : vector<2x128xf32>
    %586 = tpu.matmul %584, %585, %cst_227 {dimension_numbers = #tpu.dot_dimension_numbers<[1], [0], [0], [1], [0, 0, 1, 1], [], []>} : vector<2x256xbf16>, vector<256x128xbf16>, vector<2x128xf32> -> vector<2x128xf32>
    %c0_228 = arith.constant 0 : index
    %c0_229 = arith.constant 0 : index
    %587 = vector.load %arg20[%c0_228, %c0_229] : memref<1x128xf32, #tpu.memory_space<vmem>>, vector<1x128xf32>
    %588 = vector.broadcast %587 : vector<1x128xf32> to vector<2x128xf32>
    %589 = arith.addf %586, %588 : vector<2x128xf32>
    %c0_230 = arith.constant 0 : index
    %c0_231 = arith.constant 0 : index
    %c0_232 = arith.constant 0 : index
    %590 = vector.load %arg21[%c0_230, %c0_231, %c0_232] : memref<1x2x128xf32, #tpu.memory_space<vmem>>, vector<1x2x128xf32>
    %591 = vector.shape_cast %590 : vector<1x2x128xf32> to vector<2x128xf32>
    %592 = vector.shape_cast %589 : vector<2x128xf32> to vector<1x2x128xf32>
    tpu.vector_store %arg21[%c0_230, %c0_231, %c0_232], %592 {strides = array<i32>} : memref<1x2x128xf32, #tpu.memory_space<vmem>>, vector<1x2x128xf32>,
    return
  }
  func.func @transform_0(%arg0: i32) -> (i32, i32, i32) {
    %c0_i32 = arith.constant 0 : i32
    %c0_i32_0 = arith.constant 0 : i32
    %c0_i32_1 = arith.constant 0 : i32
    return %arg0, %c0_i32, %c0_i32_0 : i32, i32, i32
  }
  func.func @transform_1(%arg0: i32) -> (i32, i32) {
    %c0_i32 = arith.constant 0 : i32
    %c0_i32_0 = arith.constant 0 : i32
    %c0_i32_1 = arith.constant 0 : i32
    return %c0_i32, %c0_i32_0 : i32, i32
  }
  func.func @transform_2(%arg0: i32) -> (i32, i32) {
    %c0_i32 = arith.constant 0 : i32
    %c0_i32_0 = arith.constant 0 : i32
    %c0_i32_1 = arith.constant 0 : i32
    return %c0_i32, %c0_i32_0 : i32, i32
  }
  func.func @transform_3(%arg0: i32) -> (i32, i32) {
    %c0_i32 = arith.constant 0 : i32
    %c0_i32_0 = arith.constant 0 : i32
    %c0_i32_1 = arith.constant 0 : i32
    return %c0_i32, %c0_i32_0 : i32, i32
  }
  func.func @transform_4(%arg0: i32) -> (i32, i32) {
    %c0_i32 = arith.constant 0 : i32
    %c0_i32_0 = arith.constant 0 : i32
    %c0_i32_1 = arith.constant 0 : i32
    return %c0_i32, %c0_i32_0 : i32, i32
  }
  func.func @transform_5(%arg0: i32) -> (i32, i32) {
    %c0_i32 = arith.constant 0 : i32
    %c0_i32_0 = arith.constant 0 : i32
    %c0_i32_1 = arith.constant 0 : i32
    return %c0_i32, %c0_i32_0 : i32, i32
  }
  func.func @transform_6(%arg0: i32) -> (i32, i32) {
    %c0_i32 = arith.constant 0 : i32
    %c0_i32_0 = arith.constant 0 : i32
    %c0_i32_1 = arith.constant 0 : i32
    return %c0_i32, %c0_i32_0 : i32, i32
  }
  func.func @transform_7(%arg0: i32) -> (i32, i32) {
    %c0_i32 = arith.constant 0 : i32
    %c0_i32_0 = arith.constant 0 : i32
    %c0_i32_1 = arith.constant 0 : i32
    return %c0_i32, %c0_i32_0 : i32, i32
  }
  func.func @transform_8(%arg0: i32) -> (i32, i32) {
    %c0_i32 = arith.constant 0 : i32
    %c0_i32_0 = arith.constant 0 : i32
    %c0_i32_1 = arith.constant 0 : i32
    return %c0_i32, %c0_i32_0 : i32, i32
  }
  func.func @transform_9(%arg0: i32) -> (i32, i32) {
    %c0_i32 = arith.constant 0 : i32
    %c0_i32_0 = arith.constant 0 : i32
    %c0_i32_1 = arith.constant 0 : i32
    return %c0_i32, %c0_i32_0 : i32, i32
  }
  func.func @transform_10(%arg0: i32) -> (i32, i32) {
    %c0_i32 = arith.constant 0 : i32
    %c0_i32_0 = arith.constant 0 : i32
    %c0_i32_1 = arith.constant 0 : i32
    return %c0_i32, %c0_i32_0 : i32, i32
  }
  func.func @transform_11(%arg0: i32) -> (i32, i32) {
    %c0_i32 = arith.constant 0 : i32
    %c0_i32_0 = arith.constant 0 : i32
    %c0_i32_1 = arith.constant 0 : i32
    return %c0_i32, %c0_i32_0 : i32, i32
  }
  func.func @transform_12(%arg0: i32) -> (i32, i32) {
    %c0_i32 = arith.constant 0 : i32
    %c0_i32_0 = arith.constant 0 : i32
    %c0_i32_1 = arith.constant 0 : i32
    return %c0_i32, %c0_i32_0 : i32, i32
  }
  func.func @transform_13(%arg0: i32) -> (i32, i32) {
    %c0_i32 = arith.constant 0 : i32
    %c0_i32_0 = arith.constant 0 : i32
    %c0_i32_1 = arith.constant 0 : i32
    return %c0_i32, %c0_i32_0 : i32, i32
  }
  func.func @transform_14(%arg0: i32) -> (i32, i32) {
    %c0_i32 = arith.constant 0 : i32
    %c0_i32_0 = arith.constant 0 : i32
    %c0_i32_1 = arith.constant 0 : i32
    return %c0_i32, %c0_i32_0 : i32, i32
  }
  func.func @transform_15(%arg0: i32) -> (i32, i32) {
    %c0_i32 = arith.constant 0 : i32
    %c0_i32_0 = arith.constant 0 : i32
    %c0_i32_1 = arith.constant 0 : i32
    return %c0_i32, %c0_i32_0 : i32, i32
  }
  func.func @transform_16(%arg0: i32) -> (i32, i32) {
    %c0_i32 = arith.constant 0 : i32
    %c0_i32_0 = arith.constant 0 : i32
    %c0_i32_1 = arith.constant 0 : i32
    return %c0_i32, %c0_i32_0 : i32, i32
  }
  func.func @transform_17(%arg0: i32) -> (i32, i32) {
    %c0_i32 = arith.constant 0 : i32
    %c0_i32_0 = arith.constant 0 : i32
    %c0_i32_1 = arith.constant 0 : i32
    return %c0_i32, %c0_i32_0 : i32, i32
  }
  func.func @transform_18(%arg0: i32) -> (i32, i32) {
    %c0_i32 = arith.constant 0 : i32
    %c0_i32_0 = arith.constant 0 : i32
    %c0_i32_1 = arith.constant 0 : i32
    return %c0_i32, %c0_i32_0 : i32, i32
  }
  func.func @transform_19(%arg0: i32) -> (i32, i32) {
    %c0_i32 = arith.constant 0 : i32
    %c0_i32_0 = arith.constant 0 : i32
    %c0_i32_1 = arith.constant 0 : i32
    return %c0_i32, %c0_i32_0 : i32, i32
  }
  func.func @transform_20(%arg0: i32) -> (i32, i32, i32) {
    %c0_i32 = arith.constant 0 : i32
    %c0_i32_0 = arith.constant 0 : i32
    %c0_i32_1 = arith.constant 0 : i32
    return %arg0, %c0_i32, %c0_i32_0 : i32, i32, i32
  }
}

</mosaic_0001>

<llo_original>
// kernel: deepgcn_forward.1
$region0: #{deepgcn_forward.1}
  #allocation0 [shape = 'u32[]', space=smem, size = 0x4, offset = 0x4, fixed_abs, tag = 'smem constant byte address 0x4 - core index']
  #allocation1 [shape = 'u32[144,128]{1,0:T(1,128)}', space=vmem, size = 0x12000, scoped, tag = 'internal scratch']
  %s0 = inlined_call_operand.vmem [shape: f32[2,64,8], index: 0, kind: input, shape index: {}]
  %s1 = inlined_call_operand.vmem [shape: bf16[8,16], index: 1, kind: input, shape index: {}]
  %s2 = inlined_call_operand.vmem [shape: bf16[8,16], index: 2, kind: input, shape index: {}]
  %s3 = inlined_call_operand.vmem [shape: f32[1,16], index: 3, kind: input, shape index: {}]
  %s4 = inlined_call_operand.vmem [shape: bf16[16,16], index: 4, kind: input, shape index: {}]
  %s5 = inlined_call_operand.vmem [shape: bf16[16,16], index: 5, kind: input, shape index: {}]
  %s6 = inlined_call_operand.vmem [shape: f32[1,16], index: 6, kind: input, shape index: {}]
  %s7 = inlined_call_operand.vmem [shape: bf16[16,16], index: 7, kind: input, shape index: {}]
  %s8 = inlined_call_operand.vmem [shape: bf16[16,16], index: 8, kind: input, shape index: {}]
  %s9 = inlined_call_operand.vmem [shape: f32[1,16], index: 9, kind: input, shape index: {}]
  %s10 = inlined_call_operand.vmem [shape: bf16[16,64], index: 10, kind: input, shape index: {}]
  %s11 = inlined_call_operand.vmem [shape: bf16[16,64], index: 11, kind: input, shape index: {}]
  %s12 = inlined_call_operand.vmem [shape: bf16[16,64], index: 12, kind: input, shape index: {}]
  %s13 = inlined_call_operand.vmem [shape: bf16[64,512], index: 13, kind: input, shape index: {}]
  %s14 = inlined_call_operand.vmem [shape: bf16[64,512], index: 14, kind: input, shape index: {}]
  %s15 = inlined_call_operand.vmem [shape: f32[1,512], index: 15, kind: input, shape index: {}]
  %s16 = inlined_call_operand.vmem [shape: bf16[512,256], index: 16, kind: input, shape index: {}]
  %s17 = inlined_call_operand.vmem [shape: f32[1,256], index: 17, kind: input, shape index: {}]
  %s18 = inlined_call_operand.vmem [shape: bf16[256,128], index: 18, kind: input, shape index: {}]
  %s19 = inlined_call_operand.vmem [shape: f32[1,128], index: 19, kind: input, shape index: {}]
  %s20 = inlined_call_operand.hbm [shape: f32[1,2,128], index: 20, kind: output, shape index: {}]
  %s21 = sld [smem:[#allocation0]]
  $region90: #{deepgcn_forward.1} parent=0
    _
  %s23 = ssub.s32 1, %s21
  %s24 = scalar_select 0, %s23, %s21
  $region1: #{deepgcn_forward.1} parent=0
    #allocation2 [shape = 'u8[1024]{0}', space=vmem, size = 0x400, scoped, tag = 'output window, operand 0, single buffered']
    #allocation3 [shape = 's32[1]{0}', space=sflag, size = 0x4, scoped, tag = 'scoped memory for deepgcn_forward.1']
    %25 = vsyncpa [#allocation3], 0
    // Predicated region
    $region2: #{deepgcn_forward.1} parent=1 // pred_check
      _
    $region3: #{deepgcn_forward.1} parent=1 // pred_check_branch
      %27 = sbr.rel (0) target = $region5
    $region4: #{deepgcn_forward.1} parent=1 // pred_region
      _
    $region5: #{deepgcn_forward.1} parent=1 // pred_fallthru
      _
    // Predicated region
    $region6: #{deepgcn_forward.1} parent=1 // pred_check
      _
    $region7: #{deepgcn_forward.1} parent=1 // pred_check_branch
      %29 = sbr.rel (0) target = $region9
    $region8: #{deepgcn_forward.1} parent=1 // pred_region
      _
    $region9: #{deepgcn_forward.1} parent=1 // pred_fallthru
      _
    // Predicated region
    $region10: #{deepgcn_forward.1} parent=1 // pred_check
      _
    $region11: #{deepgcn_forward.1} parent=1 // pred_check_branch
      %31 = sbr.rel (0) target = $region13
    $region12: #{deepgcn_forward.1} parent=1 // pred_region
      _
    $region13: #{deepgcn_forward.1} parent=1 // pred_fallthru
      _
    // Predicated region
    $region14: #{deepgcn_forward.1} parent=1 // pred_check
      _
    $region15: #{deepgcn_forward.1} parent=1 // pred_check_branch
      %33 = sbr.rel (0) target = $region17
    $region16: #{deepgcn_forward.1} parent=1 // pred_region
      _
    $region17: #{deepgcn_forward.1} parent=1 // pred_fallthru
      _
    // Predicated region
    $region18: #{deepgcn_forward.1} parent=1 // pred_check
      _
    $region19: #{deepgcn_forward.1} parent=1 // pred_check_branch
      %35 = sbr.rel (0) target = $region21
    $region20: #{deepgcn_forward.1} parent=1 // pred_region
      _
    $region21: #{deepgcn_forward.1} parent=1 // pred_fallthru
      _
    // Predicated region
    $region22: #{deepgcn_forward.1} parent=1 // pred_check
      _
    $region23: #{deepgcn_forward.1} parent=1 // pred_check_branch
      %37 = sbr.rel (0) target = $region25
    $region24: #{deepgcn_forward.1} parent=1 // pred_region
      _
    $region25: #{deepgcn_forward.1} parent=1 // pred_fallthru
      _
    // Predicated region
    $region26: #{deepgcn_forward.1} parent=1 // pred_check
      _
    $region27: #{deepgcn_forward.1} parent=1 // pred_check_branch
      %39 = sbr.rel (0) target = $region29
    $region28: #{deepgcn_forward.1} parent=1 // pred_region
      _
    $region29: #{deepgcn_forward.1} parent=1 // pred_fallthru
      _
    // Predicated region
    $region30: #{deepgcn_forward.1} parent=1 // pred_check
      _
    $region31: #{deepgcn_forward.1} parent=1 // pred_check_branch
      %41 = sbr.rel (0) target = $region33
    $region32: #{deepgcn_forward.1} parent=1 // pred_region
      _
    $region33: #{deepgcn_forward.1} parent=1 // pred_fallthru
      _
    // Predicated region
    $region34: #{deepgcn_forward.1} parent=1 // pred_check
      _
    $region35: #{deepgcn_forward.1} parent=1 // pred_check_branch
      %43 = sbr.rel (0) target = $region37
    $region36: #{deepgcn_forward.1} parent=1 // pred_region
      _
    $region37: #{deepgcn_forward.1} parent=1 // pred_fallthru
      _
    // Predicated region
    $region38: #{deepgcn_forward.1} parent=1 // pred_check
      _
    $region39: #{deepgcn_forward.1} parent=1 // pred_check_branch
      %45 = sbr.rel (0) target = $region41
    $region40: #{deepgcn_forward.1} parent=1 // pred_region
      _
    $region41: #{deepgcn_forward.1} parent=1 // pred_fallthru
      _
    // Predicated region
    $region42: #{deepgcn_forward.1} parent=1 // pred_check
      _
    $region43: #{deepgcn_forward.1} parent=1 // pred_check_branch
      %47 = sbr.rel (0) target = $region45
    $region44: #{deepgcn_forward.1} parent=1 // pred_region
      _
    $region45: #{deepgcn_forward.1} parent=1 // pred_fallthru
      _
    // Predicated region
    $region46: #{deepgcn_forward.1} parent=1 // pred_check
      _
    $region47: #{deepgcn_forward.1} parent=1 // pred_check_branch
      %49 = sbr.rel (0) target = $region49
    $region48: #{deepgcn_forward.1} parent=1 // pred_region
      _
    $region49: #{deepgcn_forward.1} parent=1 // pred_fallthru
      _
    // Predicated region
    $region50: #{deepgcn_forward.1} parent=1 // pred_check
      _
    $region51: #{deepgcn_forward.1} parent=1 // pred_check_branch
      %51 = sbr.rel (0) target = $region53
    $region52: #{deepgcn_forward.1} parent=1 // pred_region
      _
    $region53: #{deepgcn_forward.1} parent=1 // pred_fallthru
      _
    // Predicated region
    $region54: #{deepgcn_forward.1} parent=1 // pred_check
      _
    $region55: #{deepgcn_forward.1} parent=1 // pred_check_branch
      %53 = sbr.rel (0) target = $region57
    $region56: #{deepgcn_forward.1} parent=1 // pred_region
      _
    $region57: #{deepgcn_forward.1} parent=1 // pred_fallthru
      _
    // Predicated region
    $region58: #{deepgcn_forward.1} parent=1 // pred_check
      _
    $region59: #{deepgcn_forward.1} parent=1 // pred_check_branch
      %55 = sbr.rel (0) target = $region61
    $region60: #{deepgcn_forward.1} parent=1 // pred_region
      _
    $region61: #{deepgcn_forward.1} parent=1 // pred_fallthru
      _
    // Predicated region
    $region62: #{deepgcn_forward.1} parent=1 // pred_check
      _
    $region63: #{deepgcn_forward.1} parent=1 // pred_check_branch
      %57 = sbr.rel (0) target = $region65
    $region64: #{deepgcn_forward.1} parent=1 // pred_region
      _
    $region65: #{deepgcn_forward.1} parent=1 // pred_fallthru
      _
    // Predicated region
    $region66: #{deepgcn_forward.1} parent=1 // pred_check
      _
    $region67: #{deepgcn_forward.1} parent=1 // pred_check_branch
      %59 = sbr.rel (0) target = $region69
    $region68: #{deepgcn_forward.1} parent=1 // pred_region
      _
    $region69: #{deepgcn_forward.1} parent=1 // pred_fallthru
      _
    // Predicated region
    $region70: #{deepgcn_forward.1} parent=1 // pred_check
      _
    $region71: #{deepgcn_forward.1} parent=1 // pred_check_branch
      %61 = sbr.rel (0) target = $region73
    $region72: #{deepgcn_forward.1} parent=1 // pred_region
      _
    $region73: #{deepgcn_forward.1} parent=1 // pred_fallthru
      _
    // Predicated region
    $region74: #{deepgcn_forward.1} parent=1 // pred_check
      _
    $region75: #{deepgcn_forward.1} parent=1 // pred_check_branch
      %63 = sbr.rel (0) target = $region77
    $region76: #{deepgcn_forward.1} parent=1 // pred_region
      _
    $region77: #{deepgcn_forward.1} parent=1 // pred_fallthru
      _
    // Predicated region
    $region78: #{deepgcn_forward.1} parent=1 // pred_check
      _
    $region79: #{deepgcn_forward.1} parent=1 // pred_check_branch
      %65 = sbr.rel (0) target = $region81
    $region80: #{deepgcn_forward.1} parent=1 // pred_region
      _
    $region81: #{deepgcn_forward.1} parent=1 // pred_fallthru
      _
    %v67 = vld [vmem:[%s0] sm:$0xff]
    %v68 = vld [vmem:[%s0 + $0x8] sm:$0xff]
    %v69 = vld [vmem:[%s0 + $0x10] sm:$0xff]
    %v70 = vld [vmem:[%s0 + $0x18] sm:$0xff]
    %v71 = vld [vmem:[%s0 + $0x20] sm:$0xff]
    %v72 = vld [vmem:[%s0 + $0x28] sm:$0xff]
    %v73 = vld [vmem:[%s0 + $0x30] sm:$0xff]
    %v74 = vld [vmem:[%s0 + $0x38] sm:$0xff]
    %s75 = scalar_lea.vmem %s0, 64
    %v76 = vld [vmem:[%s75] sm:$0xff]
    %v77 = vld [vmem:[%s75 + $0x8] sm:$0xff]
    %v78 = vld [vmem:[%s75 + $0x10] sm:$0xff]
    %v79 = vld [vmem:[%s75 + $0x18] sm:$0xff]
    %v80 = vld [vmem:[%s75 + $0x20] sm:$0xff]
    %v81 = vld [vmem:[%s75 + $0x28] sm:$0xff]
    %v82 = vld [vmem:[%s75 + $0x30] sm:$0xff]
    %v83 = vld [vmem:[%s75 + $0x38] sm:$0xff]
    %v84 = vld [vmem:[%s1] sm:$0xf]
    %v85 = vld [vmem:[%s2] sm:$0xf]
    %v86 = vld [vmem:[%s3] sm:$0x1]
    %v87 = vpack.c.bf16 %v68, %v67
    %v88 = vpack.c.bf16 %v70, %v69
    %v89 = vpack.c.bf16 %v72, %v71
    %v90 = vpack.c.bf16 %v74, %v73
    %v91 = vpack.c.bf16 %v77, %v76
    %v92 = vpack.c.bf16 %v79, %v78
    %v93 = vpack.c.bf16 %v81, %v80
    %v94 = vpack.c.bf16 %v83, %v82
    %vm95 = vcmask 64512
    %v97 = vsel %vm95, %v87, 0
    %v100 = vsel %vm95, %v88, 0
    %v103 = vsel %vm95, %v89, 0
    %v106 = vsel %vm95, %v90, 0
    %v109 = vsel %vm95, %v91, 0
    %v112 = vsel %vm95, %v92, 0
    %v115 = vsel %vm95, %v93, 0
    %v118 = vsel %vm95, %v94, 0
    %vm120 = vcmask 1043456
    %v122 = vsel %vm120, %v85, 0
    %124 = vmatprep.subr.bf16.mxu0 0
    %125 = vmatpush1.bf16.msra.mxu0 0
    %126 = vmatprep.subr.bf16.mxu0 0
    %127 = vmatpush1.bf16.msra.mxu0 0
    %128 = vmatprep.subr.bf16.mxu0 0
    %129 = vmatpush1.bf16.msra.mxu0 0
    %130 = vmatprep.subr.bf16.mxu0 0
    %131 = vmatpush1.bf16.msra.mxu0 0
    %132 = vmatprep.subr.bf16.mxu0 0
    %133 = vmatpush1.bf16.msra.mxu0 0
    %134 = vmatprep.subr.bf16.mxu0 0
    %135 = vmatpush1.bf16.msra.mxu0 0
    %136 = vmatprep.subr.bf16.mxu0 0
    %137 = vmatpush1.bf16.msra.mxu0 0
    %138 = vmatprep.subr.bf16.mxu0 0
    %139 = vmatpush1.bf16.msra.mxu0 %v122
    %140 = vmatprep.subr.bf16.mxu0 0
    %141 = vmatpush2.bf16.msra.mxu0 0
    %142 = vmatprep.subr.bf16.mxu0 0
    %143 = vmatpush2.bf16.msra.mxu0 0
    %144 = vmatprep.subr.bf16.mxu0 0
    %145 = vmatpush2.bf16.msra.mxu0 0
    %146 = vmatprep.subr.bf16.mxu0 0
    %147 = vmatpush2.bf16.msra.mxu0 0
    %148 = vmatprep.subr.bf16.mxu0 0
    %149 = vmatpush2.bf16.msra.mxu0 0
    %150 = vmatprep.subr.bf16.mxu0 0
    %151 = vmatpush2.bf16.msra.mxu0 0
    %152 = vmatprep.subr.bf16.mxu0 0
    %153 = vmatpush2.bf16.msra.mxu0 0
    %154 = vmatprep.subr.bf16.mxu0 0
    %155 = vmatpush2.bf16.msra.mxu0 0
    %156 = vmatprep.mubr.bf16.mxu0 0
    %157 = vmatmul.mubr.bf16.gmra.mxu0 %v97
    %v158 = vpop.f32.mrf.mxu0
    %v159 = vadd.f32 0.0, %v158
    %v160 = vpop.f32.mrf.mxu0
    %v161 = vpop.f32.mrf.mxu0
    %v162 = vadd.f32 0.0, %v161
    %v163 = vpop.f32.mrf.mxu0
    %164 = vmatprep.mubr.bf16.mxu0 0
    %165 = vmatmul.mubr.bf16.gmra.mxu0 %v100
    %v166 = vpop.f32.mrf.mxu0
    %v167 = vadd.f32 0.0, %v166
    %v168 = vpop.f32.mrf.mxu0
    %v169 = vpop.f32.mrf.mxu0
    %v170 = vadd.f32 0.0, %v169
    %v171 = vpop.f32.mrf.mxu0
    %172 = vmatprep.mubr.bf16.mxu0 0
    %173 = vmatmul.mubr.bf16.gmra.mxu0 %v103
    %v174 = vpop.f32.mrf.mxu0
    %v175 = vadd.f32 0.0, %v174
    %v176 = vpop.f32.mrf.mxu0
    %v177 = vpop.f32.mrf.mxu0
    %v178 = vadd.f32 0.0, %v177
    %v179 = vpop.f32.mrf.mxu0
    %180 = vmatprep.mubr.bf16.mxu0 0
    %181 = vmatmul.mubr.bf16.gmra.mxu0 %v106
    %v182 = vpop.f32.mrf.mxu0
    %v183 = vadd.f32 0.0, %v182
    %v184 = vpop.f32.mrf.mxu0
    %v185 = vpop.f32.mrf.mxu0
    %v186 = vadd.f32 0.0, %v185
    %v187 = vpop.f32.mrf.mxu0
    %188 = vmatprep.mubr.bf16.mxu0 0
    %189 = vmatmul.mubr.bf16.gmra.mxu0 %v109
    %v190 = vpop.f32.mrf.mxu0
    %v191 = vadd.f32 0.0, %v190
    %v192 = vpop.f32.mrf.mxu0
    %v193 = vpop.f32.mrf.mxu0
    %v194 = vadd.f32 0.0, %v193
    %v195 = vpop.f32.mrf.mxu0
    %196 = vmatprep.mubr.bf16.mxu0 0
    %197 = vmatmul.mubr.bf16.gmra.mxu0 %v112
    %v198 = vpop.f32.mrf.mxu0
    %v199 = vadd.f32 0.0, %v198
    %v200 = vpop.f32.mrf.mxu0
    %v201 = vpop.f32.mrf.mxu0
    %v202 = vadd.f32 0.0, %v201
    %v203 = vpop.f32.mrf.mxu0
    %204 = vmatprep.mubr.bf16.mxu0 0
    %205 = vmatmul.mubr.bf16.gmra.mxu0 %v115
    %v206 = vpop.f32.mrf.mxu0
    %v207 = vadd.f32 0.0, %v206
    %v208 = vpop.f32.mrf.mxu0
    %v209 = vpop.f32.mrf.mxu0
    %v210 = vadd.f32 0.0, %v209
    %v211 = vpop.f32.mrf.mxu0
    %212 = vmatprep.mubr.bf16.mxu0 0
    %213 = vmatmul.mubr.bf16.gmra.mxu0 %v118
    %v214 = vpop.f32.mrf.mxu0
    %v215 = vadd.f32 0.0, %v214
    %v216 = vpop.f32.mrf.mxu0
    %v217 = vpop.f32.mrf.mxu0
    %v218 = vadd.f32 0.0, %v217
    %v219 = vpop.f32.mrf.mxu0
    %220 = vdwg.mxu0
    %v221 = vpack.c.bf16 %v162, %v159
    %v222 = vpack.c.bf16 %v170, %v167
    %v223 = vpack.c.bf16 %v178, %v175
    %v224 = vpack.c.bf16 %v186, %v183
    %v225 = vpack.c.bf16 %v194, %v191
    %v226 = vpack.c.bf16 %v202, %v199
    %v227 = vpack.c.bf16 %v210, %v207
    %v228 = vpack.c.bf16 %v218, %v215
    %v229 = vmul.f32 %v67, %v67
    %v230 = vmul.f32 %v68, %v68
    %v231 = vmul.f32 %v69, %v69
    %v232 = vmul.f32 %v70, %v70
    %v233 = vmul.f32 %v71, %v71
    %v234 = vmul.f32 %v72, %v72
    %v235 = vmul.f32 %v73, %v73
    %v236 = vmul.f32 %v74, %v74
    %v237 = vsel %vm95, %v229, 0.0
    %238 = vadd.xlane.f32.xlu0 %v237
    %v239 = vpop.xlane.xlu0 %238
    %v240 = vsel %vm95, %v230, 0.0
    %241 = vadd.xlane.f32.xlu0 %v240
    %v242 = vpop.xlane.xlu0 %241
    %v243 = vsel %vm95, %v231, 0.0
    %244 = vadd.xlane.f32.xlu0 %v243
    %v245 = vpop.xlane.xlu0 %244
    %v246 = vsel %vm95, %v232, 0.0
    %247 = vadd.xlane.f32.xlu0 %v246
    %v248 = vpop.xlane.xlu0 %247
    %v249 = vsel %vm95, %v233, 0.0
    %250 = vadd.xlane.f32.xlu0 %v249
    %v251 = vpop.xlane.xlu0 %250
    %v252 = vsel %vm95, %v234, 0.0
    %253 = vadd.xlane.f32.xlu0 %v252
    %v254 = vpop.xlane.xlu0 %253
    %v255 = vsel %vm95, %v235, 0.0
    %256 = vadd.xlane.f32.xlu0 %v255
    %v257 = vpop.xlane.xlu0 %256
    %v258 = vsel %vm95, %v236, 0.0
    %259 = vadd.xlane.f32.xlu0 %v258
    %v260 = vpop.xlane.xlu0 %259
    %v262 = vsel %vm95, %v67, 0
    %v265 = vsel %vm95, %v68, 0
    %v268 = vsel %vm95, %v69, 0
    %v271 = vsel %vm95, %v70, 0
    %v274 = vsel %vm95, %v71, 0
    %v277 = vsel %vm95, %v72, 0
    %v280 = vsel %vm95, %v73, 0
    %v283 = vsel %vm95, %v74, 0
    %285 = vmatprep.subr.mxu0 0.0
    %286 = vmatpush1.xpose.msra.mxu0 0.0
    %287 = vmatprep.subr.mxu0 0.0
    %288 = vmatpush1.xpose.msra.mxu0 0.0
    %289 = vmatprep.subr.mxu0 0.0
    %290 = vmatpush1.xpose.msra.mxu0 0.0
    %291 = vmatprep.subr.mxu0 0.0
    %292 = vmatpush1.xpose.msra.mxu0 0.0
    %293 = vmatprep.subr.mxu0 0.0
    %294 = vmatpush1.xpose.msra.mxu0 0.0
    %295 = vmatprep.subr.mxu0 0.0
    %296 = vmatpush1.xpose.msra.mxu0 0.0
    %297 = vmatprep.subr.mxu0 0.0
    %298 = vmatpush1.xpose.msra.mxu0 0.0
    %299 = vmatprep.subr.mxu0 0.0
    %300 = vmatpush1.xpose.msra.mxu0 0.0
    %301 = vmatprep.subr.mxu0 0.0
    %302 = vmatpush1.xpose.msra.mxu0 %v283
    %303 = vmatprep.subr.mxu0 0.0
    %304 = vmatpush1.xpose.msra.mxu0 %v280
    %305 = vmatprep.subr.mxu0 0.0
    %306 = vmatpush1.xpose.msra.mxu0 %v277
    %307 = vmatprep.subr.mxu0 0.0
    %308 = vmatpush1.xpose.msra.mxu0 %v274
    %309 = vmatprep.subr.mxu0 0.0
    %310 = vmatpush1.xpose.msra.mxu0 %v271
    %311 = vmatprep.subr.mxu0 0.0
    %312 = vmatpush1.xpose.msra.mxu0 %v268
    %313 = vmatprep.subr.mxu0 0.0
    %314 = vmatpush1.xpose.msra.mxu0 %v265
    %315 = vmatprep.subr.mxu0 0.0
    %316 = vmatpush1.xpose.msra.mxu0 %v262
    %317 = vmatprep.subr.mxu0 0.0
    %318 = vmatpush2.xpose.msra.mxu0 0.0
    %319 = vmatprep.subr.mxu0 0.0
    %320 = vmatpush2.xpose.msra.mxu0 0.0
    %321 = vmatprep.subr.mxu0 0.0
    %322 = vmatpush2.xpose.msra.mxu0 0.0
    %323 = vmatprep.subr.mxu0 0.0
    %324 = vmatpush2.xpose.msra.mxu0 0.0
    %325 = vmatprep.subr.mxu0 0.0
    %326 = vmatpush2.xpose.msra.mxu0 0.0
    %327 = vmatprep.subr.mxu0 0.0
    %328 = vmatpush2.xpose.msra.mxu0 0.0
    %329 = vmatprep.subr.mxu0 0.0
    %330 = vmatpush2.xpose.msra.mxu0 0.0
    %331 = vmatprep.subr.mxu0 0.0
    %332 = vmatpush2.xpose.msra.mxu0 0.0
    %333 = vmatprep.subr.mxu0 0.0
    %334 = vmatpush2.xpose.msra.mxu0 0.0
    %335 = vmatprep.subr.mxu0 0.0
    %336 = vmatpush2.xpose.msra.mxu0 0.0
    %337 = vmatprep.subr.mxu0 0.0
    %338 = vmatpush2.xpose.msra.mxu0 0.0
    %339 = vmatprep.subr.mxu0 0.0
    %340 = vmatpush2.xpose.msra.mxu0 0.0
    %341 = vmatprep.subr.mxu0 0.0
    %342 = vmatpush2.xpose.msra.mxu0 0.0
    %343 = vmatprep.subr.mxu0 0.0
    %344 = vmatpush2.xpose.msra.mxu0 0.0
    %345 = vmatprep.subr.mxu0 0.0
    %346 = vmatpush2.xpose.msra.mxu0 0.0
    %347 = vmatprep.subr.mxu0 0.0
    %348 = vmatpush2.xpose.msra.mxu0 0.0
    %349 = vmatprep.mubr.f32.mxu0 0.0
    %350 = vmatmul.mubr.f32.gmra.mxu0 %v262
    %v351 = vpop.f32.mrf.mxu0
    %v352 = vadd.f32 0.0, %v351
    %v353 = vpop.f32.mrf.mxu0
    %354 = vmatprep.mubr.f32.mxu0 0.0
    %355 = vmatmul.mubr.f32.gmra.mxu0 %v265
    %v356 = vpop.f32.mrf.mxu0
    %v357 = vadd.f32 0.0, %v356
    %v358 = vpop.f32.mrf.mxu0
    %359 = vmatprep.mubr.f32.mxu0 0.0
    %360 = vmatmul.mubr.f32.gmra.mxu0 %v268
    %v361 = vpop.f32.mrf.mxu0
    %v362 = vadd.f32 0.0, %v361
    %v363 = vpop.f32.mrf.mxu0
    %364 = vmatprep.mubr.f32.mxu0 0.0
    %365 = vmatmul.mubr.f32.gmra.mxu0 %v271
    %v366 = vpop.f32.mrf.mxu0
    %v367 = vadd.f32 0.0, %v366
    %v368 = vpop.f32.mrf.mxu0
    %369 = vmatprep.mubr.f32.mxu0 0.0
    %370 = vmatmul.mubr.f32.gmra.mxu0 %v274
    %v371 = vpop.f32.mrf.mxu0
    %v372 = vadd.f32 0.0, %v371
    %v373 = vpop.f32.mrf.mxu0
    %374 = vmatprep.mubr.f32.mxu0 0.0
    %375 = vmatmul.mubr.f32.gmra.mxu0 %v277
    %v376 = vpop.f32.mrf.mxu0
    %v377 = vadd.f32 0.0, %v376
    %v378 = vpop.f32.mrf.mxu0
    %379 = vmatprep.mubr.f32.mxu0 0.0
    %380 = vmatmul.mubr.f32.gmra.mxu0 %v280
    %v381 = vpop.f32.mrf.mxu0
    %v382 = vadd.f32 0.0, %v381
    %v383 = vpop.f32.mrf.mxu0
    %384 = vmatprep.mubr.f32.mxu0 0.0
    %385 = vmatmul.mubr.f32.gmra.mxu0 %v283
    %v386 = vpop.f32.mrf.mxu0
    %v387 = vadd.f32 0.0, %v386
    %v388 = vpop.f32.mrf.mxu0
    %389 = vdwg.mxu0
    %390 = vxpose.xlu0.b32.start [1/16] %v239, 128
    %391 = vxpose.xlu0.b32.cont [2/16] %v242, 128
    %392 = vxpose.xlu0.b32.cont [3/16] %v245, 128
    %393 = vxpose.xlu0.b32.cont [4/16] %v248, 128
    %394 = vxpose.xlu0.b32.cont [5/16] %v251, 128
    %395 = vxpose.xlu0.b32.cont [6/16] %v254, 128
    %396 = vxpose.xlu0.b32.cont [7/16] %v257, 128
    %397 = vxpose.xlu0.b32.cont [8/16] %v260, 128
    %398 = vxpose.xlu0.b32.cont [9/16] 0.0, 128
    %399 = vxpose.xlu0.b32.cont [10/16] 0.0, 128
    %400 = vxpose.xlu0.b32.cont [11/16] 0.0, 128
    %401 = vxpose.xlu0.b32.cont [12/16] 0.0, 128
    %402 = vxpose.xlu0.b32.cont [13/16] 0.0, 128
    %403 = vxpose.xlu0.b32.cont [14/16] 0.0, 128
    %404 = vxpose.xlu0.b32.cont [15/16] 0.0, 128
    %405 = vxpose.xlu0.b32.end [16/16] 0.0, 128
    %v406 = vpop.trf.xlu0
    %v407 = vpop.trf.xlu0
    %v408 = vpop.trf.xlu0
    %v409 = vpop.trf.xlu0
    %v410 = vpop.trf.xlu0
    %v411 = vpop.trf.xlu0
    %v412 = vpop.trf.xlu0
    %v413 = vpop.trf.xlu0
    %v414 = vpop.trf.xlu0
    %v415 = vpop.trf.xlu0
    %v416 = vpop.trf.xlu0
    %v417 = vpop.trf.xlu0
    %v418 = vpop.trf.xlu0
    %v419 = vpop.trf.xlu0
    %v420 = vpop.trf.xlu0
    %v421 = vpop.trf.xlu0
    %v422 = vmul.f32 %v352, 2.0
    %v423 = vmul.f32 %v357, 2.0
    %v424 = vmul.f32 %v362, 2.0
    %v425 = vmul.f32 %v367, 2.0
    %v426 = vmul.f32 %v372, 2.0
    %v427 = vmul.f32 %v377, 2.0
    %v428 = vmul.f32 %v382, 2.0
    %v429 = vmul.f32 %v387, 2.0
    %v430 = vlaneseq
    %v431 = vshrl.u32 %v430, 7
    %v432 = vsub.s32 0, %v431
    %v433 = vrot.slane %v406, %v432
    %v434 = vsub.f32 %v433, %v422
    %v435 = vsub.f32 %v433, %v423
    %v436 = vsub.f32 %v433, %v424
    %v437 = vsub.f32 %v433, %v425
    %v438 = vsub.f32 %v433, %v426
    %v439 = vsub.f32 %v433, %v427
    %v440 = vsub.f32 %v433, %v428
    %v441 = vsub.f32 %v433, %v429
    %v442 = vlaneseq
    %v443 = vand.u32 %v442, 127
    %vm444 = vcmask 523264
    %v445 = vsel %vm444, %v434, inf
    %446 = vmin.xlane.f32.xlu0 %v445
    %v447 = vpop.xlane.xlu0 %446
    %v448 = vsel %vm444, %v435, inf
    %449 = vmin.xlane.f32.xlu0 %v448
    %v450 = vpop.xlane.xlu0 %449
    %v451 = vsel %vm444, %v436, inf
    %452 = vmin.xlane.f32.xlu0 %v451
    %v453 = vpop.xlane.xlu0 %452
    %v454 = vsel %vm444, %v437, inf
    %455 = vmin.xlane.f32.xlu0 %v454
    %v456 = vpop.xlane.xlu0 %455
    %v457 = vsel %vm444, %v438, inf
    %458 = vmin.xlane.f32.xlu0 %v457
    %v459 = vpop.xlane.xlu0 %458
    %v460 = vsel %vm444, %v439, inf
    %461 = vmin.xlane.f32.xlu0 %v460
    %v462 = vpop.xlane.xlu0 %461
    %v463 = vsel %vm444, %v440, inf
    %464 = vmin.xlane.f32.xlu0 %v463
    %v465 = vpop.xlane.xlu0 %464
    %v466 = vsel %vm444, %v441, inf
    %467 = vmin.xlane.f32.xlu0 %v466
    %v468 = vpop.xlane.xlu0 %467
    %vm469 = vcmp.le.f32.partialorder %v434, %v447
    %vm470 = vcmp.le.f32.partialorder %v435, %v450
    %vm471 = vcmp.le.f32.partialorder %v436, %v453
    %vm472 = vcmp.le.f32.partialorder %v437, %v456
    %vm473 = vcmp.le.f32.partialorder %v438, %v459
    %vm474 = vcmp.le.f32.partialorder %v439, %v462
    %vm475 = vcmp.le.f32.partialorder %v440, %v465
    %vm476 = vcmp.le.f32.partialorder %v441, %v468
    %v477 = vsel %vm469, %v443, 64
    %v478 = vsel %vm470, %v443, 64
    %v479 = vsel %vm471, %v443, 64
    %v480 = vsel %vm472, %v443, 64
    %v481 = vsel %vm473, %v443, 64
    %v482 = vsel %vm474, %v443, 64
    %v483 = vsel %vm475, %v443, 64
    %v484 = vsel %vm476, %v443, 64
    %v485 = vsel %vm444, %v477, 2147483647
    %v486 = vand.u32 %v485, 65535
    %v487 = vshra.s32 %v485, 16
    %v488 = vcvt.s32.f32 %v486
    %v489 = vcvt.s32.f32 %v487
    %490 = vmin.xlane.f32.xlu0 %v489
    %v491 = vpop.xlane.xlu0 %490
    %vm492 = vcmp.eq.f32.partialorder %v489, %v491
    %v493 = vsel %vm492, %v488, inf
    %494 = vmin.xlane.f32.xlu0 %v493
    %v495 = vpop.xlane.xlu0 %494
    %v496 = vcvt.f32.s32 %v495
    %v497 = vcvt.f32.s32 %v491
    %v498 = vshll.u32 %v497, 16
    %v499 = vadd.s32 %v498, %v496
    %v500 = vsel %vm444, %v478, 2147483647
    %v501 = vand.u32 %v500, 65535
    %v502 = vshra.s32 %v500, 16
    %v503 = vcvt.s32.f32 %v501
    %v504 = vcvt.s32.f32 %v502
    %505 = vmin.xlane.f32.xlu0 %v504
    %v506 = vpop.xlane.xlu0 %505
    %vm507 = vcmp.eq.f32.partialorder %v504, %v506
    %v508 = vsel %vm507, %v503, inf
    %509 = vmin.xlane.f32.xlu0 %v508
    %v510 = vpop.xlane.xlu0 %509
    %v511 = vcvt.f32.s32 %v510
    %v512 = vcvt.f32.s32 %v506
    %v513 = vshll.u32 %v512, 16
    %v514 = vadd.s32 %v513, %v511
    %v515 = vsel %vm444, %v479, 2147483647
    %v516 = vand.u32 %v515, 65535
    %v517 = vshra.s32 %v515, 16
    %v518 = vcvt.s32.f32 %v516
    %v519 = vcvt.s32.f32 %v517
    %520 = vmin.xlane.f32.xlu0 %v519
    %v521 = vpop.xlane.xlu0 %520
    %vm522 = vcmp.eq.f32.partialorder %v519, %v521
    %v523 = vsel %vm522, %v518, inf
    %524 = vmin.xlane.f32.xlu0 %v523
    %v525 = vpop.xlane.xlu0 %524
    %v526 = vcvt.f32.s32 %v525
    %v527 = vcvt.f32.s32 %v521
    %v528 = vshll.u32 %v527, 16
    %v529 = vadd.s32 %v528, %v526
    %v530 = vsel %vm444, %v480, 2147483647
    %v531 = vand.u32 %v530, 65535
    %v532 = vshra.s32 %v530, 16
    %v533 = vcvt.s32.f32 %v531
    %v534 = vcvt.s32.f32 %v532
    %535 = vmin.xlane.f32.xlu0 %v534
    %v536 = vpop.xlane.xlu0 %535
    %vm537 = vcmp.eq.f32.partialorder %v534, %v536
    %v538 = vsel %vm537, %v533, inf
    %539 = vmin.xlane.f32.xlu0 %v538
    %v540 = vpop.xlane.xlu0 %539
    %v541 = vcvt.f32.s32 %v540
    %v542 = vcvt.f32.s32 %v536
    %v543 = vshll.u32 %v542, 16
    %v544 = vadd.s32 %v543, %v541
    %v545 = vsel %vm444, %v481, 2147483647
    %v546 = vand.u32 %v545, 65535
    %v547 = vshra.s32 %v545, 16
    %v548 = vcvt.s32.f32 %v546
    %v549 = vcvt.s32.f32 %v547
    %550 = vmin.xlane.f32.xlu0 %v549
    %v551 = vpop.xlane.xlu0 %550
    %vm552 = vcmp.eq.f32.partialorder %v549, %v551
    %v553 = vsel %vm552, %v548, inf
    %554 = vmin.xlane.f32.xlu0 %v553
    %v555 = vpop.xlane.xlu0 %554
    %v556 = vcvt.f32.s32 %v555
    %v557 = vcvt.f32.s32 %v551
    %v558 = vshll.u32 %v557, 16
    %v559 = vadd.s32 %v558, %v556
    %v560 = vsel %vm444, %v482, 2147483647
    %v561 = vand.u32 %v560, 65535
    %v562 = vshra.s32 %v560, 16
    %v563 = vcvt.s32.f32 %v561
    %v564 = vcvt.s32.f32 %v562
    %565 = vmin.xlane.f32.xlu0 %v564
    %v566 = vpop.xlane.xlu0 %565
    %vm567 = vcmp.eq.f32.partialorder %v564, %v566
    %v568 = vsel %vm567, %v563, inf
    %569 = vmin.xlane.f32.xlu0 %v568
    %v570 = vpop.xlane.xlu0 %569
    %v571 = vcvt.f32.s32 %v570
    %v572 = vcvt.f32.s32 %v566
    %v573 = vshll.u32 %v572, 16
    %v574 = vadd.s32 %v573, %v571
    %v575 = vsel %vm444, %v483, 2147483647
    %v576 = vand.u32 %v575, 65535
    %v577 = vshra.s32 %v575, 16
    %v578 = vcvt.s32.f32 %v576
    %v579 = vcvt.s32.f32 %v577
    %580 = vmin.xlane.f32.xlu0 %v579
    %v581 = vpop.xlane.xlu0 %580
    %vm582 = vcmp.eq.f32.partialorder %v579, %v581
    %v583 = vsel %vm582, %v578, inf
    %584 = vmin.xlane.f32.xlu0 %v583
    %v585 = vpop.xlane.xlu0 %584
    %v586 = vcvt.f32.s32 %v585
    %v587 = vcvt.f32.s32 %v581
    %v588 = vshll.u32 %v587, 16
    %v589 = vadd.s32 %v588, %v586
    %v590 = vsel %vm444, %v484, 2147483647
    %v591 = vand.u32 %v590, 65535
    %v592 = vshra.s32 %v590, 16
    %v593 = vcvt.s32.f32 %v591
    %v594 = vcvt.s32.f32 %v592
    %595 = vmin.xlane.f32.xlu0 %v594
    %v596 = vpop.xlane.xlu0 %595
    %vm597 = vcmp.eq.f32.partialorder %v594, %v596
    %v598 = vsel %vm597, %v593, inf
    %599 = vmin.xlane.f32.xlu0 %v598
    %v600 = vpop.xlane.xlu0 %599
    %v601 = vcvt.f32.s32 %v600
    %v602 = vcvt.f32.s32 %v596
    %v603 = vshll.u32 %v602, 16
    %v604 = vadd.s32 %v603, %v601
    %vm605 = vcmp.eq.s32.totalorder %v443, %v499
    %vm606 = vcmp.eq.s32.totalorder %v443, %v514
    %vm607 = vcmp.eq.s32.totalorder %v443, %v529
    %vm608 = vcmp.eq.s32.totalorder %v443, %v544
    %vm609 = vcmp.eq.s32.totalorder %v443, %v559
    %vm610 = vcmp.eq.s32.totalorder %v443, %v574
    %vm611 = vcmp.eq.s32.totalorder %v443, %v589
    %vm612 = vcmp.eq.s32.totalorder %v443, %v604
    %v613 = vsel %vm605, 1.0, 0.0
    %v614 = vsel %vm606, 1.0, 0.0
    %v615 = vsel %vm607, 1.0, 0.0
    %v616 = vsel %vm608, 1.0, 0.0
    %v617 = vsel %vm609, 1.0, 0.0
    %v618 = vsel %vm610, 1.0, 0.0
    %v619 = vsel %vm611, 1.0, 0.0
    %v620 = vsel %vm612, 1.0, 0.0
    %v621 = vsel %vm605, 1e+30, %v434
    %v622 = vsel %vm606, 1e+30, %v435
    %v623 = vsel %vm607, 1e+30, %v436
    %v624 = vsel %vm608, 1e+30, %v437
    %v625 = vsel %vm609, 1e+30, %v438
    %v626 = vsel %vm610, 1e+30, %v439
    %v627 = vsel %vm611, 1e+30, %v440
    %v628 = vsel %vm612, 1e+30, %v441
    %v629 = vsel %vm444, %v621, inf
    %630 = vmin.xlane.f32.xlu0 %v629
    %v631 = vpop.xlane.xlu0 %630
    %v632 = vsel %vm444, %v622, inf
    %633 = vmin.xlane.f32.xlu0 %v632
    %v634 = vpop.xlane.xlu0 %633
    %v635 = vsel %vm444, %v623, inf
    %636 = vmin.xlane.f32.xlu0 %v635
    %v637 = vpop.xlane.xlu0 %636
    %v638 = vsel %vm444, %v624, inf
    %639 = vmin.xlane.f32.xlu0 %v638
    %v640 = vpop.xlane.xlu0 %639
    %v641 = vsel %vm444, %v625, inf
    %642 = vmin.xlane.f32.xlu0 %v641
    %v643 = vpop.xlane.xlu0 %642
    %v644 = vsel %vm444, %v626, inf
    %645 = vmin.xlane.f32.xlu0 %v644
    %v646 = vpop.xlane.xlu0 %645
    %v647 = vsel %vm444, %v627, inf
    %648 = vmin.xlane.f32.xlu0 %v647
    %v649 = vpop.xlane.xlu0 %648
    %v650 = vsel %vm444, %v628, inf
    %651 = vmin.xlane.f32.xlu0 %v650
    %v652 = vpop.xlane.xlu0 %651
    %vm653 = vcmp.le.f32.partialorder %v621, %v631
    %vm654 = vcmp.le.f32.partialorder %v622, %v634
    %vm655 = vcmp.le.f32.partialorder %v623, %v637
    %vm656 = vcmp.le.f32.partialorder %v624, %v640
    %vm657 = vcmp.le.f32.partialorder %v625, %v643
    %vm658 = vcmp.le.f32.partialorder %v626, %v646
    %vm659 = vcmp.le.f32.partialorder %v627, %v649
    %vm660 = vcmp.le.f32.partialorder %v628, %v652
    %v661 = vsel %vm653, %v443, 64
    %v662 = vsel %vm654, %v443, 64
    %v663 = vsel %vm655, %v443, 64
    %v664 = vsel %vm656, %v443, 64
    %v665 = vsel %vm657, %v443, 64
    %v666 = vsel %vm658, %v443, 64
    %v667 = vsel %vm659, %v443, 64
    %v668 = vsel %vm660, %v443, 64
    %v669 = vsel %vm444, %v661, 2147483647
    %v670 = vand.u32 %v669, 65535
    %v671 = vshra.s32 %v669, 16
    %v672 = vcvt.s32.f32 %v670
    %v673 = vcvt.s32.f32 %v671
    %674 = vmin.xlane.f32.xlu0 %v673
    %v675 = vpop.xlane.xlu0 %674
    %vm676 = vcmp.eq.f32.partialorder %v673, %v675
    %v677 = vsel %vm676, %v672, inf
    %678 = vmin.xlane.f32.xlu0 %v677
    %v679 = vpop.xlane.xlu0 %678
    %v680 = vcvt.f32.s32 %v679
    %v681 = vcvt.f32.s32 %v675
    %v682 = vshll.u32 %v681, 16
    %v683 = vadd.s32 %v682, %v680
    %v684 = vsel %vm444, %v662, 2147483647
    %v685 = vand.u32 %v684, 65535
    %v686 = vshra.s32 %v684, 16
    %v687 = vcvt.s32.f32 %v685
    %v688 = vcvt.s32.f32 %v686
    %689 = vmin.xlane.f32.xlu0 %v688
    %v690 = vpop.xlane.xlu0 %689
    %vm691 = vcmp.eq.f32.partialorder %v688, %v690
    %v692 = vsel %vm691, %v687, inf
    %693 = vmin.xlane.f32.xlu0 %v692
    %v694 = vpop.xlane.xlu0 %693
    %v695 = vcvt.f32.s32 %v694
    %v696 = vcvt.f32.s32 %v690
    %v697 = vshll.u32 %v696, 16
    %v698 = vadd.s32 %v697, %v695
    %v699 = vsel %vm444, %v663, 2147483647
    %v700 = vand.u32 %v699, 65535
    %v701 = vshra.s32 %v699, 16
    %v702 = vcvt.s32.f32 %v700
    %v703 = vcvt.s32.f32 %v701
    %704 = vmin.xlane.f32.xlu0 %v703
    %v705 = vpop.xlane.xlu0 %704
    %vm706 = vcmp.eq.f32.partialorder %v703, %v705
    %v707 = vsel %vm706, %v702, inf
    %708 = vmin.xlane.f32.xlu0 %v707
    %v709 = vpop.xlane.xlu0 %708
    %v710 = vcvt.f32.s32 %v709
    %v711 = vcvt.f32.s32 %v705
    %v712 = vshll.u32 %v711, 16
    %v713 = vadd.s32 %v712, %v710
    %v714 = vsel %vm444, %v664, 2147483647
    %v715 = vand.u32 %v714, 65535
    %v716 = vshra.s32 %v714, 16
    %v717 = vcvt.s32.f32 %v715
    %v718 = vcvt.s32.f32 %v716
    %719 = vmin.xlane.f32.xlu0 %v718
    %v720 = vpop.xlane.xlu0 %719
    %vm721 = vcmp.eq.f32.partialorder %v718, %v720
    %v722 = vsel %vm721, %v717, inf
    %723 = vmin.xlane.f32.xlu0 %v722
    %v724 = vpop.xlane.xlu0 %723
    %v725 = vcvt.f32.s32 %v724
    %v726 = vcvt.f32.s32 %v720
    %v727 = vshll.u32 %v726, 16
    %v728 = vadd.s32 %v727, %v725
    %v729 = vsel %vm444, %v665, 2147483647
    %v730 = vand.u32 %v729, 65535
    %v731 = vshra.s32 %v729, 16
    %v732 = vcvt.s32.f32 %v730
    %v733 = vcvt.s32.f32 %v731
    %734 = vmin.xlane.f32.xlu0 %v733
    %v735 = vpop.xlane.xlu0 %734
    %vm736 = vcmp.eq.f32.partialorder %v733, %v735
    %v737 = vsel %vm736, %v732, inf
    %738 = vmin.xlane.f32.xlu0 %v737
    %v739 = vpop.xlane.xlu0 %738
    %v740 = vcvt.f32.s32 %v739
    %v741 = vcvt.f32.s32 %v735
    %v742 = vshll.u32 %v741, 16
    %v743 = vadd.s32 %v742, %v740
    %v744 = vsel %vm444, %v666, 2147483647
    %v745 = vand.u32 %v744, 65535
    %v746 = vshra.s32 %v744, 16
    %v747 = vcvt.s32.f32 %v745
    %v748 = vcvt.s32.f32 %v746
    %749 = vmin.xlane.f32.xlu0 %v748
    %v750 = vpop.xlane.xlu0 %749
    %vm751 = vcmp.eq.f32.partialorder %v748, %v750
    %v752 = vsel %vm751, %v747, inf
    %753 = vmin.xlane.f32.xlu0 %v752
    %v754 = vpop.xlane.xlu0 %753
    %v755 = vcvt.f32.s32 %v754
    %v756 = vcvt.f32.s32 %v750
    %v757 = vshll.u32 %v756, 16
    %v758 = vadd.s32 %v757, %v755
    %v759 = vsel %vm444, %v667, 2147483647
    %v760 = vand.u32 %v759, 65535
    %v761 = vshra.s32 %v759, 16
    %v762 = vcvt.s32.f32 %v760
    %v763 = vcvt.s32.f32 %v761
    %764 = vmin.xlane.f32.xlu0 %v763
    %v765 = vpop.xlane.xlu0 %764
    %vm766 = vcmp.eq.f32.partialorder %v763, %v765
    %v767 = vsel %vm766, %v762, inf
    %768 = vmin.xlane.f32.xlu0 %v767
    %v769 = vpop.xlane.xlu0 %768
    %v770 = vcvt.f32.s32 %v769
    %v771 = vcvt.f32.s32 %v765
    %v772 = vshll.u32 %v771, 16
    %v773 = vadd.s32 %v772, %v770
    %v774 = vsel %vm444, %v668, 2147483647
    %v775 = vand.u32 %v774, 65535
    %v776 = vshra.s32 %v774, 16
    %v777 = vcvt.s32.f32 %v775
    %v778 = vcvt.s32.f32 %v776
    %779 = vmin.xlane.f32.xlu0 %v778
    %v780 = vpop.xlane.xlu0 %779
    %vm781 = vcmp.eq.f32.partialorder %v778, %v780
    %v782 = vsel %vm781, %v777, inf
    %783 = vmin.xlane.f32.xlu0 %v782
    %v784 = vpop.xlane.xlu0 %783
    %v785 = vcvt.f32.s32 %v784
    %v786 = vcvt.f32.s32 %v780
    %v787 = vshll.u32 %v786, 16
    %v788 = vadd.s32 %v787, %v785
    %vm789 = vcmp.eq.s32.totalorder %v443, %v683
    %vm790 = vcmp.eq.s32.totalorder %v443, %v698
    %vm791 = vcmp.eq.s32.totalorder %v443, %v713
    %vm792 = vcmp.eq.s32.totalorder %v443, %v728
    %vm793 = vcmp.eq.s32.totalorder %v443, %v743
    %vm794 = vcmp.eq.s32.totalorder %v443, %v758
    %vm795 = vcmp.eq.s32.totalorder %v443, %v773
    %vm796 = vcmp.eq.s32.totalorder %v443, %v788
    %v797 = vsel %vm789, 1.0, 0.0
    %v798 = vsel %vm790, 1.0, 0.0
    %v799 = vsel %vm791, 1.0, 0.0
    %v800 = vsel %vm792, 1.0, 0.0
    %v801 = vsel %vm793, 1.0, 0.0
    %v802 = vsel %vm794, 1.0, 0.0
    %v803 = vsel %vm795, 1.0, 0.0
    %v804 = vsel %vm796, 1.0, 0.0
    %v805 = vsel %vm789, 1e+30, %v621
    %v806 = vsel %vm790, 1e+30, %v622
    %v807 = vsel %vm791, 1e+30, %v623
    %v808 = vsel %vm792, 1e+30, %v624
    %v809 = vsel %vm793, 1e+30, %v625
    %v810 = vsel %vm794, 1e+30, %v626
    %v811 = vsel %vm795, 1e+30, %v627
    %v812 = vsel %vm796, 1e+30, %v628
    %v813 = vsel %vm444, %v805, inf
    %814 = vmin.xlane.f32.xlu0 %v813
    %v815 = vpop.xlane.xlu0 %814
    %v816 = vsel %vm444, %v806, inf
    %817 = vmin.xlane.f32.xlu0 %v816
    %v818 = vpop.xlane.xlu0 %817
    %v819 = vsel %vm444, %v807, inf
    %820 = vmin.xlane.f32.xlu0 %v819
    %v821 = vpop.xlane.xlu0 %820
    %v822 = vsel %vm444, %v808, inf
    %823 = vmin.xlane.f32.xlu0 %v822
    %v824 = vpop.xlane.xlu0 %823
    %v825 = vsel %vm444, %v809, inf
    %826 = vmin.xlane.f32.xlu0 %v825
    %v827 = vpop.xlane.xlu0 %826
    %v828 = vsel %vm444, %v810, inf
    %829 = vmin.xlane.f32.xlu0 %v828
    %v830 = vpop.xlane.xlu0 %829
    %v831 = vsel %vm444, %v811, inf
    %832 = vmin.xlane.f32.xlu0 %v831
    %v833 = vpop.xlane.xlu0 %832
    %v834 = vsel %vm444, %v812, inf
    %835 = vmin.xlane.f32.xlu0 %v834
    %v836 = vpop.xlane.xlu0 %835
    %vm837 = vcmp.le.f32.partialorder %v805, %v815
    %vm838 = vcmp.le.f32.partialorder %v806, %v818
    %vm839 = vcmp.le.f32.partialorder %v807, %v821
    %vm840 = vcmp.le.f32.partialorder %v808, %v824
    %vm841 = vcmp.le.f32.partialorder %v809, %v827
    %vm842 = vcmp.le.f32.partialorder %v810, %v830
    %vm843 = vcmp.le.f32.partialorder %v811, %v833
    %vm844 = vcmp.le.f32.partialorder %v812, %v836
    %v845 = vsel %vm837, %v443, 64
    %v846 = vsel %vm838, %v443, 64
    %v847 = vsel %vm839, %v443, 64
    %v848 = vsel %vm840, %v443, 64
    %v849 = vsel %vm841, %v443, 64
    %v850 = vsel %vm842, %v443, 64
    %v851 = vsel %vm843, %v443, 64
    %v852 = vsel %vm844, %v443, 64
    %v853 = vsel %vm444, %v845, 2147483647
    %v854 = vand.u32 %v853, 65535
    %v855 = vshra.s32 %v853, 16
    %v856 = vcvt.s32.f32 %v854
    %v857 = vcvt.s32.f32 %v855
    %858 = vmin.xlane.f32.xlu0 %v857
    %v859 = vpop.xlane.xlu0 %858
    %vm860 = vcmp.eq.f32.partialorder %v857, %v859
    %v861 = vsel %vm860, %v856, inf
    %862 = vmin.xlane.f32.xlu0 %v861
    %v863 = vpop.xlane.xlu0 %862
    %v864 = vcvt.f32.s32 %v863
    %v865 = vcvt.f32.s32 %v859
    %v866 = vshll.u32 %v865, 16
    %v867 = vadd.s32 %v866, %v864
    %v868 = vsel %vm444, %v846, 2147483647
    %v869 = vand.u32 %v868, 65535
    %v870 = vshra.s32 %v868, 16
    %v871 = vcvt.s32.f32 %v869
    %v872 = vcvt.s32.f32 %v870
    %873 = vmin.xlane.f32.xlu0 %v872
    %v874 = vpop.xlane.xlu0 %873
    %vm875 = vcmp.eq.f32.partialorder %v872, %v874
    %v876 = vsel %vm875, %v871, inf
    %877 = vmin.xlane.f32.xlu0 %v876
    %v878 = vpop.xlane.xlu0 %877
    %v879 = vcvt.f32.s32 %v878
    %v880 = vcvt.f32.s32 %v874
    %v881 = vshll.u32 %v880, 16
    %v882 = vadd.s32 %v881, %v879
    %v883 = vsel %vm444, %v847, 2147483647
    %v884 = vand.u32 %v883, 65535
    %v885 = vshra.s32 %v883, 16
    %v886 = vcvt.s32.f32 %v884
    %v887 = vcvt.s32.f32 %v885
    %888 = vmin.xlane.f32.xlu0 %v887
    %v889 = vpop.xlane.xlu0 %888
    %vm890 = vcmp.eq.f32.partialorder %v887, %v889
    %v891 = vsel %vm890, %v886, inf
    %892 = vmin.xlane.f32.xlu0 %v891
    %v893 = vpop.xlane.xlu0 %892
    %v894 = vcvt.f32.s32 %v893
    %v895 = vcvt.f32.s32 %v889
    %v896 = vshll.u32 %v895, 16
    %v897 = vadd.s32 %v896, %v894
    %v898 = vsel %vm444, %v848, 2147483647
    %v899 = vand.u32 %v898, 65535
    %v900 = vshra.s32 %v898, 16
    %v901 = vcvt.s32.f32 %v899
    %v902 = vcvt.s32.f32 %v900
    %903 = vmin.xlane.f32.xlu0 %v902
    %v904 = vpop.xlane.xlu0 %903
    %vm905 = vcmp.eq.f32.partialorder %v902, %v904
    %v906 = vsel %vm905, %v901, inf
    %907 = vmin.xlane.f32.xlu0 %v906
    %v908 = vpop.xlane.xlu0 %907
    %v909 = vcvt.f32.s32 %v908
    %v910 = vcvt.f32.s32 %v904
    %v911 = vshll.u32 %v910, 16
    %v912 = vadd.s32 %v911, %v909
    %v913 = vsel %vm444, %v849, 2147483647
    %v914 = vand.u32 %v913, 65535
    %v915 = vshra.s32 %v913, 16
    %v916 = vcvt.s32.f32 %v914
    %v917 = vcvt.s32.f32 %v915
    %918 = vmin.xlane.f32.xlu0 %v917
    %v919 = vpop.xlane.xlu0 %918
    %vm920 = vcmp.eq.f32.partialorder %v917, %v919
    %v921 = vsel %vm920, %v916, inf
    %922 = vmin.xlane.f32.xlu0 %v921
    %v923 = vpop.xlane.xlu0 %922
    %v924 = vcvt.f32.s32 %v923
    %v925 = vcvt.f32.s32 %v919
    %v926 = vshll.u32 %v925, 16
    %v927 = vadd.s32 %v926, %v924
    %v928 = vsel %vm444, %v850, 2147483647
    %v929 = vand.u32 %v928, 65535
    %v930 = vshra.s32 %v928, 16
    %v931 = vcvt.s32.f32 %v929
    %v932 = vcvt.s32.f32 %v930
    %933 = vmin.xlane.f32.xlu0 %v932
    %v934 = vpop.xlane.xlu0 %933
    %vm935 = vcmp.eq.f32.partialorder %v932, %v934
    %v936 = vsel %vm935, %v931, inf
    %937 = vmin.xlane.f32.xlu0 %v936
    %v938 = vpop.xlane.xlu0 %937
    %v939 = vcvt.f32.s32 %v938
    %v940 = vcvt.f32.s32 %v934
    %v941 = vshll.u32 %v940, 16
    %v942 = vadd.s32 %v941, %v939
    %v943 = vsel %vm444, %v851, 2147483647
    %v944 = vand.u32 %v943, 65535
    %v945 = vshra.s32 %v943, 16
    %v946 = vcvt.s32.f32 %v944
    %v947 = vcvt.s32.f32 %v945
    %948 = vmin.xlane.f32.xlu0 %v947
    %v949 = vpop.xlane.xlu0 %948
    %vm950 = vcmp.eq.f32.partialorder %v947, %v949
    %v951 = vsel %vm950, %v946, inf
    %952 = vmin.xlane.f32.xlu0 %v951
    %v953 = vpop.xlane.xlu0 %952
    %v954 = vcvt.f32.s32 %v953
    %v955 = vcvt.f32.s32 %v949
    %v956 = vshll.u32 %v955, 16
    %v957 = vadd.s32 %v956, %v954
    %v958 = vsel %vm444, %v852, 2147483647
    %v959 = vand.u32 %v958, 65535
    %v960 = vshra.s32 %v958, 16
    %v961 = vcvt.s32.f32 %v959
    %v962 = vcvt.s32.f32 %v960
    %963 = vmin.xlane.f32.xlu0 %v962
    %v964 = vpop.xlane.xlu0 %963
    %vm965 = vcmp.eq.f32.partialorder %v962, %v964
    %v966 = vsel %vm965, %v961, inf
    %967 = vmin.xlane.f32.xlu0 %v966
    %v968 = vpop.xlane.xlu0 %967
    %v969 = vcvt.f32.s32 %v968
    %v970 = vcvt.f32.s32 %v964
    %v971 = vshll.u32 %v970, 16
    %v972 = vadd.s32 %v971, %v969
    %vm973 = vcmp.eq.s32.totalorder %v443, %v867
    %vm974 = vcmp.eq.s32.totalorder %v443, %v882
    %vm975 = vcmp.eq.s32.totalorder %v443, %v897
    %vm976 = vcmp.eq.s32.totalorder %v443, %v912
    %vm977 = vcmp.eq.s32.totalorder %v443, %v927
    %vm978 = vcmp.eq.s32.totalorder %v443, %v942
    %vm979 = vcmp.eq.s32.totalorder %v443, %v957
    %vm980 = vcmp.eq.s32.totalorder %v443, %v972
    %v981 = vsel %vm973, 1.0, 0.0
    %v982 = vsel %vm974, 1.0, 0.0
    %v983 = vsel %vm975, 1.0, 0.0
    %v984 = vsel %vm976, 1.0, 0.0
    %v985 = vsel %vm977, 1.0, 0.0
    %v986 = vsel %vm978, 1.0, 0.0
    %v987 = vsel %vm979, 1.0, 0.0
    %v988 = vsel %vm980, 1.0, 0.0
    %v989 = vsel %vm973, 1e+30, %v805
    %v990 = vsel %vm974, 1e+30, %v806
    %v991 = vsel %vm975, 1e+30, %v807
    %v992 = vsel %vm976, 1e+30, %v808
    %v993 = vsel %vm977, 1e+30, %v809
    %v994 = vsel %vm978, 1e+30, %v810
    %v995 = vsel %vm979, 1e+30, %v811
    %v996 = vsel %vm980, 1e+30, %v812
    %v997 = vsel %vm444, %v989, inf
    %998 = vmin.xlane.f32.xlu0 %v997
    %v999 = vpop.xlane.xlu0 %998
    %v1000 = vsel %vm444, %v990, inf
    %1001 = vmin.xlane.f32.xlu0 %v1000
    %v1002 = vpop.xlane.xlu0 %1001
    %v1003 = vsel %vm444, %v991, inf
    %1004 = vmin.xlane.f32.xlu0 %v1003
    %v1005 = vpop.xlane.xlu0 %1004
    %v1006 = vsel %vm444, %v992, inf
    %1007 = vmin.xlane.f32.xlu0 %v1006
    %v1008 = vpop.xlane.xlu0 %1007
    %v1009 = vsel %vm444, %v993, inf
    %1010 = vmin.xlane.f32.xlu0 %v1009
    %v1011 = vpop.xlane.xlu0 %1010
    %v1012 = vsel %vm444, %v994, inf
    %1013 = vmin.xlane.f32.xlu0 %v1012
    %v1014 = vpop.xlane.xlu0 %1013
    %v1015 = vsel %vm444, %v995, inf
    %1016 = vmin.xlane.f32.xlu0 %v1015
    %v1017 = vpop.xlane.xlu0 %1016
    %v1018 = vsel %vm444, %v996, inf
    %1019 = vmin.xlane.f32.xlu0 %v1018
    %v1020 = vpop.xlane.xlu0 %1019
    %vm1021 = vcmp.le.f32.partialorder %v989, %v999
    %vm1022 = vcmp.le.f32.partialorder %v990, %v1002
    %vm1023 = vcmp.le.f32.partialorder %v991, %v1005
    %vm1024 = vcmp.le.f32.partialorder %v992, %v1008
    %vm1025 = vcmp.le.f32.partialorder %v993, %v1011
    %vm1026 = vcmp.le.f32.partialorder %v994, %v1014
    %vm1027 = vcmp.le.f32.partialorder %v995, %v1017
    %vm1028 = vcmp.le.f32.partialorder %v996, %v1020
    %v1029 = vsel %vm1021, %v443, 64
    %v1030 = vsel %vm1022, %v443, 64
    %v1031 = vsel %vm1023, %v443, 64
    %v1032 = vsel %vm1024, %v443, 64
    %v1033 = vsel %vm1025, %v443, 64
    %v1034 = vsel %vm1026, %v443, 64
    %v1035 = vsel %vm1027, %v443, 64
    %v1036 = vsel %vm1028, %v443, 64
    %v1037 = vsel %vm444, %v1029, 2147483647
    %v1038 = vand.u32 %v1037, 65535
    %v1039 = vshra.s32 %v1037, 16
    %v1040 = vcvt.s32.f32 %v1038
    %v1041 = vcvt.s32.f32 %v1039
    %1042 = vmin.xlane.f32.xlu0 %v1041
    %v1043 = vpop.xlane.xlu0 %1042
    %vm1044 = vcmp.eq.f32.partialorder %v1041, %v1043
    %v1045 = vsel %vm1044, %v1040, inf
    %1046 = vmin.xlane.f32.xlu0 %v1045
    %v1047 = vpop.xlane.xlu0 %1046
    %v1048 = vcvt.f32.s32 %v1047
    %v1049 = vcvt.f32.s32 %v1043
    %v1050 = vshll.u32 %v1049, 16
    %v1051 = vadd.s32 %v1050, %v1048
    %v1052 = vsel %vm444, %v1030, 2147483647
    %v1053 = vand.u32 %v1052, 65535
    %v1054 = vshra.s32 %v1052, 16
    %v1055 = vcvt.s32.f32 %v1053
    %v1056 = vcvt.s32.f32 %v1054
    %1057 = vmin.xlane.f32.xlu0 %v1056
    %v1058 = vpop.xlane.xlu0 %1057
    %vm1059 = vcmp.eq.f32.partialorder %v1056, %v1058
    %v1060 = vsel %vm1059, %v1055, inf
    %1061 = vmin.xlane.f32.xlu0 %v1060
    %v1062 = vpop.xlane.xlu0 %1061
    %v1063 = vcvt.f32.s32 %v1062
    %v1064 = vcvt.f32.s32 %v1058
    %v1065 = vshll.u32 %v1064, 16
    %v1066 = vadd.s32 %v1065, %v1063
    %v1067 = vsel %vm444, %v1031, 2147483647
    %v1068 = vand.u32 %v1067, 65535
    %v1069 = vshra.s32 %v1067, 16
    %v1070 = vcvt.s32.f32 %v1068
    %v1071 = vcvt.s32.f32 %v1069
    %1072 = vmin.xlane.f32.xlu0 %v1071
    %v1073 = vpop.xlane.xlu0 %1072
    %vm1074 = vcmp.eq.f32.partialorder %v1071, %v1073
    %v1075 = vsel %vm1074, %v1070, inf
    %1076 = vmin.xlane.f32.xlu0 %v1075
    %v1077 = vpop.xlane.xlu0 %1076
    %v1078 = vcvt.f32.s32 %v1077
    %v1079 = vcvt.f32.s32 %v1073
    %v1080 = vshll.u32 %v1079, 16
    %v1081 = vadd.s32 %v1080, %v1078
    %v1082 = vsel %vm444, %v1032, 2147483647
    %v1083 = vand.u32 %v1082, 65535
    %v1084 = vshra.s32 %v1082, 16
    %v1085 = vcvt.s32.f32 %v1083
    %v1086 = vcvt.s32.f32 %v1084
    %1087 = vmin.xlane.f32.xlu0 %v1086
    %v1088 = vpop.xlane.xlu0 %1087
    %vm1089 = vcmp.eq.f32.partialorder %v1086, %v1088
    %v1090 = vsel %vm1089, %v1085, inf
    %1091 = vmin.xlane.f32.xlu0 %v1090
    %v1092 = vpop.xlane.xlu0 %1091
    %v1093 = vcvt.f32.s32 %v1092
    %v1094 = vcvt.f32.s32 %v1088
    %v1095 = vshll.u32 %v1094, 16
    %v1096 = vadd.s32 %v1095, %v1093
    %v1097 = vsel %vm444, %v1033, 2147483647
    %v1098 = vand.u32 %v1097, 65535
    %v1099 = vshra.s32 %v1097, 16
    %v1100 = vcvt.s32.f32 %v1098
    %v1101 = vcvt.s32.f32 %v1099
    %1102 = vmin.xlane.f32.xlu0 %v1101
    %v1103 = vpop.xlane.xlu0 %1102
    %vm1104 = vcmp.eq.f32.partialorder %v1101, %v1103
    %v1105 = vsel %vm1104, %v1100, inf
    %1106 = vmin.xlane.f32.xlu0 %v1105
    %v1107 = vpop.xlane.xlu0 %1106
    %v1108 = vcvt.f32.s32 %v1107
    %v1109 = vcvt.f32.s32 %v1103
    %v1110 = vshll.u32 %v1109, 16
    %v1111 = vadd.s32 %v1110, %v1108
    %v1112 = vsel %vm444, %v1034, 2147483647
    %v1113 = vand.u32 %v1112, 65535
    %v1114 = vshra.s32 %v1112, 16
    %v1115 = vcvt.s32.f32 %v1113
    %v1116 = vcvt.s32.f32 %v1114
    %1117 = vmin.xlane.f32.xlu0 %v1116
    %v1118 = vpop.xlane.xlu0 %1117
    %vm1119 = vcmp.eq.f32.partialorder %v1116, %v1118
    %v1120 = vsel %vm1119, %v1115, inf
    %1121 = vmin.xlane.f32.xlu0 %v1120
    %v1122 = vpop.xlane.xlu0 %1121
    %v1123 = vcvt.f32.s32 %v1122
    %v1124 = vcvt.f32.s32 %v1118
    %v1125 = vshll.u32 %v1124, 16
    %v1126 = vadd.s32 %v1125, %v1123
    %v1127 = vsel %vm444, %v1035, 2147483647
    %v1128 = vand.u32 %v1127, 65535
    %v1129 = vshra.s32 %v1127, 16
    %v1130 = vcvt.s32.f32 %v1128
    %v1131 = vcvt.s32.f32 %v1129
    %1132 = vmin.xlane.f32.xlu0 %v1131
    %v1133 = vpop.xlane.xlu0 %1132
    %vm1134 = vcmp.eq.f32.partialorder %v1131, %v1133
    %v1135 = vsel %vm1134, %v1130, inf
    %1136 = vmin.xlane.f32.xlu0 %v1135
    %v1137 = vpop.xlane.xlu0 %1136
    %v1138 = vcvt.f32.s32 %v1137
    %v1139 = vcvt.f32.s32 %v1133
    %v1140 = vshll.u32 %v1139, 16
    %v1141 = vadd.s32 %v1140, %v1138
    %v1142 = vsel %vm444, %v1036, 2147483647
    %v1143 = vand.u32 %v1142, 65535
    %v1144 = vshra.s32 %v1142, 16
    %v1145 = vcvt.s32.f32 %v1143
    %v1146 = vcvt.s32.f32 %v1144
    %1147 = vmin.xlane.f32.xlu0 %v1146
    %v1148 = vpop.xlane.xlu0 %1147
    %vm1149 = vcmp.eq.f32.partialorder %v1146, %v1148
    %v1150 = vsel %vm1149, %v1145, inf
    %1151 = vmin.xlane.f32.xlu0 %v1150
    %v1152 = vpop.xlane.xlu0 %1151
    %v1153 = vcvt.f32.s32 %v1152
    %v1154 = vcvt.f32.s32 %v1148
    %v1155 = vshll.u32 %v1154, 16
    %v1156 = vadd.s32 %v1155, %v1153
    %vm1157 = vcmp.eq.s32.totalorder %v443, %v1051
    %vm1158 = vcmp.eq.s32.totalorder %v443, %v1066
    %vm1159 = vcmp.eq.s32.totalorder %v443, %v1081
    %vm1160 = vcmp.eq.s32.totalorder %v443, %v1096
    %vm1161 = vcmp.eq.s32.totalorder %v443, %v1111
    %vm1162 = vcmp.eq.s32.totalorder %v443, %v1126
    %vm1163 = vcmp.eq.s32.totalorder %v443, %v1141
    %vm1164 = vcmp.eq.s32.totalorder %v443, %v1156
    %v1165 = vsel %vm1157, 1.0, 0.0
    %v1166 = vsel %vm1158, 1.0, 0.0
    %v1167 = vsel %vm1159, 1.0, 0.0
    %v1168 = vsel %vm1160, 1.0, 0.0
    %v1169 = vsel %vm1161, 1.0, 0.0
    %v1170 = vsel %vm1162, 1.0, 0.0
    %v1171 = vsel %vm1163, 1.0, 0.0
    %v1172 = vsel %vm1164, 1.0, 0.0
    %v1173 = vpack.c.bf16 %v614, %v613
    %v1174 = vpack.c.bf16 %v616, %v615
    %v1175 = vpack.c.bf16 %v618, %v617
    %v1176 = vpack.c.bf16 %v620, %v619
    %v1177 = vpack.c.bf16 %v798, %v797
    %v1178 = vpack.c.bf16 %v800, %v799
    %v1179 = vpack.c.bf16 %v802, %v801
    %v1180 = vpack.c.bf16 %v804, %v803
    %v1181 = vpack.c.bf16 %v982, %v981
    %v1182 = vpack.c.bf16 %v984, %v983
    %v1183 = vpack.c.bf16 %v986, %v985
    %v1184 = vpack.c.bf16 %v988, %v987
    %v1185 = vpack.c.bf16 %v1166, %v1165
    %v1186 = vpack.c.bf16 %v1168, %v1167
    %v1187 = vpack.c.bf16 %v1170, %v1169
    %v1188 = vpack.c.bf16 %v1172, %v1171
    %v1190 = vsel %vm444, %v1173, 0
    %v1193 = vsel %vm444, %v1174, 0
    %v1196 = vsel %vm444, %v1175, 0
    %v1199 = vsel %vm444, %v1176, 0
    %v1202 = vsel %vm444, %v1177, 0
    %v1205 = vsel %vm444, %v1178, 0
    %v1208 = vsel %vm444, %v1179, 0
    %v1211 = vsel %vm444, %v1180, 0
    %v1214 = vsel %vm444, %v1181, 0
    %v1217 = vsel %vm444, %v1182, 0
    %v1220 = vsel %vm444, %v1183, 0
    %v1223 = vsel %vm444, %v1184, 0
    %v1226 = vsel %vm444, %v1185, 0
    %v1229 = vsel %vm444, %v1186, 0
    %v1232 = vsel %vm444, %v1187, 0
    %v1235 = vsel %vm444, %v1188, 0
    %1237 = vmatprep.subr.bf16.mxu0 0
    %1238 = vmatpush1.bf16.msra.mxu0 0
    %1239 = vmatprep.subr.bf16.mxu0 0
    %1240 = vmatpush1.bf16.msra.mxu0 0
    %1241 = vmatprep.subr.bf16.mxu0 0
    %1242 = vmatpush1.bf16.msra.mxu0 0
    %1243 = vmatprep.subr.bf16.mxu0 0
    %1244 = vmatpush1.bf16.msra.mxu0 0
    %1245 = vmatprep.subr.bf16.mxu0 0
    %1246 = vmatpush1.bf16.msra.mxu0 %v224
    %1247 = vmatprep.subr.bf16.mxu0 0
    %1248 = vmatpush1.bf16.msra.mxu0 %v223
    %1249 = vmatprep.subr.bf16.mxu0 0
    %1250 = vmatpush1.bf16.msra.mxu0 %v222
    %1251 = vmatprep.subr.bf16.mxu0 0
    %1252 = vmatpush1.bf16.msra.mxu0 %v221
    %1253 = vmatprep.subr.bf16.mxu0 0
    %1254 = vmatpush2.bf16.msra.mxu0 0
    %1255 = vmatprep.subr.bf16.mxu0 0
    %1256 = vmatpush2.bf16.msra.mxu0 0
    %1257 = vmatprep.subr.bf16.mxu0 0
    %1258 = vmatpush2.bf16.msra.mxu0 0
    %1259 = vmatprep.subr.bf16.mxu0 0
    %1260 = vmatpush2.bf16.msra.mxu0 0
    %1261 = vmatprep.subr.bf16.mxu0 0
    %1262 = vmatpush2.bf16.msra.mxu0 0
    %1263 = vmatprep.subr.bf16.mxu0 0
    %1264 = vmatpush2.bf16.msra.mxu0 0
    %1265 = vmatprep.subr.bf16.mxu0 0
    %1266 = vmatpush2.bf16.msra.mxu0 0
    %1267 = vmatprep.subr.bf16.mxu0 0
    %1268 = vmatpush2.bf16.msra.mxu0 0
    %1269 = vmatprep.mubr.bf16.mxu0 0
    %1270 = vmatmul.mubr.bf16.gmra.mxu0 %v1190
    %v1271 = vpop.f32.mrf.mxu0
    %v1272 = vadd.f32 0.0, %v1271
    %v1273 = vpop.f32.mrf.mxu0
    %v1274 = vpop.f32.mrf.mxu0
    %v1275 = vadd.f32 0.0, %v1274
    %v1276 = vpop.f32.mrf.mxu0
    %1277 = vmatprep.mubr.bf16.mxu0 0
    %1278 = vmatmul.mubr.bf16.gmra.mxu0 %v1193
    %v1279 = vpop.f32.mrf.mxu0
    %v1280 = vadd.f32 0.0, %v1279
    %v1281 = vpop.f32.mrf.mxu0
    %v1282 = vpop.f32.mrf.mxu0
    %v1283 = vadd.f32 0.0, %v1282
    %v1284 = vpop.f32.mrf.mxu0
    %1285 = vmatprep.mubr.bf16.mxu0 0
    %1286 = vmatmul.mubr.bf16.gmra.mxu0 %v1196
    %v1287 = vpop.f32.mrf.mxu0
    %v1288 = vadd.f32 0.0, %v1287
    %v1289 = vpop.f32.mrf.mxu0
    %v1290 = vpop.f32.mrf.mxu0
    %v1291 = vadd.f32 0.0, %v1290
    %v1292 = vpop.f32.mrf.mxu0
    %1293 = vmatprep.mubr.bf16.mxu0 0
    %1294 = vmatmul.mubr.bf16.gmra.mxu0 %v1199
    %v1295 = vpop.f32.mrf.mxu0
    %v1296 = vadd.f32 0.0, %v1295
    %v1297 = vpop.f32.mrf.mxu0
    %v1298 = vpop.f32.mrf.mxu0
    %v1299 = vadd.f32 0.0, %v1298
    %v1300 = vpop.f32.mrf.mxu0
    %1301 = vmatprep.mubr.bf16.mxu0 0
    %1302 = vmatmul.mubr.bf16.gmra.mxu0 %v1202
    %v1303 = vpop.f32.mrf.mxu0
    %v1304 = vadd.f32 0.0, %v1303
    %v1305 = vpop.f32.mrf.mxu0
    %v1306 = vpop.f32.mrf.mxu0
    %v1307 = vadd.f32 0.0, %v1306
    %v1308 = vpop.f32.mrf.mxu0
    %1309 = vmatprep.mubr.bf16.mxu0 0
    %1310 = vmatmul.mubr.bf16.gmra.mxu0 %v1205
    %v1311 = vpop.f32.mrf.mxu0
    %v1312 = vadd.f32 0.0, %v1311
    %v1313 = vpop.f32.mrf.mxu0
    %v1314 = vpop.f32.mrf.mxu0
    %v1315 = vadd.f32 0.0, %v1314
    %v1316 = vpop.f32.mrf.mxu0
    %1317 = vmatprep.mubr.bf16.mxu0 0
    %1318 = vmatmul.mubr.bf16.gmra.mxu0 %v1208
    %v1319 = vpop.f32.mrf.mxu0
    %v1320 = vadd.f32 0.0, %v1319
    %v1321 = vpop.f32.mrf.mxu0
    %v1322 = vpop.f32.mrf.mxu0
    %v1323 = vadd.f32 0.0, %v1322
    %v1324 = vpop.f32.mrf.mxu0
    %1325 = vmatprep.mubr.bf16.mxu0 0
    %1326 = vmatmul.mubr.bf16.gmra.mxu0 %v1211
    %v1327 = vpop.f32.mrf.mxu0
    %v1328 = vadd.f32 0.0, %v1327
    %v1329 = vpop.f32.mrf.mxu0
    %v1330 = vpop.f32.mrf.mxu0
    %v1331 = vadd.f32 0.0, %v1330
    %v1332 = vpop.f32.mrf.mxu0
    %1333 = vmatprep.mubr.bf16.mxu0 0
    %1334 = vmatmul.mubr.bf16.gmra.mxu0 %v1214
    %v1335 = vpop.f32.mrf.mxu0
    %v1336 = vadd.f32 0.0, %v1335
    %v1337 = vpop.f32.mrf.mxu0
    %v1338 = vpop.f32.mrf.mxu0
    %v1339 = vadd.f32 0.0, %v1338
    %v1340 = vpop.f32.mrf.mxu0
    %1341 = vmatprep.mubr.bf16.mxu0 0
    %1342 = vmatmul.mubr.bf16.gmra.mxu0 %v1217
    %v1343 = vpop.f32.mrf.mxu0
    %v1344 = vadd.f32 0.0, %v1343
    %v1345 = vpop.f32.mrf.mxu0
    %v1346 = vpop.f32.mrf.mxu0
    %v1347 = vadd.f32 0.0, %v1346
    %v1348 = vpop.f32.mrf.mxu0
    %1349 = vmatprep.mubr.bf16.mxu0 0
    %1350 = vmatmul.mubr.bf16.gmra.mxu0 %v1220
    %v1351 = vpop.f32.mrf.mxu0
    %v1352 = vadd.f32 0.0, %v1351
    %v1353 = vpop.f32.mrf.mxu0
    %v1354 = vpop.f32.mrf.mxu0
    %v1355 = vadd.f32 0.0, %v1354
    %v1356 = vpop.f32.mrf.mxu0
    %1357 = vmatprep.mubr.bf16.mxu0 0
    %1358 = vmatmul.mubr.bf16.gmra.mxu0 %v1223
    %v1359 = vpop.f32.mrf.mxu0
    %v1360 = vadd.f32 0.0, %v1359
    %v1361 = vpop.f32.mrf.mxu0
    %v1362 = vpop.f32.mrf.mxu0
    %v1363 = vadd.f32 0.0, %v1362
    %v1364 = vpop.f32.mrf.mxu0
    %1365 = vmatprep.mubr.bf16.mxu0 0
    %1366 = vmatmul.mubr.bf16.gmra.mxu0 %v1226
    %v1367 = vpop.f32.mrf.mxu0
    %v1368 = vadd.f32 0.0, %v1367
    %v1369 = vpop.f32.mrf.mxu0
    %v1370 = vpop.f32.mrf.mxu0
    %v1371 = vadd.f32 0.0, %v1370
    %v1372 = vpop.f32.mrf.mxu0
    %1373 = vmatprep.mubr.bf16.mxu0 0
    %1374 = vmatmul.mubr.bf16.gmra.mxu0 %v1229
    %v1375 = vpop.f32.mrf.mxu0
    %v1376 = vadd.f32 0.0, %v1375
    %v1377 = vpop.f32.mrf.mxu0
    %v1378 = vpop.f32.mrf.mxu0
    %v1379 = vadd.f32 0.0, %v1378
    %v1380 = vpop.f32.mrf.mxu0
    %1381 = vmatprep.mubr.bf16.mxu0 0
    %1382 = vmatmul.mubr.bf16.gmra.mxu0 %v1232
    %v1383 = vpop.f32.mrf.mxu0
    %v1384 = vadd.f32 0.0, %v1383
    %v1385 = vpop.f32.mrf.mxu0
    %v1386 = vpop.f32.mrf.mxu0
    %v1387 = vadd.f32 0.0, %v1386
    %v1388 = vpop.f32.mrf.mxu0
    %1389 = vmatprep.mubr.bf16.mxu0 0
    %1390 = vmatmul.mubr.bf16.gmra.mxu0 %v1235
    %v1391 = vpop.f32.mrf.mxu0
    %v1392 = vadd.f32 0.0, %v1391
    %v1393 = vpop.f32.mrf.mxu0
    %v1394 = vpop.f32.mrf.mxu0
    %v1395 = vadd.f32 0.0, %v1394
    %v1396 = vpop.f32.mrf.mxu0
    %1397 = vdwg.mxu0
    %v1398 = vmax.f32 %v1272, %v1304
    %v1399 = vmax.f32 %v1275, %v1307
    %v1400 = vmax.f32 %v1280, %v1312
    %v1401 = vmax.f32 %v1283, %v1315
    %v1402 = vmax.f32 %v1288, %v1320
    %v1403 = vmax.f32 %v1291, %v1323
    %v1404 = vmax.f32 %v1296, %v1328
    %v1405 = vmax.f32 %v1299, %v1331
    %v1406 = vmax.f32 %v1398, %v1336
    %v1407 = vmax.f32 %v1399, %v1339
    %v1408 = vmax.f32 %v1400, %v1344
    %v1409 = vmax.f32 %v1401, %v1347
    %v1410 = vmax.f32 %v1402, %v1352
    %v1411 = vmax.f32 %v1403, %v1355
    %v1412 = vmax.f32 %v1404, %v1360
    %v1413 = vmax.f32 %v1405, %v1363
    %v1414 = vmax.f32 %v1406, %v1368
    %v1415 = vmax.f32 %v1407, %v1371
    %v1416 = vmax.f32 %v1408, %v1376
    %v1417 = vmax.f32 %v1409, %v1379
    %v1418 = vmax.f32 %v1410, %v1384
    %v1419 = vmax.f32 %v1411, %v1387
    %v1420 = vmax.f32 %v1412, %v1392
    %v1421 = vmax.f32 %v1413, %v1395
    %v1422 = vmul.f32 %v76, %v76
    %v1423 = vmul.f32 %v77, %v77
    %v1424 = vmul.f32 %v78, %v78
    %v1425 = vmul.f32 %v79, %v79
    %v1426 = vmul.f32 %v80, %v80
    %v1427 = vmul.f32 %v81, %v81
    %v1428 = vmul.f32 %v82, %v82
    %v1429 = vmul.f32 %v83, %v83
    %v1430 = vsel %vm95, %v1422, 0.0
    %1431 = vadd.xlane.f32.xlu0 %v1430
    %v1432 = vpop.xlane.xlu0 %1431
    %v1433 = vsel %vm95, %v1423, 0.0
    %1434 = vadd.xlane.f32.xlu0 %v1433
    %v1435 = vpop.xlane.xlu0 %1434
    %v1436 = vsel %vm95, %v1424, 0.0
    %1437 = vadd.xlane.f32.xlu0 %v1436
    %v1438 = vpop.xlane.xlu0 %1437
    %v1439 = vsel %vm95, %v1425, 0.0
    %1440 = vadd.xlane.f32.xlu0 %v1439
    %v1441 = vpop.xlane.xlu0 %1440
    %v1442 = vsel %vm95, %v1426, 0.0
    %1443 = vadd.xlane.f32.xlu0 %v1442
    %v1444 = vpop.xlane.xlu0 %1443
    %v1445 = vsel %vm95, %v1427, 0.0
    %1446 = vadd.xlane.f32.xlu0 %v1445
    %v1447 = vpop.xlane.xlu0 %1446
    %v1448 = vsel %vm95, %v1428, 0.0
    %1449 = vadd.xlane.f32.xlu0 %v1448
    %v1450 = vpop.xlane.xlu0 %1449
    %v1451 = vsel %vm95, %v1429, 0.0
    %1452 = vadd.xlane.f32.xlu0 %v1451
    %v1453 = vpop.xlane.xlu0 %1452
    %v1455 = vsel %vm95, %v76, 0
    %v1458 = vsel %vm95, %v77, 0
    %v1461 = vsel %vm95, %v78, 0
    %v1464 = vsel %vm95, %v79, 0
    %v1467 = vsel %vm95, %v80, 0
    %v1470 = vsel %vm95, %v81, 0
    %v1473 = vsel %vm95, %v82, 0
    %v1476 = vsel %vm95, %v83, 0
    %1478 = vmatprep.subr.mxu0 0.0
    %1479 = vmatpush1.xpose.msra.mxu0 0.0
    %1480 = vmatprep.subr.mxu0 0.0
    %1481 = vmatpush1.xpose.msra.mxu0 0.0
    %1482 = vmatprep.subr.mxu0 0.0
    %1483 = vmatpush1.xpose.msra.mxu0 0.0
    %1484 = vmatprep.subr.mxu0 0.0
    %1485 = vmatpush1.xpose.msra.mxu0 0.0
    %1486 = vmatprep.subr.mxu0 0.0
    %1487 = vmatpush1.xpose.msra.mxu0 0.0
    %1488 = vmatprep.subr.mxu0 0.0
    %1489 = vmatpush1.xpose.msra.mxu0 0.0
    %1490 = vmatprep.subr.mxu0 0.0
    %1491 = vmatpush1.xpose.msra.mxu0 0.0
    %1492 = vmatprep.subr.mxu0 0.0
    %1493 = vmatpush1.xpose.msra.mxu0 0.0
    %1494 = vmatprep.subr.mxu0 0.0
    %1495 = vmatpush1.xpose.msra.mxu0 %v1476
    %1496 = vmatprep.subr.mxu0 0.0
    %1497 = vmatpush1.xpose.msra.mxu0 %v1473
    %1498 = vmatprep.subr.mxu0 0.0
    %1499 = vmatpush1.xpose.msra.mxu0 %v1470
    %1500 = vmatprep.subr.mxu0 0.0
    %1501 = vmatpush1.xpose.msra.mxu0 %v1467
    %1502 = vmatprep.subr.mxu0 0.0
    %1503 = vmatpush1.xpose.msra.mxu0 %v1464
    %1504 = vmatprep.subr.mxu0 0.0
    %1505 = vmatpush1.xpose.msra.mxu0 %v1461
    %1506 = vmatprep.subr.mxu0 0.0
    %1507 = vmatpush1.xpose.msra.mxu0 %v1458
    %1508 = vmatprep.subr.mxu0 0.0
    %1509 = vmatpush1.xpose.msra.mxu0 %v1455
    %1510 = vmatprep.subr.mxu0 0.0
    %1511 = vmatpush2.xpose.msra.mxu0 0.0
    %1512 = vmatprep.subr.mxu0 0.0
    %1513 = vmatpush2.xpose.msra.mxu0 0.0
    %1514 = vmatprep.subr.mxu0 0.0
    %1515 = vmatpush2.xpose.msra.mxu0 0.0
    %1516 = vmatprep.subr.mxu0 0.0
    %1517 = vmatpush2.xpose.msra.mxu0 0.0
    %1518 = vmatprep.subr.mxu0 0.0
    %1519 = vmatpush2.xpose.msra.mxu0 0.0
    %1520 = vmatprep.subr.mxu0 0.0
    %1521 = vmatpush2.xpose.msra.mxu0 0.0
    %1522 = vmatprep.subr.mxu0 0.0
    %1523 = vmatpush2.xpose.msra.mxu0 0.0
    %1524 = vmatprep.subr.mxu0 0.0
    %1525 = vmatpush2.xpose.msra.mxu0 0.0
    %1526 = vmatprep.subr.mxu0 0.0
    %1527 = vmatpush2.xpose.msra.mxu0 0.0
    %1528 = vmatprep.subr.mxu0 0.0
    %1529 = vmatpush2.xpose.msra.mxu0 0.0
    %1530 = vmatprep.subr.mxu0 0.0
    %1531 = vmatpush2.xpose.msra.mxu0 0.0
    %1532 = vmatprep.subr.mxu0 0.0
    %1533 = vmatpush2.xpose.msra.mxu0 0.0
    %1534 = vmatprep.subr.mxu0 0.0
    %1535 = vmatpush2.xpose.msra.mxu0 0.0
    %1536 = vmatprep.subr.mxu0 0.0
    %1537 = vmatpush2.xpose.msra.mxu0 0.0
    %1538 = vmatprep.subr.mxu0 0.0
    %1539 = vmatpush2.xpose.msra.mxu0 0.0
    %1540 = vmatprep.subr.mxu0 0.0
    %1541 = vmatpush2.xpose.msra.mxu0 0.0
    %1542 = vmatprep.mubr.f32.mxu0 0.0
    %1543 = vmatmul.mubr.f32.gmra.mxu0 %v1455
    %v1544 = vpop.f32.mrf.mxu0
    %v1545 = vadd.f32 0.0, %v1544
    %v1546 = vpop.f32.mrf.mxu0
    %1547 = vmatprep.mubr.f32.mxu0 0.0
    %1548 = vmatmul.mubr.f32.gmra.mxu0 %v1458
    %v1549 = vpop.f32.mrf.mxu0
    %v1550 = vadd.f32 0.0, %v1549
    %v1551 = vpop.f32.mrf.mxu0
    %1552 = vmatprep.mubr.f32.mxu0 0.0
    %1553 = vmatmul.mubr.f32.gmra.mxu0 %v1461
    %v1554 = vpop.f32.mrf.mxu0
    %v1555 = vadd.f32 0.0, %v1554
    %v1556 = vpop.f32.mrf.mxu0
    %1557 = vmatprep.mubr.f32.mxu0 0.0
    %1558 = vmatmul.mubr.f32.gmra.mxu0 %v1464
    %v1559 = vpop.f32.mrf.mxu0
    %v1560 = vadd.f32 0.0, %v1559
    %v1561 = vpop.f32.mrf.mxu0
    %1562 = vmatprep.mubr.f32.mxu0 0.0
    %1563 = vmatmul.mubr.f32.gmra.mxu0 %v1467
    %v1564 = vpop.f32.mrf.mxu0
    %v1565 = vadd.f32 0.0, %v1564
    %v1566 = vpop.f32.mrf.mxu0
    %1567 = vmatprep.mubr.f32.mxu0 0.0
    %1568 = vmatmul.mubr.f32.gmra.mxu0 %v1470
    %v1569 = vpop.f32.mrf.mxu0
    %v1570 = vadd.f32 0.0, %v1569
    %v1571 = vpop.f32.mrf.mxu0
    %1572 = vmatprep.mubr.f32.mxu0 0.0
    %1573 = vmatmul.mubr.f32.gmra.mxu0 %v1473
    %v1574 = vpop.f32.mrf.mxu0
    %v1575 = vadd.f32 0.0, %v1574
    %v1576 = vpop.f32.mrf.mxu0
    %1577 = vmatprep.mubr.f32.mxu0 0.0
    %1578 = vmatmul.mubr.f32.gmra.mxu0 %v1476
    %v1579 = vpop.f32.mrf.mxu0
    %v1580 = vadd.f32 0.0, %v1579
    %v1581 = vpop.f32.mrf.mxu0
    %1582 = vdwg.mxu0
    %1583 = vxpose.xlu0.b32.start [1/16] %v1432, 128
    %1584 = vxpose.xlu0.b32.cont [2/16] %v1435, 128
    %1585 = vxpose.xlu0.b32.cont [3/16] %v1438, 128
    %1586 = vxpose.xlu0.b32.cont [4/16] %v1441, 128
    %1587 = vxpose.xlu0.b32.cont [5/16] %v1444, 128
    %1588 = vxpose.xlu0.b32.cont [6/16] %v1447, 128
    %1589 = vxpose.xlu0.b32.cont [7/16] %v1450, 128
    %1590 = vxpose.xlu0.b32.cont [8/16] %v1453, 128
    %1591 = vxpose.xlu0.b32.cont [9/16] 0.0, 128
    %1592 = vxpose.xlu0.b32.cont [10/16] 0.0, 128
    %1593 = vxpose.xlu0.b32.cont [11/16] 0.0, 128
    %1594 = vxpose.xlu0.b32.cont [12/16] 0.0, 128
    %1595 = vxpose.xlu0.b32.cont [13/16] 0.0, 128
    %1596 = vxpose.xlu0.b32.cont [14/16] 0.0, 128
    %1597 = vxpose.xlu0.b32.cont [15/16] 0.0, 128
    %1598 = vxpose.xlu0.b32.end [16/16] 0.0, 128
    %v1599 = vpop.trf.xlu0
    %v1600 = vpop.trf.xlu0
    %v1601 = vpop.trf.xlu0
    %v1602 = vpop.trf.xlu0
    %v1603 = vpop.trf.xlu0
    %v1604 = vpop.trf.xlu0
    %v1605 = vpop.trf.xlu0
    %v1606 = vpop.trf.xlu0
    %v1607 = vpop.trf.xlu0
    %v1608 = vpop.trf.xlu0
    %v1609 = vpop.trf.xlu0
    %v1610 = vpop.trf.xlu0
    %v1611 = vpop.trf.xlu0
    %v1612 = vpop.trf.xlu0
    %v1613 = vpop.trf.xlu0
    %v1614 = vpop.trf.xlu0
    %v1615 = vmul.f32 %v1545, 2.0
    %v1616 = vmul.f32 %v1550, 2.0
    %v1617 = vmul.f32 %v1555, 2.0
    %v1618 = vmul.f32 %v1560, 2.0
    %v1619 = vmul.f32 %v1565, 2.0
    %v1620 = vmul.f32 %v1570, 2.0
    %v1621 = vmul.f32 %v1575, 2.0
    %v1622 = vmul.f32 %v1580, 2.0
    %v1623 = vlaneseq
    %v1624 = vshrl.u32 %v1623, 7
    %v1625 = vsub.s32 0, %v1624
    %v1626 = vrot.slane %v1599, %v1625
    %v1627 = vsub.f32 %v1626, %v1615
    %v1628 = vsub.f32 %v1626, %v1616
    %v1629 = vsub.f32 %v1626, %v1617
    %v1630 = vsub.f32 %v1626, %v1618
    %v1631 = vsub.f32 %v1626, %v1619
    %v1632 = vsub.f32 %v1626, %v1620
    %v1633 = vsub.f32 %v1626, %v1621
    %v1634 = vsub.f32 %v1626, %v1622
    %v1635 = vsel %vm444, %v1627, inf
    %1636 = vmin.xlane.f32.xlu0 %v1635
    %v1637 = vpop.xlane.xlu0 %1636
    %v1638 = vsel %vm444, %v1628, inf
    %1639 = vmin.xlane.f32.xlu0 %v1638
    %v1640 = vpop.xlane.xlu0 %1639
    %v1641 = vsel %vm444, %v1629, inf
    %1642 = vmin.xlane.f32.xlu0 %v1641
    %v1643 = vpop.xlane.xlu0 %1642
    %v1644 = vsel %vm444, %v1630, inf
    %1645 = vmin.xlane.f32.xlu0 %v1644
    %v1646 = vpop.xlane.xlu0 %1645
    %v1647 = vsel %vm444, %v1631, inf
    %1648 = vmin.xlane.f32.xlu0 %v1647
    %v1649 = vpop.xlane.xlu0 %1648
    %v1650 = vsel %vm444, %v1632, inf
    %1651 = vmin.xlane.f32.xlu0 %v1650
    %v1652 = vpop.xlane.xlu0 %1651
    %v1653 = vsel %vm444, %v1633, inf
    %1654 = vmin.xlane.f32.xlu0 %v1653
    %v1655 = vpop.xlane.xlu0 %1654
    %v1656 = vsel %vm444, %v1634, inf
    %1657 = vmin.xlane.f32.xlu0 %v1656
    %v1658 = vpop.xlane.xlu0 %1657
    %vm1659 = vcmp.le.f32.partialorder %v1627, %v1637
    %vm1660 = vcmp.le.f32.partialorder %v1628, %v1640
    %vm1661 = vcmp.le.f32.partialorder %v1629, %v1643
    %vm1662 = vcmp.le.f32.partialorder %v1630, %v1646
    %vm1663 = vcmp.le.f32.partialorder %v1631, %v1649
    %vm1664 = vcmp.le.f32.partialorder %v1632, %v1652
    %vm1665 = vcmp.le.f32.partialorder %v1633, %v1655
    %vm1666 = vcmp.le.f32.partialorder %v1634, %v1658
    %v1667 = vsel %vm1659, %v443, 64
    %v1668 = vsel %vm1660, %v443, 64
    %v1669 = vsel %vm1661, %v443, 64
    %v1670 = vsel %vm1662, %v443, 64
    %v1671 = vsel %vm1663, %v443, 64
    %v1672 = vsel %vm1664, %v443, 64
    %v1673 = vsel %vm1665, %v443, 64
    %v1674 = vsel %vm1666, %v443, 64
    %v1675 = vsel %vm444, %v1667, 2147483647
    %v1676 = vand.u32 %v1675, 65535
    %v1677 = vshra.s32 %v1675, 16
    %v1678 = vcvt.s32.f32 %v1676
    %v1679 = vcvt.s32.f32 %v1677
    %1680 = vmin.xlane.f32.xlu0 %v1679
    %v1681 = vpop.xlane.xlu0 %1680
    %vm1682 = vcmp.eq.f32.partialorder %v1679, %v1681
    %v1683 = vsel %vm1682, %v1678, inf
    %1684 = vmin.xlane.f32.xlu0 %v1683
    %v1685 = vpop.xlane.xlu0 %1684
    %v1686 = vcvt.f32.s32 %v1685
    %v1687 = vcvt.f32.s32 %v1681
    %v1688 = vshll.u32 %v1687, 16
    %v1689 = vadd.s32 %v1688, %v1686
    %v1690 = vsel %vm444, %v1668, 2147483647
    %v1691 = vand.u32 %v1690, 65535
    %v1692 = vshra.s32 %v1690, 16
    %v1693 = vcvt.s32.f32 %v1691
    %v1694 = vcvt.s32.f32 %v1692
    %1695 = vmin.xlane.f32.xlu0 %v1694
    %v1696 = vpop.xlane.xlu0 %1695
    %vm1697 = vcmp.eq.f32.partialorder %v1694, %v1696
    %v1698 = vsel %vm1697, %v1693, inf
    %1699 = vmin.xlane.f32.xlu0 %v1698
    %v1700 = vpop.xlane.xlu0 %1699
    %v1701 = vcvt.f32.s32 %v1700
    %v1702 = vcvt.f32.s32 %v1696
    %v1703 = vshll.u32 %v1702, 16
    %v1704 = vadd.s32 %v1703, %v1701
    %v1705 = vsel %vm444, %v1669, 2147483647
    %v1706 = vand.u32 %v1705, 65535
    %v1707 = vshra.s32 %v1705, 16
    %v1708 = vcvt.s32.f32 %v1706
    %v1709 = vcvt.s32.f32 %v1707
    %1710 = vmin.xlane.f32.xlu0 %v1709
    %v1711 = vpop.xlane.xlu0 %1710
    %vm1712 = vcmp.eq.f32.partialorder %v1709, %v1711
    %v1713 = vsel %vm1712, %v1708, inf
    %1714 = vmin.xlane.f32.xlu0 %v1713
    %v1715 = vpop.xlane.xlu0 %1714
    %v1716 = vcvt.f32.s32 %v1715
    %v1717 = vcvt.f32.s32 %v1711
    %v1718 = vshll.u32 %v1717, 16
    %v1719 = vadd.s32 %v1718, %v1716
    %v1720 = vsel %vm444, %v1670, 2147483647
    %v1721 = vand.u32 %v1720, 65535
    %v1722 = vshra.s32 %v1720, 16
    %v1723 = vcvt.s32.f32 %v1721
    %v1724 = vcvt.s32.f32 %v1722
    %1725 = vmin.xlane.f32.xlu0 %v1724
    %v1726 = vpop.xlane.xlu0 %1725
    %vm1727 = vcmp.eq.f32.partialorder %v1724, %v1726
    %v1728 = vsel %vm1727, %v1723, inf
    %1729 = vmin.xlane.f32.xlu0 %v1728
    %v1730 = vpop.xlane.xlu0 %1729
    %v1731 = vcvt.f32.s32 %v1730
    %v1732 = vcvt.f32.s32 %v1726
    %v1733 = vshll.u32 %v1732, 16
    %v1734 = vadd.s32 %v1733, %v1731
    %v1735 = vsel %vm444, %v1671, 2147483647
    %v1736 = vand.u32 %v1735, 65535
    %v1737 = vshra.s32 %v1735, 16
    %v1738 = vcvt.s32.f32 %v1736
    %v1739 = vcvt.s32.f32 %v1737
    %1740 = vmin.xlane.f32.xlu0 %v1739
    %v1741 = vpop.xlane.xlu0 %1740
    %vm1742 = vcmp.eq.f32.partialorder %v1739, %v1741
    %v1743 = vsel %vm1742, %v1738, inf
    %1744 = vmin.xlane.f32.xlu0 %v1743
    %v1745 = vpop.xlane.xlu0 %1744
    %v1746 = vcvt.f32.s32 %v1745
    %v1747 = vcvt.f32.s32 %v1741
    %v1748 = vshll.u32 %v1747, 16
    %v1749 = vadd.s32 %v1748, %v1746
    %v1750 = vsel %vm444, %v1672, 2147483647
    %v1751 = vand.u32 %v1750, 65535
    %v1752 = vshra.s32 %v1750, 16
    %v1753 = vcvt.s32.f32 %v1751
    %v1754 = vcvt.s32.f32 %v1752
    %1755 = vmin.xlane.f32.xlu0 %v1754
    %v1756 = vpop.xlane.xlu0 %1755
    %vm1757 = vcmp.eq.f32.partialorder %v1754, %v1756
    %v1758 = vsel %vm1757, %v1753, inf
    %1759 = vmin.xlane.f32.xlu0 %v1758
    %v1760 = vpop.xlane.xlu0 %1759
    %v1761 = vcvt.f32.s32 %v1760
    %v1762 = vcvt.f32.s32 %v1756
    %v1763 = vshll.u32 %v1762, 16
    %v1764 = vadd.s32 %v1763, %v1761
    %v1765 = vsel %vm444, %v1673, 2147483647
    %v1766 = vand.u32 %v1765, 65535
    %v1767 = vshra.s32 %v1765, 16
    %v1768 = vcvt.s32.f32 %v1766
    %v1769 = vcvt.s32.f32 %v1767
    %1770 = vmin.xlane.f32.xlu0 %v1769
    %v1771 = vpop.xlane.xlu0 %1770
    %vm1772 = vcmp.eq.f32.partialorder %v1769, %v1771
    %v1773 = vsel %vm1772, %v1768, inf
    %1774 = vmin.xlane.f32.xlu0 %v1773
    %v1775 = vpop.xlane.xlu0 %1774
    %v1776 = vcvt.f32.s32 %v1775
    %v1777 = vcvt.f32.s32 %v1771
    %v1778 = vshll.u32 %v1777, 16
    %v1779 = vadd.s32 %v1778, %v1776
    %v1780 = vsel %vm444, %v1674, 2147483647
    %v1781 = vand.u32 %v1780, 65535
    %v1782 = vshra.s32 %v1780, 16
    %v1783 = vcvt.s32.f32 %v1781
    %v1784 = vcvt.s32.f32 %v1782
    %1785 = vmin.xlane.f32.xlu0 %v1784
    %v1786 = vpop.xlane.xlu0 %1785
    %vm1787 = vcmp.eq.f32.partialorder %v1784, %v1786
    %v1788 = vsel %vm1787, %v1783, inf
    %1789 = vmin.xlane.f32.xlu0 %v1788
    %v1790 = vpop.xlane.xlu0 %1789
    %v1791 = vcvt.f32.s32 %v1790
    %v1792 = vcvt.f32.s32 %v1786
    %v1793 = vshll.u32 %v1792, 16
    %v1794 = vadd.s32 %v1793, %v1791
    %vm1795 = vcmp.eq.s32.totalorder %v443, %v1689
    %vm1796 = vcmp.eq.s32.totalorder %v443, %v1704
    %vm1797 = vcmp.eq.s32.totalorder %v443, %v1719
    %vm1798 = vcmp.eq.s32.totalorder %v443, %v1734
    %vm1799 = vcmp.eq.s32.totalorder %v443, %v1749
    %vm1800 = vcmp.eq.s32.totalorder %v443, %v1764
    %vm1801 = vcmp.eq.s32.totalorder %v443, %v1779
    %vm1802 = vcmp.eq.s32.totalorder %v443, %v1794
    %v1803 = vsel %vm1795, 1.0, 0.0
    %v1804 = vsel %vm1796, 1.0, 0.0
    %v1805 = vsel %vm1797, 1.0, 0.0
    %v1806 = vsel %vm1798, 1.0, 0.0
    %v1807 = vsel %vm1799, 1.0, 0.0
    %v1808 = vsel %vm1800, 1.0, 0.0
    %v1809 = vsel %vm1801, 1.0, 0.0
    %v1810 = vsel %vm1802, 1.0, 0.0
    %v1811 = vsel %vm1795, 1e+30, %v1627
    %v1812 = vsel %vm1796, 1e+30, %v1628
    %v1813 = vsel %vm1797, 1e+30, %v1629
    %v1814 = vsel %vm1798, 1e+30, %v1630
    %v1815 = vsel %vm1799, 1e+30, %v1631
    %v1816 = vsel %vm1800, 1e+30, %v1632
    %v1817 = vsel %vm1801, 1e+30, %v1633
    %v1818 = vsel %vm1802, 1e+30, %v1634
    %v1819 = vsel %vm444, %v1811, inf
    %1820 = vmin.xlane.f32.xlu0 %v1819
    %v1821 = vpop.xlane.xlu0 %1820
    %v1822 = vsel %vm444, %v1812, inf
    %1823 = vmin.xlane.f32.xlu0 %v1822
    %v1824 = vpop.xlane.xlu0 %1823
    %v1825 = vsel %vm444, %v1813, inf
    %1826 = vmin.xlane.f32.xlu0 %v1825
    %v1827 = vpop.xlane.xlu0 %1826
    %v1828 = vsel %vm444, %v1814, inf
    %1829 = vmin.xlane.f32.xlu0 %v1828
    %v1830 = vpop.xlane.xlu0 %1829
    %v1831 = vsel %vm444, %v1815, inf
    %1832 = vmin.xlane.f32.xlu0 %v1831
    %v1833 = vpop.xlane.xlu0 %1832
    %v1834 = vsel %vm444, %v1816, inf
    %1835 = vmin.xlane.f32.xlu0 %v1834
    %v1836 = vpop.xlane.xlu0 %1835
    %v1837 = vsel %vm444, %v1817, inf
    %1838 = vmin.xlane.f32.xlu0 %v1837
    %v1839 = vpop.xlane.xlu0 %1838
    %v1840 = vsel %vm444, %v1818, inf
    %1841 = vmin.xlane.f32.xlu0 %v1840
    %v1842 = vpop.xlane.xlu0 %1841
    %vm1843 = vcmp.le.f32.partialorder %v1811, %v1821
    %vm1844 = vcmp.le.f32.partialorder %v1812, %v1824
    %vm1845 = vcmp.le.f32.partialorder %v1813, %v1827
    %vm1846 = vcmp.le.f32.partialorder %v1814, %v1830
    %vm1847 = vcmp.le.f32.partialorder %v1815, %v1833
    %vm1848 = vcmp.le.f32.partialorder %v1816, %v1836
    %vm1849 = vcmp.le.f32.partialorder %v1817, %v1839
    %vm1850 = vcmp.le.f32.partialorder %v1818, %v1842
    %v1851 = vsel %vm1843, %v443, 64
    %v1852 = vsel %vm1844, %v443, 64
    %v1853 = vsel %vm1845, %v443, 64
    %v1854 = vsel %vm1846, %v443, 64
    %v1855 = vsel %vm1847, %v443, 64
    %v1856 = vsel %vm1848, %v443, 64
    %v1857 = vsel %vm1849, %v443, 64
    %v1858 = vsel %vm1850, %v443, 64
    %v1859 = vsel %vm444, %v1851, 2147483647
    %v1860 = vand.u32 %v1859, 65535
    %v1861 = vshra.s32 %v1859, 16
    %v1862 = vcvt.s32.f32 %v1860
    %v1863 = vcvt.s32.f32 %v1861
    %1864 = vmin.xlane.f32.xlu0 %v1863
    %v1865 = vpop.xlane.xlu0 %1864
    %vm1866 = vcmp.eq.f32.partialorder %v1863, %v1865
    %v1867 = vsel %vm1866, %v1862, inf
    %1868 = vmin.xlane.f32.xlu0 %v1867
    %v1869 = vpop.xlane.xlu0 %1868
    %v1870 = vcvt.f32.s32 %v1869
    %v1871 = vcvt.f32.s32 %v1865
    %v1872 = vshll.u32 %v1871, 16
    %v1873 = vadd.s32 %v1872, %v1870
    %v1874 = vsel %vm444, %v1852, 2147483647
    %v1875 = vand.u32 %v1874, 65535
    %v1876 = vshra.s32 %v1874, 16
    %v1877 = vcvt.s32.f32 %v1875
    %v1878 = vcvt.s32.f32 %v1876
    %1879 = vmin.xlane.f32.xlu0 %v1878
    %v1880 = vpop.xlane.xlu0 %1879
    %vm1881 = vcmp.eq.f32.partialorder %v1878, %v1880
    %v1882 = vsel %vm1881, %v1877, inf
    %1883 = vmin.xlane.f32.xlu0 %v1882
    %v1884 = vpop.xlane.xlu0 %1883
    %v1885 = vcvt.f32.s32 %v1884
    %v1886 = vcvt.f32.s32 %v1880
    %v1887 = vshll.u32 %v1886, 16
    %v1888 = vadd.s32 %v1887, %v1885
    %v1889 = vsel %vm444, %v1853, 2147483647
    %v1890 = vand.u32 %v1889, 65535
    %v1891 = vshra.s32 %v1889, 16
    %v1892 = vcvt.s32.f32 %v1890
    %v1893 = vcvt.s32.f32 %v1891
    %1894 = vmin.xlane.f32.xlu0 %v1893
    %v1895 = vpop.xlane.xlu0 %1894
    %vm1896 = vcmp.eq.f32.partialorder %v1893, %v1895
    %v1897 = vsel %vm1896, %v1892, inf
    %1898 = vmin.xlane.f32.xlu0 %v1897
    %v1899 = vpop.xlane.xlu0 %1898
    %v1900 = vcvt.f32.s32 %v1899
    %v1901 = vcvt.f32.s32 %v1895
    %v1902 = vshll.u32 %v1901, 16
    %v1903 = vadd.s32 %v1902, %v1900
    %v1904 = vsel %vm444, %v1854, 2147483647
    %v1905 = vand.u32 %v1904, 65535
    %v1906 = vshra.s32 %v1904, 16
    %v1907 = vcvt.s32.f32 %v1905
    %v1908 = vcvt.s32.f32 %v1906
    %1909 = vmin.xlane.f32.xlu0 %v1908
    %v1910 = vpop.xlane.xlu0 %1909
    %vm1911 = vcmp.eq.f32.partialorder %v1908, %v1910
    %v1912 = vsel %vm1911, %v1907, inf
    %1913 = vmin.xlane.f32.xlu0 %v1912
    %v1914 = vpop.xlane.xlu0 %1913
    %v1915 = vcvt.f32.s32 %v1914
    %v1916 = vcvt.f32.s32 %v1910
    %v1917 = vshll.u32 %v1916, 16
    %v1918 = vadd.s32 %v1917, %v1915
    %v1919 = vsel %vm444, %v1855, 2147483647
    %v1920 = vand.u32 %v1919, 65535
    %v1921 = vshra.s32 %v1919, 16
    %v1922 = vcvt.s32.f32 %v1920
    %v1923 = vcvt.s32.f32 %v1921
    %1924 = vmin.xlane.f32.xlu0 %v1923
    %v1925 = vpop.xlane.xlu0 %1924
    %vm1926 = vcmp.eq.f32.partialorder %v1923, %v1925
    %v1927 = vsel %vm1926, %v1922, inf
    %1928 = vmin.xlane.f32.xlu0 %v1927
    %v1929 = vpop.xlane.xlu0 %1928
    %v1930 = vcvt.f32.s32 %v1929
    %v1931 = vcvt.f32.s32 %v1925
    %v1932 = vshll.u32 %v1931, 16
    %v1933 = vadd.s32 %v1932, %v1930
    %v1934 = vsel %vm444, %v1856, 2147483647
    %v1935 = vand.u32 %v1934, 65535
    %v1936 = vshra.s32 %v1934, 16
    %v1937 = vcvt.s32.f32 %v1935
    %v1938 = vcvt.s32.f32 %v1936
    %1939 = vmin.xlane.f32.xlu0 %v1938
    %v1940 = vpop.xlane.xlu0 %1939
    %vm1941 = vcmp.eq.f32.partialorder %v1938, %v1940
    %v1942 = vsel %vm1941, %v1937, inf
    %1943 = vmin.xlane.f32.xlu0 %v1942
    %v1944 = vpop.xlane.xlu0 %1943
    %v1945 = vcvt.f32.s32 %v1944
    %v1946 = vcvt.f32.s32 %v1940
    %v1947 = vshll.u32 %v1946, 16
    %v1948 = vadd.s32 %v1947, %v1945
    %v1949 = vsel %vm444, %v1857, 2147483647
    %v1950 = vand.u32 %v1949, 65535
    %v1951 = vshra.s32 %v1949, 16
    %v1952 = vcvt.s32.f32 %v1950
    %v1953 = vcvt.s32.f32 %v1951
    %1954 = vmin.xlane.f32.xlu0 %v1953
    %v1955 = vpop.xlane.xlu0 %1954
    %vm1956 = vcmp.eq.f32.partialorder %v1953, %v1955
    %v1957 = vsel %vm1956, %v1952, inf
    %1958 = vmin.xlane.f32.xlu0 %v1957
    %v1959 = vpop.xlane.xlu0 %1958
    %v1960 = vcvt.f32.s32 %v1959
    %v1961 = vcvt.f32.s32 %v1955
    %v1962 = vshll.u32 %v1961, 16
    %v1963 = vadd.s32 %v1962, %v1960
    %v1964 = vsel %vm444, %v1858, 2147483647
    %v1965 = vand.u32 %v1964, 65535
    %v1966 = vshra.s32 %v1964, 16
    %v1967 = vcvt.s32.f32 %v1965
    %v1968 = vcvt.s32.f32 %v1966
    %1969 = vmin.xlane.f32.xlu0 %v1968
    %v1970 = vpop.xlane.xlu0 %1969
    %vm1971 = vcmp.eq.f32.partialorder %v1968, %v1970
    %v1972 = vsel %vm1971, %v1967, inf
    %1973 = vmin.xlane.f32.xlu0 %v1972
    %v1974 = vpop.xlane.xlu0 %1973
    %v1975 = vcvt.f32.s32 %v1974
    %v1976 = vcvt.f32.s32 %v1970
    %v1977 = vshll.u32 %v1976, 16
    %v1978 = vadd.s32 %v1977, %v1975
    %vm1979 = vcmp.eq.s32.totalorder %v443, %v1873
    %vm1980 = vcmp.eq.s32.totalorder %v443, %v1888
    %vm1981 = vcmp.eq.s32.totalorder %v443, %v1903
    %vm1982 = vcmp.eq.s32.totalorder %v443, %v1918
    %vm1983 = vcmp.eq.s32.totalorder %v443, %v1933
    %vm1984 = vcmp.eq.s32.totalorder %v443, %v1948
    %vm1985 = vcmp.eq.s32.totalorder %v443, %v1963
    %vm1986 = vcmp.eq.s32.totalorder %v443, %v1978
    %v1987 = vsel %vm1979, 1.0, 0.0
    %v1988 = vsel %vm1980, 1.0, 0.0
    %v1989 = vsel %vm1981, 1.0, 0.0
    %v1990 = vsel %vm1982, 1.0, 0.0
    %v1991 = vsel %vm1983, 1.0, 0.0
    %v1992 = vsel %vm1984, 1.0, 0.0
    %v1993 = vsel %vm1985, 1.0, 0.0
    %v1994 = vsel %vm1986, 1.0, 0.0
    %v1995 = vsel %vm1979, 1e+30, %v1811
    %v1996 = vsel %vm1980, 1e+30, %v1812
    %v1997 = vsel %vm1981, 1e+30, %v1813
    %v1998 = vsel %vm1982, 1e+30, %v1814
    %v1999 = vsel %vm1983, 1e+30, %v1815
    %v2000 = vsel %vm1984, 1e+30, %v1816
    %v2001 = vsel %vm1985, 1e+30, %v1817
    %v2002 = vsel %vm1986, 1e+30, %v1818
    %v2003 = vsel %vm444, %v1995, inf
    %2004 = vmin.xlane.f32.xlu0 %v2003
    %v2005 = vpop.xlane.xlu0 %2004
    %v2006 = vsel %vm444, %v1996, inf
    %2007 = vmin.xlane.f32.xlu0 %v2006
    %v2008 = vpop.xlane.xlu0 %2007
    %v2009 = vsel %vm444, %v1997, inf
    %2010 = vmin.xlane.f32.xlu0 %v2009
    %v2011 = vpop.xlane.xlu0 %2010
    %v2012 = vsel %vm444, %v1998, inf
    %2013 = vmin.xlane.f32.xlu0 %v2012
    %v2014 = vpop.xlane.xlu0 %2013
    %v2015 = vsel %vm444, %v1999, inf
    %2016 = vmin.xlane.f32.xlu0 %v2015
    %v2017 = vpop.xlane.xlu0 %2016
    %v2018 = vsel %vm444, %v2000, inf
    %2019 = vmin.xlane.f32.xlu0 %v2018
    %v2020 = vpop.xlane.xlu0 %2019
    %v2021 = vsel %vm444, %v2001, inf
    %2022 = vmin.xlane.f32.xlu0 %v2021
    %v2023 = vpop.xlane.xlu0 %2022
    %v2024 = vsel %vm444, %v2002, inf
    %2025 = vmin.xlane.f32.xlu0 %v2024
    %v2026 = vpop.xlane.xlu0 %2025
    %vm2027 = vcmp.le.f32.partialorder %v1995, %v2005
    %vm2028 = vcmp.le.f32.partialorder %v1996, %v2008
    %vm2029 = vcmp.le.f32.partialorder %v1997, %v2011
    %vm2030 = vcmp.le.f32.partialorder %v1998, %v2014
    %vm2031 = vcmp.le.f32.partialorder %v1999, %v2017
    %vm2032 = vcmp.le.f32.partialorder %v2000, %v2020
    %vm2033 = vcmp.le.f32.partialorder %v2001, %v2023
    %vm2034 = vcmp.le.f32.partialorder %v2002, %v2026
    %v2035 = vsel %vm2027, %v443, 64
    %v2036 = vsel %vm2028, %v443, 64
    %v2037 = vsel %vm2029, %v443, 64
    %v2038 = vsel %vm2030, %v443, 64
    %v2039 = vsel %vm2031, %v443, 64
    %v2040 = vsel %vm2032, %v443, 64
    %v2041 = vsel %vm2033, %v443, 64
    %v2042 = vsel %vm2034, %v443, 64
    %v2043 = vsel %vm444, %v2035, 2147483647
    %v2044 = vand.u32 %v2043, 65535
    %v2045 = vshra.s32 %v2043, 16
    %v2046 = vcvt.s32.f32 %v2044
    %v2047 = vcvt.s32.f32 %v2045
    %2048 = vmin.xlane.f32.xlu0 %v2047
    %v2049 = vpop.xlane.xlu0 %2048
    %vm2050 = vcmp.eq.f32.partialorder %v2047, %v2049
    %v2051 = vsel %vm2050, %v2046, inf
    %2052 = vmin.xlane.f32.xlu0 %v2051
    %v2053 = vpop.xlane.xlu0 %2052
    %v2054 = vcvt.f32.s32 %v2053
    %v2055 = vcvt.f32.s32 %v2049
    %v2056 = vshll.u32 %v2055, 16
    %v2057 = vadd.s32 %v2056, %v2054
    %v2058 = vsel %vm444, %v2036, 2147483647
    %v2059 = vand.u32 %v2058, 65535
    %v2060 = vshra.s32 %v2058, 16
    %v2061 = vcvt.s32.f32 %v2059
    %v2062 = vcvt.s32.f32 %v2060
    %2063 = vmin.xlane.f32.xlu0 %v2062
    %v2064 = vpop.xlane.xlu0 %2063
    %vm2065 = vcmp.eq.f32.partialorder %v2062, %v2064
    %v2066 = vsel %vm2065, %v2061, inf
    %2067 = vmin.xlane.f32.xlu0 %v2066
    %v2068 = vpop.xlane.xlu0 %2067
    %v2069 = vcvt.f32.s32 %v2068
    %v2070 = vcvt.f32.s32 %v2064
    %v2071 = vshll.u32 %v2070, 16
    %v2072 = vadd.s32 %v2071, %v2069
    %v2073 = vsel %vm444, %v2037, 2147483647
    %v2074 = vand.u32 %v2073, 65535
    %v2075 = vshra.s32 %v2073, 16
    %v2076 = vcvt.s32.f32 %v2074
    %v2077 = vcvt.s32.f32 %v2075
    %2078 = vmin.xlane.f32.xlu0 %v2077
    %v2079 = vpop.xlane.xlu0 %2078
    %vm2080 = vcmp.eq.f32.partialorder %v2077, %v2079
    %v2081 = vsel %vm2080, %v2076, inf
    %2082 = vmin.xlane.f32.xlu0 %v2081
    %v2083 = vpop.xlane.xlu0 %2082
    %v2084 = vcvt.f32.s32 %v2083
    %v2085 = vcvt.f32.s32 %v2079
    %v2086 = vshll.u32 %v2085, 16
    %v2087 = vadd.s32 %v2086, %v2084
    %v2088 = vsel %vm444, %v2038, 2147483647
    %v2089 = vand.u32 %v2088, 65535
    %v2090 = vshra.s32 %v2088, 16
    %v2091 = vcvt.s32.f32 %v2089
    %v2092 = vcvt.s32.f32 %v2090
    %2093 = vmin.xlane.f32.xlu0 %v2092
    %v2094 = vpop.xlane.xlu0 %2093
    %vm2095 = vcmp.eq.f32.partialorder %v2092, %v2094
    %v2096 = vsel %vm2095, %v2091, inf
    %2097 = vmin.xlane.f32.xlu0 %v2096
    %v2098 = vpop.xlane.xlu0 %2097
    %v2099 = vcvt.f32.s32 %v2098
    %v2100 = vcvt.f32.s32 %v2094
    %v2101 = vshll.u32 %v2100, 16
    %v2102 = vadd.s32 %v2101, %v2099
    %v2103 = vsel %vm444, %v2039, 2147483647
    %v2104 = vand.u32 %v2103, 65535
    %v2105 = vshra.s32 %v2103, 16
    %v2106 = vcvt.s32.f32 %v2104
    %v2107 = vcvt.s32.f32 %v2105
    %2108 = vmin.xlane.f32.xlu0 %v2107
    %v2109 = vpop.xlane.xlu0 %2108
    %vm2110 = vcmp.eq.f32.partialorder %v2107, %v2109
    %v2111 = vsel %vm2110, %v2106, inf
    %2112 = vmin.xlane.f32.xlu0 %v2111
    %v2113 = vpop.xlane.xlu0 %2112
    %v2114 = vcvt.f32.s32 %v2113
    %v2115 = vcvt.f32.s32 %v2109
    %v2116 = vshll.u32 %v2115, 16
    %v2117 = vadd.s32 %v2116, %v2114
    %v2118 = vsel %vm444, %v2040, 2147483647
    %v2119 = vand.u32 %v2118, 65535
    %v2120 = vshra.s32 %v2118, 16
    %v2121 = vcvt.s32.f32 %v2119
    %v2122 = vcvt.s32.f32 %v2120
    %2123 = vmin.xlane.f32.xlu0 %v2122
    %v2124 = vpop.xlane.xlu0 %2123
    %vm2125 = vcmp.eq.f32.partialorder %v2122, %v2124
    %v2126 = vsel %vm2125, %v2121, inf
    %2127 = vmin.xlane.f32.xlu0 %v2126
    %v2128 = vpop.xlane.xlu0 %2127
    %v2129 = vcvt.f32.s32 %v2128
    %v2130 = vcvt.f32.s32 %v2124
    %v2131 = vshll.u32 %v2130, 16
    %v2132 = vadd.s32 %v2131, %v2129
    %v2133 = vsel %vm444, %v2041, 2147483647
    %v2134 = vand.u32 %v2133, 65535
    %v2135 = vshra.s32 %v2133, 16
    %v2136 = vcvt.s32.f32 %v2134
    %v2137 = vcvt.s32.f32 %v2135
    %2138 = vmin.xlane.f32.xlu0 %v2137
    %v2139 = vpop.xlane.xlu0 %2138
    %vm2140 = vcmp.eq.f32.partialorder %v2137, %v2139
    %v2141 = vsel %vm2140, %v2136, inf
    %2142 = vmin.xlane.f32.xlu0 %v2141
    %v2143 = vpop.xlane.xlu0 %2142
    %v2144 = vcvt.f32.s32 %v2143
    %v2145 = vcvt.f32.s32 %v2139
    %v2146 = vshll.u32 %v2145, 16
    %v2147 = vadd.s32 %v2146, %v2144
    %v2148 = vsel %vm444, %v2042, 2147483647
    %v2149 = vand.u32 %v2148, 65535
    %v2150 = vshra.s32 %v2148, 16
    %v2151 = vcvt.s32.f32 %v2149
    %v2152 = vcvt.s32.f32 %v2150
    %2153 = vmin.xlane.f32.xlu0 %v2152
    %v2154 = vpop.xlane.xlu0 %2153
    %vm2155 = vcmp.eq.f32.partialorder %v2152, %v2154
    %v2156 = vsel %vm2155, %v2151, inf
    %2157 = vmin.xlane.f32.xlu0 %v2156
    %v2158 = vpop.xlane.xlu0 %2157
    %v2159 = vcvt.f32.s32 %v2158
    %v2160 = vcvt.f32.s32 %v2154
    %v2161 = vshll.u32 %v2160, 16
    %v2162 = vadd.s32 %v2161, %v2159
    %vm2163 = vcmp.eq.s32.totalorder %v443, %v2057
    %vm2164 = vcmp.eq.s32.totalorder %v443, %v2072
    %vm2165 = vcmp.eq.s32.totalorder %v443, %v2087
    %vm2166 = vcmp.eq.s32.totalorder %v443, %v2102
    %vm2167 = vcmp.eq.s32.totalorder %v443, %v2117
    %vm2168 = vcmp.eq.s32.totalorder %v443, %v2132
    %vm2169 = vcmp.eq.s32.totalorder %v443, %v2147
    %vm2170 = vcmp.eq.s32.totalorder %v443, %v2162
    %v2171 = vsel %vm2163, 1.0, 0.0
    %v2172 = vsel %vm2164, 1.0, 0.0
    %v2173 = vsel %vm2165, 1.0, 0.0
    %v2174 = vsel %vm2166, 1.0, 0.0
    %v2175 = vsel %vm2167, 1.0, 0.0
    %v2176 = vsel %vm2168, 1.0, 0.0
    %v2177 = vsel %vm2169, 1.0, 0.0
    %v2178 = vsel %vm2170, 1.0, 0.0
    %v2179 = vsel %vm2163, 1e+30, %v1995
    %v2180 = vsel %vm2164, 1e+30, %v1996
    %v2181 = vsel %vm2165, 1e+30, %v1997
    %v2182 = vsel %vm2166, 1e+30, %v1998
    %v2183 = vsel %vm2167, 1e+30, %v1999
    %v2184 = vsel %vm2168, 1e+30, %v2000
    %v2185 = vsel %vm2169, 1e+30, %v2001
    %v2186 = vsel %vm2170, 1e+30, %v2002
    %v2187 = vsel %vm444, %v2179, inf
    %2188 = vmin.xlane.f32.xlu0 %v2187
    %v2189 = vpop.xlane.xlu0 %2188
    %v2190 = vsel %vm444, %v2180, inf
    %2191 = vmin.xlane.f32.xlu0 %v2190
    %v2192 = vpop.xlane.xlu0 %2191
    %v2193 = vsel %vm444, %v2181, inf
    %2194 = vmin.xlane.f32.xlu0 %v2193
    %v2195 = vpop.xlane.xlu0 %2194
    %v2196 = vsel %vm444, %v2182, inf
    %2197 = vmin.xlane.f32.xlu0 %v2196
    %v2198 = vpop.xlane.xlu0 %2197
    %v2199 = vsel %vm444, %v2183, inf
    %2200 = vmin.xlane.f32.xlu0 %v2199
    %v2201 = vpop.xlane.xlu0 %2200
    %v2202 = vsel %vm444, %v2184, inf
    %2203 = vmin.xlane.f32.xlu0 %v2202
    %v2204 = vpop.xlane.xlu0 %2203
    %v2205 = vsel %vm444, %v2185, inf
    %2206 = vmin.xlane.f32.xlu0 %v2205
    %v2207 = vpop.xlane.xlu0 %2206
    %v2208 = vsel %vm444, %v2186, inf
    %2209 = vmin.xlane.f32.xlu0 %v2208
    %v2210 = vpop.xlane.xlu0 %2209
    %vm2211 = vcmp.le.f32.partialorder %v2179, %v2189
    %vm2212 = vcmp.le.f32.partialorder %v2180, %v2192
    %vm2213 = vcmp.le.f32.partialorder %v2181, %v2195
    %vm2214 = vcmp.le.f32.partialorder %v2182, %v2198
    %vm2215 = vcmp.le.f32.partialorder %v2183, %v2201
    %vm2216 = vcmp.le.f32.partialorder %v2184, %v2204
    %vm2217 = vcmp.le.f32.partialorder %v2185, %v2207
    %vm2218 = vcmp.le.f32.partialorder %v2186, %v2210
    %v2219 = vsel %vm2211, %v443, 64
    %v2220 = vsel %vm2212, %v443, 64
    %v2221 = vsel %vm2213, %v443, 64
    %v2222 = vsel %vm2214, %v443, 64
    %v2223 = vsel %vm2215, %v443, 64
    %v2224 = vsel %vm2216, %v443, 64
    %v2225 = vsel %vm2217, %v443, 64
    %v2226 = vsel %vm2218, %v443, 64
    %v2227 = vsel %vm444, %v2219, 2147483647
    %v2228 = vand.u32 %v2227, 65535
    %v2229 = vshra.s32 %v2227, 16
    %v2230 = vcvt.s32.f32 %v2228
    %v2231 = vcvt.s32.f32 %v2229
    %2232 = vmin.xlane.f32.xlu0 %v2231
    %v2233 = vpop.xlane.xlu0 %2232
    %vm2234 = vcmp.eq.f32.partialorder %v2231, %v2233
    %v2235 = vsel %vm2234, %v2230, inf
    %2236 = vmin.xlane.f32.xlu0 %v2235
    %v2237 = vpop.xlane.xlu0 %2236
    %v2238 = vcvt.f32.s32 %v2237
    %v2239 = vcvt.f32.s32 %v2233
    %v2240 = vshll.u32 %v2239, 16
    %v2241 = vadd.s32 %v2240, %v2238
    %v2242 = vsel %vm444, %v2220, 2147483647
    %v2243 = vand.u32 %v2242, 65535
    %v2244 = vshra.s32 %v2242, 16
    %v2245 = vcvt.s32.f32 %v2243
    %v2246 = vcvt.s32.f32 %v2244
    %2247 = vmin.xlane.f32.xlu0 %v2246
    %v2248 = vpop.xlane.xlu0 %2247
    %vm2249 = vcmp.eq.f32.partialorder %v2246, %v2248
    %v2250 = vsel %vm2249, %v2245, inf
    %2251 = vmin.xlane.f32.xlu0 %v2250
    %v2252 = vpop.xlane.xlu0 %2251
    %v2253 = vcvt.f32.s32 %v2252
    %v2254 = vcvt.f32.s32 %v2248
    %v2255 = vshll.u32 %v2254, 16
    %v2256 = vadd.s32 %v2255, %v2253
    %v2257 = vsel %vm444, %v2221, 2147483647
    %v2258 = vand.u32 %v2257, 65535
    %v2259 = vshra.s32 %v2257, 16
    %v2260 = vcvt.s32.f32 %v2258
    %v2261 = vcvt.s32.f32 %v2259
    %2262 = vmin.xlane.f32.xlu0 %v2261
    %v2263 = vpop.xlane.xlu0 %2262
    %vm2264 = vcmp.eq.f32.partialorder %v2261, %v2263
    %v2265 = vsel %vm2264, %v2260, inf
    %2266 = vmin.xlane.f32.xlu0 %v2265
    %v2267 = vpop.xlane.xlu0 %2266
    %v2268 = vcvt.f32.s32 %v2267
    %v2269 = vcvt.f32.s32 %v2263
    %v2270 = vshll.u32 %v2269, 16
    %v2271 = vadd.s32 %v2270, %v2268
    %v2272 = vsel %vm444, %v2222, 2147483647
    %v2273 = vand.u32 %v2272, 65535
    %v2274 = vshra.s32 %v2272, 16
    %v2275 = vcvt.s32.f32 %v2273
    %v2276 = vcvt.s32.f32 %v2274
    %2277 = vmin.xlane.f32.xlu0 %v2276
    %v2278 = vpop.xlane.xlu0 %2277
    %vm2279 = vcmp.eq.f32.partialorder %v2276, %v2278
    %v2280 = vsel %vm2279, %v2275, inf
    %2281 = vmin.xlane.f32.xlu0 %v2280
    %v2282 = vpop.xlane.xlu0 %2281
    %v2283 = vcvt.f32.s32 %v2282
    %v2284 = vcvt.f32.s32 %v2278
    %v2285 = vshll.u32 %v2284, 16
    %v2286 = vadd.s32 %v2285, %v2283
    %v2287 = vsel %vm444, %v2223, 2147483647
    %v2288 = vand.u32 %v2287, 65535
    %v2289 = vshra.s32 %v2287, 16
    %v2290 = vcvt.s32.f32 %v2288
    %v2291 = vcvt.s32.f32 %v2289
    %2292 = vmin.xlane.f32.xlu0 %v2291
    %v2293 = vpop.xlane.xlu0 %2292
    %vm2294 = vcmp.eq.f32.partialorder %v2291, %v2293
    %v2295 = vsel %vm2294, %v2290, inf
    %2296 = vmin.xlane.f32.xlu0 %v2295
    %v2297 = vpop.xlane.xlu0 %2296
    %v2298 = vcvt.f32.s32 %v2297
    %v2299 = vcvt.f32.s32 %v2293
    %v2300 = vshll.u32 %v2299, 16
    %v2301 = vadd.s32 %v2300, %v2298
    %v2302 = vsel %vm444, %v2224, 2147483647
    %v2303 = vand.u32 %v2302, 65535
    %v2304 = vshra.s32 %v2302, 16
    %v2305 = vcvt.s32.f32 %v2303
    %v2306 = vcvt.s32.f32 %v2304
    %2307 = vmin.xlane.f32.xlu0 %v2306
    %v2308 = vpop.xlane.xlu0 %2307
    %vm2309 = vcmp.eq.f32.partialorder %v2306, %v2308
    %v2310 = vsel %vm2309, %v2305, inf
    %2311 = vmin.xlane.f32.xlu0 %v2310
    %v2312 = vpop.xlane.xlu0 %2311
    %v2313 = vcvt.f32.s32 %v2312
    %v2314 = vcvt.f32.s32 %v2308
    %v2315 = vshll.u32 %v2314, 16
    %v2316 = vadd.s32 %v2315, %v2313
    %v2317 = vsel %vm444, %v2225, 2147483647
    %v2318 = vand.u32 %v2317, 65535
    %v2319 = vshra.s32 %v2317, 16
    %v2320 = vcvt.s32.f32 %v2318
    %v2321 = vcvt.s32.f32 %v2319
    %2322 = vmin.xlane.f32.xlu0 %v2321
    %v2323 = vpop.xlane.xlu0 %2322
    %vm2324 = vcmp.eq.f32.partialorder %v2321, %v2323
    %v2325 = vsel %vm2324, %v2320, inf
    %2326 = vmin.xlane.f32.xlu0 %v2325
    %v2327 = vpop.xlane.xlu0 %2326
    %v2328 = vcvt.f32.s32 %v2327
    %v2329 = vcvt.f32.s32 %v2323
    %v2330 = vshll.u32 %v2329, 16
    %v2331 = vadd.s32 %v2330, %v2328
    %v2332 = vsel %vm444, %v2226, 2147483647
    %v2333 = vand.u32 %v2332, 65535
    %v2334 = vshra.s32 %v2332, 16
    %v2335 = vcvt.s32.f32 %v2333
    %v2336 = vcvt.s32.f32 %v2334
    %2337 = vmin.xlane.f32.xlu0 %v2336
    %v2338 = vpop.xlane.xlu0 %2337
    %vm2339 = vcmp.eq.f32.partialorder %v2336, %v2338
    %v2340 = vsel %vm2339, %v2335, inf
    %2341 = vmin.xlane.f32.xlu0 %v2340
    %v2342 = vpop.xlane.xlu0 %2341
    %v2343 = vcvt.f32.s32 %v2342
    %v2344 = vcvt.f32.s32 %v2338
    %v2345 = vshll.u32 %v2344, 16
    %v2346 = vadd.s32 %v2345, %v2343
    %vm2347 = vcmp.eq.s32.totalorder %v443, %v2241
    %vm2348 = vcmp.eq.s32.totalorder %v443, %v2256
    %vm2349 = vcmp.eq.s32.totalorder %v443, %v2271
    %vm2350 = vcmp.eq.s32.totalorder %v443, %v2286
    %vm2351 = vcmp.eq.s32.totalorder %v443, %v2301
    %vm2352 = vcmp.eq.s32.totalorder %v443, %v2316
    %vm2353 = vcmp.eq.s32.totalorder %v443, %v2331
    %vm2354 = vcmp.eq.s32.totalorder %v443, %v2346
    %v2355 = vsel %vm2347, 1.0, 0.0
    %v2356 = vsel %vm2348, 1.0, 0.0
    %v2357 = vsel %vm2349, 1.0, 0.0
    %v2358 = vsel %vm2350, 1.0, 0.0
    %v2359 = vsel %vm2351, 1.0, 0.0
    %v2360 = vsel %vm2352, 1.0, 0.0
    %v2361 = vsel %vm2353, 1.0, 0.0
    %v2362 = vsel %vm2354, 1.0, 0.0
    %v2363 = vpack.c.bf16 %v1804, %v1803
    %v2364 = vpack.c.bf16 %v1806, %v1805
    %v2365 = vpack.c.bf16 %v1808, %v1807
    %v2366 = vpack.c.bf16 %v1810, %v1809
    %v2367 = vpack.c.bf16 %v1988, %v1987
    %v2368 = vpack.c.bf16 %v1990, %v1989
    %v2369 = vpack.c.bf16 %v1992, %v1991
    %v2370 = vpack.c.bf16 %v1994, %v1993
    %v2371 = vpack.c.bf16 %v2172, %v2171
    %v2372 = vpack.c.bf16 %v2174, %v2173
    %v2373 = vpack.c.bf16 %v2176, %v2175
    %v2374 = vpack.c.bf16 %v2178, %v2177
    %v2375 = vpack.c.bf16 %v2356, %v2355
    %v2376 = vpack.c.bf16 %v2358, %v2357
    %v2377 = vpack.c.bf16 %v2360, %v2359
    %v2378 = vpack.c.bf16 %v2362, %v2361
    %v2380 = vsel %vm444, %v2363, 0
    %v2383 = vsel %vm444, %v2364, 0
    %v2386 = vsel %vm444, %v2365, 0
    %v2389 = vsel %vm444, %v2366, 0
    %v2392 = vsel %vm444, %v2367, 0
    %v2395 = vsel %vm444, %v2368, 0
    %v2398 = vsel %vm444, %v2369, 0
    %v2401 = vsel %vm444, %v2370, 0
    %v2404 = vsel %vm444, %v2371, 0
    %v2407 = vsel %vm444, %v2372, 0
    %v2410 = vsel %vm444, %v2373, 0
    %v2413 = vsel %vm444, %v2374, 0
    %v2416 = vsel %vm444, %v2375, 0
    %v2419 = vsel %vm444, %v2376, 0
    %v2422 = vsel %vm444, %v2377, 0
    %v2425 = vsel %vm444, %v2378, 0
    %2427 = vmatprep.subr.bf16.mxu0 0
    %2428 = vmatpush1.bf16.msra.mxu0 0
    %2429 = vmatprep.subr.bf16.mxu0 0
    %2430 = vmatpush1.bf16.msra.mxu0 0
    %2431 = vmatprep.subr.bf16.mxu0 0
    %2432 = vmatpush1.bf16.msra.mxu0 0
    %2433 = vmatprep.subr.bf16.mxu0 0
    %2434 = vmatpush1.bf16.msra.mxu0 0
    %2435 = vmatprep.subr.bf16.mxu0 0
    %2436 = vmatpush1.bf16.msra.mxu0 %v228
    %2437 = vmatprep.subr.bf16.mxu0 0
    %2438 = vmatpush1.bf16.msra.mxu0 %v227
    %2439 = vmatprep.subr.bf16.mxu0 0
    %2440 = vmatpush1.bf16.msra.mxu0 %v226
    %2441 = vmatprep.subr.bf16.mxu0 0
    %2442 = vmatpush1.bf16.msra.mxu0 %v225
    %2443 = vmatprep.subr.bf16.mxu0 0
    %2444 = vmatpush2.bf16.msra.mxu0 0
    %2445 = vmatprep.subr.bf16.mxu0 0
    %2446 = vmatpush2.bf16.msra.mxu0 0
    %2447 = vmatprep.subr.bf16.mxu0 0
    %2448 = vmatpush2.bf16.msra.mxu0 0
    %2449 = vmatprep.subr.bf16.mxu0 0
    %2450 = vmatpush2.bf16.msra.mxu0 0
    %2451 = vmatprep.subr.bf16.mxu0 0
    %2452 = vmatpush2.bf16.msra.mxu0 0
    %2453 = vmatprep.subr.bf16.mxu0 0
    %2454 = vmatpush2.bf16.msra.mxu0 0
    %2455 = vmatprep.subr.bf16.mxu0 0
    %2456 = vmatpush2.bf16.msra.mxu0 0
    %2457 = vmatprep.subr.bf16.mxu0 0
    %2458 = vmatpush2.bf16.msra.mxu0 0
    %2459 = vmatprep.mubr.bf16.mxu0 0
    %2460 = vmatmul.mubr.bf16.gmra.mxu0 %v2380
    %v2461 = vpop.f32.mrf.mxu0
    %v2462 = vadd.f32 0.0, %v2461
    %v2463 = vpop.f32.mrf.mxu0
    %v2464 = vpop.f32.mrf.mxu0
    %v2465 = vadd.f32 0.0, %v2464
    %v2466 = vpop.f32.mrf.mxu0
    %2467 = vmatprep.mubr.bf16.mxu0 0
    %2468 = vmatmul.mubr.bf16.gmra.mxu0 %v2383
    %v2469 = vpop.f32.mrf.mxu0
    %v2470 = vadd.f32 0.0, %v2469
    %v2471 = vpop.f32.mrf.mxu0
    %v2472 = vpop.f32.mrf.mxu0
    %v2473 = vadd.f32 0.0, %v2472
    %v2474 = vpop.f32.mrf.mxu0
    %2475 = vmatprep.mubr.bf16.mxu0 0
    %2476 = vmatmul.mubr.bf16.gmra.mxu0 %v2386
    %v2477 = vpop.f32.mrf.mxu0
    %v2478 = vadd.f32 0.0, %v2477
    %v2479 = vpop.f32.mrf.mxu0
    %v2480 = vpop.f32.mrf.mxu0
    %v2481 = vadd.f32 0.0, %v2480
    %v2482 = vpop.f32.mrf.mxu0
    %2483 = vmatprep.mubr.bf16.mxu0 0
    %2484 = vmatmul.mubr.bf16.gmra.mxu0 %v2389
    %v2485 = vpop.f32.mrf.mxu0
    %v2486 = vadd.f32 0.0, %v2485
    %v2487 = vpop.f32.mrf.mxu0
    %v2488 = vpop.f32.mrf.mxu0
    %v2489 = vadd.f32 0.0, %v2488
    %v2490 = vpop.f32.mrf.mxu0
    %2491 = vmatprep.mubr.bf16.mxu0 0
    %2492 = vmatmul.mubr.bf16.gmra.mxu0 %v2392
    %v2493 = vpop.f32.mrf.mxu0
    %v2494 = vadd.f32 0.0, %v2493
    %v2495 = vpop.f32.mrf.mxu0
    %v2496 = vpop.f32.mrf.mxu0
    %v2497 = vadd.f32 0.0, %v2496
    %v2498 = vpop.f32.mrf.mxu0
    %2499 = vmatprep.mubr.bf16.mxu0 0
    %2500 = vmatmul.mubr.bf16.gmra.mxu0 %v2395
    %v2501 = vpop.f32.mrf.mxu0
    %v2502 = vadd.f32 0.0, %v2501
    %v2503 = vpop.f32.mrf.mxu0
    %v2504 = vpop.f32.mrf.mxu0
    %v2505 = vadd.f32 0.0, %v2504
    %v2506 = vpop.f32.mrf.mxu0
    %2507 = vmatprep.mubr.bf16.mxu0 0
    %2508 = vmatmul.mubr.bf16.gmra.mxu0 %v2398
    %v2509 = vpop.f32.mrf.mxu0
    %v2510 = vadd.f32 0.0, %v2509
    %v2511 = vpop.f32.mrf.mxu0
    %v2512 = vpop.f32.mrf.mxu0
    %v2513 = vadd.f32 0.0, %v2512
    %v2514 = vpop.f32.mrf.mxu0
    %2515 = vmatprep.mubr.bf16.mxu0 0
    %2516 = vmatmul.mubr.bf16.gmra.mxu0 %v2401
    %v2517 = vpop.f32.mrf.mxu0
    %v2518 = vadd.f32 0.0, %v2517
    %v2519 = vpop.f32.mrf.mxu0
    %v2520 = vpop.f32.mrf.mxu0
    %v2521 = vadd.f32 0.0, %v2520
    %v2522 = vpop.f32.mrf.mxu0
    %2523 = vmatprep.mubr.bf16.mxu0 0
    %2524 = vmatmul.mubr.bf16.gmra.mxu0 %v2404
    %v2525 = vpop.f32.mrf.mxu0
    %v2526 = vadd.f32 0.0, %v2525
    %v2527 = vpop.f32.mrf.mxu0
    %v2528 = vpop.f32.mrf.mxu0
    %v2529 = vadd.f32 0.0, %v2528
    %v2530 = vpop.f32.mrf.mxu0
    %2531 = vmatprep.mubr.bf16.mxu0 0
    %2532 = vmatmul.mubr.bf16.gmra.mxu0 %v2407
    %v2533 = vpop.f32.mrf.mxu0
    %v2534 = vadd.f32 0.0, %v2533
    %v2535 = vpop.f32.mrf.mxu0
    %v2536 = vpop.f32.mrf.mxu0
    %v2537 = vadd.f32 0.0, %v2536
    %v2538 = vpop.f32.mrf.mxu0
    %2539 = vmatprep.mubr.bf16.mxu0 0
    %2540 = vmatmul.mubr.bf16.gmra.mxu0 %v2410
    %v2541 = vpop.f32.mrf.mxu0
    %v2542 = vadd.f32 0.0, %v2541
    %v2543 = vpop.f32.mrf.mxu0
    %v2544 = vpop.f32.mrf.mxu0
    %v2545 = vadd.f32 0.0, %v2544
    %v2546 = vpop.f32.mrf.mxu0
    %2547 = vmatprep.mubr.bf16.mxu0 0
    %2548 = vmatmul.mubr.bf16.gmra.mxu0 %v2413
    %v2549 = vpop.f32.mrf.mxu0
    %v2550 = vadd.f32 0.0, %v2549
    %v2551 = vpop.f32.mrf.mxu0
    %v2552 = vpop.f32.mrf.mxu0
    %v2553 = vadd.f32 0.0, %v2552
    %v2554 = vpop.f32.mrf.mxu0
    %2555 = vmatprep.mubr.bf16.mxu0 0
    %2556 = vmatmul.mubr.bf16.gmra.mxu0 %v2416
    %v2557 = vpop.f32.mrf.mxu0
    %v2558 = vadd.f32 0.0, %v2557
    %v2559 = vpop.f32.mrf.mxu0
    %v2560 = vpop.f32.mrf.mxu0
    %v2561 = vadd.f32 0.0, %v2560
    %v2562 = vpop.f32.mrf.mxu0
    %2563 = vmatprep.mubr.bf16.mxu0 0
    %2564 = vmatmul.mubr.bf16.gmra.mxu0 %v2419
    %v2565 = vpop.f32.mrf.mxu0
    %v2566 = vadd.f32 0.0, %v2565
    %v2567 = vpop.f32.mrf.mxu0
    %v2568 = vpop.f32.mrf.mxu0
    %v2569 = vadd.f32 0.0, %v2568
    %v2570 = vpop.f32.mrf.mxu0
    %2571 = vmatprep.mubr.bf16.mxu0 0
    %2572 = vmatmul.mubr.bf16.gmra.mxu0 %v2422
    %v2573 = vpop.f32.mrf.mxu0
    %v2574 = vadd.f32 0.0, %v2573
    %v2575 = vpop.f32.mrf.mxu0
    %v2576 = vpop.f32.mrf.mxu0
    %v2577 = vadd.f32 0.0, %v2576
    %v2578 = vpop.f32.mrf.mxu0
    %2579 = vmatprep.mubr.bf16.mxu0 0
    %2580 = vmatmul.mubr.bf16.gmra.mxu0 %v2425
    %v2581 = vpop.f32.mrf.mxu0
    %v2582 = vadd.f32 0.0, %v2581
    %v2583 = vpop.f32.mrf.mxu0
    %v2584 = vpop.f32.mrf.mxu0
    %v2585 = vadd.f32 0.0, %v2584
    %v2586 = vpop.f32.mrf.mxu0
    %2587 = vdwg.mxu0
    %v2588 = vmax.f32 %v2462, %v2494
    %v2589 = vmax.f32 %v2465, %v2497
    %v2590 = vmax.f32 %v2470, %v2502
    %v2591 = vmax.f32 %v2473, %v2505
    %v2592 = vmax.f32 %v2478, %v2510
    %v2593 = vmax.f32 %v2481, %v2513
    %v2594 = vmax.f32 %v2486, %v2518
    %v2595 = vmax.f32 %v2489, %v2521
    %v2596 = vmax.f32 %v2588, %v2526
    %v2597 = vmax.f32 %v2589, %v2529
    %v2598 = vmax.f32 %v2590, %v2534
    %v2599 = vmax.f32 %v2591, %v2537
    %v2600 = vmax.f32 %v2592, %v2542
    %v2601 = vmax.f32 %v2593, %v2545
    %v2602 = vmax.f32 %v2594, %v2550
    %v2603 = vmax.f32 %v2595, %v2553
    %v2604 = vmax.f32 %v2596, %v2558
    %v2605 = vmax.f32 %v2597, %v2561
    %v2606 = vmax.f32 %v2598, %v2566
    %v2607 = vmax.f32 %v2599, %v2569
    %v2608 = vmax.f32 %v2600, %v2574
    %v2609 = vmax.f32 %v2601, %v2577
    %v2610 = vmax.f32 %v2602, %v2582
    %v2611 = vmax.f32 %v2603, %v2585
    %v2613 = vlaneseq
    %v2614 = vshrl.u32 %v2613, 7
    %v2615 = vsub.s32 0, %v2614
    %v2616 = vrot.slane %v86, %v2615
    %v2619 = vsel %vm120, %v84, 0
    %2621 = vmatprep.subr.bf16.mxu0 0
    %2622 = vmatpush1.bf16.msra.mxu0 0
    %2623 = vmatprep.subr.bf16.mxu0 0
    %2624 = vmatpush1.bf16.msra.mxu0 0
    %2625 = vmatprep.subr.bf16.mxu0 0
    %2626 = vmatpush1.bf16.msra.mxu0 0
    %2627 = vmatprep.subr.bf16.mxu0 0
    %2628 = vmatpush1.bf16.msra.mxu0 0
    %2629 = vmatprep.subr.bf16.mxu0 0
    %2630 = vmatpush1.bf16.msra.mxu0 0
    %2631 = vmatprep.subr.bf16.mxu0 0
    %2632 = vmatpush1.bf16.msra.mxu0 0
    %2633 = vmatprep.subr.bf16.mxu0 0
    %2634 = vmatpush1.bf16.msra.mxu0 0
    %2635 = vmatprep.subr.bf16.mxu0 0
    %2636 = vmatpush1.bf16.msra.mxu0 %v2619
    %2637 = vmatprep.subr.bf16.mxu0 0
    %2638 = vmatpush2.bf16.msra.mxu0 0
    %2639 = vmatprep.subr.bf16.mxu0 0
    %2640 = vmatpush2.bf16.msra.mxu0 0
    %2641 = vmatprep.subr.bf16.mxu0 0
    %2642 = vmatpush2.bf16.msra.mxu0 0
    %2643 = vmatprep.subr.bf16.mxu0 0
    %2644 = vmatpush2.bf16.msra.mxu0 0
    %2645 = vmatprep.subr.bf16.mxu0 0
    %2646 = vmatpush2.bf16.msra.mxu0 0
    %2647 = vmatprep.subr.bf16.mxu0 0
    %2648 = vmatpush2.bf16.msra.mxu0 0
    %2649 = vmatprep.subr.bf16.mxu0 0
    %2650 = vmatpush2.bf16.msra.mxu0 0
    %2651 = vmatprep.subr.bf16.mxu0 0
    %2652 = vmatpush2.bf16.msra.mxu0 0
    %2653 = vmatprep.mubr.bf16.mxu0 0
    %2654 = vmatmul.mubr.bf16.gmra.mxu0 %v97
    %v2655 = vpop.f32.mrf.mxu0
    %v2656 = vadd.f32 %v2616, %v2655
    %v2657 = vpop.f32.mrf.mxu0
    %v2658 = vpop.f32.mrf.mxu0
    %v2659 = vadd.f32 %v2616, %v2658
    %v2660 = vpop.f32.mrf.mxu0
    %2661 = vmatprep.mubr.bf16.mxu0 0
    %2662 = vmatmul.mubr.bf16.gmra.mxu0 %v100
    %v2663 = vpop.f32.mrf.mxu0
    %v2664 = vadd.f32 %v2616, %v2663
    %v2665 = vpop.f32.mrf.mxu0
    %v2666 = vpop.f32.mrf.mxu0
    %v2667 = vadd.f32 %v2616, %v2666
    %v2668 = vpop.f32.mrf.mxu0
    %2669 = vmatprep.mubr.bf16.mxu0 0
    %2670 = vmatmul.mubr.bf16.gmra.mxu0 %v103
    %v2671 = vpop.f32.mrf.mxu0
    %v2672 = vadd.f32 %v2616, %v2671
    %v2673 = vpop.f32.mrf.mxu0
    %v2674 = vpop.f32.mrf.mxu0
    %v2675 = vadd.f32 %v2616, %v2674
    %v2676 = vpop.f32.mrf.mxu0
    %2677 = vmatprep.mubr.bf16.mxu0 0
    %2678 = vmatmul.mubr.bf16.gmra.mxu0 %v106
    %v2679 = vpop.f32.mrf.mxu0
    %v2680 = vadd.f32 %v2616, %v2679
    %v2681 = vpop.f32.mrf.mxu0
    %v2682 = vpop.f32.mrf.mxu0
    %v2683 = vadd.f32 %v2616, %v2682
    %v2684 = vpop.f32.mrf.mxu0
    %2685 = vmatprep.mubr.bf16.mxu0 0
    %2686 = vmatmul.mubr.bf16.gmra.mxu0 %v109
    %v2687 = vpop.f32.mrf.mxu0
    %v2688 = vadd.f32 %v2616, %v2687
    %v2689 = vpop.f32.mrf.mxu0
    %v2690 = vpop.f32.mrf.mxu0
    %v2691 = vadd.f32 %v2616, %v2690
    %v2692 = vpop.f32.mrf.mxu0
    %2693 = vmatprep.mubr.bf16.mxu0 0
    %2694 = vmatmul.mubr.bf16.gmra.mxu0 %v112
    %v2695 = vpop.f32.mrf.mxu0
    %v2696 = vadd.f32 %v2616, %v2695
    %v2697 = vpop.f32.mrf.mxu0
    %v2698 = vpop.f32.mrf.mxu0
    %v2699 = vadd.f32 %v2616, %v2698
    %v2700 = vpop.f32.mrf.mxu0
    %2701 = vmatprep.mubr.bf16.mxu0 0
    %2702 = vmatmul.mubr.bf16.gmra.mxu0 %v115
    %v2703 = vpop.f32.mrf.mxu0
    %v2704 = vadd.f32 %v2616, %v2703
    %v2705 = vpop.f32.mrf.mxu0
    %v2706 = vpop.f32.mrf.mxu0
    %v2707 = vadd.f32 %v2616, %v2706
    %v2708 = vpop.f32.mrf.mxu0
    %2709 = vmatprep.mubr.bf16.mxu0 0
    %2710 = vmatmul.mubr.bf16.gmra.mxu0 %v118
    %v2711 = vpop.f32.mrf.mxu0
    %v2712 = vadd.f32 %v2616, %v2711
    %v2713 = vpop.f32.mrf.mxu0
    %v2714 = vpop.f32.mrf.mxu0
    %v2715 = vadd.f32 %v2616, %v2714
    %v2716 = vpop.f32.mrf.mxu0
    %2717 = vdwg.mxu0
    %v2718 = vadd.f32 %v2656, %v1414
    %v2719 = vadd.f32 %v2659, %v1415
    %v2720 = vadd.f32 %v2664, %v1416
    %v2721 = vadd.f32 %v2667, %v1417
    %v2722 = vadd.f32 %v2672, %v1418
    %v2723 = vadd.f32 %v2675, %v1419
    %v2724 = vadd.f32 %v2680, %v1420
    %v2725 = vadd.f32 %v2683, %v1421
    %v2726 = vadd.f32 %v2688, %v2604
    %v2727 = vadd.f32 %v2691, %v2605
    %v2728 = vadd.f32 %v2696, %v2606
    %v2729 = vadd.f32 %v2699, %v2607
    %v2730 = vadd.f32 %v2704, %v2608
    %v2731 = vadd.f32 %v2707, %v2609
    %v2732 = vadd.f32 %v2712, %v2610
    %v2733 = vadd.f32 %v2715, %v2611
    %v2734 = vmax.f32 %v2718, 0.0
    %v2735 = vmax.f32 %v2719, 0.0
    %v2736 = vmax.f32 %v2720, 0.0
    %v2737 = vmax.f32 %v2721, 0.0
    %v2738 = vmax.f32 %v2722, 0.0
    %v2739 = vmax.f32 %v2723, 0.0
    %v2740 = vmax.f32 %v2724, 0.0
    %v2741 = vmax.f32 %v2725, 0.0
    %v2742 = vmax.f32 %v2726, 0.0
    %v2743 = vmax.f32 %v2727, 0.0
    %v2744 = vmax.f32 %v2728, 0.0
    %v2745 = vmax.f32 %v2729, 0.0
    %v2746 = vmax.f32 %v2730, 0.0
    %v2747 = vmax.f32 %v2731, 0.0
    %v2748 = vmax.f32 %v2732, 0.0
    %v2749 = vmax.f32 %v2733, 0.0
    %v2750 = vld [vmem:[%s4] sm:$0xf]
    %v2751 = vld [vmem:[%s4 + $0x4] sm:$0xf]
    %v2752 = vld [vmem:[%s5] sm:$0xf]
    %v2753 = vld [vmem:[%s5 + $0x4] sm:$0xf]
    %v2754 = vld [vmem:[%s6] sm:$0x1]
    %v2755 = vpack.c.bf16 %v2735, %v2734
    %v2756 = vpack.c.bf16 %v2737, %v2736
    %v2757 = vpack.c.bf16 %v2739, %v2738
    %v2758 = vpack.c.bf16 %v2741, %v2740
    %v2759 = vpack.c.bf16 %v2743, %v2742
    %v2760 = vpack.c.bf16 %v2745, %v2744
    %v2761 = vpack.c.bf16 %v2747, %v2746
    %v2762 = vpack.c.bf16 %v2749, %v2748
    %v2765 = vunpack.c.l.b16 %v2752
    %v2766 = vunpack.c.l.b16 %v2753
    %v2767 = vpack.c.b16 %v2766, %v2765
    %vm2769 = vcmask 130048
    %v2771 = vsel %vm2769, %v2755, 0
    %v2774 = vsel %vm2769, %v2756, 0
    %v2777 = vsel %vm2769, %v2757, 0
    %v2780 = vsel %vm2769, %v2758, 0
    %v2783 = vsel %vm2769, %v2759, 0
    %v2786 = vsel %vm2769, %v2760, 0
    %v2789 = vsel %vm2769, %v2761, 0
    %v2792 = vsel %vm2769, %v2762, 0
    %2794 = vmatprep.subr.bf16.mxu0 0
    %2795 = vmatpush1.bf16.msra.mxu0 0
    %2796 = vmatprep.subr.bf16.mxu0 0
    %2797 = vmatpush1.bf16.msra.mxu0 0
    %2798 = vmatprep.subr.bf16.mxu0 0
    %2799 = vmatpush1.bf16.msra.mxu0 0
    %2800 = vmatprep.subr.bf16.mxu0 0
    %2801 = vmatpush1.bf16.msra.mxu0 0
    %2802 = vmatprep.subr.bf16.mxu0 0
    %2803 = vmatpush1.bf16.msra.mxu0 0
    %2804 = vmatprep.subr.bf16.mxu0 0
    %2805 = vmatpush1.bf16.msra.mxu0 0
    %2806 = vmatprep.subr.bf16.mxu0 0
    %2807 = vmatpush1.bf16.msra.mxu0 0
    %2808 = vmatprep.subr.bf16.mxu0 0
    %2809 = vmatpush1.bf16.msra.mxu0 %v2767
    %2810 = vmatprep.subr.bf16.mxu0 0
    %2811 = vmatpush2.bf16.msra.mxu0 0
    %2812 = vmatprep.subr.bf16.mxu0 0
    %2813 = vmatpush2.bf16.msra.mxu0 0
    %2814 = vmatprep.subr.bf16.mxu0 0
    %2815 = vmatpush2.bf16.msra.mxu0 0
    %2816 = vmatprep.subr.bf16.mxu0 0
    %2817 = vmatpush2.bf16.msra.mxu0 0
    %2818 = vmatprep.subr.bf16.mxu0 0
    %2819 = vmatpush2.bf16.msra.mxu0 0
    %2820 = vmatprep.subr.bf16.mxu0 0
    %2821 = vmatpush2.bf16.msra.mxu0 0
    %2822 = vmatprep.subr.bf16.mxu0 0
    %2823 = vmatpush2.bf16.msra.mxu0 0
    %2824 = vmatprep.subr.bf16.mxu0 0
    %2825 = vmatpush2.bf16.msra.mxu0 0
    %2826 = vmatprep.mubr.bf16.mxu0 0
    %2827 = vmatmul.mubr.bf16.gmra.mxu0 %v2771
    %v2828 = vpop.f32.mrf.mxu0
    %v2829 = vadd.f32 0.0, %v2828
    %v2830 = vpop.f32.mrf.mxu0
    %v2831 = vpop.f32.mrf.mxu0
    %v2832 = vadd.f32 0.0, %v2831
    %v2833 = vpop.f32.mrf.mxu0
    %2834 = vmatprep.mubr.bf16.mxu0 0
    %2835 = vmatmul.mubr.bf16.gmra.mxu0 %v2774
    %v2836 = vpop.f32.mrf.mxu0
    %v2837 = vadd.f32 0.0, %v2836
    %v2838 = vpop.f32.mrf.mxu0
    %v2839 = vpop.f32.mrf.mxu0
    %v2840 = vadd.f32 0.0, %v2839
    %v2841 = vpop.f32.mrf.mxu0
    %2842 = vmatprep.mubr.bf16.mxu0 0
    %2843 = vmatmul.mubr.bf16.gmra.mxu0 %v2777
    %v2844 = vpop.f32.mrf.mxu0
    %v2845 = vadd.f32 0.0, %v2844
    %v2846 = vpop.f32.mrf.mxu0
    %v2847 = vpop.f32.mrf.mxu0
    %v2848 = vadd.f32 0.0, %v2847
    %v2849 = vpop.f32.mrf.mxu0
    %2850 = vmatprep.mubr.bf16.mxu0 0
    %2851 = vmatmul.mubr.bf16.gmra.mxu0 %v2780
    %v2852 = vpop.f32.mrf.mxu0
    %v2853 = vadd.f32 0.0, %v2852
    %v2854 = vpop.f32.mrf.mxu0
    %v2855 = vpop.f32.mrf.mxu0
    %v2856 = vadd.f32 0.0, %v2855
    %v2857 = vpop.f32.mrf.mxu0
    %2858 = vmatprep.mubr.bf16.mxu0 0
    %2859 = vmatmul.mubr.bf16.gmra.mxu0 %v2783
    %v2860 = vpop.f32.mrf.mxu0
    %v2861 = vadd.f32 0.0, %v2860
    %v2862 = vpop.f32.mrf.mxu0
    %v2863 = vpop.f32.mrf.mxu0
    %v2864 = vadd.f32 0.0, %v2863
    %v2865 = vpop.f32.mrf.mxu0
    %2866 = vmatprep.mubr.bf16.mxu0 0
    %2867 = vmatmul.mubr.bf16.gmra.mxu0 %v2786
    %v2868 = vpop.f32.mrf.mxu0
    %v2869 = vadd.f32 0.0, %v2868
    %v2870 = vpop.f32.mrf.mxu0
    %v2871 = vpop.f32.mrf.mxu0
    %v2872 = vadd.f32 0.0, %v2871
    %v2873 = vpop.f32.mrf.mxu0
    %2874 = vmatprep.mubr.bf16.mxu0 0
    %2875 = vmatmul.mubr.bf16.gmra.mxu0 %v2789
    %v2876 = vpop.f32.mrf.mxu0
    %v2877 = vadd.f32 0.0, %v2876
    %v2878 = vpop.f32.mrf.mxu0
    %v2879 = vpop.f32.mrf.mxu0
    %v2880 = vadd.f32 0.0, %v2879
    %v2881 = vpop.f32.mrf.mxu0
    %2882 = vmatprep.mubr.bf16.mxu0 0
    %2883 = vmatmul.mubr.bf16.gmra.mxu0 %v2792
    %v2884 = vpop.f32.mrf.mxu0
    %v2885 = vadd.f32 0.0, %v2884
    %v2886 = vpop.f32.mrf.mxu0
    %v2887 = vpop.f32.mrf.mxu0
    %v2888 = vadd.f32 0.0, %v2887
    %v2889 = vpop.f32.mrf.mxu0
    %2890 = vdwg.mxu0
    %v2891 = vpack.c.bf16 %v2832, %v2829
    %v2892 = vpack.c.bf16 %v2840, %v2837
    %v2893 = vpack.c.bf16 %v2848, %v2845
    %v2894 = vpack.c.bf16 %v2856, %v2853
    %v2895 = vpack.c.bf16 %v2864, %v2861
    %v2896 = vpack.c.bf16 %v2872, %v2869
    %v2897 = vpack.c.bf16 %v2880, %v2877
    %v2898 = vpack.c.bf16 %v2888, %v2885
    %v2899 = vmul.f32 %v2734, %v2734
    %v2900 = vmul.f32 %v2735, %v2735
    %v2901 = vmul.f32 %v2736, %v2736
    %v2902 = vmul.f32 %v2737, %v2737
    %v2903 = vmul.f32 %v2738, %v2738
    %v2904 = vmul.f32 %v2739, %v2739
    %v2905 = vmul.f32 %v2740, %v2740
    %v2906 = vmul.f32 %v2741, %v2741
    %v2907 = vsel %vm2769, %v2899, 0.0
    %2908 = vadd.xlane.f32.xlu0 %v2907
    %v2909 = vpop.xlane.xlu0 %2908
    %v2910 = vsel %vm2769, %v2900, 0.0
    %2911 = vadd.xlane.f32.xlu0 %v2910
    %v2912 = vpop.xlane.xlu0 %2911
    %v2913 = vsel %vm2769, %v2901, 0.0
    %2914 = vadd.xlane.f32.xlu0 %v2913
    %v2915 = vpop.xlane.xlu0 %2914
    %v2916 = vsel %vm2769, %v2902, 0.0
    %2917 = vadd.xlane.f32.xlu0 %v2916
    %v2918 = vpop.xlane.xlu0 %2917
    %v2919 = vsel %vm2769, %v2903, 0.0
    %2920 = vadd.xlane.f32.xlu0 %v2919
    %v2921 = vpop.xlane.xlu0 %2920
    %v2922 = vsel %vm2769, %v2904, 0.0
    %2923 = vadd.xlane.f32.xlu0 %v2922
    %v2924 = vpop.xlane.xlu0 %2923
    %v2925 = vsel %vm2769, %v2905, 0.0
    %2926 = vadd.xlane.f32.xlu0 %v2925
    %v2927 = vpop.xlane.xlu0 %2926
    %v2928 = vsel %vm2769, %v2906, 0.0
    %2929 = vadd.xlane.f32.xlu0 %v2928
    %v2930 = vpop.xlane.xlu0 %2929
    %v2932 = vsel %vm2769, %v2734, 0
    %v2935 = vsel %vm2769, %v2735, 0
    %v2938 = vsel %vm2769, %v2736, 0
    %v2941 = vsel %vm2769, %v2737, 0
    %v2944 = vsel %vm2769, %v2738, 0
    %v2947 = vsel %vm2769, %v2739, 0
    %v2950 = vsel %vm2769, %v2740, 0
    %v2953 = vsel %vm2769, %v2741, 0
    %2955 = vmatprep.subr.mxu0 0.0
    %2956 = vmatpush1.xpose.msra.mxu0 0.0
    %2957 = vmatprep.subr.mxu0 0.0
    %2958 = vmatpush1.xpose.msra.mxu0 0.0
    %2959 = vmatprep.subr.mxu0 0.0
    %2960 = vmatpush1.xpose.msra.mxu0 0.0
    %2961 = vmatprep.subr.mxu0 0.0
    %2962 = vmatpush1.xpose.msra.mxu0 0.0
    %2963 = vmatprep.subr.mxu0 0.0
    %2964 = vmatpush1.xpose.msra.mxu0 0.0
    %2965 = vmatprep.subr.mxu0 0.0
    %2966 = vmatpush1.xpose.msra.mxu0 0.0
    %2967 = vmatprep.subr.mxu0 0.0
    %2968 = vmatpush1.xpose.msra.mxu0 0.0
    %2969 = vmatprep.subr.mxu0 0.0
    %2970 = vmatpush1.xpose.msra.mxu0 0.0
    %2971 = vmatprep.subr.mxu0 0.0
    %2972 = vmatpush1.xpose.msra.mxu0 %v2953
    %2973 = vmatprep.subr.mxu0 0.0
    %2974 = vmatpush1.xpose.msra.mxu0 %v2950
    %2975 = vmatprep.subr.mxu0 0.0
    %2976 = vmatpush1.xpose.msra.mxu0 %v2947
    %2977 = vmatprep.subr.mxu0 0.0
    %2978 = vmatpush1.xpose.msra.mxu0 %v2944
    %2979 = vmatprep.subr.mxu0 0.0
    %2980 = vmatpush1.xpose.msra.mxu0 %v2941
    %2981 = vmatprep.subr.mxu0 0.0
    %2982 = vmatpush1.xpose.msra.mxu0 %v2938
    %2983 = vmatprep.subr.mxu0 0.0
    %2984 = vmatpush1.xpose.msra.mxu0 %v2935
    %2985 = vmatprep.subr.mxu0 0.0
    %2986 = vmatpush1.xpose.msra.mxu0 %v2932
    %2987 = vmatprep.subr.mxu0 0.0
    %2988 = vmatpush2.xpose.msra.mxu0 0.0
    %2989 = vmatprep.subr.mxu0 0.0
    %2990 = vmatpush2.xpose.msra.mxu0 0.0
    %2991 = vmatprep.subr.mxu0 0.0
    %2992 = vmatpush2.xpose.msra.mxu0 0.0
    %2993 = vmatprep.subr.mxu0 0.0
    %2994 = vmatpush2.xpose.msra.mxu0 0.0
    %2995 = vmatprep.subr.mxu0 0.0
    %2996 = vmatpush2.xpose.msra.mxu0 0.0
    %2997 = vmatprep.subr.mxu0 0.0
    %2998 = vmatpush2.xpose.msra.mxu0 0.0
    %2999 = vmatprep.subr.mxu0 0.0
    %3000 = vmatpush2.xpose.msra.mxu0 0.0
    %3001 = vmatprep.subr.mxu0 0.0
    %3002 = vmatpush2.xpose.msra.mxu0 0.0
    %3003 = vmatprep.subr.mxu0 0.0
    %3004 = vmatpush2.xpose.msra.mxu0 0.0
    %3005 = vmatprep.subr.mxu0 0.0
    %3006 = vmatpush2.xpose.msra.mxu0 0.0
    %3007 = vmatprep.subr.mxu0 0.0
    %3008 = vmatpush2.xpose.msra.mxu0 0.0
    %3009 = vmatprep.subr.mxu0 0.0
    %3010 = vmatpush2.xpose.msra.mxu0 0.0
    %3011 = vmatprep.subr.mxu0 0.0
    %3012 = vmatpush2.xpose.msra.mxu0 0.0
    %3013 = vmatprep.subr.mxu0 0.0
    %3014 = vmatpush2.xpose.msra.mxu0 0.0
    %3015 = vmatprep.subr.mxu0 0.0
    %3016 = vmatpush2.xpose.msra.mxu0 0.0
    %3017 = vmatprep.subr.mxu0 0.0
    %3018 = vmatpush2.xpose.msra.mxu0 0.0
    %3019 = vmatprep.mubr.f32.mxu0 0.0
    %3020 = vmatmul.mubr.f32.gmra.mxu0 %v2932
    %v3021 = vpop.f32.mrf.mxu0
    %v3022 = vadd.f32 0.0, %v3021
    %v3023 = vpop.f32.mrf.mxu0
    %3024 = vmatprep.mubr.f32.mxu0 0.0
    %3025 = vmatmul.mubr.f32.gmra.mxu0 %v2935
    %v3026 = vpop.f32.mrf.mxu0
    %v3027 = vadd.f32 0.0, %v3026
    %v3028 = vpop.f32.mrf.mxu0
    %3029 = vmatprep.mubr.f32.mxu0 0.0
    %3030 = vmatmul.mubr.f32.gmra.mxu0 %v2938
    %v3031 = vpop.f32.mrf.mxu0
    %v3032 = vadd.f32 0.0, %v3031
    %v3033 = vpop.f32.mrf.mxu0
    %3034 = vmatprep.mubr.f32.mxu0 0.0
    %3035 = vmatmul.mubr.f32.gmra.mxu0 %v2941
    %v3036 = vpop.f32.mrf.mxu0
    %v3037 = vadd.f32 0.0, %v3036
    %v3038 = vpop.f32.mrf.mxu0
    %3039 = vmatprep.mubr.f32.mxu0 0.0
    %3040 = vmatmul.mubr.f32.gmra.mxu0 %v2944
    %v3041 = vpop.f32.mrf.mxu0
    %v3042 = vadd.f32 0.0, %v3041
    %v3043 = vpop.f32.mrf.mxu0
    %3044 = vmatprep.mubr.f32.mxu0 0.0
    %3045 = vmatmul.mubr.f32.gmra.mxu0 %v2947
    %v3046 = vpop.f32.mrf.mxu0
    %v3047 = vadd.f32 0.0, %v3046
    %v3048 = vpop.f32.mrf.mxu0
    %3049 = vmatprep.mubr.f32.mxu0 0.0
    %3050 = vmatmul.mubr.f32.gmra.mxu0 %v2950
    %v3051 = vpop.f32.mrf.mxu0
    %v3052 = vadd.f32 0.0, %v3051
    %v3053 = vpop.f32.mrf.mxu0
    %3054 = vmatprep.mubr.f32.mxu0 0.0
    %3055 = vmatmul.mubr.f32.gmra.mxu0 %v2953
    %v3056 = vpop.f32.mrf.mxu0
    %v3057 = vadd.f32 0.0, %v3056
    %v3058 = vpop.f32.mrf.mxu0
    %3059 = vdwg.mxu0
    %3060 = vxpose.xlu0.b32.start [1/16] %v2909, 128
    %3061 = vxpose.xlu0.b32.cont [2/16] %v2912, 128
    %3062 = vxpose.xlu0.b32.cont [3/16] %v2915, 128
    %3063 = vxpose.xlu0.b32.cont [4/16] %v2918, 128
    %3064 = vxpose.xlu0.b32.cont [5/16] %v2921, 128
    %3065 = vxpose.xlu0.b32.cont [6/16] %v2924, 128
    %3066 = vxpose.xlu0.b32.cont [7/16] %v2927, 128
    %3067 = vxpose.xlu0.b32.cont [8/16] %v2930, 128
    %3068 = vxpose.xlu0.b32.cont [9/16] 0.0, 128
    %3069 = vxpose.xlu0.b32.cont [10/16] 0.0, 128
    %3070 = vxpose.xlu0.b32.cont [11/16] 0.0, 128
    %3071 = vxpose.xlu0.b32.cont [12/16] 0.0, 128
    %3072 = vxpose.xlu0.b32.cont [13/16] 0.0, 128
    %3073 = vxpose.xlu0.b32.cont [14/16] 0.0, 128
    %3074 = vxpose.xlu0.b32.cont [15/16] 0.0, 128
    %3075 = vxpose.xlu0.b32.end [16/16] 0.0, 128
    %v3076 = vpop.trf.xlu0
    %v3077 = vpop.trf.xlu0
    %v3078 = vpop.trf.xlu0
    %v3079 = vpop.trf.xlu0
    %v3080 = vpop.trf.xlu0
    %v3081 = vpop.trf.xlu0
    %v3082 = vpop.trf.xlu0
    %v3083 = vpop.trf.xlu0
    %v3084 = vpop.trf.xlu0
    %v3085 = vpop.trf.xlu0
    %v3086 = vpop.trf.xlu0
    %v3087 = vpop.trf.xlu0
    %v3088 = vpop.trf.xlu0
    %v3089 = vpop.trf.xlu0
    %v3090 = vpop.trf.xlu0
    %v3091 = vpop.trf.xlu0
    %v3092 = vmul.f32 %v3022, 2.0
    %v3093 = vmul.f32 %v3027, 2.0
    %v3094 = vmul.f32 %v3032, 2.0
    %v3095 = vmul.f32 %v3037, 2.0
    %v3096 = vmul.f32 %v3042, 2.0
    %v3097 = vmul.f32 %v3047, 2.0
    %v3098 = vmul.f32 %v3052, 2.0
    %v3099 = vmul.f32 %v3057, 2.0
    %v3100 = vlaneseq
    %v3101 = vshrl.u32 %v3100, 7
    %v3102 = vsub.s32 0, %v3101
    %v3103 = vrot.slane %v3076, %v3102
    %v3104 = vsub.f32 %v3103, %v3092
    %v3105 = vsub.f32 %v3103, %v3093
    %v3106 = vsub.f32 %v3103, %v3094
    %v3107 = vsub.f32 %v3103, %v3095
    %v3108 = vsub.f32 %v3103, %v3096
    %v3109 = vsub.f32 %v3103, %v3097
    %v3110 = vsub.f32 %v3103, %v3098
    %v3111 = vsub.f32 %v3103, %v3099
    %v3112 = vsel %vm444, %v3104, inf
    %3113 = vmin.xlane.f32.xlu0 %v3112
    %v3114 = vpop.xlane.xlu0 %3113
    %v3115 = vsel %vm444, %v3105, inf
    %3116 = vmin.xlane.f32.xlu0 %v3115
    %v3117 = vpop.xlane.xlu0 %3116
    %v3118 = vsel %vm444, %v3106, inf
    %3119 = vmin.xlane.f32.xlu0 %v3118
    %v3120 = vpop.xlane.xlu0 %3119
    %v3121 = vsel %vm444, %v3107, inf
    %3122 = vmin.xlane.f32.xlu0 %v3121
    %v3123 = vpop.xlane.xlu0 %3122
    %v3124 = vsel %vm444, %v3108, inf
    %3125 = vmin.xlane.f32.xlu0 %v3124
    %v3126 = vpop.xlane.xlu0 %3125
    %v3127 = vsel %vm444, %v3109, inf
    %3128 = vmin.xlane.f32.xlu0 %v3127
    %v3129 = vpop.xlane.xlu0 %3128
    %v3130 = vsel %vm444, %v3110, inf
    %3131 = vmin.xlane.f32.xlu0 %v3130
    %v3132 = vpop.xlane.xlu0 %3131
    %v3133 = vsel %vm444, %v3111, inf
    %3134 = vmin.xlane.f32.xlu0 %v3133
    %v3135 = vpop.xlane.xlu0 %3134
    %vm3136 = vcmp.le.f32.partialorder %v3104, %v3114
    %vm3137 = vcmp.le.f32.partialorder %v3105, %v3117
    %vm3138 = vcmp.le.f32.partialorder %v3106, %v3120
    %vm3139 = vcmp.le.f32.partialorder %v3107, %v3123
    %vm3140 = vcmp.le.f32.partialorder %v3108, %v3126
    %vm3141 = vcmp.le.f32.partialorder %v3109, %v3129
    %vm3142 = vcmp.le.f32.partialorder %v3110, %v3132
    %vm3143 = vcmp.le.f32.partialorder %v3111, %v3135
    %v3144 = vsel %vm3136, %v443, 64
    %v3145 = vsel %vm3137, %v443, 64
    %v3146 = vsel %vm3138, %v443, 64
    %v3147 = vsel %vm3139, %v443, 64
    %v3148 = vsel %vm3140, %v443, 64
    %v3149 = vsel %vm3141, %v443, 64
    %v3150 = vsel %vm3142, %v443, 64
    %v3151 = vsel %vm3143, %v443, 64
    %v3152 = vsel %vm444, %v3144, 2147483647
    %v3153 = vand.u32 %v3152, 65535
    %v3154 = vshra.s32 %v3152, 16
    %v3155 = vcvt.s32.f32 %v3153
    %v3156 = vcvt.s32.f32 %v3154
    %3157 = vmin.xlane.f32.xlu0 %v3156
    %v3158 = vpop.xlane.xlu0 %3157
    %vm3159 = vcmp.eq.f32.partialorder %v3156, %v3158
    %v3160 = vsel %vm3159, %v3155, inf
    %3161 = vmin.xlane.f32.xlu0 %v3160
    %v3162 = vpop.xlane.xlu0 %3161
    %v3163 = vcvt.f32.s32 %v3162
    %v3164 = vcvt.f32.s32 %v3158
    %v3165 = vshll.u32 %v3164, 16
    %v3166 = vadd.s32 %v3165, %v3163
    %v3167 = vsel %vm444, %v3145, 2147483647
    %v3168 = vand.u32 %v3167, 65535
    %v3169 = vshra.s32 %v3167, 16
    %v3170 = vcvt.s32.f32 %v3168
    %v3171 = vcvt.s32.f32 %v3169
    %3172 = vmin.xlane.f32.xlu0 %v3171
    %v3173 = vpop.xlane.xlu0 %3172
    %vm3174 = vcmp.eq.f32.partialorder %v3171, %v3173
    %v3175 = vsel %vm3174, %v3170, inf
    %3176 = vmin.xlane.f32.xlu0 %v3175
    %v3177 = vpop.xlane.xlu0 %3176
    %v3178 = vcvt.f32.s32 %v3177
    %v3179 = vcvt.f32.s32 %v3173
    %v3180 = vshll.u32 %v3179, 16
    %v3181 = vadd.s32 %v3180, %v3178
    %v3182 = vsel %vm444, %v3146, 2147483647
    %v3183 = vand.u32 %v3182, 65535
    %v3184 = vshra.s32 %v3182, 16
    %v3185 = vcvt.s32.f32 %v3183
    %v3186 = vcvt.s32.f32 %v3184
    %3187 = vmin.xlane.f32.xlu0 %v3186
    %v3188 = vpop.xlane.xlu0 %3187
    %vm3189 = vcmp.eq.f32.partialorder %v3186, %v3188
    %v3190 = vsel %vm3189, %v3185, inf
    %3191 = vmin.xlane.f32.xlu0 %v3190
    %v3192 = vpop.xlane.xlu0 %3191
    %v3193 = vcvt.f32.s32 %v3192
    %v3194 = vcvt.f32.s32 %v3188
    %v3195 = vshll.u32 %v3194, 16
    %v3196 = vadd.s32 %v3195, %v3193
    %v3197 = vsel %vm444, %v3147, 2147483647
    %v3198 = vand.u32 %v3197, 65535
    %v3199 = vshra.s32 %v3197, 16
    %v3200 = vcvt.s32.f32 %v3198
    %v3201 = vcvt.s32.f32 %v3199
    %3202 = vmin.xlane.f32.xlu0 %v3201
    %v3203 = vpop.xlane.xlu0 %3202
    %vm3204 = vcmp.eq.f32.partialorder %v3201, %v3203
    %v3205 = vsel %vm3204, %v3200, inf
    %3206 = vmin.xlane.f32.xlu0 %v3205
    %v3207 = vpop.xlane.xlu0 %3206
    %v3208 = vcvt.f32.s32 %v3207
    %v3209 = vcvt.f32.s32 %v3203
    %v3210 = vshll.u32 %v3209, 16
    %v3211 = vadd.s32 %v3210, %v3208
    %v3212 = vsel %vm444, %v3148, 2147483647
    %v3213 = vand.u32 %v3212, 65535
    %v3214 = vshra.s32 %v3212, 16
    %v3215 = vcvt.s32.f32 %v3213
    %v3216 = vcvt.s32.f32 %v3214
    %3217 = vmin.xlane.f32.xlu0 %v3216
    %v3218 = vpop.xlane.xlu0 %3217
    %vm3219 = vcmp.eq.f32.partialorder %v3216, %v3218
    %v3220 = vsel %vm3219, %v3215, inf
    %3221 = vmin.xlane.f32.xlu0 %v3220
    %v3222 = vpop.xlane.xlu0 %3221
    %v3223 = vcvt.f32.s32 %v3222
    %v3224 = vcvt.f32.s32 %v3218
    %v3225 = vshll.u32 %v3224, 16
    %v3226 = vadd.s32 %v3225, %v3223
    %v3227 = vsel %vm444, %v3149, 2147483647
    %v3228 = vand.u32 %v3227, 65535
    %v3229 = vshra.s32 %v3227, 16
    %v3230 = vcvt.s32.f32 %v3228
    %v3231 = vcvt.s32.f32 %v3229
    %3232 = vmin.xlane.f32.xlu0 %v3231
    %v3233 = vpop.xlane.xlu0 %3232
    %vm3234 = vcmp.eq.f32.partialorder %v3231, %v3233
    %v3235 = vsel %vm3234, %v3230, inf
    %3236 = vmin.xlane.f32.xlu0 %v3235
    %v3237 = vpop.xlane.xlu0 %3236
    %v3238 = vcvt.f32.s32 %v3237
    %v3239 = vcvt.f32.s32 %v3233
    %v3240 = vshll.u32 %v3239, 16
    %v3241 = vadd.s32 %v3240, %v3238
    %v3242 = vsel %vm444, %v3150, 2147483647
    %v3243 = vand.u32 %v3242, 65535
    %v3244 = vshra.s32 %v3242, 16
    %v3245 = vcvt.s32.f32 %v3243
    %v3246 = vcvt.s32.f32 %v3244
    %3247 = vmin.xlane.f32.xlu0 %v3246
    %v3248 = vpop.xlane.xlu0 %3247
    %vm3249 = vcmp.eq.f32.partialorder %v3246, %v3248
    %v3250 = vsel %vm3249, %v3245, inf
    %3251 = vmin.xlane.f32.xlu0 %v3250
    %v3252 = vpop.xlane.xlu0 %3251
    %v3253 = vcvt.f32.s32 %v3252
    %v3254 = vcvt.f32.s32 %v3248
    %v3255 = vshll.u32 %v3254, 16
    %v3256 = vadd.s32 %v3255, %v3253
    %v3257 = vsel %vm444, %v3151, 2147483647
    %v3258 = vand.u32 %v3257, 65535
    %v3259 = vshra.s32 %v3257, 16
    %v3260 = vcvt.s32.f32 %v3258
    %v3261 = vcvt.s32.f32 %v3259
    %3262 = vmin.xlane.f32.xlu0 %v3261
    %v3263 = vpop.xlane.xlu0 %3262
    %vm3264 = vcmp.eq.f32.partialorder %v3261, %v3263
    %v3265 = vsel %vm3264, %v3260, inf
    %3266 = vmin.xlane.f32.xlu0 %v3265
    %v3267 = vpop.xlane.xlu0 %3266
    %v3268 = vcvt.f32.s32 %v3267
    %v3269 = vcvt.f32.s32 %v3263
    %v3270 = vshll.u32 %v3269, 16
    %v3271 = vadd.s32 %v3270, %v3268
    %vm3272 = vcmp.eq.s32.totalorder %v443, %v3166
    %vm3273 = vcmp.eq.s32.totalorder %v443, %v3181
    %vm3274 = vcmp.eq.s32.totalorder %v443, %v3196
    %vm3275 = vcmp.eq.s32.totalorder %v443, %v3211
    %vm3276 = vcmp.eq.s32.totalorder %v443, %v3226
    %vm3277 = vcmp.eq.s32.totalorder %v443, %v3241
    %vm3278 = vcmp.eq.s32.totalorder %v443, %v3256
    %vm3279 = vcmp.eq.s32.totalorder %v443, %v3271
    %v3280 = vsel %vm3272, 1.0, 0.0
    %v3281 = vsel %vm3273, 1.0, 0.0
    %v3282 = vsel %vm3274, 1.0, 0.0
    %v3283 = vsel %vm3275, 1.0, 0.0
    %v3284 = vsel %vm3276, 1.0, 0.0
    %v3285 = vsel %vm3277, 1.0, 0.0
    %v3286 = vsel %vm3278, 1.0, 0.0
    %v3287 = vsel %vm3279, 1.0, 0.0
    %v3288 = vsel %vm3272, 1e+30, %v3104
    %v3289 = vsel %vm3273, 1e+30, %v3105
    %v3290 = vsel %vm3274, 1e+30, %v3106
    %v3291 = vsel %vm3275, 1e+30, %v3107
    %v3292 = vsel %vm3276, 1e+30, %v3108
    %v3293 = vsel %vm3277, 1e+30, %v3109
    %v3294 = vsel %vm3278, 1e+30, %v3110
    %v3295 = vsel %vm3279, 1e+30, %v3111
    %v3296 = vsel %vm444, %v3288, inf
    %3297 = vmin.xlane.f32.xlu0 %v3296
    %v3298 = vpop.xlane.xlu0 %3297
    %v3299 = vsel %vm444, %v3289, inf
    %3300 = vmin.xlane.f32.xlu0 %v3299
    %v3301 = vpop.xlane.xlu0 %3300
    %v3302 = vsel %vm444, %v3290, inf
    %3303 = vmin.xlane.f32.xlu0 %v3302
    %v3304 = vpop.xlane.xlu0 %3303
    %v3305 = vsel %vm444, %v3291, inf
    %3306 = vmin.xlane.f32.xlu0 %v3305
    %v3307 = vpop.xlane.xlu0 %3306
    %v3308 = vsel %vm444, %v3292, inf
    %3309 = vmin.xlane.f32.xlu0 %v3308
    %v3310 = vpop.xlane.xlu0 %3309
    %v3311 = vsel %vm444, %v3293, inf
    %3312 = vmin.xlane.f32.xlu0 %v3311
    %v3313 = vpop.xlane.xlu0 %3312
    %v3314 = vsel %vm444, %v3294, inf
    %3315 = vmin.xlane.f32.xlu0 %v3314
    %v3316 = vpop.xlane.xlu0 %3315
    %v3317 = vsel %vm444, %v3295, inf
    %3318 = vmin.xlane.f32.xlu0 %v3317
    %v3319 = vpop.xlane.xlu0 %3318
    %vm3320 = vcmp.le.f32.partialorder %v3288, %v3298
    %vm3321 = vcmp.le.f32.partialorder %v3289, %v3301
    %vm3322 = vcmp.le.f32.partialorder %v3290, %v3304
    %vm3323 = vcmp.le.f32.partialorder %v3291, %v3307
    %vm3324 = vcmp.le.f32.partialorder %v3292, %v3310
    %vm3325 = vcmp.le.f32.partialorder %v3293, %v3313
    %vm3326 = vcmp.le.f32.partialorder %v3294, %v3316
    %vm3327 = vcmp.le.f32.partialorder %v3295, %v3319
    %v3328 = vsel %vm3320, %v443, 64
    %v3329 = vsel %vm3321, %v443, 64
    %v3330 = vsel %vm3322, %v443, 64
    %v3331 = vsel %vm3323, %v443, 64
    %v3332 = vsel %vm3324, %v443, 64
    %v3333 = vsel %vm3325, %v443, 64
    %v3334 = vsel %vm3326, %v443, 64
    %v3335 = vsel %vm3327, %v443, 64
    %v3336 = vsel %vm444, %v3328, 2147483647
    %v3337 = vand.u32 %v3336, 65535
    %v3338 = vshra.s32 %v3336, 16
    %v3339 = vcvt.s32.f32 %v3337
    %v3340 = vcvt.s32.f32 %v3338
    %3341 = vmin.xlane.f32.xlu0 %v3340
    %v3342 = vpop.xlane.xlu0 %3341
    %vm3343 = vcmp.eq.f32.partialorder %v3340, %v3342
    %v3344 = vsel %vm3343, %v3339, inf
    %3345 = vmin.xlane.f32.xlu0 %v3344
    %v3346 = vpop.xlane.xlu0 %3345
    %v3347 = vcvt.f32.s32 %v3346
    %v3348 = vcvt.f32.s32 %v3342
    %v3349 = vshll.u32 %v3348, 16
    %v3350 = vadd.s32 %v3349, %v3347
    %v3351 = vsel %vm444, %v3329, 2147483647
    %v3352 = vand.u32 %v3351, 65535
    %v3353 = vshra.s32 %v3351, 16
    %v3354 = vcvt.s32.f32 %v3352
    %v3355 = vcvt.s32.f32 %v3353
    %3356 = vmin.xlane.f32.xlu0 %v3355
    %v3357 = vpop.xlane.xlu0 %3356
    %vm3358 = vcmp.eq.f32.partialorder %v3355, %v3357
    %v3359 = vsel %vm3358, %v3354, inf
    %3360 = vmin.xlane.f32.xlu0 %v3359
    %v3361 = vpop.xlane.xlu0 %3360
    %v3362 = vcvt.f32.s32 %v3361
    %v3363 = vcvt.f32.s32 %v3357
    %v3364 = vshll.u32 %v3363, 16
    %v3365 = vadd.s32 %v3364, %v3362
    %v3366 = vsel %vm444, %v3330, 2147483647
    %v3367 = vand.u32 %v3366, 65535
    %v3368 = vshra.s32 %v3366, 16
    %v3369 = vcvt.s32.f32 %v3367
    %v3370 = vcvt.s32.f32 %v3368
    %3371 = vmin.xlane.f32.xlu0 %v3370
    %v3372 = vpop.xlane.xlu0 %3371
    %vm3373 = vcmp.eq.f32.partialorder %v3370, %v3372
    %v3374 = vsel %vm3373, %v3369, inf
    %3375 = vmin.xlane.f32.xlu0 %v3374
    %v3376 = vpop.xlane.xlu0 %3375
    %v3377 = vcvt.f32.s32 %v3376
    %v3378 = vcvt.f32.s32 %v3372
    %v3379 = vshll.u32 %v3378, 16
    %v3380 = vadd.s32 %v3379, %v3377
    %v3381 = vsel %vm444, %v3331, 2147483647
    %v3382 = vand.u32 %v3381, 65535
    %v3383 = vshra.s32 %v3381, 16
    %v3384 = vcvt.s32.f32 %v3382
    %v3385 = vcvt.s32.f32 %v3383
    %3386 = vmin.xlane.f32.xlu0 %v3385
    %v3387 = vpop.xlane.xlu0 %3386
    %vm3388 = vcmp.eq.f32.partialorder %v3385, %v3387
    %v3389 = vsel %vm3388, %v3384, inf
    %3390 = vmin.xlane.f32.xlu0 %v3389
    %v3391 = vpop.xlane.xlu0 %3390
    %v3392 = vcvt.f32.s32 %v3391
    %v3393 = vcvt.f32.s32 %v3387
    %v3394 = vshll.u32 %v3393, 16
    %v3395 = vadd.s32 %v3394, %v3392
    %v3396 = vsel %vm444, %v3332, 2147483647
    %v3397 = vand.u32 %v3396, 65535
    %v3398 = vshra.s32 %v3396, 16
    %v3399 = vcvt.s32.f32 %v3397
    %v3400 = vcvt.s32.f32 %v3398
    %3401 = vmin.xlane.f32.xlu0 %v3400
    %v3402 = vpop.xlane.xlu0 %3401
    %vm3403 = vcmp.eq.f32.partialorder %v3400, %v3402
    %v3404 = vsel %vm3403, %v3399, inf
    %3405 = vmin.xlane.f32.xlu0 %v3404
    %v3406 = vpop.xlane.xlu0 %3405
    %v3407 = vcvt.f32.s32 %v3406
    %v3408 = vcvt.f32.s32 %v3402
    %v3409 = vshll.u32 %v3408, 16
    %v3410 = vadd.s32 %v3409, %v3407
    %v3411 = vsel %vm444, %v3333, 2147483647
    %v3412 = vand.u32 %v3411, 65535
    %v3413 = vshra.s32 %v3411, 16
    %v3414 = vcvt.s32.f32 %v3412
    %v3415 = vcvt.s32.f32 %v3413
    %3416 = vmin.xlane.f32.xlu0 %v3415
    %v3417 = vpop.xlane.xlu0 %3416
    %vm3418 = vcmp.eq.f32.partialorder %v3415, %v3417
    %v3419 = vsel %vm3418, %v3414, inf
    %3420 = vmin.xlane.f32.xlu0 %v3419
    %v3421 = vpop.xlane.xlu0 %3420
    %v3422 = vcvt.f32.s32 %v3421
    %v3423 = vcvt.f32.s32 %v3417
    %v3424 = vshll.u32 %v3423, 16
    %v3425 = vadd.s32 %v3424, %v3422
    %v3426 = vsel %vm444, %v3334, 2147483647
    %v3427 = vand.u32 %v3426, 65535
    %v3428 = vshra.s32 %v3426, 16
    %v3429 = vcvt.s32.f32 %v3427
    %v3430 = vcvt.s32.f32 %v3428
    %3431 = vmin.xlane.f32.xlu0 %v3430
    %v3432 = vpop.xlane.xlu0 %3431
    %vm3433 = vcmp.eq.f32.partialorder %v3430, %v3432
    %v3434 = vsel %vm3433, %v3429, inf
    %3435 = vmin.xlane.f32.xlu0 %v3434
    %v3436 = vpop.xlane.xlu0 %3435
    %v3437 = vcvt.f32.s32 %v3436
    %v3438 = vcvt.f32.s32 %v3432
    %v3439 = vshll.u32 %v3438, 16
    %v3440 = vadd.s32 %v3439, %v3437
    %v3441 = vsel %vm444, %v3335, 2147483647
    %v3442 = vand.u32 %v3441, 65535
    %v3443 = vshra.s32 %v3441, 16
    %v3444 = vcvt.s32.f32 %v3442
    %v3445 = vcvt.s32.f32 %v3443
    %3446 = vmin.xlane.f32.xlu0 %v3445
    %v3447 = vpop.xlane.xlu0 %3446
    %vm3448 = vcmp.eq.f32.partialorder %v3445, %v3447
    %v3449 = vsel %vm3448, %v3444, inf
    %3450 = vmin.xlane.f32.xlu0 %v3449
    %v3451 = vpop.xlane.xlu0 %3450
    %v3452 = vcvt.f32.s32 %v3451
    %v3453 = vcvt.f32.s32 %v3447
    %v3454 = vshll.u32 %v3453, 16
    %v3455 = vadd.s32 %v3454, %v3452
    %vm3456 = vcmp.eq.s32.totalorder %v443, %v3350
    %vm3457 = vcmp.eq.s32.totalorder %v443, %v3365
    %vm3458 = vcmp.eq.s32.totalorder %v443, %v3380
    %vm3459 = vcmp.eq.s32.totalorder %v443, %v3395
    %vm3460 = vcmp.eq.s32.totalorder %v443, %v3410
    %vm3461 = vcmp.eq.s32.totalorder %v443, %v3425
    %vm3462 = vcmp.eq.s32.totalorder %v443, %v3440
    %vm3463 = vcmp.eq.s32.totalorder %v443, %v3455
    %v3464 = vsel %vm3456, 1.0, 0.0
    %v3465 = vsel %vm3457, 1.0, 0.0
    %v3466 = vsel %vm3458, 1.0, 0.0
    %v3467 = vsel %vm3459, 1.0, 0.0
    %v3468 = vsel %vm3460, 1.0, 0.0
    %v3469 = vsel %vm3461, 1.0, 0.0
    %v3470 = vsel %vm3462, 1.0, 0.0
    %v3471 = vsel %vm3463, 1.0, 0.0
    %v3472 = vsel %vm3456, 1e+30, %v3288
    %v3473 = vsel %vm3457, 1e+30, %v3289
    %v3474 = vsel %vm3458, 1e+30, %v3290
    %v3475 = vsel %vm3459, 1e+30, %v3291
    %v3476 = vsel %vm3460, 1e+30, %v3292
    %v3477 = vsel %vm3461, 1e+30, %v3293
    %v3478 = vsel %vm3462, 1e+30, %v3294
    %v3479 = vsel %vm3463, 1e+30, %v3295
    %v3480 = vsel %vm444, %v3472, inf
    %3481 = vmin.xlane.f32.xlu0 %v3480
    %v3482 = vpop.xlane.xlu0 %3481
    %v3483 = vsel %vm444, %v3473, inf
    %3484 = vmin.xlane.f32.xlu0 %v3483
    %v3485 = vpop.xlane.xlu0 %3484
    %v3486 = vsel %vm444, %v3474, inf
    %3487 = vmin.xlane.f32.xlu0 %v3486
    %v3488 = vpop.xlane.xlu0 %3487
    %v3489 = vsel %vm444, %v3475, inf
    %3490 = vmin.xlane.f32.xlu0 %v3489
    %v3491 = vpop.xlane.xlu0 %3490
    %v3492 = vsel %vm444, %v3476, inf
    %3493 = vmin.xlane.f32.xlu0 %v3492
    %v3494 = vpop.xlane.xlu0 %3493
    %v3495 = vsel %vm444, %v3477, inf
    %3496 = vmin.xlane.f32.xlu0 %v3495
    %v3497 = vpop.xlane.xlu0 %3496
    %v3498 = vsel %vm444, %v3478, inf
    %3499 = vmin.xlane.f32.xlu0 %v3498
    %v3500 = vpop.xlane.xlu0 %3499
    %v3501 = vsel %vm444, %v3479, inf
    %3502 = vmin.xlane.f32.xlu0 %v3501
    %v3503 = vpop.xlane.xlu0 %3502
    %vm3504 = vcmp.le.f32.partialorder %v3472, %v3482
    %vm3505 = vcmp.le.f32.partialorder %v3473, %v3485
    %vm3506 = vcmp.le.f32.partialorder %v3474, %v3488
    %vm3507 = vcmp.le.f32.partialorder %v3475, %v3491
    %vm3508 = vcmp.le.f32.partialorder %v3476, %v3494
    %vm3509 = vcmp.le.f32.partialorder %v3477, %v3497
    %vm3510 = vcmp.le.f32.partialorder %v3478, %v3500
    %vm3511 = vcmp.le.f32.partialorder %v3479, %v3503
    %v3512 = vsel %vm3504, %v443, 64
    %v3513 = vsel %vm3505, %v443, 64
    %v3514 = vsel %vm3506, %v443, 64
    %v3515 = vsel %vm3507, %v443, 64
    %v3516 = vsel %vm3508, %v443, 64
    %v3517 = vsel %vm3509, %v443, 64
    %v3518 = vsel %vm3510, %v443, 64
    %v3519 = vsel %vm3511, %v443, 64
    %v3520 = vsel %vm444, %v3512, 2147483647
    %v3521 = vand.u32 %v3520, 65535
    %v3522 = vshra.s32 %v3520, 16
    %v3523 = vcvt.s32.f32 %v3521
    %v3524 = vcvt.s32.f32 %v3522
    %3525 = vmin.xlane.f32.xlu0 %v3524
    %v3526 = vpop.xlane.xlu0 %3525
    %vm3527 = vcmp.eq.f32.partialorder %v3524, %v3526
    %v3528 = vsel %vm3527, %v3523, inf
    %3529 = vmin.xlane.f32.xlu0 %v3528
    %v3530 = vpop.xlane.xlu0 %3529
    %v3531 = vcvt.f32.s32 %v3530
    %v3532 = vcvt.f32.s32 %v3526
    %v3533 = vshll.u32 %v3532, 16
    %v3534 = vadd.s32 %v3533, %v3531
    %v3535 = vsel %vm444, %v3513, 2147483647
    %v3536 = vand.u32 %v3535, 65535
    %v3537 = vshra.s32 %v3535, 16
    %v3538 = vcvt.s32.f32 %v3536
    %v3539 = vcvt.s32.f32 %v3537
    %3540 = vmin.xlane.f32.xlu0 %v3539
    %v3541 = vpop.xlane.xlu0 %3540
    %vm3542 = vcmp.eq.f32.partialorder %v3539, %v3541
    %v3543 = vsel %vm3542, %v3538, inf
    %3544 = vmin.xlane.f32.xlu0 %v3543
    %v3545 = vpop.xlane.xlu0 %3544
    %v3546 = vcvt.f32.s32 %v3545
    %v3547 = vcvt.f32.s32 %v3541
    %v3548 = vshll.u32 %v3547, 16
    %v3549 = vadd.s32 %v3548, %v3546
    %v3550 = vsel %vm444, %v3514, 2147483647
    %v3551 = vand.u32 %v3550, 65535
    %v3552 = vshra.s32 %v3550, 16
    %v3553 = vcvt.s32.f32 %v3551
    %v3554 = vcvt.s32.f32 %v3552
    %3555 = vmin.xlane.f32.xlu0 %v3554
    %v3556 = vpop.xlane.xlu0 %3555
    %vm3557 = vcmp.eq.f32.partialorder %v3554, %v3556
    %v3558 = vsel %vm3557, %v3553, inf
    %3559 = vmin.xlane.f32.xlu0 %v3558
    %v3560 = vpop.xlane.xlu0 %3559
    %v3561 = vcvt.f32.s32 %v3560
    %v3562 = vcvt.f32.s32 %v3556
    %v3563 = vshll.u32 %v3562, 16
    %v3564 = vadd.s32 %v3563, %v3561
    %v3565 = vsel %vm444, %v3515, 2147483647
    %v3566 = vand.u32 %v3565, 65535
    %v3567 = vshra.s32 %v3565, 16
    %v3568 = vcvt.s32.f32 %v3566
    %v3569 = vcvt.s32.f32 %v3567
    %3570 = vmin.xlane.f32.xlu0 %v3569
    %v3571 = vpop.xlane.xlu0 %3570
    %vm3572 = vcmp.eq.f32.partialorder %v3569, %v3571
    %v3573 = vsel %vm3572, %v3568, inf
    %3574 = vmin.xlane.f32.xlu0 %v3573
    %v3575 = vpop.xlane.xlu0 %3574
    %v3576 = vcvt.f32.s32 %v3575
    %v3577 = vcvt.f32.s32 %v3571
    %v3578 = vshll.u32 %v3577, 16
    %v3579 = vadd.s32 %v3578, %v3576
    %v3580 = vsel %vm444, %v3516, 2147483647
    %v3581 = vand.u32 %v3580, 65535
    %v3582 = vshra.s32 %v3580, 16
    %v3583 = vcvt.s32.f32 %v3581
    %v3584 = vcvt.s32.f32 %v3582
    %3585 = vmin.xlane.f32.xlu0 %v3584
    %v3586 = vpop.xlane.xlu0 %3585
    %vm3587 = vcmp.eq.f32.partialorder %v3584, %v3586
    %v3588 = vsel %vm3587, %v3583, inf
    %3589 = vmin.xlane.f32.xlu0 %v3588
    %v3590 = vpop.xlane.xlu0 %3589
    %v3591 = vcvt.f32.s32 %v3590
    %v3592 = vcvt.f32.s32 %v3586
    %v3593 = vshll.u32 %v3592, 16
    %v3594 = vadd.s32 %v3593, %v3591
    %v3595 = vsel %vm444, %v3517, 2147483647
    %v3596 = vand.u32 %v3595, 65535
    %v3597 = vshra.s32 %v3595, 16
    %v3598 = vcvt.s32.f32 %v3596
    %v3599 = vcvt.s32.f32 %v3597
    %3600 = vmin.xlane.f32.xlu0 %v3599
    %v3601 = vpop.xlane.xlu0 %3600
    %vm3602 = vcmp.eq.f32.partialorder %v3599, %v3601
    %v3603 = vsel %vm3602, %v3598, inf
    %3604 = vmin.xlane.f32.xlu0 %v3603
    %v3605 = vpop.xlane.xlu0 %3604
    %v3606 = vcvt.f32.s32 %v3605
    %v3607 = vcvt.f32.s32 %v3601
    %v3608 = vshll.u32 %v3607, 16
    %v3609 = vadd.s32 %v3608, %v3606
    %v3610 = vsel %vm444, %v3518, 2147483647
    %v3611 = vand.u32 %v3610, 65535
    %v3612 = vshra.s32 %v3610, 16
    %v3613 = vcvt.s32.f32 %v3611
    %v3614 = vcvt.s32.f32 %v3612
    %3615 = vmin.xlane.f32.xlu0 %v3614
    %v3616 = vpop.xlane.xlu0 %3615
    %vm3617 = vcmp.eq.f32.partialorder %v3614, %v3616
    %v3618 = vsel %vm3617, %v3613, inf
    %3619 = vmin.xlane.f32.xlu0 %v3618
    %v3620 = vpop.xlane.xlu0 %3619
    %v3621 = vcvt.f32.s32 %v3620
    %v3622 = vcvt.f32.s32 %v3616
    %v3623 = vshll.u32 %v3622, 16
    %v3624 = vadd.s32 %v3623, %v3621
    %v3625 = vsel %vm444, %v3519, 2147483647
    %v3626 = vand.u32 %v3625, 65535
    %v3627 = vshra.s32 %v3625, 16
    %v3628 = vcvt.s32.f32 %v3626
    %v3629 = vcvt.s32.f32 %v3627
    %3630 = vmin.xlane.f32.xlu0 %v3629
    %v3631 = vpop.xlane.xlu0 %3630
    %vm3632 = vcmp.eq.f32.partialorder %v3629, %v3631
    %v3633 = vsel %vm3632, %v3628, inf
    %3634 = vmin.xlane.f32.xlu0 %v3633
    %v3635 = vpop.xlane.xlu0 %3634
    %v3636 = vcvt.f32.s32 %v3635
    %v3637 = vcvt.f32.s32 %v3631
    %v3638 = vshll.u32 %v3637, 16
    %v3639 = vadd.s32 %v3638, %v3636
    %vm3640 = vcmp.eq.s32.totalorder %v443, %v3534
    %vm3641 = vcmp.eq.s32.totalorder %v443, %v3549
    %vm3642 = vcmp.eq.s32.totalorder %v443, %v3564
    %vm3643 = vcmp.eq.s32.totalorder %v443, %v3579
    %vm3644 = vcmp.eq.s32.totalorder %v443, %v3594
    %vm3645 = vcmp.eq.s32.totalorder %v443, %v3609
    %vm3646 = vcmp.eq.s32.totalorder %v443, %v3624
    %vm3647 = vcmp.eq.s32.totalorder %v443, %v3639
    %v3648 = vsel %vm3640, 1.0, 0.0
    %v3649 = vsel %vm3641, 1.0, 0.0
    %v3650 = vsel %vm3642, 1.0, 0.0
    %v3651 = vsel %vm3643, 1.0, 0.0
    %v3652 = vsel %vm3644, 1.0, 0.0
    %v3653 = vsel %vm3645, 1.0, 0.0
    %v3654 = vsel %vm3646, 1.0, 0.0
    %v3655 = vsel %vm3647, 1.0, 0.0
    %v3656 = vsel %vm3640, 1e+30, %v3472
    %v3657 = vsel %vm3641, 1e+30, %v3473
    %v3658 = vsel %vm3642, 1e+30, %v3474
    %v3659 = vsel %vm3643, 1e+30, %v3475
    %v3660 = vsel %vm3644, 1e+30, %v3476
    %v3661 = vsel %vm3645, 1e+30, %v3477
    %v3662 = vsel %vm3646, 1e+30, %v3478
    %v3663 = vsel %vm3647, 1e+30, %v3479
    %v3664 = vsel %vm444, %v3656, inf
    %3665 = vmin.xlane.f32.xlu0 %v3664
    %v3666 = vpop.xlane.xlu0 %3665
    %v3667 = vsel %vm444, %v3657, inf
    %3668 = vmin.xlane.f32.xlu0 %v3667
    %v3669 = vpop.xlane.xlu0 %3668
    %v3670 = vsel %vm444, %v3658, inf
    %3671 = vmin.xlane.f32.xlu0 %v3670
    %v3672 = vpop.xlane.xlu0 %3671
    %v3673 = vsel %vm444, %v3659, inf
    %3674 = vmin.xlane.f32.xlu0 %v3673
    %v3675 = vpop.xlane.xlu0 %3674
    %v3676 = vsel %vm444, %v3660, inf
    %3677 = vmin.xlane.f32.xlu0 %v3676
    %v3678 = vpop.xlane.xlu0 %3677
    %v3679 = vsel %vm444, %v3661, inf
    %3680 = vmin.xlane.f32.xlu0 %v3679
    %v3681 = vpop.xlane.xlu0 %3680
    %v3682 = vsel %vm444, %v3662, inf
    %3683 = vmin.xlane.f32.xlu0 %v3682
    %v3684 = vpop.xlane.xlu0 %3683
    %v3685 = vsel %vm444, %v3663, inf
    %3686 = vmin.xlane.f32.xlu0 %v3685
    %v3687 = vpop.xlane.xlu0 %3686
    %vm3688 = vcmp.le.f32.partialorder %v3656, %v3666
    %vm3689 = vcmp.le.f32.partialorder %v3657, %v3669
    %vm3690 = vcmp.le.f32.partialorder %v3658, %v3672
    %vm3691 = vcmp.le.f32.partialorder %v3659, %v3675
    %vm3692 = vcmp.le.f32.partialorder %v3660, %v3678
    %vm3693 = vcmp.le.f32.partialorder %v3661, %v3681
    %vm3694 = vcmp.le.f32.partialorder %v3662, %v3684
    %vm3695 = vcmp.le.f32.partialorder %v3663, %v3687
    %v3696 = vsel %vm3688, %v443, 64
    %v3697 = vsel %vm3689, %v443, 64
    %v3698 = vsel %vm3690, %v443, 64
    %v3699 = vsel %vm3691, %v443, 64
    %v3700 = vsel %vm3692, %v443, 64
    %v3701 = vsel %vm3693, %v443, 64
    %v3702 = vsel %vm3694, %v443, 64
    %v3703 = vsel %vm3695, %v443, 64
    %v3704 = vsel %vm444, %v3696, 2147483647
    %v3705 = vand.u32 %v3704, 65535
    %v3706 = vshra.s32 %v3704, 16
    %v3707 = vcvt.s32.f32 %v3705
    %v3708 = vcvt.s32.f32 %v3706
    %3709 = vmin.xlane.f32.xlu0 %v3708
    %v3710 = vpop.xlane.xlu0 %3709
    %vm3711 = vcmp.eq.f32.partialorder %v3708, %v3710
    %v3712 = vsel %vm3711, %v3707, inf
    %3713 = vmin.xlane.f32.xlu0 %v3712
    %v3714 = vpop.xlane.xlu0 %3713
    %v3715 = vcvt.f32.s32 %v3714
    %v3716 = vcvt.f32.s32 %v3710
    %v3717 = vshll.u32 %v3716, 16
    %v3718 = vadd.s32 %v3717, %v3715
    %v3719 = vsel %vm444, %v3697, 2147483647
    %v3720 = vand.u32 %v3719, 65535
    %v3721 = vshra.s32 %v3719, 16
    %v3722 = vcvt.s32.f32 %v3720
    %v3723 = vcvt.s32.f32 %v3721
    %3724 = vmin.xlane.f32.xlu0 %v3723
    %v3725 = vpop.xlane.xlu0 %3724
    %vm3726 = vcmp.eq.f32.partialorder %v3723, %v3725
    %v3727 = vsel %vm3726, %v3722, inf
    %3728 = vmin.xlane.f32.xlu0 %v3727
    %v3729 = vpop.xlane.xlu0 %3728
    %v3730 = vcvt.f32.s32 %v3729
    %v3731 = vcvt.f32.s32 %v3725
    %v3732 = vshll.u32 %v3731, 16
    %v3733 = vadd.s32 %v3732, %v3730
    %v3734 = vsel %vm444, %v3698, 2147483647
    %v3735 = vand.u32 %v3734, 65535
    %v3736 = vshra.s32 %v3734, 16
    %v3737 = vcvt.s32.f32 %v3735
    %v3738 = vcvt.s32.f32 %v3736
    %3739 = vmin.xlane.f32.xlu0 %v3738
    %v3740 = vpop.xlane.xlu0 %3739
    %vm3741 = vcmp.eq.f32.partialorder %v3738, %v3740
    %v3742 = vsel %vm3741, %v3737, inf
    %3743 = vmin.xlane.f32.xlu0 %v3742
    %v3744 = vpop.xlane.xlu0 %3743
    %v3745 = vcvt.f32.s32 %v3744
    %v3746 = vcvt.f32.s32 %v3740
    %v3747 = vshll.u32 %v3746, 16
    %v3748 = vadd.s32 %v3747, %v3745
    %v3749 = vsel %vm444, %v3699, 2147483647
    %v3750 = vand.u32 %v3749, 65535
    %v3751 = vshra.s32 %v3749, 16
    %v3752 = vcvt.s32.f32 %v3750
    %v3753 = vcvt.s32.f32 %v3751
    %3754 = vmin.xlane.f32.xlu0 %v3753
    %v3755 = vpop.xlane.xlu0 %3754
    %vm3756 = vcmp.eq.f32.partialorder %v3753, %v3755
    %v3757 = vsel %vm3756, %v3752, inf
    %3758 = vmin.xlane.f32.xlu0 %v3757
    %v3759 = vpop.xlane.xlu0 %3758
    %v3760 = vcvt.f32.s32 %v3759
    %v3761 = vcvt.f32.s32 %v3755
    %v3762 = vshll.u32 %v3761, 16
    %v3763 = vadd.s32 %v3762, %v3760
    %v3764 = vsel %vm444, %v3700, 2147483647
    %v3765 = vand.u32 %v3764, 65535
    %v3766 = vshra.s32 %v3764, 16
    %v3767 = vcvt.s32.f32 %v3765
    %v3768 = vcvt.s32.f32 %v3766
    %3769 = vmin.xlane.f32.xlu0 %v3768
    %v3770 = vpop.xlane.xlu0 %3769
    %vm3771 = vcmp.eq.f32.partialorder %v3768, %v3770
    %v3772 = vsel %vm3771, %v3767, inf
    %3773 = vmin.xlane.f32.xlu0 %v3772
    %v3774 = vpop.xlane.xlu0 %3773
    %v3775 = vcvt.f32.s32 %v3774
    %v3776 = vcvt.f32.s32 %v3770
    %v3777 = vshll.u32 %v3776, 16
    %v3778 = vadd.s32 %v3777, %v3775
    %v3779 = vsel %vm444, %v3701, 2147483647
    %v3780 = vand.u32 %v3779, 65535
    %v3781 = vshra.s32 %v3779, 16
    %v3782 = vcvt.s32.f32 %v3780
    %v3783 = vcvt.s32.f32 %v3781
    %3784 = vmin.xlane.f32.xlu0 %v3783
    %v3785 = vpop.xlane.xlu0 %3784
    %vm3786 = vcmp.eq.f32.partialorder %v3783, %v3785
    %v3787 = vsel %vm3786, %v3782, inf
    %3788 = vmin.xlane.f32.xlu0 %v3787
    %v3789 = vpop.xlane.xlu0 %3788
    %v3790 = vcvt.f32.s32 %v3789
    %v3791 = vcvt.f32.s32 %v3785
    %v3792 = vshll.u32 %v3791, 16
    %v3793 = vadd.s32 %v3792, %v3790
    %v3794 = vsel %vm444, %v3702, 2147483647
    %v3795 = vand.u32 %v3794, 65535
    %v3796 = vshra.s32 %v3794, 16
    %v3797 = vcvt.s32.f32 %v3795
    %v3798 = vcvt.s32.f32 %v3796
    %3799 = vmin.xlane.f32.xlu0 %v3798
    %v3800 = vpop.xlane.xlu0 %3799
    %vm3801 = vcmp.eq.f32.partialorder %v3798, %v3800
    %v3802 = vsel %vm3801, %v3797, inf
    %3803 = vmin.xlane.f32.xlu0 %v3802
    %v3804 = vpop.xlane.xlu0 %3803
    %v3805 = vcvt.f32.s32 %v3804
    %v3806 = vcvt.f32.s32 %v3800
    %v3807 = vshll.u32 %v3806, 16
    %v3808 = vadd.s32 %v3807, %v3805
    %v3809 = vsel %vm444, %v3703, 2147483647
    %v3810 = vand.u32 %v3809, 65535
    %v3811 = vshra.s32 %v3809, 16
    %v3812 = vcvt.s32.f32 %v3810
    %v3813 = vcvt.s32.f32 %v3811
    %3814 = vmin.xlane.f32.xlu0 %v3813
    %v3815 = vpop.xlane.xlu0 %3814
    %vm3816 = vcmp.eq.f32.partialorder %v3813, %v3815
    %v3817 = vsel %vm3816, %v3812, inf
    %3818 = vmin.xlane.f32.xlu0 %v3817
    %v3819 = vpop.xlane.xlu0 %3818
    %v3820 = vcvt.f32.s32 %v3819
    %v3821 = vcvt.f32.s32 %v3815
    %v3822 = vshll.u32 %v3821, 16
    %v3823 = vadd.s32 %v3822, %v3820
    %vm3824 = vcmp.eq.s32.totalorder %v443, %v3718
    %vm3825 = vcmp.eq.s32.totalorder %v443, %v3733
    %vm3826 = vcmp.eq.s32.totalorder %v443, %v3748
    %vm3827 = vcmp.eq.s32.totalorder %v443, %v3763
    %vm3828 = vcmp.eq.s32.totalorder %v443, %v3778
    %vm3829 = vcmp.eq.s32.totalorder %v443, %v3793
    %vm3830 = vcmp.eq.s32.totalorder %v443, %v3808
    %vm3831 = vcmp.eq.s32.totalorder %v443, %v3823
    %v3832 = vsel %vm3824, 1.0, 0.0
    %v3833 = vsel %vm3825, 1.0, 0.0
    %v3834 = vsel %vm3826, 1.0, 0.0
    %v3835 = vsel %vm3827, 1.0, 0.0
    %v3836 = vsel %vm3828, 1.0, 0.0
    %v3837 = vsel %vm3829, 1.0, 0.0
    %v3838 = vsel %vm3830, 1.0, 0.0
    %v3839 = vsel %vm3831, 1.0, 0.0
    %v3840 = vpack.c.bf16 %v3281, %v3280
    %v3841 = vpack.c.bf16 %v3283, %v3282
    %v3842 = vpack.c.bf16 %v3285, %v3284
    %v3843 = vpack.c.bf16 %v3287, %v3286
    %v3844 = vpack.c.bf16 %v3465, %v3464
    %v3845 = vpack.c.bf16 %v3467, %v3466
    %v3846 = vpack.c.bf16 %v3469, %v3468
    %v3847 = vpack.c.bf16 %v3471, %v3470
    %v3848 = vpack.c.bf16 %v3649, %v3648
    %v3849 = vpack.c.bf16 %v3651, %v3650
    %v3850 = vpack.c.bf16 %v3653, %v3652
    %v3851 = vpack.c.bf16 %v3655, %v3654
    %v3852 = vpack.c.bf16 %v3833, %v3832
    %v3853 = vpack.c.bf16 %v3835, %v3834
    %v3854 = vpack.c.bf16 %v3837, %v3836
    %v3855 = vpack.c.bf16 %v3839, %v3838
    %v3857 = vsel %vm444, %v3840, 0
    %v3860 = vsel %vm444, %v3841, 0
    %v3863 = vsel %vm444, %v3842, 0
    %v3866 = vsel %vm444, %v3843, 0
    %v3869 = vsel %vm444, %v3844, 0
    %v3872 = vsel %vm444, %v3845, 0
    %v3875 = vsel %vm444, %v3846, 0
    %v3878 = vsel %vm444, %v3847, 0
    %v3881 = vsel %vm444, %v3848, 0
    %v3884 = vsel %vm444, %v3849, 0
    %v3887 = vsel %vm444, %v3850, 0
    %v3890 = vsel %vm444, %v3851, 0
    %v3893 = vsel %vm444, %v3852, 0
    %v3896 = vsel %vm444, %v3853, 0
    %v3899 = vsel %vm444, %v3854, 0
    %v3902 = vsel %vm444, %v3855, 0
    %3904 = vmatprep.subr.bf16.mxu0 0
    %3905 = vmatpush1.bf16.msra.mxu0 0
    %3906 = vmatprep.subr.bf16.mxu0 0
    %3907 = vmatpush1.bf16.msra.mxu0 0
    %3908 = vmatprep.subr.bf16.mxu0 0
    %3909 = vmatpush1.bf16.msra.mxu0 0
    %3910 = vmatprep.subr.bf16.mxu0 0
    %3911 = vmatpush1.bf16.msra.mxu0 0
    %3912 = vmatprep.subr.bf16.mxu0 0
    %3913 = vmatpush1.bf16.msra.mxu0 %v2894
    %3914 = vmatprep.subr.bf16.mxu0 0
    %3915 = vmatpush1.bf16.msra.mxu0 %v2893
    %3916 = vmatprep.subr.bf16.mxu0 0
    %3917 = vmatpush1.bf16.msra.mxu0 %v2892
    %3918 = vmatprep.subr.bf16.mxu0 0
    %3919 = vmatpush1.bf16.msra.mxu0 %v2891
    %3920 = vmatprep.subr.bf16.mxu0 0
    %3921 = vmatpush2.bf16.msra.mxu0 0
    %3922 = vmatprep.subr.bf16.mxu0 0
    %3923 = vmatpush2.bf16.msra.mxu0 0
    %3924 = vmatprep.subr.bf16.mxu0 0
    %3925 = vmatpush2.bf16.msra.mxu0 0
    %3926 = vmatprep.subr.bf16.mxu0 0
    %3927 = vmatpush2.bf16.msra.mxu0 0
    %3928 = vmatprep.subr.bf16.mxu0 0
    %3929 = vmatpush2.bf16.msra.mxu0 0
    %3930 = vmatprep.subr.bf16.mxu0 0
    %3931 = vmatpush2.bf16.msra.mxu0 0
    %3932 = vmatprep.subr.bf16.mxu0 0
    %3933 = vmatpush2.bf16.msra.mxu0 0
    %3934 = vmatprep.subr.bf16.mxu0 0
    %3935 = vmatpush2.bf16.msra.mxu0 0
    %3936 = vmatprep.mubr.bf16.mxu0 0
    %3937 = vmatmul.mubr.bf16.gmra.mxu0 %v3857
    %v3938 = vpop.f32.mrf.mxu0
    %v3939 = vadd.f32 0.0, %v3938
    %v3940 = vpop.f32.mrf.mxu0
    %v3941 = vpop.f32.mrf.mxu0
    %v3942 = vadd.f32 0.0, %v3941
    %v3943 = vpop.f32.mrf.mxu0
    %3944 = vmatprep.mubr.bf16.mxu0 0
    %3945 = vmatmul.mubr.bf16.gmra.mxu0 %v3860
    %v3946 = vpop.f32.mrf.mxu0
    %v3947 = vadd.f32 0.0, %v3946
    %v3948 = vpop.f32.mrf.mxu0
    %v3949 = vpop.f32.mrf.mxu0
    %v3950 = vadd.f32 0.0, %v3949
    %v3951 = vpop.f32.mrf.mxu0
    %3952 = vmatprep.mubr.bf16.mxu0 0
    %3953 = vmatmul.mubr.bf16.gmra.mxu0 %v3863
    %v3954 = vpop.f32.mrf.mxu0
    %v3955 = vadd.f32 0.0, %v3954
    %v3956 = vpop.f32.mrf.mxu0
    %v3957 = vpop.f32.mrf.mxu0
    %v3958 = vadd.f32 0.0, %v3957
    %v3959 = vpop.f32.mrf.mxu0
    %3960 = vmatprep.mubr.bf16.mxu0 0
    %3961 = vmatmul.mubr.bf16.gmra.mxu0 %v3866
    %v3962 = vpop.f32.mrf.mxu0
    %v3963 = vadd.f32 0.0, %v3962
    %v3964 = vpop.f32.mrf.mxu0
    %v3965 = vpop.f32.mrf.mxu0
    %v3966 = vadd.f32 0.0, %v3965
    %v3967 = vpop.f32.mrf.mxu0
    %3968 = vmatprep.mubr.bf16.mxu0 0
    %3969 = vmatmul.mubr.bf16.gmra.mxu0 %v3869
    %v3970 = vpop.f32.mrf.mxu0
    %v3971 = vadd.f32 0.0, %v3970
    %v3972 = vpop.f32.mrf.mxu0
    %v3973 = vpop.f32.mrf.mxu0
    %v3974 = vadd.f32 0.0, %v3973
    %v3975 = vpop.f32.mrf.mxu0
    %3976 = vmatprep.mubr.bf16.mxu0 0
    %3977 = vmatmul.mubr.bf16.gmra.mxu0 %v3872
    %v3978 = vpop.f32.mrf.mxu0
    %v3979 = vadd.f32 0.0, %v3978
    %v3980 = vpop.f32.mrf.mxu0
    %v3981 = vpop.f32.mrf.mxu0
    %v3982 = vadd.f32 0.0, %v3981
    %v3983 = vpop.f32.mrf.mxu0
    %3984 = vmatprep.mubr.bf16.mxu0 0
    %3985 = vmatmul.mubr.bf16.gmra.mxu0 %v3875
    %v3986 = vpop.f32.mrf.mxu0
    %v3987 = vadd.f32 0.0, %v3986
    %v3988 = vpop.f32.mrf.mxu0
    %v3989 = vpop.f32.mrf.mxu0
    %v3990 = vadd.f32 0.0, %v3989
    %v3991 = vpop.f32.mrf.mxu0
    %3992 = vmatprep.mubr.bf16.mxu0 0
    %3993 = vmatmul.mubr.bf16.gmra.mxu0 %v3878
    %v3994 = vpop.f32.mrf.mxu0
    %v3995 = vadd.f32 0.0, %v3994
    %v3996 = vpop.f32.mrf.mxu0
    %v3997 = vpop.f32.mrf.mxu0
    %v3998 = vadd.f32 0.0, %v3997
    %v3999 = vpop.f32.mrf.mxu0
    %4000 = vmatprep.mubr.bf16.mxu0 0
    %4001 = vmatmul.mubr.bf16.gmra.mxu0 %v3881
    %v4002 = vpop.f32.mrf.mxu0
    %v4003 = vadd.f32 0.0, %v4002
    %v4004 = vpop.f32.mrf.mxu0
    %v4005 = vpop.f32.mrf.mxu0
    %v4006 = vadd.f32 0.0, %v4005
    %v4007 = vpop.f32.mrf.mxu0
    %4008 = vmatprep.mubr.bf16.mxu0 0
    %4009 = vmatmul.mubr.bf16.gmra.mxu0 %v3884
    %v4010 = vpop.f32.mrf.mxu0
    %v4011 = vadd.f32 0.0, %v4010
    %v4012 = vpop.f32.mrf.mxu0
    %v4013 = vpop.f32.mrf.mxu0
    %v4014 = vadd.f32 0.0, %v4013
    %v4015 = vpop.f32.mrf.mxu0
    %4016 = vmatprep.mubr.bf16.mxu0 0
    %4017 = vmatmul.mubr.bf16.gmra.mxu0 %v3887
    %v4018 = vpop.f32.mrf.mxu0
    %v4019 = vadd.f32 0.0, %v4018
    %v4020 = vpop.f32.mrf.mxu0
    %v4021 = vpop.f32.mrf.mxu0
    %v4022 = vadd.f32 0.0, %v4021
    %v4023 = vpop.f32.mrf.mxu0
    %4024 = vmatprep.mubr.bf16.mxu0 0
    %4025 = vmatmul.mubr.bf16.gmra.mxu0 %v3890
    %v4026 = vpop.f32.mrf.mxu0
    %v4027 = vadd.f32 0.0, %v4026
    %v4028 = vpop.f32.mrf.mxu0
    %v4029 = vpop.f32.mrf.mxu0
    %v4030 = vadd.f32 0.0, %v4029
    %v4031 = vpop.f32.mrf.mxu0
    %4032 = vmatprep.mubr.bf16.mxu0 0
    %4033 = vmatmul.mubr.bf16.gmra.mxu0 %v3893
    %v4034 = vpop.f32.mrf.mxu0
    %v4035 = vadd.f32 0.0, %v4034
    %v4036 = vpop.f32.mrf.mxu0
    %v4037 = vpop.f32.mrf.mxu0
    %v4038 = vadd.f32 0.0, %v4037
    %v4039 = vpop.f32.mrf.mxu0
    %4040 = vmatprep.mubr.bf16.mxu0 0
    %4041 = vmatmul.mubr.bf16.gmra.mxu0 %v3896
    %v4042 = vpop.f32.mrf.mxu0
    %v4043 = vadd.f32 0.0, %v4042
    %v4044 = vpop.f32.mrf.mxu0
    %v4045 = vpop.f32.mrf.mxu0
    %v4046 = vadd.f32 0.0, %v4045
    %v4047 = vpop.f32.mrf.mxu0
    %4048 = vmatprep.mubr.bf16.mxu0 0
    %4049 = vmatmul.mubr.bf16.gmra.mxu0 %v3899
    %v4050 = vpop.f32.mrf.mxu0
    %v4051 = vadd.f32 0.0, %v4050
    %v4052 = vpop.f32.mrf.mxu0
    %v4053 = vpop.f32.mrf.mxu0
    %v4054 = vadd.f32 0.0, %v4053
    %v4055 = vpop.f32.mrf.mxu0
    %4056 = vmatprep.mubr.bf16.mxu0 0
    %4057 = vmatmul.mubr.bf16.gmra.mxu0 %v3902
    %v4058 = vpop.f32.mrf.mxu0
    %v4059 = vadd.f32 0.0, %v4058
    %v4060 = vpop.f32.mrf.mxu0
    %v4061 = vpop.f32.mrf.mxu0
    %v4062 = vadd.f32 0.0, %v4061
    %v4063 = vpop.f32.mrf.mxu0
    %4064 = vdwg.mxu0
    %v4065 = vmax.f32 %v3939, %v3971
    %v4066 = vmax.f32 %v3942, %v3974
    %v4067 = vmax.f32 %v3947, %v3979
    %v4068 = vmax.f32 %v3950, %v3982
    %v4069 = vmax.f32 %v3955, %v3987
    %v4070 = vmax.f32 %v3958, %v3990
    %v4071 = vmax.f32 %v3963, %v3995
    %v4072 = vmax.f32 %v3966, %v3998
    %v4073 = vmax.f32 %v4065, %v4003
    %v4074 = vmax.f32 %v4066, %v4006
    %v4075 = vmax.f32 %v4067, %v4011
    %v4076 = vmax.f32 %v4068, %v4014
    %v4077 = vmax.f32 %v4069, %v4019
    %v4078 = vmax.f32 %v4070, %v4022
    %v4079 = vmax.f32 %v4071, %v4027
    %v4080 = vmax.f32 %v4072, %v4030
    %v4081 = vmax.f32 %v4073, %v4035
    %v4082 = vmax.f32 %v4074, %v4038
    %v4083 = vmax.f32 %v4075, %v4043
    %v4084 = vmax.f32 %v4076, %v4046
    %v4085 = vmax.f32 %v4077, %v4051
    %v4086 = vmax.f32 %v4078, %v4054
    %v4087 = vmax.f32 %v4079, %v4059
    %v4088 = vmax.f32 %v4080, %v4062
    %v4089 = vmul.f32 %v2742, %v2742
    %v4090 = vmul.f32 %v2743, %v2743
    %v4091 = vmul.f32 %v2744, %v2744
    %v4092 = vmul.f32 %v2745, %v2745
    %v4093 = vmul.f32 %v2746, %v2746
    %v4094 = vmul.f32 %v2747, %v2747
    %v4095 = vmul.f32 %v2748, %v2748
    %v4096 = vmul.f32 %v2749, %v2749
    %v4097 = vsel %vm2769, %v4089, 0.0
    %4098 = vadd.xlane.f32.xlu0 %v4097
    %v4099 = vpop.xlane.xlu0 %4098
    %v4100 = vsel %vm2769, %v4090, 0.0
    %4101 = vadd.xlane.f32.xlu0 %v4100
    %v4102 = vpop.xlane.xlu0 %4101
    %v4103 = vsel %vm2769, %v4091, 0.0
    %4104 = vadd.xlane.f32.xlu0 %v4103
    %v4105 = vpop.xlane.xlu0 %4104
    %v4106 = vsel %vm2769, %v4092, 0.0
    %4107 = vadd.xlane.f32.xlu0 %v4106
    %v4108 = vpop.xlane.xlu0 %4107
    %v4109 = vsel %vm2769, %v4093, 0.0
    %4110 = vadd.xlane.f32.xlu0 %v4109
    %v4111 = vpop.xlane.xlu0 %4110
    %v4112 = vsel %vm2769, %v4094, 0.0
    %4113 = vadd.xlane.f32.xlu0 %v4112
    %v4114 = vpop.xlane.xlu0 %4113
    %v4115 = vsel %vm2769, %v4095, 0.0
    %4116 = vadd.xlane.f32.xlu0 %v4115
    %v4117 = vpop.xlane.xlu0 %4116
    %v4118 = vsel %vm2769, %v4096, 0.0
    %4119 = vadd.xlane.f32.xlu0 %v4118
    %v4120 = vpop.xlane.xlu0 %4119
    %v4122 = vsel %vm2769, %v2742, 0
    %v4125 = vsel %vm2769, %v2743, 0
    %v4128 = vsel %vm2769, %v2744, 0
    %v4131 = vsel %vm2769, %v2745, 0
    %v4134 = vsel %vm2769, %v2746, 0
    %v4137 = vsel %vm2769, %v2747, 0
    %v4140 = vsel %vm2769, %v2748, 0
    %v4143 = vsel %vm2769, %v2749, 0
    %4145 = vmatprep.subr.mxu0 0.0
    %4146 = vmatpush1.xpose.msra.mxu0 0.0
    %4147 = vmatprep.subr.mxu0 0.0
    %4148 = vmatpush1.xpose.msra.mxu0 0.0
    %4149 = vmatprep.subr.mxu0 0.0
    %4150 = vmatpush1.xpose.msra.mxu0 0.0
    %4151 = vmatprep.subr.mxu0 0.0
    %4152 = vmatpush1.xpose.msra.mxu0 0.0
    %4153 = vmatprep.subr.mxu0 0.0
    %4154 = vmatpush1.xpose.msra.mxu0 0.0
    %4155 = vmatprep.subr.mxu0 0.0
    %4156 = vmatpush1.xpose.msra.mxu0 0.0
    %4157 = vmatprep.subr.mxu0 0.0
    %4158 = vmatpush1.xpose.msra.mxu0 0.0
    %4159 = vmatprep.subr.mxu0 0.0
    %4160 = vmatpush1.xpose.msra.mxu0 0.0
    %4161 = vmatprep.subr.mxu0 0.0
    %4162 = vmatpush1.xpose.msra.mxu0 %v4143
    %4163 = vmatprep.subr.mxu0 0.0
    %4164 = vmatpush1.xpose.msra.mxu0 %v4140
    %4165 = vmatprep.subr.mxu0 0.0
    %4166 = vmatpush1.xpose.msra.mxu0 %v4137
    %4167 = vmatprep.subr.mxu0 0.0
    %4168 = vmatpush1.xpose.msra.mxu0 %v4134
    %4169 = vmatprep.subr.mxu0 0.0
    %4170 = vmatpush1.xpose.msra.mxu0 %v4131
    %4171 = vmatprep.subr.mxu0 0.0
    %4172 = vmatpush1.xpose.msra.mxu0 %v4128
    %4173 = vmatprep.subr.mxu0 0.0
    %4174 = vmatpush1.xpose.msra.mxu0 %v4125
    %4175 = vmatprep.subr.mxu0 0.0
    %4176 = vmatpush1.xpose.msra.mxu0 %v4122
    %4177 = vmatprep.subr.mxu0 0.0
    %4178 = vmatpush2.xpose.msra.mxu0 0.0
    %4179 = vmatprep.subr.mxu0 0.0
    %4180 = vmatpush2.xpose.msra.mxu0 0.0
    %4181 = vmatprep.subr.mxu0 0.0
    %4182 = vmatpush2.xpose.msra.mxu0 0.0
    %4183 = vmatprep.subr.mxu0 0.0
    %4184 = vmatpush2.xpose.msra.mxu0 0.0
    %4185 = vmatprep.subr.mxu0 0.0
    %4186 = vmatpush2.xpose.msra.mxu0 0.0
    %4187 = vmatprep.subr.mxu0 0.0
    %4188 = vmatpush2.xpose.msra.mxu0 0.0
    %4189 = vmatprep.subr.mxu0 0.0
    %4190 = vmatpush2.xpose.msra.mxu0 0.0
    %4191 = vmatprep.subr.mxu0 0.0
    %4192 = vmatpush2.xpose.msra.mxu0 0.0
    %4193 = vmatprep.subr.mxu0 0.0
    %4194 = vmatpush2.xpose.msra.mxu0 0.0
    %4195 = vmatprep.subr.mxu0 0.0
    %4196 = vmatpush2.xpose.msra.mxu0 0.0
    %4197 = vmatprep.subr.mxu0 0.0
    %4198 = vmatpush2.xpose.msra.mxu0 0.0
    %4199 = vmatprep.subr.mxu0 0.0
    %4200 = vmatpush2.xpose.msra.mxu0 0.0
    %4201 = vmatprep.subr.mxu0 0.0
    %4202 = vmatpush2.xpose.msra.mxu0 0.0
    %4203 = vmatprep.subr.mxu0 0.0
    %4204 = vmatpush2.xpose.msra.mxu0 0.0
    %4205 = vmatprep.subr.mxu0 0.0
    %4206 = vmatpush2.xpose.msra.mxu0 0.0
    %4207 = vmatprep.subr.mxu0 0.0
    %4208 = vmatpush2.xpose.msra.mxu0 0.0
    %4209 = vmatprep.mubr.f32.mxu0 0.0
    %4210 = vmatmul.mubr.f32.gmra.mxu0 %v4122
    %v4211 = vpop.f32.mrf.mxu0
    %v4212 = vadd.f32 0.0, %v4211
    %v4213 = vpop.f32.mrf.mxu0
    %4214 = vmatprep.mubr.f32.mxu0 0.0
    %4215 = vmatmul.mubr.f32.gmra.mxu0 %v4125
    %v4216 = vpop.f32.mrf.mxu0
    %v4217 = vadd.f32 0.0, %v4216
    %v4218 = vpop.f32.mrf.mxu0
    %4219 = vmatprep.mubr.f32.mxu0 0.0
    %4220 = vmatmul.mubr.f32.gmra.mxu0 %v4128
    %v4221 = vpop.f32.mrf.mxu0
    %v4222 = vadd.f32 0.0, %v4221
    %v4223 = vpop.f32.mrf.mxu0
    %4224 = vmatprep.mubr.f32.mxu0 0.0
    %4225 = vmatmul.mubr.f32.gmra.mxu0 %v4131
    %v4226 = vpop.f32.mrf.mxu0
    %v4227 = vadd.f32 0.0, %v4226
    %v4228 = vpop.f32.mrf.mxu0
    %4229 = vmatprep.mubr.f32.mxu0 0.0
    %4230 = vmatmul.mubr.f32.gmra.mxu0 %v4134
    %v4231 = vpop.f32.mrf.mxu0
    %v4232 = vadd.f32 0.0, %v4231
    %v4233 = vpop.f32.mrf.mxu0
    %4234 = vmatprep.mubr.f32.mxu0 0.0
    %4235 = vmatmul.mubr.f32.gmra.mxu0 %v4137
    %v4236 = vpop.f32.mrf.mxu0
    %v4237 = vadd.f32 0.0, %v4236
    %v4238 = vpop.f32.mrf.mxu0
    %4239 = vmatprep.mubr.f32.mxu0 0.0
    %4240 = vmatmul.mubr.f32.gmra.mxu0 %v4140
    %v4241 = vpop.f32.mrf.mxu0
    %v4242 = vadd.f32 0.0, %v4241
    %v4243 = vpop.f32.mrf.mxu0
    %4244 = vmatprep.mubr.f32.mxu0 0.0
    %4245 = vmatmul.mubr.f32.gmra.mxu0 %v4143
    %v4246 = vpop.f32.mrf.mxu0
    %v4247 = vadd.f32 0.0, %v4246
    %v4248 = vpop.f32.mrf.mxu0
    %4249 = vdwg.mxu0
    %4250 = vxpose.xlu0.b32.start [1/16] %v4099, 128
    %4251 = vxpose.xlu0.b32.cont [2/16] %v4102, 128
    %4252 = vxpose.xlu0.b32.cont [3/16] %v4105, 128
    %4253 = vxpose.xlu0.b32.cont [4/16] %v4108, 128
    %4254 = vxpose.xlu0.b32.cont [5/16] %v4111, 128
    %4255 = vxpose.xlu0.b32.cont [6/16] %v4114, 128
    %4256 = vxpose.xlu0.b32.cont [7/16] %v4117, 128
    %4257 = vxpose.xlu0.b32.cont [8/16] %v4120, 128
    %4258 = vxpose.xlu0.b32.cont [9/16] 0.0, 128
    %4259 = vxpose.xlu0.b32.cont [10/16] 0.0, 128
    %4260 = vxpose.xlu0.b32.cont [11/16] 0.0, 128
    %4261 = vxpose.xlu0.b32.cont [12/16] 0.0, 128
    %4262 = vxpose.xlu0.b32.cont [13/16] 0.0, 128
    %4263 = vxpose.xlu0.b32.cont [14/16] 0.0, 128
    %4264 = vxpose.xlu0.b32.cont [15/16] 0.0, 128
    %4265 = vxpose.xlu0.b32.end [16/16] 0.0, 128
    %v4266 = vpop.trf.xlu0
    %v4267 = vpop.trf.xlu0
    %v4268 = vpop.trf.xlu0
    %v4269 = vpop.trf.xlu0
    %v4270 = vpop.trf.xlu0
    %v4271 = vpop.trf.xlu0
    %v4272 = vpop.trf.xlu0
    %v4273 = vpop.trf.xlu0
    %v4274 = vpop.trf.xlu0
    %v4275 = vpop.trf.xlu0
    %v4276 = vpop.trf.xlu0
    %v4277 = vpop.trf.xlu0
    %v4278 = vpop.trf.xlu0
    %v4279 = vpop.trf.xlu0
    %v4280 = vpop.trf.xlu0
    %v4281 = vpop.trf.xlu0
    %v4282 = vmul.f32 %v4212, 2.0
    %v4283 = vmul.f32 %v4217, 2.0
    %v4284 = vmul.f32 %v4222, 2.0
    %v4285 = vmul.f32 %v4227, 2.0
    %v4286 = vmul.f32 %v4232, 2.0
    %v4287 = vmul.f32 %v4237, 2.0
    %v4288 = vmul.f32 %v4242, 2.0
    %v4289 = vmul.f32 %v4247, 2.0
    %v4290 = vlaneseq
    %v4291 = vshrl.u32 %v4290, 7
    %v4292 = vsub.s32 0, %v4291
    %v4293 = vrot.slane %v4266, %v4292
    %v4294 = vsub.f32 %v4293, %v4282
    %v4295 = vsub.f32 %v4293, %v4283
    %v4296 = vsub.f32 %v4293, %v4284
    %v4297 = vsub.f32 %v4293, %v4285
    %v4298 = vsub.f32 %v4293, %v4286
    %v4299 = vsub.f32 %v4293, %v4287
    %v4300 = vsub.f32 %v4293, %v4288
    %v4301 = vsub.f32 %v4293, %v4289
    %v4302 = vsel %vm444, %v4294, inf
    %4303 = vmin.xlane.f32.xlu0 %v4302
    %v4304 = vpop.xlane.xlu0 %4303
    %v4305 = vsel %vm444, %v4295, inf
    %4306 = vmin.xlane.f32.xlu0 %v4305
    %v4307 = vpop.xlane.xlu0 %4306
    %v4308 = vsel %vm444, %v4296, inf
    %4309 = vmin.xlane.f32.xlu0 %v4308
    %v4310 = vpop.xlane.xlu0 %4309
    %v4311 = vsel %vm444, %v4297, inf
    %4312 = vmin.xlane.f32.xlu0 %v4311
    %v4313 = vpop.xlane.xlu0 %4312
    %v4314 = vsel %vm444, %v4298, inf
    %4315 = vmin.xlane.f32.xlu0 %v4314
    %v4316 = vpop.xlane.xlu0 %4315
    %v4317 = vsel %vm444, %v4299, inf
    %4318 = vmin.xlane.f32.xlu0 %v4317
    %v4319 = vpop.xlane.xlu0 %4318
    %v4320 = vsel %vm444, %v4300, inf
    %4321 = vmin.xlane.f32.xlu0 %v4320
    %v4322 = vpop.xlane.xlu0 %4321
    %v4323 = vsel %vm444, %v4301, inf
    %4324 = vmin.xlane.f32.xlu0 %v4323
    %v4325 = vpop.xlane.xlu0 %4324
    %vm4326 = vcmp.le.f32.partialorder %v4294, %v4304
    %vm4327 = vcmp.le.f32.partialorder %v4295, %v4307
    %vm4328 = vcmp.le.f32.partialorder %v4296, %v4310
    %vm4329 = vcmp.le.f32.partialorder %v4297, %v4313
    %vm4330 = vcmp.le.f32.partialorder %v4298, %v4316
    %vm4331 = vcmp.le.f32.partialorder %v4299, %v4319
    %vm4332 = vcmp.le.f32.partialorder %v4300, %v4322
    %vm4333 = vcmp.le.f32.partialorder %v4301, %v4325
    %v4334 = vsel %vm4326, %v443, 64
    %v4335 = vsel %vm4327, %v443, 64
    %v4336 = vsel %vm4328, %v443, 64
    %v4337 = vsel %vm4329, %v443, 64
    %v4338 = vsel %vm4330, %v443, 64
    %v4339 = vsel %vm4331, %v443, 64
    %v4340 = vsel %vm4332, %v443, 64
    %v4341 = vsel %vm4333, %v443, 64
    %v4342 = vsel %vm444, %v4334, 2147483647
    %v4343 = vand.u32 %v4342, 65535
    %v4344 = vshra.s32 %v4342, 16
    %v4345 = vcvt.s32.f32 %v4343
    %v4346 = vcvt.s32.f32 %v4344
    %4347 = vmin.xlane.f32.xlu0 %v4346
    %v4348 = vpop.xlane.xlu0 %4347
    %vm4349 = vcmp.eq.f32.partialorder %v4346, %v4348
    %v4350 = vsel %vm4349, %v4345, inf
    %4351 = vmin.xlane.f32.xlu0 %v4350
    %v4352 = vpop.xlane.xlu0 %4351
    %v4353 = vcvt.f32.s32 %v4352
    %v4354 = vcvt.f32.s32 %v4348
    %v4355 = vshll.u32 %v4354, 16
    %v4356 = vadd.s32 %v4355, %v4353
    %v4357 = vsel %vm444, %v4335, 2147483647
    %v4358 = vand.u32 %v4357, 65535
    %v4359 = vshra.s32 %v4357, 16
    %v4360 = vcvt.s32.f32 %v4358
    %v4361 = vcvt.s32.f32 %v4359
    %4362 = vmin.xlane.f32.xlu0 %v4361
    %v4363 = vpop.xlane.xlu0 %4362
    %vm4364 = vcmp.eq.f32.partialorder %v4361, %v4363
    %v4365 = vsel %vm4364, %v4360, inf
    %4366 = vmin.xlane.f32.xlu0 %v4365
    %v4367 = vpop.xlane.xlu0 %4366
    %v4368 = vcvt.f32.s32 %v4367
    %v4369 = vcvt.f32.s32 %v4363
    %v4370 = vshll.u32 %v4369, 16
    %v4371 = vadd.s32 %v4370, %v4368
    %v4372 = vsel %vm444, %v4336, 2147483647
    %v4373 = vand.u32 %v4372, 65535
    %v4374 = vshra.s32 %v4372, 16
    %v4375 = vcvt.s32.f32 %v4373
    %v4376 = vcvt.s32.f32 %v4374
    %4377 = vmin.xlane.f32.xlu0 %v4376
    %v4378 = vpop.xlane.xlu0 %4377
    %vm4379 = vcmp.eq.f32.partialorder %v4376, %v4378
    %v4380 = vsel %vm4379, %v4375, inf
    %4381 = vmin.xlane.f32.xlu0 %v4380
    %v4382 = vpop.xlane.xlu0 %4381
    %v4383 = vcvt.f32.s32 %v4382
    %v4384 = vcvt.f32.s32 %v4378
    %v4385 = vshll.u32 %v4384, 16
    %v4386 = vadd.s32 %v4385, %v4383
    %v4387 = vsel %vm444, %v4337, 2147483647
    %v4388 = vand.u32 %v4387, 65535
    %v4389 = vshra.s32 %v4387, 16
    %v4390 = vcvt.s32.f32 %v4388
    %v4391 = vcvt.s32.f32 %v4389
    %4392 = vmin.xlane.f32.xlu0 %v4391
    %v4393 = vpop.xlane.xlu0 %4392
    %vm4394 = vcmp.eq.f32.partialorder %v4391, %v4393
    %v4395 = vsel %vm4394, %v4390, inf
    %4396 = vmin.xlane.f32.xlu0 %v4395
    %v4397 = vpop.xlane.xlu0 %4396
    %v4398 = vcvt.f32.s32 %v4397
    %v4399 = vcvt.f32.s32 %v4393
    %v4400 = vshll.u32 %v4399, 16
    %v4401 = vadd.s32 %v4400, %v4398
    %v4402 = vsel %vm444, %v4338, 2147483647
    %v4403 = vand.u32 %v4402, 65535
    %v4404 = vshra.s32 %v4402, 16
    %v4405 = vcvt.s32.f32 %v4403
    %v4406 = vcvt.s32.f32 %v4404
    %4407 = vmin.xlane.f32.xlu0 %v4406
    %v4408 = vpop.xlane.xlu0 %4407
    %vm4409 = vcmp.eq.f32.partialorder %v4406, %v4408
    %v4410 = vsel %vm4409, %v4405, inf
    %4411 = vmin.xlane.f32.xlu0 %v4410
    %v4412 = vpop.xlane.xlu0 %4411
    %v4413 = vcvt.f32.s32 %v4412
    %v4414 = vcvt.f32.s32 %v4408
    %v4415 = vshll.u32 %v4414, 16
    %v4416 = vadd.s32 %v4415, %v4413
    %v4417 = vsel %vm444, %v4339, 2147483647
    %v4418 = vand.u32 %v4417, 65535
    %v4419 = vshra.s32 %v4417, 16
    %v4420 = vcvt.s32.f32 %v4418
    %v4421 = vcvt.s32.f32 %v4419
    %4422 = vmin.xlane.f32.xlu0 %v4421
    %v4423 = vpop.xlane.xlu0 %4422
    %vm4424 = vcmp.eq.f32.partialorder %v4421, %v4423
    %v4425 = vsel %vm4424, %v4420, inf
    %4426 = vmin.xlane.f32.xlu0 %v4425
    %v4427 = vpop.xlane.xlu0 %4426
    %v4428 = vcvt.f32.s32 %v4427
    %v4429 = vcvt.f32.s32 %v4423
    %v4430 = vshll.u32 %v4429, 16
    %v4431 = vadd.s32 %v4430, %v4428
    %v4432 = vsel %vm444, %v4340, 2147483647
    %v4433 = vand.u32 %v4432, 65535
    %v4434 = vshra.s32 %v4432, 16
    %v4435 = vcvt.s32.f32 %v4433
    %v4436 = vcvt.s32.f32 %v4434
    %4437 = vmin.xlane.f32.xlu0 %v4436
    %v4438 = vpop.xlane.xlu0 %4437
    %vm4439 = vcmp.eq.f32.partialorder %v4436, %v4438
    %v4440 = vsel %vm4439, %v4435, inf
    %4441 = vmin.xlane.f32.xlu0 %v4440
    %v4442 = vpop.xlane.xlu0 %4441
    %v4443 = vcvt.f32.s32 %v4442
    %v4444 = vcvt.f32.s32 %v4438
    %v4445 = vshll.u32 %v4444, 16
    %v4446 = vadd.s32 %v4445, %v4443
    %v4447 = vsel %vm444, %v4341, 2147483647
    %v4448 = vand.u32 %v4447, 65535
    %v4449 = vshra.s32 %v4447, 16
    %v4450 = vcvt.s32.f32 %v4448
    %v4451 = vcvt.s32.f32 %v4449
    %4452 = vmin.xlane.f32.xlu0 %v4451
    %v4453 = vpop.xlane.xlu0 %4452
    %vm4454 = vcmp.eq.f32.partialorder %v4451, %v4453
    %v4455 = vsel %vm4454, %v4450, inf
    %4456 = vmin.xlane.f32.xlu0 %v4455
    %v4457 = vpop.xlane.xlu0 %4456
    %v4458 = vcvt.f32.s32 %v4457
    %v4459 = vcvt.f32.s32 %v4453
    %v4460 = vshll.u32 %v4459, 16
    %v4461 = vadd.s32 %v4460, %v4458
    %vm4462 = vcmp.eq.s32.totalorder %v443, %v4356
    %vm4463 = vcmp.eq.s32.totalorder %v443, %v4371
    %vm4464 = vcmp.eq.s32.totalorder %v443, %v4386
    %vm4465 = vcmp.eq.s32.totalorder %v443, %v4401
    %vm4466 = vcmp.eq.s32.totalorder %v443, %v4416
    %vm4467 = vcmp.eq.s32.totalorder %v443, %v4431
    %vm4468 = vcmp.eq.s32.totalorder %v443, %v4446
    %vm4469 = vcmp.eq.s32.totalorder %v443, %v4461
    %v4470 = vsel %vm4462, 1.0, 0.0
    %v4471 = vsel %vm4463, 1.0, 0.0
    %v4472 = vsel %vm4464, 1.0, 0.0
    %v4473 = vsel %vm4465, 1.0, 0.0
    %v4474 = vsel %vm4466, 1.0, 0.0
    %v4475 = vsel %vm4467, 1.0, 0.0
    %v4476 = vsel %vm4468, 1.0, 0.0
    %v4477 = vsel %vm4469, 1.0, 0.0
    %v4478 = vsel %vm4462, 1e+30, %v4294
    %v4479 = vsel %vm4463, 1e+30, %v4295
    %v4480 = vsel %vm4464, 1e+30, %v4296
    %v4481 = vsel %vm4465, 1e+30, %v4297
    %v4482 = vsel %vm4466, 1e+30, %v4298
    %v4483 = vsel %vm4467, 1e+30, %v4299
    %v4484 = vsel %vm4468, 1e+30, %v4300
    %v4485 = vsel %vm4469, 1e+30, %v4301
    %v4486 = vsel %vm444, %v4478, inf
    %4487 = vmin.xlane.f32.xlu0 %v4486
    %v4488 = vpop.xlane.xlu0 %4487
    %v4489 = vsel %vm444, %v4479, inf
    %4490 = vmin.xlane.f32.xlu0 %v4489
    %v4491 = vpop.xlane.xlu0 %4490
    %v4492 = vsel %vm444, %v4480, inf
    %4493 = vmin.xlane.f32.xlu0 %v4492
    %v4494 = vpop.xlane.xlu0 %4493
    %v4495 = vsel %vm444, %v4481, inf
    %4496 = vmin.xlane.f32.xlu0 %v4495
    %v4497 = vpop.xlane.xlu0 %4496
    %v4498 = vsel %vm444, %v4482, inf
    %4499 = vmin.xlane.f32.xlu0 %v4498
    %v4500 = vpop.xlane.xlu0 %4499
    %v4501 = vsel %vm444, %v4483, inf
    %4502 = vmin.xlane.f32.xlu0 %v4501
    %v4503 = vpop.xlane.xlu0 %4502
    %v4504 = vsel %vm444, %v4484, inf
    %4505 = vmin.xlane.f32.xlu0 %v4504
    %v4506 = vpop.xlane.xlu0 %4505
    %v4507 = vsel %vm444, %v4485, inf
    %4508 = vmin.xlane.f32.xlu0 %v4507
    %v4509 = vpop.xlane.xlu0 %4508
    %vm4510 = vcmp.le.f32.partialorder %v4478, %v4488
    %vm4511 = vcmp.le.f32.partialorder %v4479, %v4491
    %vm4512 = vcmp.le.f32.partialorder %v4480, %v4494
    %vm4513 = vcmp.le.f32.partialorder %v4481, %v4497
    %vm4514 = vcmp.le.f32.partialorder %v4482, %v4500
    %vm4515 = vcmp.le.f32.partialorder %v4483, %v4503
    %vm4516 = vcmp.le.f32.partialorder %v4484, %v4506
    %vm4517 = vcmp.le.f32.partialorder %v4485, %v4509
    %v4518 = vsel %vm4510, %v443, 64
    %v4519 = vsel %vm4511, %v443, 64
    %v4520 = vsel %vm4512, %v443, 64
    %v4521 = vsel %vm4513, %v443, 64
    %v4522 = vsel %vm4514, %v443, 64
    %v4523 = vsel %vm4515, %v443, 64
    %v4524 = vsel %vm4516, %v443, 64
    %v4525 = vsel %vm4517, %v443, 64
    %v4526 = vsel %vm444, %v4518, 2147483647
    %v4527 = vand.u32 %v4526, 65535
    %v4528 = vshra.s32 %v4526, 16
    %v4529 = vcvt.s32.f32 %v4527
    %v4530 = vcvt.s32.f32 %v4528
    %4531 = vmin.xlane.f32.xlu0 %v4530
    %v4532 = vpop.xlane.xlu0 %4531
    %vm4533 = vcmp.eq.f32.partialorder %v4530, %v4532
    %v4534 = vsel %vm4533, %v4529, inf
    %4535 = vmin.xlane.f32.xlu0 %v4534
    %v4536 = vpop.xlane.xlu0 %4535
    %v4537 = vcvt.f32.s32 %v4536
    %v4538 = vcvt.f32.s32 %v4532
    %v4539 = vshll.u32 %v4538, 16
    %v4540 = vadd.s32 %v4539, %v4537
    %v4541 = vsel %vm444, %v4519, 2147483647
    %v4542 = vand.u32 %v4541, 65535
    %v4543 = vshra.s32 %v4541, 16
    %v4544 = vcvt.s32.f32 %v4542
    %v4545 = vcvt.s32.f32 %v4543
    %4546 = vmin.xlane.f32.xlu0 %v4545
    %v4547 = vpop.xlane.xlu0 %4546
    %vm4548 = vcmp.eq.f32.partialorder %v4545, %v4547
    %v4549 = vsel %vm4548, %v4544, inf
    %4550 = vmin.xlane.f32.xlu0 %v4549
    %v4551 = vpop.xlane.xlu0 %4550
    %v4552 = vcvt.f32.s32 %v4551
    %v4553 = vcvt.f32.s32 %v4547
    %v4554 = vshll.u32 %v4553, 16
    %v4555 = vadd.s32 %v4554, %v4552
    %v4556 = vsel %vm444, %v4520, 2147483647
    %v4557 = vand.u32 %v4556, 65535
    %v4558 = vshra.s32 %v4556, 16
    %v4559 = vcvt.s32.f32 %v4557
    %v4560 = vcvt.s32.f32 %v4558
    %4561 = vmin.xlane.f32.xlu0 %v4560
    %v4562 = vpop.xlane.xlu0 %4561
    %vm4563 = vcmp.eq.f32.partialorder %v4560, %v4562
    %v4564 = vsel %vm4563, %v4559, inf
    %4565 = vmin.xlane.f32.xlu0 %v4564
    %v4566 = vpop.xlane.xlu0 %4565
    %v4567 = vcvt.f32.s32 %v4566
    %v4568 = vcvt.f32.s32 %v4562
    %v4569 = vshll.u32 %v4568, 16
    %v4570 = vadd.s32 %v4569, %v4567
    %v4571 = vsel %vm444, %v4521, 2147483647
    %v4572 = vand.u32 %v4571, 65535
    %v4573 = vshra.s32 %v4571, 16
    %v4574 = vcvt.s32.f32 %v4572
    %v4575 = vcvt.s32.f32 %v4573
    %4576 = vmin.xlane.f32.xlu0 %v4575
    %v4577 = vpop.xlane.xlu0 %4576
    %vm4578 = vcmp.eq.f32.partialorder %v4575, %v4577
    %v4579 = vsel %vm4578, %v4574, inf
    %4580 = vmin.xlane.f32.xlu0 %v4579
    %v4581 = vpop.xlane.xlu0 %4580
    %v4582 = vcvt.f32.s32 %v4581
    %v4583 = vcvt.f32.s32 %v4577
    %v4584 = vshll.u32 %v4583, 16
    %v4585 = vadd.s32 %v4584, %v4582
    %v4586 = vsel %vm444, %v4522, 2147483647
    %v4587 = vand.u32 %v4586, 65535
    %v4588 = vshra.s32 %v4586, 16
    %v4589 = vcvt.s32.f32 %v4587
    %v4590 = vcvt.s32.f32 %v4588
    %4591 = vmin.xlane.f32.xlu0 %v4590
    %v4592 = vpop.xlane.xlu0 %4591
    %vm4593 = vcmp.eq.f32.partialorder %v4590, %v4592
    %v4594 = vsel %vm4593, %v4589, inf
    %4595 = vmin.xlane.f32.xlu0 %v4594
    %v4596 = vpop.xlane.xlu0 %4595
    %v4597 = vcvt.f32.s32 %v4596
    %v4598 = vcvt.f32.s32 %v4592
    %v4599 = vshll.u32 %v4598, 16
    %v4600 = vadd.s32 %v4599, %v4597
    %v4601 = vsel %vm444, %v4523, 2147483647
    %v4602 = vand.u32 %v4601, 65535
    %v4603 = vshra.s32 %v4601, 16
    %v4604 = vcvt.s32.f32 %v4602
    %v4605 = vcvt.s32.f32 %v4603
    %4606 = vmin.xlane.f32.xlu0 %v4605
    %v4607 = vpop.xlane.xlu0 %4606
    %vm4608 = vcmp.eq.f32.partialorder %v4605, %v4607
    %v4609 = vsel %vm4608, %v4604, inf
    %4610 = vmin.xlane.f32.xlu0 %v4609
    %v4611 = vpop.xlane.xlu0 %4610
    %v4612 = vcvt.f32.s32 %v4611
    %v4613 = vcvt.f32.s32 %v4607
    %v4614 = vshll.u32 %v4613, 16
    %v4615 = vadd.s32 %v4614, %v4612
    %v4616 = vsel %vm444, %v4524, 2147483647
    %v4617 = vand.u32 %v4616, 65535
    %v4618 = vshra.s32 %v4616, 16
    %v4619 = vcvt.s32.f32 %v4617
    %v4620 = vcvt.s32.f32 %v4618
    %4621 = vmin.xlane.f32.xlu0 %v4620
    %v4622 = vpop.xlane.xlu0 %4621
    %vm4623 = vcmp.eq.f32.partialorder %v4620, %v4622
    %v4624 = vsel %vm4623, %v4619, inf
    %4625 = vmin.xlane.f32.xlu0 %v4624
    %v4626 = vpop.xlane.xlu0 %4625
    %v4627 = vcvt.f32.s32 %v4626
    %v4628 = vcvt.f32.s32 %v4622
    %v4629 = vshll.u32 %v4628, 16
    %v4630 = vadd.s32 %v4629, %v4627
    %v4631 = vsel %vm444, %v4525, 2147483647
    %v4632 = vand.u32 %v4631, 65535
    %v4633 = vshra.s32 %v4631, 16
    %v4634 = vcvt.s32.f32 %v4632
    %v4635 = vcvt.s32.f32 %v4633
    %4636 = vmin.xlane.f32.xlu0 %v4635
    %v4637 = vpop.xlane.xlu0 %4636
    %vm4638 = vcmp.eq.f32.partialorder %v4635, %v4637
    %v4639 = vsel %vm4638, %v4634, inf
    %4640 = vmin.xlane.f32.xlu0 %v4639
    %v4641 = vpop.xlane.xlu0 %4640
    %v4642 = vcvt.f32.s32 %v4641
    %v4643 = vcvt.f32.s32 %v4637
    %v4644 = vshll.u32 %v4643, 16
    %v4645 = vadd.s32 %v4644, %v4642
    %vm4646 = vcmp.eq.s32.totalorder %v443, %v4540
    %vm4647 = vcmp.eq.s32.totalorder %v443, %v4555
    %vm4648 = vcmp.eq.s32.totalorder %v443, %v4570
    %vm4649 = vcmp.eq.s32.totalorder %v443, %v4585
    %vm4650 = vcmp.eq.s32.totalorder %v443, %v4600
    %vm4651 = vcmp.eq.s32.totalorder %v443, %v4615
    %vm4652 = vcmp.eq.s32.totalorder %v443, %v4630
    %vm4653 = vcmp.eq.s32.totalorder %v443, %v4645
    %v4654 = vsel %vm4646, 1.0, 0.0
    %v4655 = vsel %vm4647, 1.0, 0.0
    %v4656 = vsel %vm4648, 1.0, 0.0
    %v4657 = vsel %vm4649, 1.0, 0.0
    %v4658 = vsel %vm4650, 1.0, 0.0
    %v4659 = vsel %vm4651, 1.0, 0.0
    %v4660 = vsel %vm4652, 1.0, 0.0
    %v4661 = vsel %vm4653, 1.0, 0.0
    %v4662 = vsel %vm4646, 1e+30, %v4478
    %v4663 = vsel %vm4647, 1e+30, %v4479
    %v4664 = vsel %vm4648, 1e+30, %v4480
    %v4665 = vsel %vm4649, 1e+30, %v4481
    %v4666 = vsel %vm4650, 1e+30, %v4482
    %v4667 = vsel %vm4651, 1e+30, %v4483
    %v4668 = vsel %vm4652, 1e+30, %v4484
    %v4669 = vsel %vm4653, 1e+30, %v4485
    %v4670 = vsel %vm444, %v4662, inf
    %4671 = vmin.xlane.f32.xlu0 %v4670
    %v4672 = vpop.xlane.xlu0 %4671
    %v4673 = vsel %vm444, %v4663, inf
    %4674 = vmin.xlane.f32.xlu0 %v4673
    %v4675 = vpop.xlane.xlu0 %4674
    %v4676 = vsel %vm444, %v4664, inf
    %4677 = vmin.xlane.f32.xlu0 %v4676
    %v4678 = vpop.xlane.xlu0 %4677
    %v4679 = vsel %vm444, %v4665, inf
    %4680 = vmin.xlane.f32.xlu0 %v4679
    %v4681 = vpop.xlane.xlu0 %4680
    %v4682 = vsel %vm444, %v4666, inf
    %4683 = vmin.xlane.f32.xlu0 %v4682
    %v4684 = vpop.xlane.xlu0 %4683
    %v4685 = vsel %vm444, %v4667, inf
    %4686 = vmin.xlane.f32.xlu0 %v4685
    %v4687 = vpop.xlane.xlu0 %4686
    %v4688 = vsel %vm444, %v4668, inf
    %4689 = vmin.xlane.f32.xlu0 %v4688
    %v4690 = vpop.xlane.xlu0 %4689
    %v4691 = vsel %vm444, %v4669, inf
    %4692 = vmin.xlane.f32.xlu0 %v4691
    %v4693 = vpop.xlane.xlu0 %4692
    %vm4694 = vcmp.le.f32.partialorder %v4662, %v4672
    %vm4695 = vcmp.le.f32.partialorder %v4663, %v4675
    %vm4696 = vcmp.le.f32.partialorder %v4664, %v4678
    %vm4697 = vcmp.le.f32.partialorder %v4665, %v4681
    %vm4698 = vcmp.le.f32.partialorder %v4666, %v4684
    %vm4699 = vcmp.le.f32.partialorder %v4667, %v4687
    %vm4700 = vcmp.le.f32.partialorder %v4668, %v4690
    %vm4701 = vcmp.le.f32.partialorder %v4669, %v4693
    %v4702 = vsel %vm4694, %v443, 64
    %v4703 = vsel %vm4695, %v443, 64
    %v4704 = vsel %vm4696, %v443, 64
    %v4705 = vsel %vm4697, %v443, 64
    %v4706 = vsel %vm4698, %v443, 64
    %v4707 = vsel %vm4699, %v443, 64
    %v4708 = vsel %vm4700, %v443, 64
    %v4709 = vsel %vm4701, %v443, 64
    %v4710 = vsel %vm444, %v4702, 2147483647
    %v4711 = vand.u32 %v4710, 65535
    %v4712 = vshra.s32 %v4710, 16
    %v4713 = vcvt.s32.f32 %v4711
    %v4714 = vcvt.s32.f32 %v4712
    %4715 = vmin.xlane.f32.xlu0 %v4714
    %v4716 = vpop.xlane.xlu0 %4715
    %vm4717 = vcmp.eq.f32.partialorder %v4714, %v4716
    %v4718 = vsel %vm4717, %v4713, inf
    %4719 = vmin.xlane.f32.xlu0 %v4718
    %v4720 = vpop.xlane.xlu0 %4719
    %v4721 = vcvt.f32.s32 %v4720
    %v4722 = vcvt.f32.s32 %v4716
    %v4723 = vshll.u32 %v4722, 16
    %v4724 = vadd.s32 %v4723, %v4721
    %v4725 = vsel %vm444, %v4703, 2147483647
    %v4726 = vand.u32 %v4725, 65535
    %v4727 = vshra.s32 %v4725, 16
    %v4728 = vcvt.s32.f32 %v4726
    %v4729 = vcvt.s32.f32 %v4727
    %4730 = vmin.xlane.f32.xlu0 %v4729
    %v4731 = vpop.xlane.xlu0 %4730
    %vm4732 = vcmp.eq.f32.partialorder %v4729, %v4731
    %v4733 = vsel %vm4732, %v4728, inf
    %4734 = vmin.xlane.f32.xlu0 %v4733
    %v4735 = vpop.xlane.xlu0 %4734
    %v4736 = vcvt.f32.s32 %v4735
    %v4737 = vcvt.f32.s32 %v4731
    %v4738 = vshll.u32 %v4737, 16
    %v4739 = vadd.s32 %v4738, %v4736
    %v4740 = vsel %vm444, %v4704, 2147483647
    %v4741 = vand.u32 %v4740, 65535
    %v4742 = vshra.s32 %v4740, 16
    %v4743 = vcvt.s32.f32 %v4741
    %v4744 = vcvt.s32.f32 %v4742
    %4745 = vmin.xlane.f32.xlu0 %v4744
    %v4746 = vpop.xlane.xlu0 %4745
    %vm4747 = vcmp.eq.f32.partialorder %v4744, %v4746
    %v4748 = vsel %vm4747, %v4743, inf
    %4749 = vmin.xlane.f32.xlu0 %v4748
    %v4750 = vpop.xlane.xlu0 %4749
    %v4751 = vcvt.f32.s32 %v4750
    %v4752 = vcvt.f32.s32 %v4746
    %v4753 = vshll.u32 %v4752, 16
    %v4754 = vadd.s32 %v4753, %v4751
    %v4755 = vsel %vm444, %v4705, 2147483647
    %v4756 = vand.u32 %v4755, 65535
    %v4757 = vshra.s32 %v4755, 16
    %v4758 = vcvt.s32.f32 %v4756
    %v4759 = vcvt.s32.f32 %v4757
    %4760 = vmin.xlane.f32.xlu0 %v4759
    %v4761 = vpop.xlane.xlu0 %4760
    %vm4762 = vcmp.eq.f32.partialorder %v4759, %v4761
    %v4763 = vsel %vm4762, %v4758, inf
    %4764 = vmin.xlane.f32.xlu0 %v4763
    %v4765 = vpop.xlane.xlu0 %4764
    %v4766 = vcvt.f32.s32 %v4765
    %v4767 = vcvt.f32.s32 %v4761
    %v4768 = vshll.u32 %v4767, 16
    %v4769 = vadd.s32 %v4768, %v4766
    %v4770 = vsel %vm444, %v4706, 2147483647
    %v4771 = vand.u32 %v4770, 65535
    %v4772 = vshra.s32 %v4770, 16
    %v4773 = vcvt.s32.f32 %v4771
    %v4774 = vcvt.s32.f32 %v4772
    %4775 = vmin.xlane.f32.xlu0 %v4774
    %v4776 = vpop.xlane.xlu0 %4775
    %vm4777 = vcmp.eq.f32.partialorder %v4774, %v4776
    %v4778 = vsel %vm4777, %v4773, inf
    %4779 = vmin.xlane.f32.xlu0 %v4778
    %v4780 = vpop.xlane.xlu0 %4779
    %v4781 = vcvt.f32.s32 %v4780
    %v4782 = vcvt.f32.s32 %v4776
    %v4783 = vshll.u32 %v4782, 16
    %v4784 = vadd.s32 %v4783, %v4781
    %v4785 = vsel %vm444, %v4707, 2147483647
    %v4786 = vand.u32 %v4785, 65535
    %v4787 = vshra.s32 %v4785, 16
    %v4788 = vcvt.s32.f32 %v4786
    %v4789 = vcvt.s32.f32 %v4787
    %4790 = vmin.xlane.f32.xlu0 %v4789
    %v4791 = vpop.xlane.xlu0 %4790
    %vm4792 = vcmp.eq.f32.partialorder %v4789, %v4791
    %v4793 = vsel %vm4792, %v4788, inf
    %4794 = vmin.xlane.f32.xlu0 %v4793
    %v4795 = vpop.xlane.xlu0 %4794
    %v4796 = vcvt.f32.s32 %v4795
    %v4797 = vcvt.f32.s32 %v4791
    %v4798 = vshll.u32 %v4797, 16
    %v4799 = vadd.s32 %v4798, %v4796
    %v4800 = vsel %vm444, %v4708, 2147483647
    %v4801 = vand.u32 %v4800, 65535
    %v4802 = vshra.s32 %v4800, 16
    %v4803 = vcvt.s32.f32 %v4801
    %v4804 = vcvt.s32.f32 %v4802
    %4805 = vmin.xlane.f32.xlu0 %v4804
    %v4806 = vpop.xlane.xlu0 %4805
    %vm4807 = vcmp.eq.f32.partialorder %v4804, %v4806
    %v4808 = vsel %vm4807, %v4803, inf
    %4809 = vmin.xlane.f32.xlu0 %v4808
    %v4810 = vpop.xlane.xlu0 %4809
    %v4811 = vcvt.f32.s32 %v4810
    %v4812 = vcvt.f32.s32 %v4806
    %v4813 = vshll.u32 %v4812, 16
    %v4814 = vadd.s32 %v4813, %v4811
    %v4815 = vsel %vm444, %v4709, 2147483647
    %v4816 = vand.u32 %v4815, 65535
    %v4817 = vshra.s32 %v4815, 16
    %v4818 = vcvt.s32.f32 %v4816
    %v4819 = vcvt.s32.f32 %v4817
    %4820 = vmin.xlane.f32.xlu0 %v4819
    %v4821 = vpop.xlane.xlu0 %4820
    %vm4822 = vcmp.eq.f32.partialorder %v4819, %v4821
    %v4823 = vsel %vm4822, %v4818, inf
    %4824 = vmin.xlane.f32.xlu0 %v4823
    %v4825 = vpop.xlane.xlu0 %4824
    %v4826 = vcvt.f32.s32 %v4825
    %v4827 = vcvt.f32.s32 %v4821
    %v4828 = vshll.u32 %v4827, 16
    %v4829 = vadd.s32 %v4828, %v4826
    %vm4830 = vcmp.eq.s32.totalorder %v443, %v4724
    %vm4831 = vcmp.eq.s32.totalorder %v443, %v4739
    %vm4832 = vcmp.eq.s32.totalorder %v443, %v4754
    %vm4833 = vcmp.eq.s32.totalorder %v443, %v4769
    %vm4834 = vcmp.eq.s32.totalorder %v443, %v4784
    %vm4835 = vcmp.eq.s32.totalorder %v443, %v4799
    %vm4836 = vcmp.eq.s32.totalorder %v443, %v4814
    %vm4837 = vcmp.eq.s32.totalorder %v443, %v4829
    %v4838 = vsel %vm4830, 1.0, 0.0
    %v4839 = vsel %vm4831, 1.0, 0.0
    %v4840 = vsel %vm4832, 1.0, 0.0
    %v4841 = vsel %vm4833, 1.0, 0.0
    %v4842 = vsel %vm4834, 1.0, 0.0
    %v4843 = vsel %vm4835, 1.0, 0.0
    %v4844 = vsel %vm4836, 1.0, 0.0
    %v4845 = vsel %vm4837, 1.0, 0.0
    %v4846 = vsel %vm4830, 1e+30, %v4662
    %v4847 = vsel %vm4831, 1e+30, %v4663
    %v4848 = vsel %vm4832, 1e+30, %v4664
    %v4849 = vsel %vm4833, 1e+30, %v4665
    %v4850 = vsel %vm4834, 1e+30, %v4666
    %v4851 = vsel %vm4835, 1e+30, %v4667
    %v4852 = vsel %vm4836, 1e+30, %v4668
    %v4853 = vsel %vm4837, 1e+30, %v4669
    %v4854 = vsel %vm444, %v4846, inf
    %4855 = vmin.xlane.f32.xlu0 %v4854
    %v4856 = vpop.xlane.xlu0 %4855
    %v4857 = vsel %vm444, %v4847, inf
    %4858 = vmin.xlane.f32.xlu0 %v4857
    %v4859 = vpop.xlane.xlu0 %4858
    %v4860 = vsel %vm444, %v4848, inf
    %4861 = vmin.xlane.f32.xlu0 %v4860
    %v4862 = vpop.xlane.xlu0 %4861
    %v4863 = vsel %vm444, %v4849, inf
    %4864 = vmin.xlane.f32.xlu0 %v4863
    %v4865 = vpop.xlane.xlu0 %4864
    %v4866 = vsel %vm444, %v4850, inf
    %4867 = vmin.xlane.f32.xlu0 %v4866
    %v4868 = vpop.xlane.xlu0 %4867
    %v4869 = vsel %vm444, %v4851, inf
    %4870 = vmin.xlane.f32.xlu0 %v4869
    %v4871 = vpop.xlane.xlu0 %4870
    %v4872 = vsel %vm444, %v4852, inf
    %4873 = vmin.xlane.f32.xlu0 %v4872
    %v4874 = vpop.xlane.xlu0 %4873
    %v4875 = vsel %vm444, %v4853, inf
    %4876 = vmin.xlane.f32.xlu0 %v4875
    %v4877 = vpop.xlane.xlu0 %4876
    %vm4878 = vcmp.le.f32.partialorder %v4846, %v4856
    %vm4879 = vcmp.le.f32.partialorder %v4847, %v4859
    %vm4880 = vcmp.le.f32.partialorder %v4848, %v4862
    %vm4881 = vcmp.le.f32.partialorder %v4849, %v4865
    %vm4882 = vcmp.le.f32.partialorder %v4850, %v4868
    %vm4883 = vcmp.le.f32.partialorder %v4851, %v4871
    %vm4884 = vcmp.le.f32.partialorder %v4852, %v4874
    %vm4885 = vcmp.le.f32.partialorder %v4853, %v4877
    %v4886 = vsel %vm4878, %v443, 64
    %v4887 = vsel %vm4879, %v443, 64
    %v4888 = vsel %vm4880, %v443, 64
    %v4889 = vsel %vm4881, %v443, 64
    %v4890 = vsel %vm4882, %v443, 64
    %v4891 = vsel %vm4883, %v443, 64
    %v4892 = vsel %vm4884, %v443, 64
    %v4893 = vsel %vm4885, %v443, 64
    %v4894 = vsel %vm444, %v4886, 2147483647
    %v4895 = vand.u32 %v4894, 65535
    %v4896 = vshra.s32 %v4894, 16
    %v4897 = vcvt.s32.f32 %v4895
    %v4898 = vcvt.s32.f32 %v4896
    %4899 = vmin.xlane.f32.xlu0 %v4898
    %v4900 = vpop.xlane.xlu0 %4899
    %vm4901 = vcmp.eq.f32.partialorder %v4898, %v4900
    %v4902 = vsel %vm4901, %v4897, inf
    %4903 = vmin.xlane.f32.xlu0 %v4902
    %v4904 = vpop.xlane.xlu0 %4903
    %v4905 = vcvt.f32.s32 %v4904
    %v4906 = vcvt.f32.s32 %v4900
    %v4907 = vshll.u32 %v4906, 16
    %v4908 = vadd.s32 %v4907, %v4905
    %v4909 = vsel %vm444, %v4887, 2147483647
    %v4910 = vand.u32 %v4909, 65535
    %v4911 = vshra.s32 %v4909, 16
    %v4912 = vcvt.s32.f32 %v4910
    %v4913 = vcvt.s32.f32 %v4911
    %4914 = vmin.xlane.f32.xlu0 %v4913
    %v4915 = vpop.xlane.xlu0 %4914
    %vm4916 = vcmp.eq.f32.partialorder %v4913, %v4915
    %v4917 = vsel %vm4916, %v4912, inf
    %4918 = vmin.xlane.f32.xlu0 %v4917
    %v4919 = vpop.xlane.xlu0 %4918
    %v4920 = vcvt.f32.s32 %v4919
    %v4921 = vcvt.f32.s32 %v4915
    %v4922 = vshll.u32 %v4921, 16
    %v4923 = vadd.s32 %v4922, %v4920
    %v4924 = vsel %vm444, %v4888, 2147483647
    %v4925 = vand.u32 %v4924, 65535
    %v4926 = vshra.s32 %v4924, 16
    %v4927 = vcvt.s32.f32 %v4925
    %v4928 = vcvt.s32.f32 %v4926
    %4929 = vmin.xlane.f32.xlu0 %v4928
    %v4930 = vpop.xlane.xlu0 %4929
    %vm4931 = vcmp.eq.f32.partialorder %v4928, %v4930
    %v4932 = vsel %vm4931, %v4927, inf
    %4933 = vmin.xlane.f32.xlu0 %v4932
    %v4934 = vpop.xlane.xlu0 %4933
    %v4935 = vcvt.f32.s32 %v4934
    %v4936 = vcvt.f32.s32 %v4930
    %v4937 = vshll.u32 %v4936, 16
    %v4938 = vadd.s32 %v4937, %v4935
    %v4939 = vsel %vm444, %v4889, 2147483647
    %v4940 = vand.u32 %v4939, 65535
    %v4941 = vshra.s32 %v4939, 16
    %v4942 = vcvt.s32.f32 %v4940
    %v4943 = vcvt.s32.f32 %v4941
    %4944 = vmin.xlane.f32.xlu0 %v4943
    %v4945 = vpop.xlane.xlu0 %4944
    %vm4946 = vcmp.eq.f32.partialorder %v4943, %v4945
    %v4947 = vsel %vm4946, %v4942, inf
    %4948 = vmin.xlane.f32.xlu0 %v4947
    %v4949 = vpop.xlane.xlu0 %4948
    %v4950 = vcvt.f32.s32 %v4949
    %v4951 = vcvt.f32.s32 %v4945
    %v4952 = vshll.u32 %v4951, 16
    %v4953 = vadd.s32 %v4952, %v4950
    %v4954 = vsel %vm444, %v4890, 2147483647
    %v4955 = vand.u32 %v4954, 65535
    %v4956 = vshra.s32 %v4954, 16
    %v4957 = vcvt.s32.f32 %v4955
    %v4958 = vcvt.s32.f32 %v4956
    %4959 = vmin.xlane.f32.xlu0 %v4958
    %v4960 = vpop.xlane.xlu0 %4959
    %vm4961 = vcmp.eq.f32.partialorder %v4958, %v4960
    %v4962 = vsel %vm4961, %v4957, inf
    %4963 = vmin.xlane.f32.xlu0 %v4962
    %v4964 = vpop.xlane.xlu0 %4963
    %v4965 = vcvt.f32.s32 %v4964
    %v4966 = vcvt.f32.s32 %v4960
    %v4967 = vshll.u32 %v4966, 16
    %v4968 = vadd.s32 %v4967, %v4965
    %v4969 = vsel %vm444, %v4891, 2147483647
    %v4970 = vand.u32 %v4969, 65535
    %v4971 = vshra.s32 %v4969, 16
    %v4972 = vcvt.s32.f32 %v4970
    %v4973 = vcvt.s32.f32 %v4971
    %4974 = vmin.xlane.f32.xlu0 %v4973
    %v4975 = vpop.xlane.xlu0 %4974
    %vm4976 = vcmp.eq.f32.partialorder %v4973, %v4975
    %v4977 = vsel %vm4976, %v4972, inf
    %4978 = vmin.xlane.f32.xlu0 %v4977
    %v4979 = vpop.xlane.xlu0 %4978
    %v4980 = vcvt.f32.s32 %v4979
    %v4981 = vcvt.f32.s32 %v4975
    %v4982 = vshll.u32 %v4981, 16
    %v4983 = vadd.s32 %v4982, %v4980
    %v4984 = vsel %vm444, %v4892, 2147483647
    %v4985 = vand.u32 %v4984, 65535
    %v4986 = vshra.s32 %v4984, 16
    %v4987 = vcvt.s32.f32 %v4985
    %v4988 = vcvt.s32.f32 %v4986
    %4989 = vmin.xlane.f32.xlu0 %v4988
    %v4990 = vpop.xlane.xlu0 %4989
    %vm4991 = vcmp.eq.f32.partialorder %v4988, %v4990
    %v4992 = vsel %vm4991, %v4987, inf
    %4993 = vmin.xlane.f32.xlu0 %v4992
    %v4994 = vpop.xlane.xlu0 %4993
    %v4995 = vcvt.f32.s32 %v4994
    %v4996 = vcvt.f32.s32 %v4990
    %v4997 = vshll.u32 %v4996, 16
    %v4998 = vadd.s32 %v4997, %v4995
    %v4999 = vsel %vm444, %v4893, 2147483647
    %v5000 = vand.u32 %v4999, 65535
    %v5001 = vshra.s32 %v4999, 16
    %v5002 = vcvt.s32.f32 %v5000
    %v5003 = vcvt.s32.f32 %v5001
    %5004 = vmin.xlane.f32.xlu0 %v5003
    %v5005 = vpop.xlane.xlu0 %5004
    %vm5006 = vcmp.eq.f32.partialorder %v5003, %v5005
    %v5007 = vsel %vm5006, %v5002, inf
    %5008 = vmin.xlane.f32.xlu0 %v5007
    %v5009 = vpop.xlane.xlu0 %5008
    %v5010 = vcvt.f32.s32 %v5009
    %v5011 = vcvt.f32.s32 %v5005
    %v5012 = vshll.u32 %v5011, 16
    %v5013 = vadd.s32 %v5012, %v5010
    %vm5014 = vcmp.eq.s32.totalorder %v443, %v4908
    %vm5015 = vcmp.eq.s32.totalorder %v443, %v4923
    %vm5016 = vcmp.eq.s32.totalorder %v443, %v4938
    %vm5017 = vcmp.eq.s32.totalorder %v443, %v4953
    %vm5018 = vcmp.eq.s32.totalorder %v443, %v4968
    %vm5019 = vcmp.eq.s32.totalorder %v443, %v4983
    %vm5020 = vcmp.eq.s32.totalorder %v443, %v4998
    %vm5021 = vcmp.eq.s32.totalorder %v443, %v5013
    %v5022 = vsel %vm5014, 1.0, 0.0
    %v5023 = vsel %vm5015, 1.0, 0.0
    %v5024 = vsel %vm5016, 1.0, 0.0
    %v5025 = vsel %vm5017, 1.0, 0.0
    %v5026 = vsel %vm5018, 1.0, 0.0
    %v5027 = vsel %vm5019, 1.0, 0.0
    %v5028 = vsel %vm5020, 1.0, 0.0
    %v5029 = vsel %vm5021, 1.0, 0.0
    %v5030 = vpack.c.bf16 %v4471, %v4470
    %v5031 = vpack.c.bf16 %v4473, %v4472
    %v5032 = vpack.c.bf16 %v4475, %v4474
    %v5033 = vpack.c.bf16 %v4477, %v4476
    %v5034 = vpack.c.bf16 %v4655, %v4654
    %v5035 = vpack.c.bf16 %v4657, %v4656
    %v5036 = vpack.c.bf16 %v4659, %v4658
    %v5037 = vpack.c.bf16 %v4661, %v4660
    %v5038 = vpack.c.bf16 %v4839, %v4838
    %v5039 = vpack.c.bf16 %v4841, %v4840
    %v5040 = vpack.c.bf16 %v4843, %v4842
    %v5041 = vpack.c.bf16 %v4845, %v4844
    %v5042 = vpack.c.bf16 %v5023, %v5022
    %v5043 = vpack.c.bf16 %v5025, %v5024
    %v5044 = vpack.c.bf16 %v5027, %v5026
    %v5045 = vpack.c.bf16 %v5029, %v5028
    %v5047 = vsel %vm444, %v5030, 0
    %v5050 = vsel %vm444, %v5031, 0
    %v5053 = vsel %vm444, %v5032, 0
    %v5056 = vsel %vm444, %v5033, 0
    %v5059 = vsel %vm444, %v5034, 0
    %v5062 = vsel %vm444, %v5035, 0
    %v5065 = vsel %vm444, %v5036, 0
    %v5068 = vsel %vm444, %v5037, 0
    %v5071 = vsel %vm444, %v5038, 0
    %v5074 = vsel %vm444, %v5039, 0
    %v5077 = vsel %vm444, %v5040, 0
    %v5080 = vsel %vm444, %v5041, 0
    %v5083 = vsel %vm444, %v5042, 0
    %v5086 = vsel %vm444, %v5043, 0
    %v5089 = vsel %vm444, %v5044, 0
    %v5092 = vsel %vm444, %v5045, 0
    %5094 = vmatprep.subr.bf16.mxu0 0
    %5095 = vmatpush1.bf16.msra.mxu0 0
    %5096 = vmatprep.subr.bf16.mxu0 0
    %5097 = vmatpush1.bf16.msra.mxu0 0
    %5098 = vmatprep.subr.bf16.mxu0 0
    %5099 = vmatpush1.bf16.msra.mxu0 0
    %5100 = vmatprep.subr.bf16.mxu0 0
    %5101 = vmatpush1.bf16.msra.mxu0 0
    %5102 = vmatprep.subr.bf16.mxu0 0
    %5103 = vmatpush1.bf16.msra.mxu0 %v2898
    %5104 = vmatprep.subr.bf16.mxu0 0
    %5105 = vmatpush1.bf16.msra.mxu0 %v2897
    %5106 = vmatprep.subr.bf16.mxu0 0
    %5107 = vmatpush1.bf16.msra.mxu0 %v2896
    %5108 = vmatprep.subr.bf16.mxu0 0
    %5109 = vmatpush1.bf16.msra.mxu0 %v2895
    %5110 = vmatprep.subr.bf16.mxu0 0
    %5111 = vmatpush2.bf16.msra.mxu0 0
    %5112 = vmatprep.subr.bf16.mxu0 0
    %5113 = vmatpush2.bf16.msra.mxu0 0
    %5114 = vmatprep.subr.bf16.mxu0 0
    %5115 = vmatpush2.bf16.msra.mxu0 0
    %5116 = vmatprep.subr.bf16.mxu0 0
    %5117 = vmatpush2.bf16.msra.mxu0 0
    %5118 = vmatprep.subr.bf16.mxu0 0
    %5119 = vmatpush2.bf16.msra.mxu0 0
    %5120 = vmatprep.subr.bf16.mxu0 0
    %5121 = vmatpush2.bf16.msra.mxu0 0
    %5122 = vmatprep.subr.bf16.mxu0 0
    %5123 = vmatpush2.bf16.msra.mxu0 0
    %5124 = vmatprep.subr.bf16.mxu0 0
    %5125 = vmatpush2.bf16.msra.mxu0 0
    %5126 = vmatprep.mubr.bf16.mxu0 0
    %5127 = vmatmul.mubr.bf16.gmra.mxu0 %v5047
    %v5128 = vpop.f32.mrf.mxu0
    %v5129 = vadd.f32 0.0, %v5128
    %v5130 = vpop.f32.mrf.mxu0
    %v5131 = vpop.f32.mrf.mxu0
    %v5132 = vadd.f32 0.0, %v5131
    %v5133 = vpop.f32.mrf.mxu0
    %5134 = vmatprep.mubr.bf16.mxu0 0
    %5135 = vmatmul.mubr.bf16.gmra.mxu0 %v5050
    %v5136 = vpop.f32.mrf.mxu0
    %v5137 = vadd.f32 0.0, %v5136
    %v5138 = vpop.f32.mrf.mxu0
    %v5139 = vpop.f32.mrf.mxu0
    %v5140 = vadd.f32 0.0, %v5139
    %v5141 = vpop.f32.mrf.mxu0
    %5142 = vmatprep.mubr.bf16.mxu0 0
    %5143 = vmatmul.mubr.bf16.gmra.mxu0 %v5053
    %v5144 = vpop.f32.mrf.mxu0
    %v5145 = vadd.f32 0.0, %v5144
    %v5146 = vpop.f32.mrf.mxu0
    %v5147 = vpop.f32.mrf.mxu0
    %v5148 = vadd.f32 0.0, %v5147
    %v5149 = vpop.f32.mrf.mxu0
    %5150 = vmatprep.mubr.bf16.mxu0 0
    %5151 = vmatmul.mubr.bf16.gmra.mxu0 %v5056
    %v5152 = vpop.f32.mrf.mxu0
    %v5153 = vadd.f32 0.0, %v5152
    %v5154 = vpop.f32.mrf.mxu0
    %v5155 = vpop.f32.mrf.mxu0
    %v5156 = vadd.f32 0.0, %v5155
    %v5157 = vpop.f32.mrf.mxu0
    %5158 = vmatprep.mubr.bf16.mxu0 0
    %5159 = vmatmul.mubr.bf16.gmra.mxu0 %v5059
    %v5160 = vpop.f32.mrf.mxu0
    %v5161 = vadd.f32 0.0, %v5160
    %v5162 = vpop.f32.mrf.mxu0
    %v5163 = vpop.f32.mrf.mxu0
    %v5164 = vadd.f32 0.0, %v5163
    %v5165 = vpop.f32.mrf.mxu0
    %5166 = vmatprep.mubr.bf16.mxu0 0
    %5167 = vmatmul.mubr.bf16.gmra.mxu0 %v5062
    %v5168 = vpop.f32.mrf.mxu0
    %v5169 = vadd.f32 0.0, %v5168
    %v5170 = vpop.f32.mrf.mxu0
    %v5171 = vpop.f32.mrf.mxu0
    %v5172 = vadd.f32 0.0, %v5171
    %v5173 = vpop.f32.mrf.mxu0
    %5174 = vmatprep.mubr.bf16.mxu0 0
    %5175 = vmatmul.mubr.bf16.gmra.mxu0 %v5065
    %v5176 = vpop.f32.mrf.mxu0
    %v5177 = vadd.f32 0.0, %v5176
    %v5178 = vpop.f32.mrf.mxu0
    %v5179 = vpop.f32.mrf.mxu0
    %v5180 = vadd.f32 0.0, %v5179
    %v5181 = vpop.f32.mrf.mxu0
    %5182 = vmatprep.mubr.bf16.mxu0 0
    %5183 = vmatmul.mubr.bf16.gmra.mxu0 %v5068
    %v5184 = vpop.f32.mrf.mxu0
    %v5185 = vadd.f32 0.0, %v5184
    %v5186 = vpop.f32.mrf.mxu0
    %v5187 = vpop.f32.mrf.mxu0
    %v5188 = vadd.f32 0.0, %v5187
    %v5189 = vpop.f32.mrf.mxu0
    %5190 = vmatprep.mubr.bf16.mxu0 0
    %5191 = vmatmul.mubr.bf16.gmra.mxu0 %v5071
    %v5192 = vpop.f32.mrf.mxu0
    %v5193 = vadd.f32 0.0, %v5192
    %v5194 = vpop.f32.mrf.mxu0
    %v5195 = vpop.f32.mrf.mxu0
    %v5196 = vadd.f32 0.0, %v5195
    %v5197 = vpop.f32.mrf.mxu0
    %5198 = vmatprep.mubr.bf16.mxu0 0
    %5199 = vmatmul.mubr.bf16.gmra.mxu0 %v5074
    %v5200 = vpop.f32.mrf.mxu0
    %v5201 = vadd.f32 0.0, %v5200
    %v5202 = vpop.f32.mrf.mxu0
    %v5203 = vpop.f32.mrf.mxu0
    %v5204 = vadd.f32 0.0, %v5203
    %v5205 = vpop.f32.mrf.mxu0
    %5206 = vmatprep.mubr.bf16.mxu0 0
    %5207 = vmatmul.mubr.bf16.gmra.mxu0 %v5077
    %v5208 = vpop.f32.mrf.mxu0
    %v5209 = vadd.f32 0.0, %v5208
    %v5210 = vpop.f32.mrf.mxu0
    %v5211 = vpop.f32.mrf.mxu0
    %v5212 = vadd.f32 0.0, %v5211
    %v5213 = vpop.f32.mrf.mxu0
    %5214 = vmatprep.mubr.bf16.mxu0 0
    %5215 = vmatmul.mubr.bf16.gmra.mxu0 %v5080
    %v5216 = vpop.f32.mrf.mxu0
    %v5217 = vadd.f32 0.0, %v5216
    %v5218 = vpop.f32.mrf.mxu0
    %v5219 = vpop.f32.mrf.mxu0
    %v5220 = vadd.f32 0.0, %v5219
    %v5221 = vpop.f32.mrf.mxu0
    %5222 = vmatprep.mubr.bf16.mxu0 0
    %5223 = vmatmul.mubr.bf16.gmra.mxu0 %v5083
    %v5224 = vpop.f32.mrf.mxu0
    %v5225 = vadd.f32 0.0, %v5224
    %v5226 = vpop.f32.mrf.mxu0
    %v5227 = vpop.f32.mrf.mxu0
    %v5228 = vadd.f32 0.0, %v5227
    %v5229 = vpop.f32.mrf.mxu0
    %5230 = vmatprep.mubr.bf16.mxu0 0
    %5231 = vmatmul.mubr.bf16.gmra.mxu0 %v5086
    %v5232 = vpop.f32.mrf.mxu0
    %v5233 = vadd.f32 0.0, %v5232
    %v5234 = vpop.f32.mrf.mxu0
    %v5235 = vpop.f32.mrf.mxu0
    %v5236 = vadd.f32 0.0, %v5235
    %v5237 = vpop.f32.mrf.mxu0
    %5238 = vmatprep.mubr.bf16.mxu0 0
    %5239 = vmatmul.mubr.bf16.gmra.mxu0 %v5089
    %v5240 = vpop.f32.mrf.mxu0
    %v5241 = vadd.f32 0.0, %v5240
    %v5242 = vpop.f32.mrf.mxu0
    %v5243 = vpop.f32.mrf.mxu0
    %v5244 = vadd.f32 0.0, %v5243
    %v5245 = vpop.f32.mrf.mxu0
    %5246 = vmatprep.mubr.bf16.mxu0 0
    %5247 = vmatmul.mubr.bf16.gmra.mxu0 %v5092
    %v5248 = vpop.f32.mrf.mxu0
    %v5249 = vadd.f32 0.0, %v5248
    %v5250 = vpop.f32.mrf.mxu0
    %v5251 = vpop.f32.mrf.mxu0
    %v5252 = vadd.f32 0.0, %v5251
    %v5253 = vpop.f32.mrf.mxu0
    %5254 = vdwg.mxu0
    %v5255 = vmax.f32 %v5129, %v5161
    %v5256 = vmax.f32 %v5132, %v5164
    %v5257 = vmax.f32 %v5137, %v5169
    %v5258 = vmax.f32 %v5140, %v5172
    %v5259 = vmax.f32 %v5145, %v5177
    %v5260 = vmax.f32 %v5148, %v5180
    %v5261 = vmax.f32 %v5153, %v5185
    %v5262 = vmax.f32 %v5156, %v5188
    %v5263 = vmax.f32 %v5255, %v5193
    %v5264 = vmax.f32 %v5256, %v5196
    %v5265 = vmax.f32 %v5257, %v5201
    %v5266 = vmax.f32 %v5258, %v5204
    %v5267 = vmax.f32 %v5259, %v5209
    %v5268 = vmax.f32 %v5260, %v5212
    %v5269 = vmax.f32 %v5261, %v5217
    %v5270 = vmax.f32 %v5262, %v5220
    %v5271 = vmax.f32 %v5263, %v5225
    %v5272 = vmax.f32 %v5264, %v5228
    %v5273 = vmax.f32 %v5265, %v5233
    %v5274 = vmax.f32 %v5266, %v5236
    %v5275 = vmax.f32 %v5267, %v5241
    %v5276 = vmax.f32 %v5268, %v5244
    %v5277 = vmax.f32 %v5269, %v5249
    %v5278 = vmax.f32 %v5270, %v5252
    %v5280 = vlaneseq
    %v5281 = vshrl.u32 %v5280, 7
    %v5282 = vsub.s32 0, %v5281
    %v5283 = vrot.slane %v2754, %v5282
    %v5287 = vunpack.c.l.b16 %v2750
    %v5288 = vunpack.c.l.b16 %v2751
    %v5289 = vpack.c.b16 %v5288, %v5287
    %5291 = vmatprep.subr.bf16.mxu0 0
    %5292 = vmatpush1.bf16.msra.mxu0 0
    %5293 = vmatprep.subr.bf16.mxu0 0
    %5294 = vmatpush1.bf16.msra.mxu0 0
    %5295 = vmatprep.subr.bf16.mxu0 0
    %5296 = vmatpush1.bf16.msra.mxu0 0
    %5297 = vmatprep.subr.bf16.mxu0 0
    %5298 = vmatpush1.bf16.msra.mxu0 0
    %5299 = vmatprep.subr.bf16.mxu0 0
    %5300 = vmatpush1.bf16.msra.mxu0 0
    %5301 = vmatprep.subr.bf16.mxu0 0
    %5302 = vmatpush1.bf16.msra.mxu0 0
    %5303 = vmatprep.subr.bf16.mxu0 0
    %5304 = vmatpush1.bf16.msra.mxu0 0
    %5305 = vmatprep.subr.bf16.mxu0 0
    %5306 = vmatpush1.bf16.msra.mxu0 %v5289
    %5307 = vmatprep.subr.bf16.mxu0 0
    %5308 = vmatpush2.bf16.msra.mxu0 0
    %5309 = vmatprep.subr.bf16.mxu0 0
    %5310 = vmatpush2.bf16.msra.mxu0 0
    %5311 = vmatprep.subr.bf16.mxu0 0
    %5312 = vmatpush2.bf16.msra.mxu0 0
    %5313 = vmatprep.subr.bf16.mxu0 0
    %5314 = vmatpush2.bf16.msra.mxu0 0
    %5315 = vmatprep.subr.bf16.mxu0 0
    %5316 = vmatpush2.bf16.msra.mxu0 0
    %5317 = vmatprep.subr.bf16.mxu0 0
    %5318 = vmatpush2.bf16.msra.mxu0 0
    %5319 = vmatprep.subr.bf16.mxu0 0
    %5320 = vmatpush2.bf16.msra.mxu0 0
    %5321 = vmatprep.subr.bf16.mxu0 0
    %5322 = vmatpush2.bf16.msra.mxu0 0
    %5323 = vmatprep.mubr.bf16.mxu0 0
    %5324 = vmatmul.mubr.bf16.gmra.mxu0 %v2771
    %v5325 = vpop.f32.mrf.mxu0
    %v5326 = vadd.f32 %v5283, %v5325
    %v5327 = vpop.f32.mrf.mxu0
    %v5328 = vpop.f32.mrf.mxu0
    %v5329 = vadd.f32 %v5283, %v5328
    %v5330 = vpop.f32.mrf.mxu0
    %5331 = vmatprep.mubr.bf16.mxu0 0
    %5332 = vmatmul.mubr.bf16.gmra.mxu0 %v2774
    %v5333 = vpop.f32.mrf.mxu0
    %v5334 = vadd.f32 %v5283, %v5333
    %v5335 = vpop.f32.mrf.mxu0
    %v5336 = vpop.f32.mrf.mxu0
    %v5337 = vadd.f32 %v5283, %v5336
    %v5338 = vpop.f32.mrf.mxu0
    %5339 = vmatprep.mubr.bf16.mxu0 0
    %5340 = vmatmul.mubr.bf16.gmra.mxu0 %v2777
    %v5341 = vpop.f32.mrf.mxu0
    %v5342 = vadd.f32 %v5283, %v5341
    %v5343 = vpop.f32.mrf.mxu0
    %v5344 = vpop.f32.mrf.mxu0
    %v5345 = vadd.f32 %v5283, %v5344
    %v5346 = vpop.f32.mrf.mxu0
    %5347 = vmatprep.mubr.bf16.mxu0 0
    %5348 = vmatmul.mubr.bf16.gmra.mxu0 %v2780
    %v5349 = vpop.f32.mrf.mxu0
    %v5350 = vadd.f32 %v5283, %v5349
    %v5351 = vpop.f32.mrf.mxu0
    %v5352 = vpop.f32.mrf.mxu0
    %v5353 = vadd.f32 %v5283, %v5352
    %v5354 = vpop.f32.mrf.mxu0
    %5355 = vmatprep.mubr.bf16.mxu0 0
    %5356 = vmatmul.mubr.bf16.gmra.mxu0 %v2783
    %v5357 = vpop.f32.mrf.mxu0
    %v5358 = vadd.f32 %v5283, %v5357
    %v5359 = vpop.f32.mrf.mxu0
    %v5360 = vpop.f32.mrf.mxu0
    %v5361 = vadd.f32 %v5283, %v5360
    %v5362 = vpop.f32.mrf.mxu0
    %5363 = vmatprep.mubr.bf16.mxu0 0
    %5364 = vmatmul.mubr.bf16.gmra.mxu0 %v2786
    %v5365 = vpop.f32.mrf.mxu0
    %v5366 = vadd.f32 %v5283, %v5365
    %v5367 = vpop.f32.mrf.mxu0
    %v5368 = vpop.f32.mrf.mxu0
    %v5369 = vadd.f32 %v5283, %v5368
    %v5370 = vpop.f32.mrf.mxu0
    %5371 = vmatprep.mubr.bf16.mxu0 0
    %5372 = vmatmul.mubr.bf16.gmra.mxu0 %v2789
    %v5373 = vpop.f32.mrf.mxu0
    %v5374 = vadd.f32 %v5283, %v5373
    %v5375 = vpop.f32.mrf.mxu0
    %v5376 = vpop.f32.mrf.mxu0
    %v5377 = vadd.f32 %v5283, %v5376
    %v5378 = vpop.f32.mrf.mxu0
    %5379 = vmatprep.mubr.bf16.mxu0 0
    %5380 = vmatmul.mubr.bf16.gmra.mxu0 %v2792
    %v5381 = vpop.f32.mrf.mxu0
    %v5382 = vadd.f32 %v5283, %v5381
    %v5383 = vpop.f32.mrf.mxu0
    %v5384 = vpop.f32.mrf.mxu0
    %v5385 = vadd.f32 %v5283, %v5384
    %v5386 = vpop.f32.mrf.mxu0
    %5387 = vdwg.mxu0
    %v5388 = vadd.f32 %v5326, %v4081
    %v5389 = vadd.f32 %v5329, %v4082
    %v5390 = vadd.f32 %v5334, %v4083
    %v5391 = vadd.f32 %v5337, %v4084
    %v5392 = vadd.f32 %v5342, %v4085
    %v5393 = vadd.f32 %v5345, %v4086
    %v5394 = vadd.f32 %v5350, %v4087
    %v5395 = vadd.f32 %v5353, %v4088
    %v5396 = vadd.f32 %v5358, %v5271
    %v5397 = vadd.f32 %v5361, %v5272
    %v5398 = vadd.f32 %v5366, %v5273
    %v5399 = vadd.f32 %v5369, %v5274
    %v5400 = vadd.f32 %v5374, %v5275
    %v5401 = vadd.f32 %v5377, %v5276
    %v5402 = vadd.f32 %v5382, %v5277
    %v5403 = vadd.f32 %v5385, %v5278
    %v5404 = vmax.f32 %v5388, 0.0
    %v5405 = vmax.f32 %v5389, 0.0
    %v5406 = vmax.f32 %v5390, 0.0
    %v5407 = vmax.f32 %v5391, 0.0
    %v5408 = vmax.f32 %v5392, 0.0
    %v5409 = vmax.f32 %v5393, 0.0
    %v5410 = vmax.f32 %v5394, 0.0
    %v5411 = vmax.f32 %v5395, 0.0
    %v5412 = vmax.f32 %v5396, 0.0
    %v5413 = vmax.f32 %v5397, 0.0
    %v5414 = vmax.f32 %v5398, 0.0
    %v5415 = vmax.f32 %v5399, 0.0
    %v5416 = vmax.f32 %v5400, 0.0
    %v5417 = vmax.f32 %v5401, 0.0
    %v5418 = vmax.f32 %v5402, 0.0
    %v5419 = vmax.f32 %v5403, 0.0
    %v5420 = vadd.f32 %v5404, %v2734
    %v5421 = vadd.f32 %v5405, %v2735
    %v5422 = vadd.f32 %v5406, %v2736
    %v5423 = vadd.f32 %v5407, %v2737
    %v5424 = vadd.f32 %v5408, %v2738
    %v5425 = vadd.f32 %v5409, %v2739
    %v5426 = vadd.f32 %v5410, %v2740
    %v5427 = vadd.f32 %v5411, %v2741
    %v5428 = vadd.f32 %v5412, %v2742
    %v5429 = vadd.f32 %v5413, %v2743
    %v5430 = vadd.f32 %v5414, %v2744
    %v5431 = vadd.f32 %v5415, %v2745
    %v5432 = vadd.f32 %v5416, %v2746
    %v5433 = vadd.f32 %v5417, %v2747
    %v5434 = vadd.f32 %v5418, %v2748
    %v5435 = vadd.f32 %v5419, %v2749
    %v5436 = vld [vmem:[%s7] sm:$0xf]
    %v5437 = vld [vmem:[%s7 + $0x4] sm:$0xf]
    %v5438 = vld [vmem:[%s8] sm:$0xf]
    %v5439 = vld [vmem:[%s8 + $0x4] sm:$0xf]
    %v5440 = vld [vmem:[%s9] sm:$0x1]
    %v5441 = vpack.c.bf16 %v5421, %v5420
    %v5442 = vpack.c.bf16 %v5423, %v5422
    %v5443 = vpack.c.bf16 %v5425, %v5424
    %v5444 = vpack.c.bf16 %v5427, %v5426
    %v5445 = vpack.c.bf16 %v5429, %v5428
    %v5446 = vpack.c.bf16 %v5431, %v5430
    %v5447 = vpack.c.bf16 %v5433, %v5432
    %v5448 = vpack.c.bf16 %v5435, %v5434
    %v5451 = vunpack.c.l.b16 %v5438
    %v5452 = vunpack.c.l.b16 %v5439
    %v5453 = vpack.c.b16 %v5452, %v5451
    %v5456 = vsel %vm2769, %v5441, 0
    %v5459 = vsel %vm2769, %v5442, 0
    %v5462 = vsel %vm2769, %v5443, 0
    %v5465 = vsel %vm2769, %v5444, 0
    %v5468 = vsel %vm2769, %v5445, 0
    %v5471 = vsel %vm2769, %v5446, 0
    %v5474 = vsel %vm2769, %v5447, 0
    %v5477 = vsel %vm2769, %v5448, 0
    %5479 = vmatprep.subr.bf16.mxu0 0
    %5480 = vmatpush1.bf16.msra.mxu0 0
    %5481 = vmatprep.subr.bf16.mxu0 0
    %5482 = vmatpush1.bf16.msra.mxu0 0
    %5483 = vmatprep.subr.bf16.mxu0 0
    %5484 = vmatpush1.bf16.msra.mxu0 0
    %5485 = vmatprep.subr.bf16.mxu0 0
    %5486 = vmatpush1.bf16.msra.mxu0 0
    %5487 = vmatprep.subr.bf16.mxu0 0
    %5488 = vmatpush1.bf16.msra.mxu0 0
    %5489 = vmatprep.subr.bf16.mxu0 0
    %5490 = vmatpush1.bf16.msra.mxu0 0
    %5491 = vmatprep.subr.bf16.mxu0 0
    %5492 = vmatpush1.bf16.msra.mxu0 0
    %5493 = vmatprep.subr.bf16.mxu0 0
    %5494 = vmatpush1.bf16.msra.mxu0 %v5453
    %5495 = vmatprep.subr.bf16.mxu0 0
    %5496 = vmatpush2.bf16.msra.mxu0 0
    %5497 = vmatprep.subr.bf16.mxu0 0
    %5498 = vmatpush2.bf16.msra.mxu0 0
    %5499 = vmatprep.subr.bf16.mxu0 0
    %5500 = vmatpush2.bf16.msra.mxu0 0
    %5501 = vmatprep.subr.bf16.mxu0 0
    %5502 = vmatpush2.bf16.msra.mxu0 0
    %5503 = vmatprep.subr.bf16.mxu0 0
    %5504 = vmatpush2.bf16.msra.mxu0 0
    %5505 = vmatprep.subr.bf16.mxu0 0
    %5506 = vmatpush2.bf16.msra.mxu0 0
    %5507 = vmatprep.subr.bf16.mxu0 0
    %5508 = vmatpush2.bf16.msra.mxu0 0
    %5509 = vmatprep.subr.bf16.mxu0 0
    %5510 = vmatpush2.bf16.msra.mxu0 0
    %5511 = vmatprep.mubr.bf16.mxu0 0
    %5512 = vmatmul.mubr.bf16.gmra.mxu0 %v5456
    %v5513 = vpop.f32.mrf.mxu0
    %v5514 = vadd.f32 0.0, %v5513
    %v5515 = vpop.f32.mrf.mxu0
    %v5516 = vpop.f32.mrf.mxu0
    %v5517 = vadd.f32 0.0, %v5516
    %v5518 = vpop.f32.mrf.mxu0
    %5519 = vmatprep.mubr.bf16.mxu0 0
    %5520 = vmatmul.mubr.bf16.gmra.mxu0 %v5459
    %v5521 = vpop.f32.mrf.mxu0
    %v5522 = vadd.f32 0.0, %v5521
    %v5523 = vpop.f32.mrf.mxu0
    %v5524 = vpop.f32.mrf.mxu0
    %v5525 = vadd.f32 0.0, %v5524
    %v5526 = vpop.f32.mrf.mxu0
    %5527 = vmatprep.mubr.bf16.mxu0 0
    %5528 = vmatmul.mubr.bf16.gmra.mxu0 %v5462
    %v5529 = vpop.f32.mrf.mxu0
    %v5530 = vadd.f32 0.0, %v5529
    %v5531 = vpop.f32.mrf.mxu0
    %v5532 = vpop.f32.mrf.mxu0
    %v5533 = vadd.f32 0.0, %v5532
    %v5534 = vpop.f32.mrf.mxu0
    %5535 = vmatprep.mubr.bf16.mxu0 0
    %5536 = vmatmul.mubr.bf16.gmra.mxu0 %v5465
    %v5537 = vpop.f32.mrf.mxu0
    %v5538 = vadd.f32 0.0, %v5537
    %v5539 = vpop.f32.mrf.mxu0
    %v5540 = vpop.f32.mrf.mxu0
    %v5541 = vadd.f32 0.0, %v5540
    %v5542 = vpop.f32.mrf.mxu0
    %5543 = vmatprep.mubr.bf16.mxu0 0
    %5544 = vmatmul.mubr.bf16.gmra.mxu0 %v5468
    %v5545 = vpop.f32.mrf.mxu0
    %v5546 = vadd.f32 0.0, %v5545
    %v5547 = vpop.f32.mrf.mxu0
    %v5548 = vpop.f32.mrf.mxu0
    %v5549 = vadd.f32 0.0, %v5548
    %v5550 = vpop.f32.mrf.mxu0
    %5551 = vmatprep.mubr.bf16.mxu0 0
    %5552 = vmatmul.mubr.bf16.gmra.mxu0 %v5471
    %v5553 = vpop.f32.mrf.mxu0
    %v5554 = vadd.f32 0.0, %v5553
    %v5555 = vpop.f32.mrf.mxu0
    %v5556 = vpop.f32.mrf.mxu0
    %v5557 = vadd.f32 0.0, %v5556
    %v5558 = vpop.f32.mrf.mxu0
    %5559 = vmatprep.mubr.bf16.mxu0 0
    %5560 = vmatmul.mubr.bf16.gmra.mxu0 %v5474
    %v5561 = vpop.f32.mrf.mxu0
    %v5562 = vadd.f32 0.0, %v5561
    %v5563 = vpop.f32.mrf.mxu0
    %v5564 = vpop.f32.mrf.mxu0
    %v5565 = vadd.f32 0.0, %v5564
    %v5566 = vpop.f32.mrf.mxu0
    %5567 = vmatprep.mubr.bf16.mxu0 0
    %5568 = vmatmul.mubr.bf16.gmra.mxu0 %v5477
    %v5569 = vpop.f32.mrf.mxu0
    %v5570 = vadd.f32 0.0, %v5569
    %v5571 = vpop.f32.mrf.mxu0
    %v5572 = vpop.f32.mrf.mxu0
    %v5573 = vadd.f32 0.0, %v5572
    %v5574 = vpop.f32.mrf.mxu0
    %5575 = vdwg.mxu0
    %v5576 = vpack.c.bf16 %v5517, %v5514
    %v5577 = vpack.c.bf16 %v5525, %v5522
    %v5578 = vpack.c.bf16 %v5533, %v5530
    %v5579 = vpack.c.bf16 %v5541, %v5538
    %v5580 = vpack.c.bf16 %v5549, %v5546
    %v5581 = vpack.c.bf16 %v5557, %v5554
    %v5582 = vpack.c.bf16 %v5565, %v5562
    %v5583 = vpack.c.bf16 %v5573, %v5570
    %v5584 = vmul.f32 %v5420, %v5420
    %v5585 = vmul.f32 %v5421, %v5421
    %v5586 = vmul.f32 %v5422, %v5422
    %v5587 = vmul.f32 %v5423, %v5423
    %v5588 = vmul.f32 %v5424, %v5424
    %v5589 = vmul.f32 %v5425, %v5425
    %v5590 = vmul.f32 %v5426, %v5426
    %v5591 = vmul.f32 %v5427, %v5427
    %v5592 = vsel %vm2769, %v5584, 0.0
    %5593 = vadd.xlane.f32.xlu0 %v5592
    %v5594 = vpop.xlane.xlu0 %5593
    %v5595 = vsel %vm2769, %v5585, 0.0
    %5596 = vadd.xlane.f32.xlu0 %v5595
    %v5597 = vpop.xlane.xlu0 %5596
    %v5598 = vsel %vm2769, %v5586, 0.0
    %5599 = vadd.xlane.f32.xlu0 %v5598
    %v5600 = vpop.xlane.xlu0 %5599
    %v5601 = vsel %vm2769, %v5587, 0.0
    %5602 = vadd.xlane.f32.xlu0 %v5601
    %v5603 = vpop.xlane.xlu0 %5602
    %v5604 = vsel %vm2769, %v5588, 0.0
    %5605 = vadd.xlane.f32.xlu0 %v5604
    %v5606 = vpop.xlane.xlu0 %5605
    %v5607 = vsel %vm2769, %v5589, 0.0
    %5608 = vadd.xlane.f32.xlu0 %v5607
    %v5609 = vpop.xlane.xlu0 %5608
    %v5610 = vsel %vm2769, %v5590, 0.0
    %5611 = vadd.xlane.f32.xlu0 %v5610
    %v5612 = vpop.xlane.xlu0 %5611
    %v5613 = vsel %vm2769, %v5591, 0.0
    %5614 = vadd.xlane.f32.xlu0 %v5613
    %v5615 = vpop.xlane.xlu0 %5614
    %v5617 = vsel %vm2769, %v5420, 0
    %v5620 = vsel %vm2769, %v5421, 0
    %v5623 = vsel %vm2769, %v5422, 0
    %v5626 = vsel %vm2769, %v5423, 0
    %v5629 = vsel %vm2769, %v5424, 0
    %v5632 = vsel %vm2769, %v5425, 0
    %v5635 = vsel %vm2769, %v5426, 0
    %v5638 = vsel %vm2769, %v5427, 0
    %5640 = vmatprep.subr.mxu0 0.0
    %5641 = vmatpush1.xpose.msra.mxu0 0.0
    %5642 = vmatprep.subr.mxu0 0.0
    %5643 = vmatpush1.xpose.msra.mxu0 0.0
    %5644 = vmatprep.subr.mxu0 0.0
    %5645 = vmatpush1.xpose.msra.mxu0 0.0
    %5646 = vmatprep.subr.mxu0 0.0
    %5647 = vmatpush1.xpose.msra.mxu0 0.0
    %5648 = vmatprep.subr.mxu0 0.0
    %5649 = vmatpush1.xpose.msra.mxu0 0.0
    %5650 = vmatprep.subr.mxu0 0.0
    %5651 = vmatpush1.xpose.msra.mxu0 0.0
    %5652 = vmatprep.subr.mxu0 0.0
    %5653 = vmatpush1.xpose.msra.mxu0 0.0
    %5654 = vmatprep.subr.mxu0 0.0
    %5655 = vmatpush1.xpose.msra.mxu0 0.0
    %5656 = vmatprep.subr.mxu0 0.0
    %5657 = vmatpush1.xpose.msra.mxu0 %v5638
    %5658 = vmatprep.subr.mxu0 0.0
    %5659 = vmatpush1.xpose.msra.mxu0 %v5635
    %5660 = vmatprep.subr.mxu0 0.0
    %5661 = vmatpush1.xpose.msra.mxu0 %v5632
    %5662 = vmatprep.subr.mxu0 0.0
    %5663 = vmatpush1.xpose.msra.mxu0 %v5629
    %5664 = vmatprep.subr.mxu0 0.0
    %5665 = vmatpush1.xpose.msra.mxu0 %v5626
    %5666 = vmatprep.subr.mxu0 0.0
    %5667 = vmatpush1.xpose.msra.mxu0 %v5623
    %5668 = vmatprep.subr.mxu0 0.0
    %5669 = vmatpush1.xpose.msra.mxu0 %v5620
    %5670 = vmatprep.subr.mxu0 0.0
    %5671 = vmatpush1.xpose.msra.mxu0 %v5617
    %5672 = vmatprep.subr.mxu0 0.0
    %5673 = vmatpush2.xpose.msra.mxu0 0.0
    %5674 = vmatprep.subr.mxu0 0.0
    %5675 = vmatpush2.xpose.msra.mxu0 0.0
    %5676 = vmatprep.subr.mxu0 0.0
    %5677 = vmatpush2.xpose.msra.mxu0 0.0
    %5678 = vmatprep.subr.mxu0 0.0
    %5679 = vmatpush2.xpose.msra.mxu0 0.0
    %5680 = vmatprep.subr.mxu0 0.0
    %5681 = vmatpush2.xpose.msra.mxu0 0.0
    %5682 = vmatprep.subr.mxu0 0.0
    %5683 = vmatpush2.xpose.msra.mxu0 0.0
    %5684 = vmatprep.subr.mxu0 0.0
    %5685 = vmatpush2.xpose.msra.mxu0 0.0
    %5686 = vmatprep.subr.mxu0 0.0
    %5687 = vmatpush2.xpose.msra.mxu0 0.0
    %5688 = vmatprep.subr.mxu0 0.0
    %5689 = vmatpush2.xpose.msra.mxu0 0.0
    %5690 = vmatprep.subr.mxu0 0.0
    %5691 = vmatpush2.xpose.msra.mxu0 0.0
    %5692 = vmatprep.subr.mxu0 0.0
    %5693 = vmatpush2.xpose.msra.mxu0 0.0
    %5694 = vmatprep.subr.mxu0 0.0
    %5695 = vmatpush2.xpose.msra.mxu0 0.0
    %5696 = vmatprep.subr.mxu0 0.0
    %5697 = vmatpush2.xpose.msra.mxu0 0.0
    %5698 = vmatprep.subr.mxu0 0.0
    %5699 = vmatpush2.xpose.msra.mxu0 0.0
    %5700 = vmatprep.subr.mxu0 0.0
    %5701 = vmatpush2.xpose.msra.mxu0 0.0
    %5702 = vmatprep.subr.mxu0 0.0
    %5703 = vmatpush2.xpose.msra.mxu0 0.0
    %5704 = vmatprep.mubr.f32.mxu0 0.0
    %5705 = vmatmul.mubr.f32.gmra.mxu0 %v5617
    %v5706 = vpop.f32.mrf.mxu0
    %v5707 = vadd.f32 0.0, %v5706
    %v5708 = vpop.f32.mrf.mxu0
    %5709 = vmatprep.mubr.f32.mxu0 0.0
    %5710 = vmatmul.mubr.f32.gmra.mxu0 %v5620
    %v5711 = vpop.f32.mrf.mxu0
    %v5712 = vadd.f32 0.0, %v5711
    %v5713 = vpop.f32.mrf.mxu0
    %5714 = vmatprep.mubr.f32.mxu0 0.0
    %5715 = vmatmul.mubr.f32.gmra.mxu0 %v5623
    %v5716 = vpop.f32.mrf.mxu0
    %v5717 = vadd.f32 0.0, %v5716
    %v5718 = vpop.f32.mrf.mxu0
    %5719 = vmatprep.mubr.f32.mxu0 0.0
    %5720 = vmatmul.mubr.f32.gmra.mxu0 %v5626
    %v5721 = vpop.f32.mrf.mxu0
    %v5722 = vadd.f32 0.0, %v5721
    %v5723 = vpop.f32.mrf.mxu0
    %5724 = vmatprep.mubr.f32.mxu0 0.0
    %5725 = vmatmul.mubr.f32.gmra.mxu0 %v5629
    %v5726 = vpop.f32.mrf.mxu0
    %v5727 = vadd.f32 0.0, %v5726
    %v5728 = vpop.f32.mrf.mxu0
    %5729 = vmatprep.mubr.f32.mxu0 0.0
    %5730 = vmatmul.mubr.f32.gmra.mxu0 %v5632
    %v5731 = vpop.f32.mrf.mxu0
    %v5732 = vadd.f32 0.0, %v5731
    %v5733 = vpop.f32.mrf.mxu0
    %5734 = vmatprep.mubr.f32.mxu0 0.0
    %5735 = vmatmul.mubr.f32.gmra.mxu0 %v5635
    %v5736 = vpop.f32.mrf.mxu0
    %v5737 = vadd.f32 0.0, %v5736
    %v5738 = vpop.f32.mrf.mxu0
    %5739 = vmatprep.mubr.f32.mxu0 0.0
    %5740 = vmatmul.mubr.f32.gmra.mxu0 %v5638
    %v5741 = vpop.f32.mrf.mxu0
    %v5742 = vadd.f32 0.0, %v5741
    %v5743 = vpop.f32.mrf.mxu0
    %5744 = vdwg.mxu0
    %5745 = vxpose.xlu0.b32.start [1/16] %v5594, 128
    %5746 = vxpose.xlu0.b32.cont [2/16] %v5597, 128
    %5747 = vxpose.xlu0.b32.cont [3/16] %v5600, 128
    %5748 = vxpose.xlu0.b32.cont [4/16] %v5603, 128
    %5749 = vxpose.xlu0.b32.cont [5/16] %v5606, 128
    %5750 = vxpose.xlu0.b32.cont [6/16] %v5609, 128
    %5751 = vxpose.xlu0.b32.cont [7/16] %v5612, 128
    %5752 = vxpose.xlu0.b32.cont [8/16] %v5615, 128
    %5753 = vxpose.xlu0.b32.cont [9/16] 0.0, 128
    %5754 = vxpose.xlu0.b32.cont [10/16] 0.0, 128
    %5755 = vxpose.xlu0.b32.cont [11/16] 0.0, 128
    %5756 = vxpose.xlu0.b32.cont [12/16] 0.0, 128
    %5757 = vxpose.xlu0.b32.cont [13/16] 0.0, 128
    %5758 = vxpose.xlu0.b32.cont [14/16] 0.0, 128
    %5759 = vxpose.xlu0.b32.cont [15/16] 0.0, 128
    %5760 = vxpose.xlu0.b32.end [16/16] 0.0, 128
    %v5761 = vpop.trf.xlu0
    %v5762 = vpop.trf.xlu0
    %v5763 = vpop.trf.xlu0
    %v5764 = vpop.trf.xlu0
    %v5765 = vpop.trf.xlu0
    %v5766 = vpop.trf.xlu0
    %v5767 = vpop.trf.xlu0
    %v5768 = vpop.trf.xlu0
    %v5769 = vpop.trf.xlu0
    %v5770 = vpop.trf.xlu0
    %v5771 = vpop.trf.xlu0
    %v5772 = vpop.trf.xlu0
    %v5773 = vpop.trf.xlu0
    %v5774 = vpop.trf.xlu0
    %v5775 = vpop.trf.xlu0
    %v5776 = vpop.trf.xlu0
    %v5777 = vmul.f32 %v5707, 2.0
    %v5778 = vmul.f32 %v5712, 2.0
    %v5779 = vmul.f32 %v5717, 2.0
    %v5780 = vmul.f32 %v5722, 2.0
    %v5781 = vmul.f32 %v5727, 2.0
    %v5782 = vmul.f32 %v5732, 2.0
    %v5783 = vmul.f32 %v5737, 2.0
    %v5784 = vmul.f32 %v5742, 2.0
    %v5785 = vlaneseq
    %v5786 = vshrl.u32 %v5785, 7
    %v5787 = vsub.s32 0, %v5786
    %v5788 = vrot.slane %v5761, %v5787
    %v5789 = vsub.f32 %v5788, %v5777
    %v5790 = vsub.f32 %v5788, %v5778
    %v5791 = vsub.f32 %v5788, %v5779
    %v5792 = vsub.f32 %v5788, %v5780
    %v5793 = vsub.f32 %v5788, %v5781
    %v5794 = vsub.f32 %v5788, %v5782
    %v5795 = vsub.f32 %v5788, %v5783
    %v5796 = vsub.f32 %v5788, %v5784
    %v5797 = vsel %vm444, %v5789, inf
    %5798 = vmin.xlane.f32.xlu0 %v5797
    %v5799 = vpop.xlane.xlu0 %5798
    %v5800 = vsel %vm444, %v5790, inf
    %5801 = vmin.xlane.f32.xlu0 %v5800
    %v5802 = vpop.xlane.xlu0 %5801
    %v5803 = vsel %vm444, %v5791, inf
    %5804 = vmin.xlane.f32.xlu0 %v5803
    %v5805 = vpop.xlane.xlu0 %5804
    %v5806 = vsel %vm444, %v5792, inf
    %5807 = vmin.xlane.f32.xlu0 %v5806
    %v5808 = vpop.xlane.xlu0 %5807
    %v5809 = vsel %vm444, %v5793, inf
    %5810 = vmin.xlane.f32.xlu0 %v5809
    %v5811 = vpop.xlane.xlu0 %5810
    %v5812 = vsel %vm444, %v5794, inf
    %5813 = vmin.xlane.f32.xlu0 %v5812
    %v5814 = vpop.xlane.xlu0 %5813
    %v5815 = vsel %vm444, %v5795, inf
    %5816 = vmin.xlane.f32.xlu0 %v5815
    %v5817 = vpop.xlane.xlu0 %5816
    %v5818 = vsel %vm444, %v5796, inf
    %5819 = vmin.xlane.f32.xlu0 %v5818
    %v5820 = vpop.xlane.xlu0 %5819
    %vm5821 = vcmp.le.f32.partialorder %v5789, %v5799
    %vm5822 = vcmp.le.f32.partialorder %v5790, %v5802
    %vm5823 = vcmp.le.f32.partialorder %v5791, %v5805
    %vm5824 = vcmp.le.f32.partialorder %v5792, %v5808
    %vm5825 = vcmp.le.f32.partialorder %v5793, %v5811
    %vm5826 = vcmp.le.f32.partialorder %v5794, %v5814
    %vm5827 = vcmp.le.f32.partialorder %v5795, %v5817
    %vm5828 = vcmp.le.f32.partialorder %v5796, %v5820
    %v5829 = vsel %vm5821, %v443, 64
    %v5830 = vsel %vm5822, %v443, 64
    %v5831 = vsel %vm5823, %v443, 64
    %v5832 = vsel %vm5824, %v443, 64
    %v5833 = vsel %vm5825, %v443, 64
    %v5834 = vsel %vm5826, %v443, 64
    %v5835 = vsel %vm5827, %v443, 64
    %v5836 = vsel %vm5828, %v443, 64
    %v5837 = vsel %vm444, %v5829, 2147483647
    %v5838 = vand.u32 %v5837, 65535
    %v5839 = vshra.s32 %v5837, 16
    %v5840 = vcvt.s32.f32 %v5838
    %v5841 = vcvt.s32.f32 %v5839
    %5842 = vmin.xlane.f32.xlu0 %v5841
    %v5843 = vpop.xlane.xlu0 %5842
    %vm5844 = vcmp.eq.f32.partialorder %v5841, %v5843
    %v5845 = vsel %vm5844, %v5840, inf
    %5846 = vmin.xlane.f32.xlu0 %v5845
    %v5847 = vpop.xlane.xlu0 %5846
    %v5848 = vcvt.f32.s32 %v5847
    %v5849 = vcvt.f32.s32 %v5843
    %v5850 = vshll.u32 %v5849, 16
    %v5851 = vadd.s32 %v5850, %v5848
    %v5852 = vsel %vm444, %v5830, 2147483647
    %v5853 = vand.u32 %v5852, 65535
    %v5854 = vshra.s32 %v5852, 16
    %v5855 = vcvt.s32.f32 %v5853
    %v5856 = vcvt.s32.f32 %v5854
    %5857 = vmin.xlane.f32.xlu0 %v5856
    %v5858 = vpop.xlane.xlu0 %5857
    %vm5859 = vcmp.eq.f32.partialorder %v5856, %v5858
    %v5860 = vsel %vm5859, %v5855, inf
    %5861 = vmin.xlane.f32.xlu0 %v5860
    %v5862 = vpop.xlane.xlu0 %5861
    %v5863 = vcvt.f32.s32 %v5862
    %v5864 = vcvt.f32.s32 %v5858
    %v5865 = vshll.u32 %v5864, 16
    %v5866 = vadd.s32 %v5865, %v5863
    %v5867 = vsel %vm444, %v5831, 2147483647
    %v5868 = vand.u32 %v5867, 65535
    %v5869 = vshra.s32 %v5867, 16
    %v5870 = vcvt.s32.f32 %v5868
    %v5871 = vcvt.s32.f32 %v5869
    %5872 = vmin.xlane.f32.xlu0 %v5871
    %v5873 = vpop.xlane.xlu0 %5872
    %vm5874 = vcmp.eq.f32.partialorder %v5871, %v5873
    %v5875 = vsel %vm5874, %v5870, inf
    %5876 = vmin.xlane.f32.xlu0 %v5875
    %v5877 = vpop.xlane.xlu0 %5876
    %v5878 = vcvt.f32.s32 %v5877
    %v5879 = vcvt.f32.s32 %v5873
    %v5880 = vshll.u32 %v5879, 16
    %v5881 = vadd.s32 %v5880, %v5878
    %v5882 = vsel %vm444, %v5832, 2147483647
    %v5883 = vand.u32 %v5882, 65535
    %v5884 = vshra.s32 %v5882, 16
    %v5885 = vcvt.s32.f32 %v5883
    %v5886 = vcvt.s32.f32 %v5884
    %5887 = vmin.xlane.f32.xlu0 %v5886
    %v5888 = vpop.xlane.xlu0 %5887
    %vm5889 = vcmp.eq.f32.partialorder %v5886, %v5888
    %v5890 = vsel %vm5889, %v5885, inf
    %5891 = vmin.xlane.f32.xlu0 %v5890
    %v5892 = vpop.xlane.xlu0 %5891
    %v5893 = vcvt.f32.s32 %v5892
    %v5894 = vcvt.f32.s32 %v5888
    %v5895 = vshll.u32 %v5894, 16
    %v5896 = vadd.s32 %v5895, %v5893
    %v5897 = vsel %vm444, %v5833, 2147483647
    %v5898 = vand.u32 %v5897, 65535
    %v5899 = vshra.s32 %v5897, 16
    %v5900 = vcvt.s32.f32 %v5898
    %v5901 = vcvt.s32.f32 %v5899
    %5902 = vmin.xlane.f32.xlu0 %v5901
    %v5903 = vpop.xlane.xlu0 %5902
    %vm5904 = vcmp.eq.f32.partialorder %v5901, %v5903
    %v5905 = vsel %vm5904, %v5900, inf
    %5906 = vmin.xlane.f32.xlu0 %v5905
    %v5907 = vpop.xlane.xlu0 %5906
    %v5908 = vcvt.f32.s32 %v5907
    %v5909 = vcvt.f32.s32 %v5903
    %v5910 = vshll.u32 %v5909, 16
    %v5911 = vadd.s32 %v5910, %v5908
    %v5912 = vsel %vm444, %v5834, 2147483647
    %v5913 = vand.u32 %v5912, 65535
    %v5914 = vshra.s32 %v5912, 16
    %v5915 = vcvt.s32.f32 %v5913
    %v5916 = vcvt.s32.f32 %v5914
    %5917 = vmin.xlane.f32.xlu0 %v5916
    %v5918 = vpop.xlane.xlu0 %5917
    %vm5919 = vcmp.eq.f32.partialorder %v5916, %v5918
    %v5920 = vsel %vm5919, %v5915, inf
    %5921 = vmin.xlane.f32.xlu0 %v5920
    %v5922 = vpop.xlane.xlu0 %5921
    %v5923 = vcvt.f32.s32 %v5922
    %v5924 = vcvt.f32.s32 %v5918
    %v5925 = vshll.u32 %v5924, 16
    %v5926 = vadd.s32 %v5925, %v5923
    %v5927 = vsel %vm444, %v5835, 2147483647
    %v5928 = vand.u32 %v5927, 65535
    %v5929 = vshra.s32 %v5927, 16
    %v5930 = vcvt.s32.f32 %v5928
    %v5931 = vcvt.s32.f32 %v5929
    %5932 = vmin.xlane.f32.xlu0 %v5931
    %v5933 = vpop.xlane.xlu0 %5932
    %vm5934 = vcmp.eq.f32.partialorder %v5931, %v5933
    %v5935 = vsel %vm5934, %v5930, inf
    %5936 = vmin.xlane.f32.xlu0 %v5935
    %v5937 = vpop.xlane.xlu0 %5936
    %v5938 = vcvt.f32.s32 %v5937
    %v5939 = vcvt.f32.s32 %v5933
    %v5940 = vshll.u32 %v5939, 16
    %v5941 = vadd.s32 %v5940, %v5938
    %v5942 = vsel %vm444, %v5836, 2147483647
    %v5943 = vand.u32 %v5942, 65535
    %v5944 = vshra.s32 %v5942, 16
    %v5945 = vcvt.s32.f32 %v5943
    %v5946 = vcvt.s32.f32 %v5944
    %5947 = vmin.xlane.f32.xlu0 %v5946
    %v5948 = vpop.xlane.xlu0 %5947
    %vm5949 = vcmp.eq.f32.partialorder %v5946, %v5948
    %v5950 = vsel %vm5949, %v5945, inf
    %5951 = vmin.xlane.f32.xlu0 %v5950
    %v5952 = vpop.xlane.xlu0 %5951
    %v5953 = vcvt.f32.s32 %v5952
    %v5954 = vcvt.f32.s32 %v5948
    %v5955 = vshll.u32 %v5954, 16
    %v5956 = vadd.s32 %v5955, %v5953
    %vm5957 = vcmp.eq.s32.totalorder %v443, %v5851
    %vm5958 = vcmp.eq.s32.totalorder %v443, %v5866
    %vm5959 = vcmp.eq.s32.totalorder %v443, %v5881
    %vm5960 = vcmp.eq.s32.totalorder %v443, %v5896
    %vm5961 = vcmp.eq.s32.totalorder %v443, %v5911
    %vm5962 = vcmp.eq.s32.totalorder %v443, %v5926
    %vm5963 = vcmp.eq.s32.totalorder %v443, %v5941
    %vm5964 = vcmp.eq.s32.totalorder %v443, %v5956
    %v5965 = vsel %vm5957, 1.0, 0.0
    %v5966 = vsel %vm5958, 1.0, 0.0
    %v5967 = vsel %vm5959, 1.0, 0.0
    %v5968 = vsel %vm5960, 1.0, 0.0
    %v5969 = vsel %vm5961, 1.0, 0.0
    %v5970 = vsel %vm5962, 1.0, 0.0
    %v5971 = vsel %vm5963, 1.0, 0.0
    %v5972 = vsel %vm5964, 1.0, 0.0
    %v5973 = vsel %vm5957, 1e+30, %v5789
    %v5974 = vsel %vm5958, 1e+30, %v5790
    %v5975 = vsel %vm5959, 1e+30, %v5791
    %v5976 = vsel %vm5960, 1e+30, %v5792
    %v5977 = vsel %vm5961, 1e+30, %v5793
    %v5978 = vsel %vm5962, 1e+30, %v5794
    %v5979 = vsel %vm5963, 1e+30, %v5795
    %v5980 = vsel %vm5964, 1e+30, %v5796
    %v5981 = vsel %vm444, %v5973, inf
    %5982 = vmin.xlane.f32.xlu0 %v5981
    %v5983 = vpop.xlane.xlu0 %5982
    %v5984 = vsel %vm444, %v5974, inf
    %5985 = vmin.xlane.f32.xlu0 %v5984
    %v5986 = vpop.xlane.xlu0 %5985
    %v5987 = vsel %vm444, %v5975, inf
    %5988 = vmin.xlane.f32.xlu0 %v5987
    %v5989 = vpop.xlane.xlu0 %5988
    %v5990 = vsel %vm444, %v5976, inf
    %5991 = vmin.xlane.f32.xlu0 %v5990
    %v5992 = vpop.xlane.xlu0 %5991
    %v5993 = vsel %vm444, %v5977, inf
    %5994 = vmin.xlane.f32.xlu0 %v5993
    %v5995 = vpop.xlane.xlu0 %5994
    %v5996 = vsel %vm444, %v5978, inf
    %5997 = vmin.xlane.f32.xlu0 %v5996
    %v5998 = vpop.xlane.xlu0 %5997
    %v5999 = vsel %vm444, %v5979, inf
    %6000 = vmin.xlane.f32.xlu0 %v5999
    %v6001 = vpop.xlane.xlu0 %6000
    %v6002 = vsel %vm444, %v5980, inf
    %6003 = vmin.xlane.f32.xlu0 %v6002
    %v6004 = vpop.xlane.xlu0 %6003
    %vm6005 = vcmp.le.f32.partialorder %v5973, %v5983
    %vm6006 = vcmp.le.f32.partialorder %v5974, %v5986
    %vm6007 = vcmp.le.f32.partialorder %v5975, %v5989
    %vm6008 = vcmp.le.f32.partialorder %v5976, %v5992
    %vm6009 = vcmp.le.f32.partialorder %v5977, %v5995
    %vm6010 = vcmp.le.f32.partialorder %v5978, %v5998
    %vm6011 = vcmp.le.f32.partialorder %v5979, %v6001
    %vm6012 = vcmp.le.f32.partialorder %v5980, %v6004
    %v6013 = vsel %vm6005, %v443, 64
    %v6014 = vsel %vm6006, %v443, 64
    %v6015 = vsel %vm6007, %v443, 64
    %v6016 = vsel %vm6008, %v443, 64
    %v6017 = vsel %vm6009, %v443, 64
    %v6018 = vsel %vm6010, %v443, 64
    %v6019 = vsel %vm6011, %v443, 64
    %v6020 = vsel %vm6012, %v443, 64
    %v6021 = vsel %vm444, %v6013, 2147483647
    %v6022 = vand.u32 %v6021, 65535
    %v6023 = vshra.s32 %v6021, 16
    %v6024 = vcvt.s32.f32 %v6022
    %v6025 = vcvt.s32.f32 %v6023
    %6026 = vmin.xlane.f32.xlu0 %v6025
    %v6027 = vpop.xlane.xlu0 %6026
    %vm6028 = vcmp.eq.f32.partialorder %v6025, %v6027
    %v6029 = vsel %vm6028, %v6024, inf
    %6030 = vmin.xlane.f32.xlu0 %v6029
    %v6031 = vpop.xlane.xlu0 %6030
    %v6032 = vcvt.f32.s32 %v6031
    %v6033 = vcvt.f32.s32 %v6027
    %v6034 = vshll.u32 %v6033, 16
    %v6035 = vadd.s32 %v6034, %v6032
    %v6036 = vsel %vm444, %v6014, 2147483647
    %v6037 = vand.u32 %v6036, 65535
    %v6038 = vshra.s32 %v6036, 16
    %v6039 = vcvt.s32.f32 %v6037
    %v6040 = vcvt.s32.f32 %v6038
    %6041 = vmin.xlane.f32.xlu0 %v6040
    %v6042 = vpop.xlane.xlu0 %6041
    %vm6043 = vcmp.eq.f32.partialorder %v6040, %v6042
    %v6044 = vsel %vm6043, %v6039, inf
    %6045 = vmin.xlane.f32.xlu0 %v6044
    %v6046 = vpop.xlane.xlu0 %6045
    %v6047 = vcvt.f32.s32 %v6046
    %v6048 = vcvt.f32.s32 %v6042
    %v6049 = vshll.u32 %v6048, 16
    %v6050 = vadd.s32 %v6049, %v6047
    %v6051 = vsel %vm444, %v6015, 2147483647
    %v6052 = vand.u32 %v6051, 65535
    %v6053 = vshra.s32 %v6051, 16
    %v6054 = vcvt.s32.f32 %v6052
    %v6055 = vcvt.s32.f32 %v6053
    %6056 = vmin.xlane.f32.xlu0 %v6055
    %v6057 = vpop.xlane.xlu0 %6056
    %vm6058 = vcmp.eq.f32.partialorder %v6055, %v6057
    %v6059 = vsel %vm6058, %v6054, inf
    %6060 = vmin.xlane.f32.xlu0 %v6059
    %v6061 = vpop.xlane.xlu0 %6060
    %v6062 = vcvt.f32.s32 %v6061
    %v6063 = vcvt.f32.s32 %v6057
    %v6064 = vshll.u32 %v6063, 16
    %v6065 = vadd.s32 %v6064, %v6062
    %v6066 = vsel %vm444, %v6016, 2147483647
    %v6067 = vand.u32 %v6066, 65535
    %v6068 = vshra.s32 %v6066, 16
    %v6069 = vcvt.s32.f32 %v6067
    %v6070 = vcvt.s32.f32 %v6068
    %6071 = vmin.xlane.f32.xlu0 %v6070
    %v6072 = vpop.xlane.xlu0 %6071
    %vm6073 = vcmp.eq.f32.partialorder %v6070, %v6072
    %v6074 = vsel %vm6073, %v6069, inf
    %6075 = vmin.xlane.f32.xlu0 %v6074
    %v6076 = vpop.xlane.xlu0 %6075
    %v6077 = vcvt.f32.s32 %v6076
    %v6078 = vcvt.f32.s32 %v6072
    %v6079 = vshll.u32 %v6078, 16
    %v6080 = vadd.s32 %v6079, %v6077
    %v6081 = vsel %vm444, %v6017, 2147483647
    %v6082 = vand.u32 %v6081, 65535
    %v6083 = vshra.s32 %v6081, 16
    %v6084 = vcvt.s32.f32 %v6082
    %v6085 = vcvt.s32.f32 %v6083
    %6086 = vmin.xlane.f32.xlu0 %v6085
    %v6087 = vpop.xlane.xlu0 %6086
    %vm6088 = vcmp.eq.f32.partialorder %v6085, %v6087
    %v6089 = vsel %vm6088, %v6084, inf
    %6090 = vmin.xlane.f32.xlu0 %v6089
    %v6091 = vpop.xlane.xlu0 %6090
    %v6092 = vcvt.f32.s32 %v6091
    %v6093 = vcvt.f32.s32 %v6087
    %v6094 = vshll.u32 %v6093, 16
    %v6095 = vadd.s32 %v6094, %v6092
    %v6096 = vsel %vm444, %v6018, 2147483647
    %v6097 = vand.u32 %v6096, 65535
    %v6098 = vshra.s32 %v6096, 16
    %v6099 = vcvt.s32.f32 %v6097
    %v6100 = vcvt.s32.f32 %v6098
    %6101 = vmin.xlane.f32.xlu0 %v6100
    %v6102 = vpop.xlane.xlu0 %6101
    %vm6103 = vcmp.eq.f32.partialorder %v6100, %v6102
    %v6104 = vsel %vm6103, %v6099, inf
    %6105 = vmin.xlane.f32.xlu0 %v6104
    %v6106 = vpop.xlane.xlu0 %6105
    %v6107 = vcvt.f32.s32 %v6106
    %v6108 = vcvt.f32.s32 %v6102
    %v6109 = vshll.u32 %v6108, 16
    %v6110 = vadd.s32 %v6109, %v6107
    %v6111 = vsel %vm444, %v6019, 2147483647
    %v6112 = vand.u32 %v6111, 65535
    %v6113 = vshra.s32 %v6111, 16
    %v6114 = vcvt.s32.f32 %v6112
    %v6115 = vcvt.s32.f32 %v6113
    %6116 = vmin.xlane.f32.xlu0 %v6115
    %v6117 = vpop.xlane.xlu0 %6116
    %vm6118 = vcmp.eq.f32.partialorder %v6115, %v6117
    %v6119 = vsel %vm6118, %v6114, inf
    %6120 = vmin.xlane.f32.xlu0 %v6119
    %v6121 = vpop.xlane.xlu0 %6120
    %v6122 = vcvt.f32.s32 %v6121
    %v6123 = vcvt.f32.s32 %v6117
    %v6124 = vshll.u32 %v6123, 16
    %v6125 = vadd.s32 %v6124, %v6122
    %v6126 = vsel %vm444, %v6020, 2147483647
    %v6127 = vand.u32 %v6126, 65535
    %v6128 = vshra.s32 %v6126, 16
    %v6129 = vcvt.s32.f32 %v6127
    %v6130 = vcvt.s32.f32 %v6128
    %6131 = vmin.xlane.f32.xlu0 %v6130
    %v6132 = vpop.xlane.xlu0 %6131
    %vm6133 = vcmp.eq.f32.partialorder %v6130, %v6132
    %v6134 = vsel %vm6133, %v6129, inf
    %6135 = vmin.xlane.f32.xlu0 %v6134
    %v6136 = vpop.xlane.xlu0 %6135
    %v6137 = vcvt.f32.s32 %v6136
    %v6138 = vcvt.f32.s32 %v6132
    %v6139 = vshll.u32 %v6138, 16
    %v6140 = vadd.s32 %v6139, %v6137
    %vm6141 = vcmp.eq.s32.totalorder %v443, %v6035
    %vm6142 = vcmp.eq.s32.totalorder %v443, %v6050
    %vm6143 = vcmp.eq.s32.totalorder %v443, %v6065
    %vm6144 = vcmp.eq.s32.totalorder %v443, %v6080
    %vm6145 = vcmp.eq.s32.totalorder %v443, %v6095
    %vm6146 = vcmp.eq.s32.totalorder %v443, %v6110
    %vm6147 = vcmp.eq.s32.totalorder %v443, %v6125
    %vm6148 = vcmp.eq.s32.totalorder %v443, %v6140
    %v6149 = vsel %vm6141, 1.0, 0.0
    %v6150 = vsel %vm6142, 1.0, 0.0
    %v6151 = vsel %vm6143, 1.0, 0.0
    %v6152 = vsel %vm6144, 1.0, 0.0
    %v6153 = vsel %vm6145, 1.0, 0.0
    %v6154 = vsel %vm6146, 1.0, 0.0
    %v6155 = vsel %vm6147, 1.0, 0.0
    %v6156 = vsel %vm6148, 1.0, 0.0
    %v6157 = vsel %vm6141, 1e+30, %v5973
    %v6158 = vsel %vm6142, 1e+30, %v5974
    %v6159 = vsel %vm6143, 1e+30, %v5975
    %v6160 = vsel %vm6144, 1e+30, %v5976
    %v6161 = vsel %vm6145, 1e+30, %v5977
    %v6162 = vsel %vm6146, 1e+30, %v5978
    %v6163 = vsel %vm6147, 1e+30, %v5979
    %v6164 = vsel %vm6148, 1e+30, %v5980
    %v6165 = vsel %vm444, %v6157, inf
    %6166 = vmin.xlane.f32.xlu0 %v6165
    %v6167 = vpop.xlane.xlu0 %6166
    %v6168 = vsel %vm444, %v6158, inf
    %6169 = vmin.xlane.f32.xlu0 %v6168
    %v6170 = vpop.xlane.xlu0 %6169
    %v6171 = vsel %vm444, %v6159, inf
    %6172 = vmin.xlane.f32.xlu0 %v6171
    %v6173 = vpop.xlane.xlu0 %6172
    %v6174 = vsel %vm444, %v6160, inf
    %6175 = vmin.xlane.f32.xlu0 %v6174
    %v6176 = vpop.xlane.xlu0 %6175
    %v6177 = vsel %vm444, %v6161, inf
    %6178 = vmin.xlane.f32.xlu0 %v6177
    %v6179 = vpop.xlane.xlu0 %6178
    %v6180 = vsel %vm444, %v6162, inf
    %6181 = vmin.xlane.f32.xlu0 %v6180
    %v6182 = vpop.xlane.xlu0 %6181
    %v6183 = vsel %vm444, %v6163, inf
    %6184 = vmin.xlane.f32.xlu0 %v6183
    %v6185 = vpop.xlane.xlu0 %6184
    %v6186 = vsel %vm444, %v6164, inf
    %6187 = vmin.xlane.f32.xlu0 %v6186
    %v6188 = vpop.xlane.xlu0 %6187
    %vm6189 = vcmp.le.f32.partialorder %v6157, %v6167
    %vm6190 = vcmp.le.f32.partialorder %v6158, %v6170
    %vm6191 = vcmp.le.f32.partialorder %v6159, %v6173
    %vm6192 = vcmp.le.f32.partialorder %v6160, %v6176
    %vm6193 = vcmp.le.f32.partialorder %v6161, %v6179
    %vm6194 = vcmp.le.f32.partialorder %v6162, %v6182
    %vm6195 = vcmp.le.f32.partialorder %v6163, %v6185
    %vm6196 = vcmp.le.f32.partialorder %v6164, %v6188
    %v6197 = vsel %vm6189, %v443, 64
    %v6198 = vsel %vm6190, %v443, 64
    %v6199 = vsel %vm6191, %v443, 64
    %v6200 = vsel %vm6192, %v443, 64
    %v6201 = vsel %vm6193, %v443, 64
    %v6202 = vsel %vm6194, %v443, 64
    %v6203 = vsel %vm6195, %v443, 64
    %v6204 = vsel %vm6196, %v443, 64
    %v6205 = vsel %vm444, %v6197, 2147483647
    %v6206 = vand.u32 %v6205, 65535
    %v6207 = vshra.s32 %v6205, 16
    %v6208 = vcvt.s32.f32 %v6206
    %v6209 = vcvt.s32.f32 %v6207
    %6210 = vmin.xlane.f32.xlu0 %v6209
    %v6211 = vpop.xlane.xlu0 %6210
    %vm6212 = vcmp.eq.f32.partialorder %v6209, %v6211
    %v6213 = vsel %vm6212, %v6208, inf
    %6214 = vmin.xlane.f32.xlu0 %v6213
    %v6215 = vpop.xlane.xlu0 %6214
    %v6216 = vcvt.f32.s32 %v6215
    %v6217 = vcvt.f32.s32 %v6211
    %v6218 = vshll.u32 %v6217, 16
    %v6219 = vadd.s32 %v6218, %v6216
    %v6220 = vsel %vm444, %v6198, 2147483647
    %v6221 = vand.u32 %v6220, 65535
    %v6222 = vshra.s32 %v6220, 16
    %v6223 = vcvt.s32.f32 %v6221
    %v6224 = vcvt.s32.f32 %v6222
    %6225 = vmin.xlane.f32.xlu0 %v6224
    %v6226 = vpop.xlane.xlu0 %6225
    %vm6227 = vcmp.eq.f32.partialorder %v6224, %v6226
    %v6228 = vsel %vm6227, %v6223, inf
    %6229 = vmin.xlane.f32.xlu0 %v6228
    %v6230 = vpop.xlane.xlu0 %6229
    %v6231 = vcvt.f32.s32 %v6230
    %v6232 = vcvt.f32.s32 %v6226
    %v6233 = vshll.u32 %v6232, 16
    %v6234 = vadd.s32 %v6233, %v6231
    %v6235 = vsel %vm444, %v6199, 2147483647
    %v6236 = vand.u32 %v6235, 65535
    %v6237 = vshra.s32 %v6235, 16
    %v6238 = vcvt.s32.f32 %v6236
    %v6239 = vcvt.s32.f32 %v6237
    %6240 = vmin.xlane.f32.xlu0 %v6239
    %v6241 = vpop.xlane.xlu0 %6240
    %vm6242 = vcmp.eq.f32.partialorder %v6239, %v6241
    %v6243 = vsel %vm6242, %v6238, inf
    %6244 = vmin.xlane.f32.xlu0 %v6243
    %v6245 = vpop.xlane.xlu0 %6244
    %v6246 = vcvt.f32.s32 %v6245
    %v6247 = vcvt.f32.s32 %v6241
    %v6248 = vshll.u32 %v6247, 16
    %v6249 = vadd.s32 %v6248, %v6246
    %v6250 = vsel %vm444, %v6200, 2147483647
    %v6251 = vand.u32 %v6250, 65535
    %v6252 = vshra.s32 %v6250, 16
    %v6253 = vcvt.s32.f32 %v6251
    %v6254 = vcvt.s32.f32 %v6252
    %6255 = vmin.xlane.f32.xlu0 %v6254
    %v6256 = vpop.xlane.xlu0 %6255
    %vm6257 = vcmp.eq.f32.partialorder %v6254, %v6256
    %v6258 = vsel %vm6257, %v6253, inf
    %6259 = vmin.xlane.f32.xlu0 %v6258
    %v6260 = vpop.xlane.xlu0 %6259
    %v6261 = vcvt.f32.s32 %v6260
    %v6262 = vcvt.f32.s32 %v6256
    %v6263 = vshll.u32 %v6262, 16
    %v6264 = vadd.s32 %v6263, %v6261
    %v6265 = vsel %vm444, %v6201, 2147483647
    %v6266 = vand.u32 %v6265, 65535
    %v6267 = vshra.s32 %v6265, 16
    %v6268 = vcvt.s32.f32 %v6266
    %v6269 = vcvt.s32.f32 %v6267
    %6270 = vmin.xlane.f32.xlu0 %v6269
    %v6271 = vpop.xlane.xlu0 %6270
    %vm6272 = vcmp.eq.f32.partialorder %v6269, %v6271
    %v6273 = vsel %vm6272, %v6268, inf
    %6274 = vmin.xlane.f32.xlu0 %v6273
    %v6275 = vpop.xlane.xlu0 %6274
    %v6276 = vcvt.f32.s32 %v6275
    %v6277 = vcvt.f32.s32 %v6271
    %v6278 = vshll.u32 %v6277, 16
    %v6279 = vadd.s32 %v6278, %v6276
    %v6280 = vsel %vm444, %v6202, 2147483647
    %v6281 = vand.u32 %v6280, 65535
    %v6282 = vshra.s32 %v6280, 16
    %v6283 = vcvt.s32.f32 %v6281
    %v6284 = vcvt.s32.f32 %v6282
    %6285 = vmin.xlane.f32.xlu0 %v6284
    %v6286 = vpop.xlane.xlu0 %6285
    %vm6287 = vcmp.eq.f32.partialorder %v6284, %v6286
    %v6288 = vsel %vm6287, %v6283, inf
    %6289 = vmin.xlane.f32.xlu0 %v6288
    %v6290 = vpop.xlane.xlu0 %6289
    %v6291 = vcvt.f32.s32 %v6290
    %v6292 = vcvt.f32.s32 %v6286
    %v6293 = vshll.u32 %v6292, 16
    %v6294 = vadd.s32 %v6293, %v6291
    %v6295 = vsel %vm444, %v6203, 2147483647
    %v6296 = vand.u32 %v6295, 65535
    %v6297 = vshra.s32 %v6295, 16
    %v6298 = vcvt.s32.f32 %v6296
    %v6299 = vcvt.s32.f32 %v6297
    %6300 = vmin.xlane.f32.xlu0 %v6299
    %v6301 = vpop.xlane.xlu0 %6300
    %vm6302 = vcmp.eq.f32.partialorder %v6299, %v6301
    %v6303 = vsel %vm6302, %v6298, inf
    %6304 = vmin.xlane.f32.xlu0 %v6303
    %v6305 = vpop.xlane.xlu0 %6304
    %v6306 = vcvt.f32.s32 %v6305
    %v6307 = vcvt.f32.s32 %v6301
    %v6308 = vshll.u32 %v6307, 16
    %v6309 = vadd.s32 %v6308, %v6306
    %v6310 = vsel %vm444, %v6204, 2147483647
    %v6311 = vand.u32 %v6310, 65535
    %v6312 = vshra.s32 %v6310, 16
    %v6313 = vcvt.s32.f32 %v6311
    %v6314 = vcvt.s32.f32 %v6312
    %6315 = vmin.xlane.f32.xlu0 %v6314
    %v6316 = vpop.xlane.xlu0 %6315
    %vm6317 = vcmp.eq.f32.partialorder %v6314, %v6316
    %v6318 = vsel %vm6317, %v6313, inf
    %6319 = vmin.xlane.f32.xlu0 %v6318
    %v6320 = vpop.xlane.xlu0 %6319
    %v6321 = vcvt.f32.s32 %v6320
    %v6322 = vcvt.f32.s32 %v6316
    %v6323 = vshll.u32 %v6322, 16
    %v6324 = vadd.s32 %v6323, %v6321
    %vm6325 = vcmp.eq.s32.totalorder %v443, %v6219
    %vm6326 = vcmp.eq.s32.totalorder %v443, %v6234
    %vm6327 = vcmp.eq.s32.totalorder %v443, %v6249
    %vm6328 = vcmp.eq.s32.totalorder %v443, %v6264
    %vm6329 = vcmp.eq.s32.totalorder %v443, %v6279
    %vm6330 = vcmp.eq.s32.totalorder %v443, %v6294
    %vm6331 = vcmp.eq.s32.totalorder %v443, %v6309
    %vm6332 = vcmp.eq.s32.totalorder %v443, %v6324
    %v6333 = vsel %vm6325, 1.0, 0.0
    %v6334 = vsel %vm6326, 1.0, 0.0
    %v6335 = vsel %vm6327, 1.0, 0.0
    %v6336 = vsel %vm6328, 1.0, 0.0
    %v6337 = vsel %vm6329, 1.0, 0.0
    %v6338 = vsel %vm6330, 1.0, 0.0
    %v6339 = vsel %vm6331, 1.0, 0.0
    %v6340 = vsel %vm6332, 1.0, 0.0
    %v6341 = vsel %vm6325, 1e+30, %v6157
    %v6342 = vsel %vm6326, 1e+30, %v6158
    %v6343 = vsel %vm6327, 1e+30, %v6159
    %v6344 = vsel %vm6328, 1e+30, %v6160
    %v6345 = vsel %vm6329, 1e+30, %v6161
    %v6346 = vsel %vm6330, 1e+30, %v6162
    %v6347 = vsel %vm6331, 1e+30, %v6163
    %v6348 = vsel %vm6332, 1e+30, %v6164
    %v6349 = vsel %vm444, %v6341, inf
    %6350 = vmin.xlane.f32.xlu0 %v6349
    %v6351 = vpop.xlane.xlu0 %6350
    %v6352 = vsel %vm444, %v6342, inf
    %6353 = vmin.xlane.f32.xlu0 %v6352
    %v6354 = vpop.xlane.xlu0 %6353
    %v6355 = vsel %vm444, %v6343, inf
    %6356 = vmin.xlane.f32.xlu0 %v6355
    %v6357 = vpop.xlane.xlu0 %6356
    %v6358 = vsel %vm444, %v6344, inf
    %6359 = vmin.xlane.f32.xlu0 %v6358
    %v6360 = vpop.xlane.xlu0 %6359
    %v6361 = vsel %vm444, %v6345, inf
    %6362 = vmin.xlane.f32.xlu0 %v6361
    %v6363 = vpop.xlane.xlu0 %6362
    %v6364 = vsel %vm444, %v6346, inf
    %6365 = vmin.xlane.f32.xlu0 %v6364
    %v6366 = vpop.xlane.xlu0 %6365
    %v6367 = vsel %vm444, %v6347, inf
    %6368 = vmin.xlane.f32.xlu0 %v6367
    %v6369 = vpop.xlane.xlu0 %6368
    %v6370 = vsel %vm444, %v6348, inf
    %6371 = vmin.xlane.f32.xlu0 %v6370
    %v6372 = vpop.xlane.xlu0 %6371
    %vm6373 = vcmp.le.f32.partialorder %v6341, %v6351
    %vm6374 = vcmp.le.f32.partialorder %v6342, %v6354
    %vm6375 = vcmp.le.f32.partialorder %v6343, %v6357
    %vm6376 = vcmp.le.f32.partialorder %v6344, %v6360
    %vm6377 = vcmp.le.f32.partialorder %v6345, %v6363
    %vm6378 = vcmp.le.f32.partialorder %v6346, %v6366
    %vm6379 = vcmp.le.f32.partialorder %v6347, %v6369
    %vm6380 = vcmp.le.f32.partialorder %v6348, %v6372
    %v6381 = vsel %vm6373, %v443, 64
    %v6382 = vsel %vm6374, %v443, 64
    %v6383 = vsel %vm6375, %v443, 64
    %v6384 = vsel %vm6376, %v443, 64
    %v6385 = vsel %vm6377, %v443, 64
    %v6386 = vsel %vm6378, %v443, 64
    %v6387 = vsel %vm6379, %v443, 64
    %v6388 = vsel %vm6380, %v443, 64
    %v6389 = vsel %vm444, %v6381, 2147483647
    %v6390 = vand.u32 %v6389, 65535
    %v6391 = vshra.s32 %v6389, 16
    %v6392 = vcvt.s32.f32 %v6390
    %v6393 = vcvt.s32.f32 %v6391
    %6394 = vmin.xlane.f32.xlu0 %v6393
    %v6395 = vpop.xlane.xlu0 %6394
    %vm6396 = vcmp.eq.f32.partialorder %v6393, %v6395
    %v6397 = vsel %vm6396, %v6392, inf
    %6398 = vmin.xlane.f32.xlu0 %v6397
    %v6399 = vpop.xlane.xlu0 %6398
    %v6400 = vcvt.f32.s32 %v6399
    %v6401 = vcvt.f32.s32 %v6395
    %v6402 = vshll.u32 %v6401, 16
    %v6403 = vadd.s32 %v6402, %v6400
    %v6404 = vsel %vm444, %v6382, 2147483647
    %v6405 = vand.u32 %v6404, 65535
    %v6406 = vshra.s32 %v6404, 16
    %v6407 = vcvt.s32.f32 %v6405
    %v6408 = vcvt.s32.f32 %v6406
    %6409 = vmin.xlane.f32.xlu0 %v6408
    %v6410 = vpop.xlane.xlu0 %6409
    %vm6411 = vcmp.eq.f32.partialorder %v6408, %v6410
    %v6412 = vsel %vm6411, %v6407, inf
    %6413 = vmin.xlane.f32.xlu0 %v6412
    %v6414 = vpop.xlane.xlu0 %6413
    %v6415 = vcvt.f32.s32 %v6414
    %v6416 = vcvt.f32.s32 %v6410
    %v6417 = vshll.u32 %v6416, 16
    %v6418 = vadd.s32 %v6417, %v6415
    %v6419 = vsel %vm444, %v6383, 2147483647
    %v6420 = vand.u32 %v6419, 65535
    %v6421 = vshra.s32 %v6419, 16
    %v6422 = vcvt.s32.f32 %v6420
    %v6423 = vcvt.s32.f32 %v6421
    %6424 = vmin.xlane.f32.xlu0 %v6423
    %v6425 = vpop.xlane.xlu0 %6424
    %vm6426 = vcmp.eq.f32.partialorder %v6423, %v6425
    %v6427 = vsel %vm6426, %v6422, inf
    %6428 = vmin.xlane.f32.xlu0 %v6427
    %v6429 = vpop.xlane.xlu0 %6428
    %v6430 = vcvt.f32.s32 %v6429
    %v6431 = vcvt.f32.s32 %v6425
    %v6432 = vshll.u32 %v6431, 16
    %v6433 = vadd.s32 %v6432, %v6430
    %v6434 = vsel %vm444, %v6384, 2147483647
    %v6435 = vand.u32 %v6434, 65535
    %v6436 = vshra.s32 %v6434, 16
    %v6437 = vcvt.s32.f32 %v6435
    %v6438 = vcvt.s32.f32 %v6436
    %6439 = vmin.xlane.f32.xlu0 %v6438
    %v6440 = vpop.xlane.xlu0 %6439
    %vm6441 = vcmp.eq.f32.partialorder %v6438, %v6440
    %v6442 = vsel %vm6441, %v6437, inf
    %6443 = vmin.xlane.f32.xlu0 %v6442
    %v6444 = vpop.xlane.xlu0 %6443
    %v6445 = vcvt.f32.s32 %v6444
    %v6446 = vcvt.f32.s32 %v6440
    %v6447 = vshll.u32 %v6446, 16
    %v6448 = vadd.s32 %v6447, %v6445
    %v6449 = vsel %vm444, %v6385, 2147483647
    %v6450 = vand.u32 %v6449, 65535
    %v6451 = vshra.s32 %v6449, 16
    %v6452 = vcvt.s32.f32 %v6450
    %v6453 = vcvt.s32.f32 %v6451
    %6454 = vmin.xlane.f32.xlu0 %v6453
    %v6455 = vpop.xlane.xlu0 %6454
    %vm6456 = vcmp.eq.f32.partialorder %v6453, %v6455
    %v6457 = vsel %vm6456, %v6452, inf
    %6458 = vmin.xlane.f32.xlu0 %v6457
    %v6459 = vpop.xlane.xlu0 %6458
    %v6460 = vcvt.f32.s32 %v6459
    %v6461 = vcvt.f32.s32 %v6455
    %v6462 = vshll.u32 %v6461, 16
    %v6463 = vadd.s32 %v6462, %v6460
    %v6464 = vsel %vm444, %v6386, 2147483647
    %v6465 = vand.u32 %v6464, 65535
    %v6466 = vshra.s32 %v6464, 16
    %v6467 = vcvt.s32.f32 %v6465
    %v6468 = vcvt.s32.f32 %v6466
    %6469 = vmin.xlane.f32.xlu0 %v6468
    %v6470 = vpop.xlane.xlu0 %6469
    %vm6471 = vcmp.eq.f32.partialorder %v6468, %v6470
    %v6472 = vsel %vm6471, %v6467, inf
    %6473 = vmin.xlane.f32.xlu0 %v6472
    %v6474 = vpop.xlane.xlu0 %6473
    %v6475 = vcvt.f32.s32 %v6474
    %v6476 = vcvt.f32.s32 %v6470
    %v6477 = vshll.u32 %v6476, 16
    %v6478 = vadd.s32 %v6477, %v6475
    %v6479 = vsel %vm444, %v6387, 2147483647
    %v6480 = vand.u32 %v6479, 65535
    %v6481 = vshra.s32 %v6479, 16
    %v6482 = vcvt.s32.f32 %v6480
    %v6483 = vcvt.s32.f32 %v6481
    %6484 = vmin.xlane.f32.xlu0 %v6483
    %v6485 = vpop.xlane.xlu0 %6484
    %vm6486 = vcmp.eq.f32.partialorder %v6483, %v6485
    %v6487 = vsel %vm6486, %v6482, inf
    %6488 = vmin.xlane.f32.xlu0 %v6487
    %v6489 = vpop.xlane.xlu0 %6488
    %v6490 = vcvt.f32.s32 %v6489
    %v6491 = vcvt.f32.s32 %v6485
    %v6492 = vshll.u32 %v6491, 16
    %v6493 = vadd.s32 %v6492, %v6490
    %v6494 = vsel %vm444, %v6388, 2147483647
    %v6495 = vand.u32 %v6494, 65535
    %v6496 = vshra.s32 %v6494, 16
    %v6497 = vcvt.s32.f32 %v6495
    %v6498 = vcvt.s32.f32 %v6496
    %6499 = vmin.xlane.f32.xlu0 %v6498
    %v6500 = vpop.xlane.xlu0 %6499
    %vm6501 = vcmp.eq.f32.partialorder %v6498, %v6500
    %v6502 = vsel %vm6501, %v6497, inf
    %6503 = vmin.xlane.f32.xlu0 %v6502
    %v6504 = vpop.xlane.xlu0 %6503
    %v6505 = vcvt.f32.s32 %v6504
    %v6506 = vcvt.f32.s32 %v6500
    %v6507 = vshll.u32 %v6506, 16
    %v6508 = vadd.s32 %v6507, %v6505
    %vm6509 = vcmp.eq.s32.totalorder %v443, %v6403
    %vm6510 = vcmp.eq.s32.totalorder %v443, %v6418
    %vm6511 = vcmp.eq.s32.totalorder %v443, %v6433
    %vm6512 = vcmp.eq.s32.totalorder %v443, %v6448
    %vm6513 = vcmp.eq.s32.totalorder %v443, %v6463
    %vm6514 = vcmp.eq.s32.totalorder %v443, %v6478
    %vm6515 = vcmp.eq.s32.totalorder %v443, %v6493
    %vm6516 = vcmp.eq.s32.totalorder %v443, %v6508
    %v6517 = vsel %vm6509, 1.0, 0.0
    %v6518 = vsel %vm6510, 1.0, 0.0
    %v6519 = vsel %vm6511, 1.0, 0.0
    %v6520 = vsel %vm6512, 1.0, 0.0
    %v6521 = vsel %vm6513, 1.0, 0.0
    %v6522 = vsel %vm6514, 1.0, 0.0
    %v6523 = vsel %vm6515, 1.0, 0.0
    %v6524 = vsel %vm6516, 1.0, 0.0
    %v6525 = vpack.c.bf16 %v5966, %v5965
    %v6526 = vpack.c.bf16 %v5968, %v5967
    %v6527 = vpack.c.bf16 %v5970, %v5969
    %v6528 = vpack.c.bf16 %v5972, %v5971
    %v6529 = vpack.c.bf16 %v6150, %v6149
    %v6530 = vpack.c.bf16 %v6152, %v6151
    %v6531 = vpack.c.bf16 %v6154, %v6153
    %v6532 = vpack.c.bf16 %v6156, %v6155
    %v6533 = vpack.c.bf16 %v6334, %v6333
    %v6534 = vpack.c.bf16 %v6336, %v6335
    %v6535 = vpack.c.bf16 %v6338, %v6337
    %v6536 = vpack.c.bf16 %v6340, %v6339
    %v6537 = vpack.c.bf16 %v6518, %v6517
    %v6538 = vpack.c.bf16 %v6520, %v6519
    %v6539 = vpack.c.bf16 %v6522, %v6521
    %v6540 = vpack.c.bf16 %v6524, %v6523
    %v6542 = vsel %vm444, %v6525, 0
    %v6545 = vsel %vm444, %v6526, 0
    %v6548 = vsel %vm444, %v6527, 0
    %v6551 = vsel %vm444, %v6528, 0
    %v6554 = vsel %vm444, %v6529, 0
    %v6557 = vsel %vm444, %v6530, 0
    %v6560 = vsel %vm444, %v6531, 0
    %v6563 = vsel %vm444, %v6532, 0
    %v6566 = vsel %vm444, %v6533, 0
    %v6569 = vsel %vm444, %v6534, 0
    %v6572 = vsel %vm444, %v6535, 0
    %v6575 = vsel %vm444, %v6536, 0
    %v6578 = vsel %vm444, %v6537, 0
    %v6581 = vsel %vm444, %v6538, 0
    %v6584 = vsel %vm444, %v6539, 0
    %v6587 = vsel %vm444, %v6540, 0
    %6589 = vmatprep.subr.bf16.mxu0 0
    %6590 = vmatpush1.bf16.msra.mxu0 0
    %6591 = vmatprep.subr.bf16.mxu0 0
    %6592 = vmatpush1.bf16.msra.mxu0 0
    %6593 = vmatprep.subr.bf16.mxu0 0
    %6594 = vmatpush1.bf16.msra.mxu0 0
    %6595 = vmatprep.subr.bf16.mxu0 0
    %6596 = vmatpush1.bf16.msra.mxu0 0
    %6597 = vmatprep.subr.bf16.mxu0 0
    %6598 = vmatpush1.bf16.msra.mxu0 %v5579
    %6599 = vmatprep.subr.bf16.mxu0 0
    %6600 = vmatpush1.bf16.msra.mxu0 %v5578
    %6601 = vmatprep.subr.bf16.mxu0 0
    %6602 = vmatpush1.bf16.msra.mxu0 %v5577
    %6603 = vmatprep.subr.bf16.mxu0 0
    %6604 = vmatpush1.bf16.msra.mxu0 %v5576
    %6605 = vmatprep.subr.bf16.mxu0 0
    %6606 = vmatpush2.bf16.msra.mxu0 0
    %6607 = vmatprep.subr.bf16.mxu0 0
    %6608 = vmatpush2.bf16.msra.mxu0 0
    %6609 = vmatprep.subr.bf16.mxu0 0
    %6610 = vmatpush2.bf16.msra.mxu0 0
    %6611 = vmatprep.subr.bf16.mxu0 0
    %6612 = vmatpush2.bf16.msra.mxu0 0
    %6613 = vmatprep.subr.bf16.mxu0 0
    %6614 = vmatpush2.bf16.msra.mxu0 0
    %6615 = vmatprep.subr.bf16.mxu0 0
    %6616 = vmatpush2.bf16.msra.mxu0 0
    %6617 = vmatprep.subr.bf16.mxu0 0
    %6618 = vmatpush2.bf16.msra.mxu0 0
    %6619 = vmatprep.subr.bf16.mxu0 0
    %6620 = vmatpush2.bf16.msra.mxu0 0
    %6621 = vmatprep.mubr.bf16.mxu0 0
    %6622 = vmatmul.mubr.bf16.gmra.mxu0 %v6542
    %v6623 = vpop.f32.mrf.mxu0
    %v6624 = vadd.f32 0.0, %v6623
    %v6625 = vpop.f32.mrf.mxu0
    %v6626 = vpop.f32.mrf.mxu0
    %v6627 = vadd.f32 0.0, %v6626
    %v6628 = vpop.f32.mrf.mxu0
    %6629 = vmatprep.mubr.bf16.mxu0 0
    %6630 = vmatmul.mubr.bf16.gmra.mxu0 %v6545
    %v6631 = vpop.f32.mrf.mxu0
    %v6632 = vadd.f32 0.0, %v6631
    %v6633 = vpop.f32.mrf.mxu0
    %v6634 = vpop.f32.mrf.mxu0
    %v6635 = vadd.f32 0.0, %v6634
    %v6636 = vpop.f32.mrf.mxu0
    %6637 = vmatprep.mubr.bf16.mxu0 0
    %6638 = vmatmul.mubr.bf16.gmra.mxu0 %v6548
    %v6639 = vpop.f32.mrf.mxu0
    %v6640 = vadd.f32 0.0, %v6639
    %v6641 = vpop.f32.mrf.mxu0
    %v6642 = vpop.f32.mrf.mxu0
    %v6643 = vadd.f32 0.0, %v6642
    %v6644 = vpop.f32.mrf.mxu0
    %6645 = vmatprep.mubr.bf16.mxu0 0
    %6646 = vmatmul.mubr.bf16.gmra.mxu0 %v6551
    %v6647 = vpop.f32.mrf.mxu0
    %v6648 = vadd.f32 0.0, %v6647
    %v6649 = vpop.f32.mrf.mxu0
    %v6650 = vpop.f32.mrf.mxu0
    %v6651 = vadd.f32 0.0, %v6650
    %v6652 = vpop.f32.mrf.mxu0
    %6653 = vmatprep.mubr.bf16.mxu0 0
    %6654 = vmatmul.mubr.bf16.gmra.mxu0 %v6554
    %v6655 = vpop.f32.mrf.mxu0
    %v6656 = vadd.f32 0.0, %v6655
    %v6657 = vpop.f32.mrf.mxu0
    %v6658 = vpop.f32.mrf.mxu0
    %v6659 = vadd.f32 0.0, %v6658
    %v6660 = vpop.f32.mrf.mxu0
    %6661 = vmatprep.mubr.bf16.mxu0 0
    %6662 = vmatmul.mubr.bf16.gmra.mxu0 %v6557
    %v6663 = vpop.f32.mrf.mxu0
    %v6664 = vadd.f32 0.0, %v6663
    %v6665 = vpop.f32.mrf.mxu0
    %v6666 = vpop.f32.mrf.mxu0
    %v6667 = vadd.f32 0.0, %v6666
    %v6668 = vpop.f32.mrf.mxu0
    %6669 = vmatprep.mubr.bf16.mxu0 0
    %6670 = vmatmul.mubr.bf16.gmra.mxu0 %v6560
    %v6671 = vpop.f32.mrf.mxu0
    %v6672 = vadd.f32 0.0, %v6671
    %v6673 = vpop.f32.mrf.mxu0
    %v6674 = vpop.f32.mrf.mxu0
    %v6675 = vadd.f32 0.0, %v6674
    %v6676 = vpop.f32.mrf.mxu0
    %6677 = vmatprep.mubr.bf16.mxu0 0
    %6678 = vmatmul.mubr.bf16.gmra.mxu0 %v6563
    %v6679 = vpop.f32.mrf.mxu0
    %v6680 = vadd.f32 0.0, %v6679
    %v6681 = vpop.f32.mrf.mxu0
    %v6682 = vpop.f32.mrf.mxu0
    %v6683 = vadd.f32 0.0, %v6682
    %v6684 = vpop.f32.mrf.mxu0
    %6685 = vmatprep.mubr.bf16.mxu0 0
    %6686 = vmatmul.mubr.bf16.gmra.mxu0 %v6566
    %v6687 = vpop.f32.mrf.mxu0
    %v6688 = vadd.f32 0.0, %v6687
    %v6689 = vpop.f32.mrf.mxu0
    %v6690 = vpop.f32.mrf.mxu0
    %v6691 = vadd.f32 0.0, %v6690
    %v6692 = vpop.f32.mrf.mxu0
    %6693 = vmatprep.mubr.bf16.mxu0 0
    %6694 = vmatmul.mubr.bf16.gmra.mxu0 %v6569
    %v6695 = vpop.f32.mrf.mxu0
    %v6696 = vadd.f32 0.0, %v6695
    %v6697 = vpop.f32.mrf.mxu0
    %v6698 = vpop.f32.mrf.mxu0
    %v6699 = vadd.f32 0.0, %v6698
    %v6700 = vpop.f32.mrf.mxu0
    %6701 = vmatprep.mubr.bf16.mxu0 0
    %6702 = vmatmul.mubr.bf16.gmra.mxu0 %v6572
    %v6703 = vpop.f32.mrf.mxu0
    %v6704 = vadd.f32 0.0, %v6703
    %v6705 = vpop.f32.mrf.mxu0
    %v6706 = vpop.f32.mrf.mxu0
    %v6707 = vadd.f32 0.0, %v6706
    %v6708 = vpop.f32.mrf.mxu0
    %6709 = vmatprep.mubr.bf16.mxu0 0
    %6710 = vmatmul.mubr.bf16.gmra.mxu0 %v6575
    %v6711 = vpop.f32.mrf.mxu0
    %v6712 = vadd.f32 0.0, %v6711
    %v6713 = vpop.f32.mrf.mxu0
    %v6714 = vpop.f32.mrf.mxu0
    %v6715 = vadd.f32 0.0, %v6714
    %v6716 = vpop.f32.mrf.mxu0
    %6717 = vmatprep.mubr.bf16.mxu0 0
    %6718 = vmatmul.mubr.bf16.gmra.mxu0 %v6578
    %v6719 = vpop.f32.mrf.mxu0
    %v6720 = vadd.f32 0.0, %v6719
    %v6721 = vpop.f32.mrf.mxu0
    %v6722 = vpop.f32.mrf.mxu0
    %v6723 = vadd.f32 0.0, %v6722
    %v6724 = vpop.f32.mrf.mxu0
    %6725 = vmatprep.mubr.bf16.mxu0 0
    %6726 = vmatmul.mubr.bf16.gmra.mxu0 %v6581
    %v6727 = vpop.f32.mrf.mxu0
    %v6728 = vadd.f32 0.0, %v6727
    %v6729 = vpop.f32.mrf.mxu0
    %v6730 = vpop.f32.mrf.mxu0
    %v6731 = vadd.f32 0.0, %v6730
    %v6732 = vpop.f32.mrf.mxu0
    %6733 = vmatprep.mubr.bf16.mxu0 0
    %6734 = vmatmul.mubr.bf16.gmra.mxu0 %v6584
    %v6735 = vpop.f32.mrf.mxu0
    %v6736 = vadd.f32 0.0, %v6735
    %v6737 = vpop.f32.mrf.mxu0
    %v6738 = vpop.f32.mrf.mxu0
    %v6739 = vadd.f32 0.0, %v6738
    %v6740 = vpop.f32.mrf.mxu0
    %6741 = vmatprep.mubr.bf16.mxu0 0
    %6742 = vmatmul.mubr.bf16.gmra.mxu0 %v6587
    %v6743 = vpop.f32.mrf.mxu0
    %v6744 = vadd.f32 0.0, %v6743
    %v6745 = vpop.f32.mrf.mxu0
    %v6746 = vpop.f32.mrf.mxu0
    %v6747 = vadd.f32 0.0, %v6746
    %v6748 = vpop.f32.mrf.mxu0
    %6749 = vdwg.mxu0
    %v6750 = vmax.f32 %v6624, %v6656
    %v6751 = vmax.f32 %v6627, %v6659
    %v6752 = vmax.f32 %v6632, %v6664
    %v6753 = vmax.f32 %v6635, %v6667
    %v6754 = vmax.f32 %v6640, %v6672
    %v6755 = vmax.f32 %v6643, %v6675
    %v6756 = vmax.f32 %v6648, %v6680
    %v6757 = vmax.f32 %v6651, %v6683
    %v6758 = vmax.f32 %v6750, %v6688
    %v6759 = vmax.f32 %v6751, %v6691
    %v6760 = vmax.f32 %v6752, %v6696
    %v6761 = vmax.f32 %v6753, %v6699
    %v6762 = vmax.f32 %v6754, %v6704
    %v6763 = vmax.f32 %v6755, %v6707
    %v6764 = vmax.f32 %v6756, %v6712
    %v6765 = vmax.f32 %v6757, %v6715
    %v6766 = vmax.f32 %v6758, %v6720
    %v6767 = vmax.f32 %v6759, %v6723
    %v6768 = vmax.f32 %v6760, %v6728
    %v6769 = vmax.f32 %v6761, %v6731
    %v6770 = vmax.f32 %v6762, %v6736
    %v6771 = vmax.f32 %v6763, %v6739
    %v6772 = vmax.f32 %v6764, %v6744
    %v6773 = vmax.f32 %v6765, %v6747
    %v6774 = vmul.f32 %v5428, %v5428
    %v6775 = vmul.f32 %v5429, %v5429
    %v6776 = vmul.f32 %v5430, %v5430
    %v6777 = vmul.f32 %v5431, %v5431
    %v6778 = vmul.f32 %v5432, %v5432
    %v6779 = vmul.f32 %v5433, %v5433
    %v6780 = vmul.f32 %v5434, %v5434
    %v6781 = vmul.f32 %v5435, %v5435
    %v6782 = vsel %vm2769, %v6774, 0.0
    %6783 = vadd.xlane.f32.xlu0 %v6782
    %v6784 = vpop.xlane.xlu0 %6783
    %v6785 = vsel %vm2769, %v6775, 0.0
    %6786 = vadd.xlane.f32.xlu0 %v6785
    %v6787 = vpop.xlane.xlu0 %6786
    %v6788 = vsel %vm2769, %v6776, 0.0
    %6789 = vadd.xlane.f32.xlu0 %v6788
    %v6790 = vpop.xlane.xlu0 %6789
    %v6791 = vsel %vm2769, %v6777, 0.0
    %6792 = vadd.xlane.f32.xlu0 %v6791
    %v6793 = vpop.xlane.xlu0 %6792
    %v6794 = vsel %vm2769, %v6778, 0.0
    %6795 = vadd.xlane.f32.xlu0 %v6794
    %v6796 = vpop.xlane.xlu0 %6795
    %v6797 = vsel %vm2769, %v6779, 0.0
    %6798 = vadd.xlane.f32.xlu0 %v6797
    %v6799 = vpop.xlane.xlu0 %6798
    %v6800 = vsel %vm2769, %v6780, 0.0
    %6801 = vadd.xlane.f32.xlu0 %v6800
    %v6802 = vpop.xlane.xlu0 %6801
    %v6803 = vsel %vm2769, %v6781, 0.0
    %6804 = vadd.xlane.f32.xlu0 %v6803
    %v6805 = vpop.xlane.xlu0 %6804
    %v6807 = vsel %vm2769, %v5428, 0
    %v6810 = vsel %vm2769, %v5429, 0
    %v6813 = vsel %vm2769, %v5430, 0
    %v6816 = vsel %vm2769, %v5431, 0
    %v6819 = vsel %vm2769, %v5432, 0
    %v6822 = vsel %vm2769, %v5433, 0
    %v6825 = vsel %vm2769, %v5434, 0
    %v6828 = vsel %vm2769, %v5435, 0
    %6830 = vmatprep.subr.mxu0 0.0
    %6831 = vmatpush1.xpose.msra.mxu0 0.0
    %6832 = vmatprep.subr.mxu0 0.0
    %6833 = vmatpush1.xpose.msra.mxu0 0.0
    %6834 = vmatprep.subr.mxu0 0.0
    %6835 = vmatpush1.xpose.msra.mxu0 0.0
    %6836 = vmatprep.subr.mxu0 0.0
    %6837 = vmatpush1.xpose.msra.mxu0 0.0
    %6838 = vmatprep.subr.mxu0 0.0
    %6839 = vmatpush1.xpose.msra.mxu0 0.0
    %6840 = vmatprep.subr.mxu0 0.0
    %6841 = vmatpush1.xpose.msra.mxu0 0.0
    %6842 = vmatprep.subr.mxu0 0.0
    %6843 = vmatpush1.xpose.msra.mxu0 0.0
    %6844 = vmatprep.subr.mxu0 0.0
    %6845 = vmatpush1.xpose.msra.mxu0 0.0
    %6846 = vmatprep.subr.mxu0 0.0
    %6847 = vmatpush1.xpose.msra.mxu0 %v6828
    %6848 = vmatprep.subr.mxu0 0.0
    %6849 = vmatpush1.xpose.msra.mxu0 %v6825
    %6850 = vmatprep.subr.mxu0 0.0
    %6851 = vmatpush1.xpose.msra.mxu0 %v6822
    %6852 = vmatprep.subr.mxu0 0.0
    %6853 = vmatpush1.xpose.msra.mxu0 %v6819
    %6854 = vmatprep.subr.mxu0 0.0
    %6855 = vmatpush1.xpose.msra.mxu0 %v6816
    %6856 = vmatprep.subr.mxu0 0.0
    %6857 = vmatpush1.xpose.msra.mxu0 %v6813
    %6858 = vmatprep.subr.mxu0 0.0
    %6859 = vmatpush1.xpose.msra.mxu0 %v6810
    %6860 = vmatprep.subr.mxu0 0.0
    %6861 = vmatpush1.xpose.msra.mxu0 %v6807
    %6862 = vmatprep.subr.mxu0 0.0
    %6863 = vmatpush2.xpose.msra.mxu0 0.0
    %6864 = vmatprep.subr.mxu0 0.0
    %6865 = vmatpush2.xpose.msra.mxu0 0.0
    %6866 = vmatprep.subr.mxu0 0.0
    %6867 = vmatpush2.xpose.msra.mxu0 0.0
    %6868 = vmatprep.subr.mxu0 0.0
    %6869 = vmatpush2.xpose.msra.mxu0 0.0
    %6870 = vmatprep.subr.mxu0 0.0
    %6871 = vmatpush2.xpose.msra.mxu0 0.0
    %6872 = vmatprep.subr.mxu0 0.0
    %6873 = vmatpush2.xpose.msra.mxu0 0.0
    %6874 = vmatprep.subr.mxu0 0.0
    %6875 = vmatpush2.xpose.msra.mxu0 0.0
    %6876 = vmatprep.subr.mxu0 0.0
    %6877 = vmatpush2.xpose.msra.mxu0 0.0
    %6878 = vmatprep.subr.mxu0 0.0
    %6879 = vmatpush2.xpose.msra.mxu0 0.0
    %6880 = vmatprep.subr.mxu0 0.0
    %6881 = vmatpush2.xpose.msra.mxu0 0.0
    %6882 = vmatprep.subr.mxu0 0.0
    %6883 = vmatpush2.xpose.msra.mxu0 0.0
    %6884 = vmatprep.subr.mxu0 0.0
    %6885 = vmatpush2.xpose.msra.mxu0 0.0
    %6886 = vmatprep.subr.mxu0 0.0
    %6887 = vmatpush2.xpose.msra.mxu0 0.0
    %6888 = vmatprep.subr.mxu0 0.0
    %6889 = vmatpush2.xpose.msra.mxu0 0.0
    %6890 = vmatprep.subr.mxu0 0.0
    %6891 = vmatpush2.xpose.msra.mxu0 0.0
    %6892 = vmatprep.subr.mxu0 0.0
    %6893 = vmatpush2.xpose.msra.mxu0 0.0
    %6894 = vmatprep.mubr.f32.mxu0 0.0
    %6895 = vmatmul.mubr.f32.gmra.mxu0 %v6807
    %v6896 = vpop.f32.mrf.mxu0
    %v6897 = vadd.f32 0.0, %v6896
    %v6898 = vpop.f32.mrf.mxu0
    %6899 = vmatprep.mubr.f32.mxu0 0.0
    %6900 = vmatmul.mubr.f32.gmra.mxu0 %v6810
    %v6901 = vpop.f32.mrf.mxu0
    %v6902 = vadd.f32 0.0, %v6901
    %v6903 = vpop.f32.mrf.mxu0
    %6904 = vmatprep.mubr.f32.mxu0 0.0
    %6905 = vmatmul.mubr.f32.gmra.mxu0 %v6813
    %v6906 = vpop.f32.mrf.mxu0
    %v6907 = vadd.f32 0.0, %v6906
    %v6908 = vpop.f32.mrf.mxu0
    %6909 = vmatprep.mubr.f32.mxu0 0.0
    %6910 = vmatmul.mubr.f32.gmra.mxu0 %v6816
    %v6911 = vpop.f32.mrf.mxu0
    %v6912 = vadd.f32 0.0, %v6911
    %v6913 = vpop.f32.mrf.mxu0
    %6914 = vmatprep.mubr.f32.mxu0 0.0
    %6915 = vmatmul.mubr.f32.gmra.mxu0 %v6819
    %v6916 = vpop.f32.mrf.mxu0
    %v6917 = vadd.f32 0.0, %v6916
    %v6918 = vpop.f32.mrf.mxu0
    %6919 = vmatprep.mubr.f32.mxu0 0.0
    %6920 = vmatmul.mubr.f32.gmra.mxu0 %v6822
    %v6921 = vpop.f32.mrf.mxu0
    %v6922 = vadd.f32 0.0, %v6921
    %v6923 = vpop.f32.mrf.mxu0
    %6924 = vmatprep.mubr.f32.mxu0 0.0
    %6925 = vmatmul.mubr.f32.gmra.mxu0 %v6825
    %v6926 = vpop.f32.mrf.mxu0
    %v6927 = vadd.f32 0.0, %v6926
    %v6928 = vpop.f32.mrf.mxu0
    %6929 = vmatprep.mubr.f32.mxu0 0.0
    %6930 = vmatmul.mubr.f32.gmra.mxu0 %v6828
    %v6931 = vpop.f32.mrf.mxu0
    %v6932 = vadd.f32 0.0, %v6931
    %v6933 = vpop.f32.mrf.mxu0
    %6934 = vdwg.mxu0
    %6935 = vxpose.xlu0.b32.start [1/16] %v6784, 128
    %6936 = vxpose.xlu0.b32.cont [2/16] %v6787, 128
    %6937 = vxpose.xlu0.b32.cont [3/16] %v6790, 128
    %6938 = vxpose.xlu0.b32.cont [4/16] %v6793, 128
    %6939 = vxpose.xlu0.b32.cont [5/16] %v6796, 128
    %6940 = vxpose.xlu0.b32.cont [6/16] %v6799, 128
    %6941 = vxpose.xlu0.b32.cont [7/16] %v6802, 128
    %6942 = vxpose.xlu0.b32.cont [8/16] %v6805, 128
    %6943 = vxpose.xlu0.b32.cont [9/16] 0.0, 128
    %6944 = vxpose.xlu0.b32.cont [10/16] 0.0, 128
    %6945 = vxpose.xlu0.b32.cont [11/16] 0.0, 128
    %6946 = vxpose.xlu0.b32.cont [12/16] 0.0, 128
    %6947 = vxpose.xlu0.b32.cont [13/16] 0.0, 128
    %6948 = vxpose.xlu0.b32.cont [14/16] 0.0, 128
    %6949 = vxpose.xlu0.b32.cont [15/16] 0.0, 128
    %6950 = vxpose.xlu0.b32.end [16/16] 0.0, 128
    %v6951 = vpop.trf.xlu0
    %v6952 = vpop.trf.xlu0
    %v6953 = vpop.trf.xlu0
    %v6954 = vpop.trf.xlu0
    %v6955 = vpop.trf.xlu0
    %v6956 = vpop.trf.xlu0
    %v6957 = vpop.trf.xlu0
    %v6958 = vpop.trf.xlu0
    %v6959 = vpop.trf.xlu0
    %v6960 = vpop.trf.xlu0
    %v6961 = vpop.trf.xlu0
    %v6962 = vpop.trf.xlu0
    %v6963 = vpop.trf.xlu0
    %v6964 = vpop.trf.xlu0
    %v6965 = vpop.trf.xlu0
    %v6966 = vpop.trf.xlu0
    %v6967 = vmul.f32 %v6897, 2.0
    %v6968 = vmul.f32 %v6902, 2.0
    %v6969 = vmul.f32 %v6907, 2.0
    %v6970 = vmul.f32 %v6912, 2.0
    %v6971 = vmul.f32 %v6917, 2.0
    %v6972 = vmul.f32 %v6922, 2.0
    %v6973 = vmul.f32 %v6927, 2.0
    %v6974 = vmul.f32 %v6932, 2.0
    %v6975 = vlaneseq
    %v6976 = vshrl.u32 %v6975, 7
    %v6977 = vsub.s32 0, %v6976
    %v6978 = vrot.slane %v6951, %v6977
    %v6979 = vsub.f32 %v6978, %v6967
    %v6980 = vsub.f32 %v6978, %v6968
    %v6981 = vsub.f32 %v6978, %v6969
    %v6982 = vsub.f32 %v6978, %v6970
    %v6983 = vsub.f32 %v6978, %v6971
    %v6984 = vsub.f32 %v6978, %v6972
    %v6985 = vsub.f32 %v6978, %v6973
    %v6986 = vsub.f32 %v6978, %v6974
    %v6987 = vsel %vm444, %v6979, inf
    %6988 = vmin.xlane.f32.xlu0 %v6987
    %v6989 = vpop.xlane.xlu0 %6988
    %v6990 = vsel %vm444, %v6980, inf
    %6991 = vmin.xlane.f32.xlu0 %v6990
    %v6992 = vpop.xlane.xlu0 %6991
    %v6993 = vsel %vm444, %v6981, inf
    %6994 = vmin.xlane.f32.xlu0 %v6993
    %v6995 = vpop.xlane.xlu0 %6994
    %v6996 = vsel %vm444, %v6982, inf
    %6997 = vmin.xlane.f32.xlu0 %v6996
    %v6998 = vpop.xlane.xlu0 %6997
    %v6999 = vsel %vm444, %v6983, inf
    %7000 = vmin.xlane.f32.xlu0 %v6999
    %v7001 = vpop.xlane.xlu0 %7000
    %v7002 = vsel %vm444, %v6984, inf
    %7003 = vmin.xlane.f32.xlu0 %v7002
    %v7004 = vpop.xlane.xlu0 %7003
    %v7005 = vsel %vm444, %v6985, inf
    %7006 = vmin.xlane.f32.xlu0 %v7005
    %v7007 = vpop.xlane.xlu0 %7006
    %v7008 = vsel %vm444, %v6986, inf
    %7009 = vmin.xlane.f32.xlu0 %v7008
    %v7010 = vpop.xlane.xlu0 %7009
    %vm7011 = vcmp.le.f32.partialorder %v6979, %v6989
    %vm7012 = vcmp.le.f32.partialorder %v6980, %v6992
    %vm7013 = vcmp.le.f32.partialorder %v6981, %v6995
    %vm7014 = vcmp.le.f32.partialorder %v6982, %v6998
    %vm7015 = vcmp.le.f32.partialorder %v6983, %v7001
    %vm7016 = vcmp.le.f32.partialorder %v6984, %v7004
    %vm7017 = vcmp.le.f32.partialorder %v6985, %v7007
    %vm7018 = vcmp.le.f32.partialorder %v6986, %v7010
    %v7019 = vsel %vm7011, %v443, 64
    %v7020 = vsel %vm7012, %v443, 64
    %v7021 = vsel %vm7013, %v443, 64
    %v7022 = vsel %vm7014, %v443, 64
    %v7023 = vsel %vm7015, %v443, 64
    %v7024 = vsel %vm7016, %v443, 64
    %v7025 = vsel %vm7017, %v443, 64
    %v7026 = vsel %vm7018, %v443, 64
    %v7027 = vsel %vm444, %v7019, 2147483647
    %v7028 = vand.u32 %v7027, 65535
    %v7029 = vshra.s32 %v7027, 16
    %v7030 = vcvt.s32.f32 %v7028
    %v7031 = vcvt.s32.f32 %v7029
    %7032 = vmin.xlane.f32.xlu0 %v7031
    %v7033 = vpop.xlane.xlu0 %7032
    %vm7034 = vcmp.eq.f32.partialorder %v7031, %v7033
    %v7035 = vsel %vm7034, %v7030, inf
    %7036 = vmin.xlane.f32.xlu0 %v7035
    %v7037 = vpop.xlane.xlu0 %7036
    %v7038 = vcvt.f32.s32 %v7037
    %v7039 = vcvt.f32.s32 %v7033
    %v7040 = vshll.u32 %v7039, 16
    %v7041 = vadd.s32 %v7040, %v7038
    %v7042 = vsel %vm444, %v7020, 2147483647
    %v7043 = vand.u32 %v7042, 65535
    %v7044 = vshra.s32 %v7042, 16
    %v7045 = vcvt.s32.f32 %v7043
    %v7046 = vcvt.s32.f32 %v7044
    %7047 = vmin.xlane.f32.xlu0 %v7046
    %v7048 = vpop.xlane.xlu0 %7047
    %vm7049 = vcmp.eq.f32.partialorder %v7046, %v7048
    %v7050 = vsel %vm7049, %v7045, inf
    %7051 = vmin.xlane.f32.xlu0 %v7050
    %v7052 = vpop.xlane.xlu0 %7051
    %v7053 = vcvt.f32.s32 %v7052
    %v7054 = vcvt.f32.s32 %v7048
    %v7055 = vshll.u32 %v7054, 16
    %v7056 = vadd.s32 %v7055, %v7053
    %v7057 = vsel %vm444, %v7021, 2147483647
    %v7058 = vand.u32 %v7057, 65535
    %v7059 = vshra.s32 %v7057, 16
    %v7060 = vcvt.s32.f32 %v7058
    %v7061 = vcvt.s32.f32 %v7059
    %7062 = vmin.xlane.f32.xlu0 %v7061
    %v7063 = vpop.xlane.xlu0 %7062
    %vm7064 = vcmp.eq.f32.partialorder %v7061, %v7063
    %v7065 = vsel %vm7064, %v7060, inf
    %7066 = vmin.xlane.f32.xlu0 %v7065
    %v7067 = vpop.xlane.xlu0 %7066
    %v7068 = vcvt.f32.s32 %v7067
    %v7069 = vcvt.f32.s32 %v7063
    %v7070 = vshll.u32 %v7069, 16
    %v7071 = vadd.s32 %v7070, %v7068
    %v7072 = vsel %vm444, %v7022, 2147483647
    %v7073 = vand.u32 %v7072, 65535
    %v7074 = vshra.s32 %v7072, 16
    %v7075 = vcvt.s32.f32 %v7073
    %v7076 = vcvt.s32.f32 %v7074
    %7077 = vmin.xlane.f32.xlu0 %v7076
    %v7078 = vpop.xlane.xlu0 %7077
    %vm7079 = vcmp.eq.f32.partialorder %v7076, %v7078
    %v7080 = vsel %vm7079, %v7075, inf
    %7081 = vmin.xlane.f32.xlu0 %v7080
    %v7082 = vpop.xlane.xlu0 %7081
    %v7083 = vcvt.f32.s32 %v7082
    %v7084 = vcvt.f32.s32 %v7078
    %v7085 = vshll.u32 %v7084, 16
    %v7086 = vadd.s32 %v7085, %v7083
    %v7087 = vsel %vm444, %v7023, 2147483647
    %v7088 = vand.u32 %v7087, 65535
    %v7089 = vshra.s32 %v7087, 16
    %v7090 = vcvt.s32.f32 %v7088
    %v7091 = vcvt.s32.f32 %v7089
    %7092 = vmin.xlane.f32.xlu0 %v7091
    %v7093 = vpop.xlane.xlu0 %7092
    %vm7094 = vcmp.eq.f32.partialorder %v7091, %v7093
    %v7095 = vsel %vm7094, %v7090, inf
    %7096 = vmin.xlane.f32.xlu0 %v7095
    %v7097 = vpop.xlane.xlu0 %7096
    %v7098 = vcvt.f32.s32 %v7097
    %v7099 = vcvt.f32.s32 %v7093
    %v7100 = vshll.u32 %v7099, 16
    %v7101 = vadd.s32 %v7100, %v7098
    %v7102 = vsel %vm444, %v7024, 2147483647
    %v7103 = vand.u32 %v7102, 65535
    %v7104 = vshra.s32 %v7102, 16
    %v7105 = vcvt.s32.f32 %v7103
    %v7106 = vcvt.s32.f32 %v7104
    %7107 = vmin.xlane.f32.xlu0 %v7106
    %v7108 = vpop.xlane.xlu0 %7107
    %vm7109 = vcmp.eq.f32.partialorder %v7106, %v7108
    %v7110 = vsel %vm7109, %v7105, inf
    %7111 = vmin.xlane.f32.xlu0 %v7110
    %v7112 = vpop.xlane.xlu0 %7111
    %v7113 = vcvt.f32.s32 %v7112
    %v7114 = vcvt.f32.s32 %v7108
    %v7115 = vshll.u32 %v7114, 16
    %v7116 = vadd.s32 %v7115, %v7113
    %v7117 = vsel %vm444, %v7025, 2147483647
    %v7118 = vand.u32 %v7117, 65535
    %v7119 = vshra.s32 %v7117, 16
    %v7120 = vcvt.s32.f32 %v7118
    %v7121 = vcvt.s32.f32 %v7119
    %7122 = vmin.xlane.f32.xlu0 %v7121
    %v7123 = vpop.xlane.xlu0 %7122
    %vm7124 = vcmp.eq.f32.partialorder %v7121, %v7123
    %v7125 = vsel %vm7124, %v7120, inf
    %7126 = vmin.xlane.f32.xlu0 %v7125
    %v7127 = vpop.xlane.xlu0 %7126
    %v7128 = vcvt.f32.s32 %v7127
    %v7129 = vcvt.f32.s32 %v7123
    %v7130 = vshll.u32 %v7129, 16
    %v7131 = vadd.s32 %v7130, %v7128
    %v7132 = vsel %vm444, %v7026, 2147483647
    %v7133 = vand.u32 %v7132, 65535
    %v7134 = vshra.s32 %v7132, 16
    %v7135 = vcvt.s32.f32 %v7133
    %v7136 = vcvt.s32.f32 %v7134
    %7137 = vmin.xlane.f32.xlu0 %v7136
    %v7138 = vpop.xlane.xlu0 %7137
    %vm7139 = vcmp.eq.f32.partialorder %v7136, %v7138
    %v7140 = vsel %vm7139, %v7135, inf
    %7141 = vmin.xlane.f32.xlu0 %v7140
    %v7142 = vpop.xlane.xlu0 %7141
    %v7143 = vcvt.f32.s32 %v7142
    %v7144 = vcvt.f32.s32 %v7138
    %v7145 = vshll.u32 %v7144, 16
    %v7146 = vadd.s32 %v7145, %v7143
    %vm7147 = vcmp.eq.s32.totalorder %v443, %v7041
    %vm7148 = vcmp.eq.s32.totalorder %v443, %v7056
    %vm7149 = vcmp.eq.s32.totalorder %v443, %v7071
    %vm7150 = vcmp.eq.s32.totalorder %v443, %v7086
    %vm7151 = vcmp.eq.s32.totalorder %v443, %v7101
    %vm7152 = vcmp.eq.s32.totalorder %v443, %v7116
    %vm7153 = vcmp.eq.s32.totalorder %v443, %v7131
    %vm7154 = vcmp.eq.s32.totalorder %v443, %v7146
    %v7155 = vsel %vm7147, 1.0, 0.0
    %v7156 = vsel %vm7148, 1.0, 0.0
    %v7157 = vsel %vm7149, 1.0, 0.0
    %v7158 = vsel %vm7150, 1.0, 0.0
    %v7159 = vsel %vm7151, 1.0, 0.0
    %v7160 = vsel %vm7152, 1.0, 0.0
    %v7161 = vsel %vm7153, 1.0, 0.0
    %v7162 = vsel %vm7154, 1.0, 0.0
    %v7163 = vsel %vm7147, 1e+30, %v6979
    %v7164 = vsel %vm7148, 1e+30, %v6980
    %v7165 = vsel %vm7149, 1e+30, %v6981
    %v7166 = vsel %vm7150, 1e+30, %v6982
    %v7167 = vsel %vm7151, 1e+30, %v6983
    %v7168 = vsel %vm7152, 1e+30, %v6984
    %v7169 = vsel %vm7153, 1e+30, %v6985
    %v7170 = vsel %vm7154, 1e+30, %v6986
    %v7171 = vsel %vm444, %v7163, inf
    %7172 = vmin.xlane.f32.xlu0 %v7171
    %v7173 = vpop.xlane.xlu0 %7172
    %v7174 = vsel %vm444, %v7164, inf
    %7175 = vmin.xlane.f32.xlu0 %v7174
    %v7176 = vpop.xlane.xlu0 %7175
    %v7177 = vsel %vm444, %v7165, inf
    %7178 = vmin.xlane.f32.xlu0 %v7177
    %v7179 = vpop.xlane.xlu0 %7178
    %v7180 = vsel %vm444, %v7166, inf
    %7181 = vmin.xlane.f32.xlu0 %v7180
    %v7182 = vpop.xlane.xlu0 %7181
    %v7183 = vsel %vm444, %v7167, inf
    %7184 = vmin.xlane.f32.xlu0 %v7183
    %v7185 = vpop.xlane.xlu0 %7184
    %v7186 = vsel %vm444, %v7168, inf
    %7187 = vmin.xlane.f32.xlu0 %v7186
    %v7188 = vpop.xlane.xlu0 %7187
    %v7189 = vsel %vm444, %v7169, inf
    %7190 = vmin.xlane.f32.xlu0 %v7189
    %v7191 = vpop.xlane.xlu0 %7190
    %v7192 = vsel %vm444, %v7170, inf
    %7193 = vmin.xlane.f32.xlu0 %v7192
    %v7194 = vpop.xlane.xlu0 %7193
    %vm7195 = vcmp.le.f32.partialorder %v7163, %v7173
    %vm7196 = vcmp.le.f32.partialorder %v7164, %v7176
    %vm7197 = vcmp.le.f32.partialorder %v7165, %v7179
    %vm7198 = vcmp.le.f32.partialorder %v7166, %v7182
    %vm7199 = vcmp.le.f32.partialorder %v7167, %v7185
    %vm7200 = vcmp.le.f32.partialorder %v7168, %v7188
    %vm7201 = vcmp.le.f32.partialorder %v7169, %v7191
    %vm7202 = vcmp.le.f32.partialorder %v7170, %v7194
    %v7203 = vsel %vm7195, %v443, 64
    %v7204 = vsel %vm7196, %v443, 64
    %v7205 = vsel %vm7197, %v443, 64
    %v7206 = vsel %vm7198, %v443, 64
    %v7207 = vsel %vm7199, %v443, 64
    %v7208 = vsel %vm7200, %v443, 64
    %v7209 = vsel %vm7201, %v443, 64
    %v7210 = vsel %vm7202, %v443, 64
    %v7211 = vsel %vm444, %v7203, 2147483647
    %v7212 = vand.u32 %v7211, 65535
    %v7213 = vshra.s32 %v7211, 16
    %v7214 = vcvt.s32.f32 %v7212
    %v7215 = vcvt.s32.f32 %v7213
    %7216 = vmin.xlane.f32.xlu0 %v7215
    %v7217 = vpop.xlane.xlu0 %7216
    %vm7218 = vcmp.eq.f32.partialorder %v7215, %v7217
    %v7219 = vsel %vm7218, %v7214, inf
    %7220 = vmin.xlane.f32.xlu0 %v7219
    %v7221 = vpop.xlane.xlu0 %7220
    %v7222 = vcvt.f32.s32 %v7221
    %v7223 = vcvt.f32.s32 %v7217
    %v7224 = vshll.u32 %v7223, 16
    %v7225 = vadd.s32 %v7224, %v7222
    %v7226 = vsel %vm444, %v7204, 2147483647
    %v7227 = vand.u32 %v7226, 65535
    %v7228 = vshra.s32 %v7226, 16
    %v7229 = vcvt.s32.f32 %v7227
    %v7230 = vcvt.s32.f32 %v7228
    %7231 = vmin.xlane.f32.xlu0 %v7230
    %v7232 = vpop.xlane.xlu0 %7231
    %vm7233 = vcmp.eq.f32.partialorder %v7230, %v7232
    %v7234 = vsel %vm7233, %v7229, inf
    %7235 = vmin.xlane.f32.xlu0 %v7234
    %v7236 = vpop.xlane.xlu0 %7235
    %v7237 = vcvt.f32.s32 %v7236
    %v7238 = vcvt.f32.s32 %v7232
    %v7239 = vshll.u32 %v7238, 16
    %v7240 = vadd.s32 %v7239, %v7237
    %v7241 = vsel %vm444, %v7205, 2147483647
    %v7242 = vand.u32 %v7241, 65535
    %v7243 = vshra.s32 %v7241, 16
    %v7244 = vcvt.s32.f32 %v7242
    %v7245 = vcvt.s32.f32 %v7243
    %7246 = vmin.xlane.f32.xlu0 %v7245
    %v7247 = vpop.xlane.xlu0 %7246
    %vm7248 = vcmp.eq.f32.partialorder %v7245, %v7247
    %v7249 = vsel %vm7248, %v7244, inf
    %7250 = vmin.xlane.f32.xlu0 %v7249
    %v7251 = vpop.xlane.xlu0 %7250
    %v7252 = vcvt.f32.s32 %v7251
    %v7253 = vcvt.f32.s32 %v7247
    %v7254 = vshll.u32 %v7253, 16
    %v7255 = vadd.s32 %v7254, %v7252
    %v7256 = vsel %vm444, %v7206, 2147483647
    %v7257 = vand.u32 %v7256, 65535
    %v7258 = vshra.s32 %v7256, 16
    %v7259 = vcvt.s32.f32 %v7257
    %v7260 = vcvt.s32.f32 %v7258
    %7261 = vmin.xlane.f32.xlu0 %v7260
    %v7262 = vpop.xlane.xlu0 %7261
    %vm7263 = vcmp.eq.f32.partialorder %v7260, %v7262
    %v7264 = vsel %vm7263, %v7259, inf
    %7265 = vmin.xlane.f32.xlu0 %v7264
    %v7266 = vpop.xlane.xlu0 %7265
    %v7267 = vcvt.f32.s32 %v7266
    %v7268 = vcvt.f32.s32 %v7262
    %v7269 = vshll.u32 %v7268, 16
    %v7270 = vadd.s32 %v7269, %v7267
    %v7271 = vsel %vm444, %v7207, 2147483647
    %v7272 = vand.u32 %v7271, 65535
    %v7273 = vshra.s32 %v7271, 16
    %v7274 = vcvt.s32.f32 %v7272
    %v7275 = vcvt.s32.f32 %v7273
    %7276 = vmin.xlane.f32.xlu0 %v7275
    %v7277 = vpop.xlane.xlu0 %7276
    %vm7278 = vcmp.eq.f32.partialorder %v7275, %v7277
    %v7279 = vsel %vm7278, %v7274, inf
    %7280 = vmin.xlane.f32.xlu0 %v7279
    %v7281 = vpop.xlane.xlu0 %7280
    %v7282 = vcvt.f32.s32 %v7281
    %v7283 = vcvt.f32.s32 %v7277
    %v7284 = vshll.u32 %v7283, 16
    %v7285 = vadd.s32 %v7284, %v7282
    %v7286 = vsel %vm444, %v7208, 2147483647
    %v7287 = vand.u32 %v7286, 65535
    %v7288 = vshra.s32 %v7286, 16
    %v7289 = vcvt.s32.f32 %v7287
    %v7290 = vcvt.s32.f32 %v7288
    %7291 = vmin.xlane.f32.xlu0 %v7290
    %v7292 = vpop.xlane.xlu0 %7291
    %vm7293 = vcmp.eq.f32.partialorder %v7290, %v7292
    %v7294 = vsel %vm7293, %v7289, inf
    %7295 = vmin.xlane.f32.xlu0 %v7294
    %v7296 = vpop.xlane.xlu0 %7295
    %v7297 = vcvt.f32.s32 %v7296
    %v7298 = vcvt.f32.s32 %v7292
    %v7299 = vshll.u32 %v7298, 16
    %v7300 = vadd.s32 %v7299, %v7297
    %v7301 = vsel %vm444, %v7209, 2147483647
    %v7302 = vand.u32 %v7301, 65535
    %v7303 = vshra.s32 %v7301, 16
    %v7304 = vcvt.s32.f32 %v7302
    %v7305 = vcvt.s32.f32 %v7303
    %7306 = vmin.xlane.f32.xlu0 %v7305
    %v7307 = vpop.xlane.xlu0 %7306
    %vm7308 = vcmp.eq.f32.partialorder %v7305, %v7307
    %v7309 = vsel %vm7308, %v7304, inf
    %7310 = vmin.xlane.f32.xlu0 %v7309
    %v7311 = vpop.xlane.xlu0 %7310
    %v7312 = vcvt.f32.s32 %v7311
    %v7313 = vcvt.f32.s32 %v7307
    %v7314 = vshll.u32 %v7313, 16
    %v7315 = vadd.s32 %v7314, %v7312
    %v7316 = vsel %vm444, %v7210, 2147483647
    %v7317 = vand.u32 %v7316, 65535
    %v7318 = vshra.s32 %v7316, 16
    %v7319 = vcvt.s32.f32 %v7317
    %v7320 = vcvt.s32.f32 %v7318
    %7321 = vmin.xlane.f32.xlu0 %v7320
    %v7322 = vpop.xlane.xlu0 %7321
    %vm7323 = vcmp.eq.f32.partialorder %v7320, %v7322
    %v7324 = vsel %vm7323, %v7319, inf
    %7325 = vmin.xlane.f32.xlu0 %v7324
    %v7326 = vpop.xlane.xlu0 %7325
    %v7327 = vcvt.f32.s32 %v7326
    %v7328 = vcvt.f32.s32 %v7322
    %v7329 = vshll.u32 %v7328, 16
    %v7330 = vadd.s32 %v7329, %v7327
    %vm7331 = vcmp.eq.s32.totalorder %v443, %v7225
    %vm7332 = vcmp.eq.s32.totalorder %v443, %v7240
    %vm7333 = vcmp.eq.s32.totalorder %v443, %v7255
    %vm7334 = vcmp.eq.s32.totalorder %v443, %v7270
    %vm7335 = vcmp.eq.s32.totalorder %v443, %v7285
    %vm7336 = vcmp.eq.s32.totalorder %v443, %v7300
    %vm7337 = vcmp.eq.s32.totalorder %v443, %v7315
    %vm7338 = vcmp.eq.s32.totalorder %v443, %v7330
    %v7339 = vsel %vm7331, 1.0, 0.0
    %v7340 = vsel %vm7332, 1.0, 0.0
    %v7341 = vsel %vm7333, 1.0, 0.0
    %v7342 = vsel %vm7334, 1.0, 0.0
    %v7343 = vsel %vm7335, 1.0, 0.0
    %v7344 = vsel %vm7336, 1.0, 0.0
    %v7345 = vsel %vm7337, 1.0, 0.0
    %v7346 = vsel %vm7338, 1.0, 0.0
    %v7347 = vsel %vm7331, 1e+30, %v7163
    %v7348 = vsel %vm7332, 1e+30, %v7164
    %v7349 = vsel %vm7333, 1e+30, %v7165
    %v7350 = vsel %vm7334, 1e+30, %v7166
    %v7351 = vsel %vm7335, 1e+30, %v7167
    %v7352 = vsel %vm7336, 1e+30, %v7168
    %v7353 = vsel %vm7337, 1e+30, %v7169
    %v7354 = vsel %vm7338, 1e+30, %v7170
    %v7355 = vsel %vm444, %v7347, inf
    %7356 = vmin.xlane.f32.xlu0 %v7355
    %v7357 = vpop.xlane.xlu0 %7356
    %v7358 = vsel %vm444, %v7348, inf
    %7359 = vmin.xlane.f32.xlu0 %v7358
    %v7360 = vpop.xlane.xlu0 %7359
    %v7361 = vsel %vm444, %v7349, inf
    %7362 = vmin.xlane.f32.xlu0 %v7361
    %v7363 = vpop.xlane.xlu0 %7362
    %v7364 = vsel %vm444, %v7350, inf
    %7365 = vmin.xlane.f32.xlu0 %v7364
    %v7366 = vpop.xlane.xlu0 %7365
    %v7367 = vsel %vm444, %v7351, inf
    %7368 = vmin.xlane.f32.xlu0 %v7367
    %v7369 = vpop.xlane.xlu0 %7368
    %v7370 = vsel %vm444, %v7352, inf
    %7371 = vmin.xlane.f32.xlu0 %v7370
    %v7372 = vpop.xlane.xlu0 %7371
    %v7373 = vsel %vm444, %v7353, inf
    %7374 = vmin.xlane.f32.xlu0 %v7373
    %v7375 = vpop.xlane.xlu0 %7374
    %v7376 = vsel %vm444, %v7354, inf
    %7377 = vmin.xlane.f32.xlu0 %v7376
    %v7378 = vpop.xlane.xlu0 %7377
    %vm7379 = vcmp.le.f32.partialorder %v7347, %v7357
    %vm7380 = vcmp.le.f32.partialorder %v7348, %v7360
    %vm7381 = vcmp.le.f32.partialorder %v7349, %v7363
    %vm7382 = vcmp.le.f32.partialorder %v7350, %v7366
    %vm7383 = vcmp.le.f32.partialorder %v7351, %v7369
    %vm7384 = vcmp.le.f32.partialorder %v7352, %v7372
    %vm7385 = vcmp.le.f32.partialorder %v7353, %v7375
    %vm7386 = vcmp.le.f32.partialorder %v7354, %v7378
    %v7387 = vsel %vm7379, %v443, 64
    %v7388 = vsel %vm7380, %v443, 64
    %v7389 = vsel %vm7381, %v443, 64
    %v7390 = vsel %vm7382, %v443, 64
    %v7391 = vsel %vm7383, %v443, 64
    %v7392 = vsel %vm7384, %v443, 64
    %v7393 = vsel %vm7385, %v443, 64
    %v7394 = vsel %vm7386, %v443, 64
    %v7395 = vsel %vm444, %v7387, 2147483647
    %v7396 = vand.u32 %v7395, 65535
    %v7397 = vshra.s32 %v7395, 16
    %v7398 = vcvt.s32.f32 %v7396
    %v7399 = vcvt.s32.f32 %v7397
    %7400 = vmin.xlane.f32.xlu0 %v7399
    %v7401 = vpop.xlane.xlu0 %7400
    %vm7402 = vcmp.eq.f32.partialorder %v7399, %v7401
    %v7403 = vsel %vm7402, %v7398, inf
    %7404 = vmin.xlane.f32.xlu0 %v7403
    %v7405 = vpop.xlane.xlu0 %7404
    %v7406 = vcvt.f32.s32 %v7405
    %v7407 = vcvt.f32.s32 %v7401
    %v7408 = vshll.u32 %v7407, 16
    %v7409 = vadd.s32 %v7408, %v7406
    %v7410 = vsel %vm444, %v7388, 2147483647
    %v7411 = vand.u32 %v7410, 65535
    %v7412 = vshra.s32 %v7410, 16
    %v7413 = vcvt.s32.f32 %v7411
    %v7414 = vcvt.s32.f32 %v7412
    %7415 = vmin.xlane.f32.xlu0 %v7414
    %v7416 = vpop.xlane.xlu0 %7415
    %vm7417 = vcmp.eq.f32.partialorder %v7414, %v7416
    %v7418 = vsel %vm7417, %v7413, inf
    %7419 = vmin.xlane.f32.xlu0 %v7418
    %v7420 = vpop.xlane.xlu0 %7419
    %v7421 = vcvt.f32.s32 %v7420
    %v7422 = vcvt.f32.s32 %v7416
    %v7423 = vshll.u32 %v7422, 16
    %v7424 = vadd.s32 %v7423, %v7421
    %v7425 = vsel %vm444, %v7389, 2147483647
    %v7426 = vand.u32 %v7425, 65535
    %v7427 = vshra.s32 %v7425, 16
    %v7428 = vcvt.s32.f32 %v7426
    %v7429 = vcvt.s32.f32 %v7427
    %7430 = vmin.xlane.f32.xlu0 %v7429
    %v7431 = vpop.xlane.xlu0 %7430
    %vm7432 = vcmp.eq.f32.partialorder %v7429, %v7431
    %v7433 = vsel %vm7432, %v7428, inf
    %7434 = vmin.xlane.f32.xlu0 %v7433
    %v7435 = vpop.xlane.xlu0 %7434
    %v7436 = vcvt.f32.s32 %v7435
    %v7437 = vcvt.f32.s32 %v7431
    %v7438 = vshll.u32 %v7437, 16
    %v7439 = vadd.s32 %v7438, %v7436
    %v7440 = vsel %vm444, %v7390, 2147483647
    %v7441 = vand.u32 %v7440, 65535
    %v7442 = vshra.s32 %v7440, 16
    %v7443 = vcvt.s32.f32 %v7441
    %v7444 = vcvt.s32.f32 %v7442
    %7445 = vmin.xlane.f32.xlu0 %v7444
    %v7446 = vpop.xlane.xlu0 %7445
    %vm7447 = vcmp.eq.f32.partialorder %v7444, %v7446
    %v7448 = vsel %vm7447, %v7443, inf
    %7449 = vmin.xlane.f32.xlu0 %v7448
    %v7450 = vpop.xlane.xlu0 %7449
    %v7451 = vcvt.f32.s32 %v7450
    %v7452 = vcvt.f32.s32 %v7446
    %v7453 = vshll.u32 %v7452, 16
    %v7454 = vadd.s32 %v7453, %v7451
    %v7455 = vsel %vm444, %v7391, 2147483647
    %v7456 = vand.u32 %v7455, 65535
    %v7457 = vshra.s32 %v7455, 16
    %v7458 = vcvt.s32.f32 %v7456
    %v7459 = vcvt.s32.f32 %v7457
    %7460 = vmin.xlane.f32.xlu0 %v7459
    %v7461 = vpop.xlane.xlu0 %7460
    %vm7462 = vcmp.eq.f32.partialorder %v7459, %v7461
    %v7463 = vsel %vm7462, %v7458, inf
    %7464 = vmin.xlane.f32.xlu0 %v7463
    %v7465 = vpop.xlane.xlu0 %7464
    %v7466 = vcvt.f32.s32 %v7465
    %v7467 = vcvt.f32.s32 %v7461
    %v7468 = vshll.u32 %v7467, 16
    %v7469 = vadd.s32 %v7468, %v7466
    %v7470 = vsel %vm444, %v7392, 2147483647
    %v7471 = vand.u32 %v7470, 65535
    %v7472 = vshra.s32 %v7470, 16
    %v7473 = vcvt.s32.f32 %v7471
    %v7474 = vcvt.s32.f32 %v7472
    %7475 = vmin.xlane.f32.xlu0 %v7474
    %v7476 = vpop.xlane.xlu0 %7475
    %vm7477 = vcmp.eq.f32.partialorder %v7474, %v7476
    %v7478 = vsel %vm7477, %v7473, inf
    %7479 = vmin.xlane.f32.xlu0 %v7478
    %v7480 = vpop.xlane.xlu0 %7479
    %v7481 = vcvt.f32.s32 %v7480
    %v7482 = vcvt.f32.s32 %v7476
    %v7483 = vshll.u32 %v7482, 16
    %v7484 = vadd.s32 %v7483, %v7481
    %v7485 = vsel %vm444, %v7393, 2147483647
    %v7486 = vand.u32 %v7485, 65535
    %v7487 = vshra.s32 %v7485, 16
    %v7488 = vcvt.s32.f32 %v7486
    %v7489 = vcvt.s32.f32 %v7487
    %7490 = vmin.xlane.f32.xlu0 %v7489
    %v7491 = vpop.xlane.xlu0 %7490
    %vm7492 = vcmp.eq.f32.partialorder %v7489, %v7491
    %v7493 = vsel %vm7492, %v7488, inf
    %7494 = vmin.xlane.f32.xlu0 %v7493
    %v7495 = vpop.xlane.xlu0 %7494
    %v7496 = vcvt.f32.s32 %v7495
    %v7497 = vcvt.f32.s32 %v7491
    %v7498 = vshll.u32 %v7497, 16
    %v7499 = vadd.s32 %v7498, %v7496
    %v7500 = vsel %vm444, %v7394, 2147483647
    %v7501 = vand.u32 %v7500, 65535
    %v7502 = vshra.s32 %v7500, 16
    %v7503 = vcvt.s32.f32 %v7501
    %v7504 = vcvt.s32.f32 %v7502
    %7505 = vmin.xlane.f32.xlu0 %v7504
    %v7506 = vpop.xlane.xlu0 %7505
    %vm7507 = vcmp.eq.f32.partialorder %v7504, %v7506
    %v7508 = vsel %vm7507, %v7503, inf
    %7509 = vmin.xlane.f32.xlu0 %v7508
    %v7510 = vpop.xlane.xlu0 %7509
    %v7511 = vcvt.f32.s32 %v7510
    %v7512 = vcvt.f32.s32 %v7506
    %v7513 = vshll.u32 %v7512, 16
    %v7514 = vadd.s32 %v7513, %v7511
    %vm7515 = vcmp.eq.s32.totalorder %v443, %v7409
    %vm7516 = vcmp.eq.s32.totalorder %v443, %v7424
    %vm7517 = vcmp.eq.s32.totalorder %v443, %v7439
    %vm7518 = vcmp.eq.s32.totalorder %v443, %v7454
    %vm7519 = vcmp.eq.s32.totalorder %v443, %v7469
    %vm7520 = vcmp.eq.s32.totalorder %v443, %v7484
    %vm7521 = vcmp.eq.s32.totalorder %v443, %v7499
    %vm7522 = vcmp.eq.s32.totalorder %v443, %v7514
    %v7523 = vsel %vm7515, 1.0, 0.0
    %v7524 = vsel %vm7516, 1.0, 0.0
    %v7525 = vsel %vm7517, 1.0, 0.0
    %v7526 = vsel %vm7518, 1.0, 0.0
    %v7527 = vsel %vm7519, 1.0, 0.0
    %v7528 = vsel %vm7520, 1.0, 0.0
    %v7529 = vsel %vm7521, 1.0, 0.0
    %v7530 = vsel %vm7522, 1.0, 0.0
    %v7531 = vsel %vm7515, 1e+30, %v7347
    %v7532 = vsel %vm7516, 1e+30, %v7348
    %v7533 = vsel %vm7517, 1e+30, %v7349
    %v7534 = vsel %vm7518, 1e+30, %v7350
    %v7535 = vsel %vm7519, 1e+30, %v7351
    %v7536 = vsel %vm7520, 1e+30, %v7352
    %v7537 = vsel %vm7521, 1e+30, %v7353
    %v7538 = vsel %vm7522, 1e+30, %v7354
    %v7539 = vsel %vm444, %v7531, inf
    %7540 = vmin.xlane.f32.xlu0 %v7539
    %v7541 = vpop.xlane.xlu0 %7540
    %v7542 = vsel %vm444, %v7532, inf
    %7543 = vmin.xlane.f32.xlu0 %v7542
    %v7544 = vpop.xlane.xlu0 %7543
    %v7545 = vsel %vm444, %v7533, inf
    %7546 = vmin.xlane.f32.xlu0 %v7545
    %v7547 = vpop.xlane.xlu0 %7546
    %v7548 = vsel %vm444, %v7534, inf
    %7549 = vmin.xlane.f32.xlu0 %v7548
    %v7550 = vpop.xlane.xlu0 %7549
    %v7551 = vsel %vm444, %v7535, inf
    %7552 = vmin.xlane.f32.xlu0 %v7551
    %v7553 = vpop.xlane.xlu0 %7552
    %v7554 = vsel %vm444, %v7536, inf
    %7555 = vmin.xlane.f32.xlu0 %v7554
    %v7556 = vpop.xlane.xlu0 %7555
    %v7557 = vsel %vm444, %v7537, inf
    %7558 = vmin.xlane.f32.xlu0 %v7557
    %v7559 = vpop.xlane.xlu0 %7558
    %v7560 = vsel %vm444, %v7538, inf
    %7561 = vmin.xlane.f32.xlu0 %v7560
    %v7562 = vpop.xlane.xlu0 %7561
    %vm7563 = vcmp.le.f32.partialorder %v7531, %v7541
    %vm7564 = vcmp.le.f32.partialorder %v7532, %v7544
    %vm7565 = vcmp.le.f32.partialorder %v7533, %v7547
    %vm7566 = vcmp.le.f32.partialorder %v7534, %v7550
    %vm7567 = vcmp.le.f32.partialorder %v7535, %v7553
    %vm7568 = vcmp.le.f32.partialorder %v7536, %v7556
    %vm7569 = vcmp.le.f32.partialorder %v7537, %v7559
    %vm7570 = vcmp.le.f32.partialorder %v7538, %v7562
    %v7571 = vsel %vm7563, %v443, 64
    %v7572 = vsel %vm7564, %v443, 64
    %v7573 = vsel %vm7565, %v443, 64
    %v7574 = vsel %vm7566, %v443, 64
    %v7575 = vsel %vm7567, %v443, 64
    %v7576 = vsel %vm7568, %v443, 64
    %v7577 = vsel %vm7569, %v443, 64
    %v7578 = vsel %vm7570, %v443, 64
    %v7579 = vsel %vm444, %v7571, 2147483647
    %v7580 = vand.u32 %v7579, 65535
    %v7581 = vshra.s32 %v7579, 16
    %v7582 = vcvt.s32.f32 %v7580
    %v7583 = vcvt.s32.f32 %v7581
    %7584 = vmin.xlane.f32.xlu0 %v7583
    %v7585 = vpop.xlane.xlu0 %7584
    %vm7586 = vcmp.eq.f32.partialorder %v7583, %v7585
    %v7587 = vsel %vm7586, %v7582, inf
    %7588 = vmin.xlane.f32.xlu0 %v7587
    %v7589 = vpop.xlane.xlu0 %7588
    %v7590 = vcvt.f32.s32 %v7589
    %v7591 = vcvt.f32.s32 %v7585
    %v7592 = vshll.u32 %v7591, 16
    %v7593 = vadd.s32 %v7592, %v7590
    %v7594 = vsel %vm444, %v7572, 2147483647
    %v7595 = vand.u32 %v7594, 65535
    %v7596 = vshra.s32 %v7594, 16
    %v7597 = vcvt.s32.f32 %v7595
    %v7598 = vcvt.s32.f32 %v7596
    %7599 = vmin.xlane.f32.xlu0 %v7598
    %v7600 = vpop.xlane.xlu0 %7599
    %vm7601 = vcmp.eq.f32.partialorder %v7598, %v7600
    %v7602 = vsel %vm7601, %v7597, inf
    %7603 = vmin.xlane.f32.xlu0 %v7602
    %v7604 = vpop.xlane.xlu0 %7603
    %v7605 = vcvt.f32.s32 %v7604
    %v7606 = vcvt.f32.s32 %v7600
    %v7607 = vshll.u32 %v7606, 16
    %v7608 = vadd.s32 %v7607, %v7605
    %v7609 = vsel %vm444, %v7573, 2147483647
    %v7610 = vand.u32 %v7609, 65535
    %v7611 = vshra.s32 %v7609, 16
    %v7612 = vcvt.s32.f32 %v7610
    %v7613 = vcvt.s32.f32 %v7611
    %7614 = vmin.xlane.f32.xlu0 %v7613
    %v7615 = vpop.xlane.xlu0 %7614
    %vm7616 = vcmp.eq.f32.partialorder %v7613, %v7615
    %v7617 = vsel %vm7616, %v7612, inf
    %7618 = vmin.xlane.f32.xlu0 %v7617
    %v7619 = vpop.xlane.xlu0 %7618
    %v7620 = vcvt.f32.s32 %v7619
    %v7621 = vcvt.f32.s32 %v7615
    %v7622 = vshll.u32 %v7621, 16
    %v7623 = vadd.s32 %v7622, %v7620
    %v7624 = vsel %vm444, %v7574, 2147483647
    %v7625 = vand.u32 %v7624, 65535
    %v7626 = vshra.s32 %v7624, 16
    %v7627 = vcvt.s32.f32 %v7625
    %v7628 = vcvt.s32.f32 %v7626
    %7629 = vmin.xlane.f32.xlu0 %v7628
    %v7630 = vpop.xlane.xlu0 %7629
    %vm7631 = vcmp.eq.f32.partialorder %v7628, %v7630
    %v7632 = vsel %vm7631, %v7627, inf
    %7633 = vmin.xlane.f32.xlu0 %v7632
    %v7634 = vpop.xlane.xlu0 %7633
    %v7635 = vcvt.f32.s32 %v7634
    %v7636 = vcvt.f32.s32 %v7630
    %v7637 = vshll.u32 %v7636, 16
    %v7638 = vadd.s32 %v7637, %v7635
    %v7639 = vsel %vm444, %v7575, 2147483647
    %v7640 = vand.u32 %v7639, 65535
    %v7641 = vshra.s32 %v7639, 16
    %v7642 = vcvt.s32.f32 %v7640
    %v7643 = vcvt.s32.f32 %v7641
    %7644 = vmin.xlane.f32.xlu0 %v7643
    %v7645 = vpop.xlane.xlu0 %7644
    %vm7646 = vcmp.eq.f32.partialorder %v7643, %v7645
    %v7647 = vsel %vm7646, %v7642, inf
    %7648 = vmin.xlane.f32.xlu0 %v7647
    %v7649 = vpop.xlane.xlu0 %7648
    %v7650 = vcvt.f32.s32 %v7649
    %v7651 = vcvt.f32.s32 %v7645
    %v7652 = vshll.u32 %v7651, 16
    %v7653 = vadd.s32 %v7652, %v7650
    %v7654 = vsel %vm444, %v7576, 2147483647
    %v7655 = vand.u32 %v7654, 65535
    %v7656 = vshra.s32 %v7654, 16
    %v7657 = vcvt.s32.f32 %v7655
    %v7658 = vcvt.s32.f32 %v7656
    %7659 = vmin.xlane.f32.xlu0 %v7658
    %v7660 = vpop.xlane.xlu0 %7659
    %vm7661 = vcmp.eq.f32.partialorder %v7658, %v7660
    %v7662 = vsel %vm7661, %v7657, inf
    %7663 = vmin.xlane.f32.xlu0 %v7662
    %v7664 = vpop.xlane.xlu0 %7663
    %v7665 = vcvt.f32.s32 %v7664
    %v7666 = vcvt.f32.s32 %v7660
    %v7667 = vshll.u32 %v7666, 16
    %v7668 = vadd.s32 %v7667, %v7665
    %v7669 = vsel %vm444, %v7577, 2147483647
    %v7670 = vand.u32 %v7669, 65535
    %v7671 = vshra.s32 %v7669, 16
    %v7672 = vcvt.s32.f32 %v7670
    %v7673 = vcvt.s32.f32 %v7671
    %7674 = vmin.xlane.f32.xlu0 %v7673
    %v7675 = vpop.xlane.xlu0 %7674
    %vm7676 = vcmp.eq.f32.partialorder %v7673, %v7675
    %v7677 = vsel %vm7676, %v7672, inf
    %7678 = vmin.xlane.f32.xlu0 %v7677
    %v7679 = vpop.xlane.xlu0 %7678
    %v7680 = vcvt.f32.s32 %v7679
    %v7681 = vcvt.f32.s32 %v7675
    %v7682 = vshll.u32 %v7681, 16
    %v7683 = vadd.s32 %v7682, %v7680
    %v7684 = vsel %vm444, %v7578, 2147483647
    %v7685 = vand.u32 %v7684, 65535
    %v7686 = vshra.s32 %v7684, 16
    %v7687 = vcvt.s32.f32 %v7685
    %v7688 = vcvt.s32.f32 %v7686
    %7689 = vmin.xlane.f32.xlu0 %v7688
    %v7690 = vpop.xlane.xlu0 %7689
    %vm7691 = vcmp.eq.f32.partialorder %v7688, %v7690
    %v7692 = vsel %vm7691, %v7687, inf
    %7693 = vmin.xlane.f32.xlu0 %v7692
    %v7694 = vpop.xlane.xlu0 %7693
    %v7695 = vcvt.f32.s32 %v7694
    %v7696 = vcvt.f32.s32 %v7690
    %v7697 = vshll.u32 %v7696, 16
    %v7698 = vadd.s32 %v7697, %v7695
    %vm7699 = vcmp.eq.s32.totalorder %v443, %v7593
    %vm7700 = vcmp.eq.s32.totalorder %v443, %v7608
    %vm7701 = vcmp.eq.s32.totalorder %v443, %v7623
    %vm7702 = vcmp.eq.s32.totalorder %v443, %v7638
    %vm7703 = vcmp.eq.s32.totalorder %v443, %v7653
    %vm7704 = vcmp.eq.s32.totalorder %v443, %v7668
    %vm7705 = vcmp.eq.s32.totalorder %v443, %v7683
    %vm7706 = vcmp.eq.s32.totalorder %v443, %v7698
    %v7707 = vsel %vm7699, 1.0, 0.0
    %v7708 = vsel %vm7700, 1.0, 0.0
    %v7709 = vsel %vm7701, 1.0, 0.0
    %v7710 = vsel %vm7702, 1.0, 0.0
    %v7711 = vsel %vm7703, 1.0, 0.0
    %v7712 = vsel %vm7704, 1.0, 0.0
    %v7713 = vsel %vm7705, 1.0, 0.0
    %v7714 = vsel %vm7706, 1.0, 0.0
    %v7715 = vpack.c.bf16 %v7156, %v7155
    %v7716 = vpack.c.bf16 %v7158, %v7157
    %v7717 = vpack.c.bf16 %v7160, %v7159
    %v7718 = vpack.c.bf16 %v7162, %v7161
    %v7719 = vpack.c.bf16 %v7340, %v7339
    %v7720 = vpack.c.bf16 %v7342, %v7341
    %v7721 = vpack.c.bf16 %v7344, %v7343
    %v7722 = vpack.c.bf16 %v7346, %v7345
    %v7723 = vpack.c.bf16 %v7524, %v7523
    %v7724 = vpack.c.bf16 %v7526, %v7525
    %v7725 = vpack.c.bf16 %v7528, %v7527
    %v7726 = vpack.c.bf16 %v7530, %v7529
    %v7727 = vpack.c.bf16 %v7708, %v7707
    %v7728 = vpack.c.bf16 %v7710, %v7709
    %v7729 = vpack.c.bf16 %v7712, %v7711
    %v7730 = vpack.c.bf16 %v7714, %v7713
    %v7732 = vsel %vm444, %v7715, 0
    %v7735 = vsel %vm444, %v7716, 0
    %v7738 = vsel %vm444, %v7717, 0
    %v7741 = vsel %vm444, %v7718, 0
    %v7744 = vsel %vm444, %v7719, 0
    %v7747 = vsel %vm444, %v7720, 0
    %v7750 = vsel %vm444, %v7721, 0
    %v7753 = vsel %vm444, %v7722, 0
    %v7756 = vsel %vm444, %v7723, 0
    %v7759 = vsel %vm444, %v7724, 0
    %v7762 = vsel %vm444, %v7725, 0
    %v7765 = vsel %vm444, %v7726, 0
    %v7768 = vsel %vm444, %v7727, 0
    %v7771 = vsel %vm444, %v7728, 0
    %v7774 = vsel %vm444, %v7729, 0
    %v7777 = vsel %vm444, %v7730, 0
    %7779 = vmatprep.subr.bf16.mxu0 0
    %7780 = vmatpush1.bf16.msra.mxu0 0
    %7781 = vmatprep.subr.bf16.mxu0 0
    %7782 = vmatpush1.bf16.msra.mxu0 0
    %7783 = vmatprep.subr.bf16.mxu0 0
    %7784 = vmatpush1.bf16.msra.mxu0 0
    %7785 = vmatprep.subr.bf16.mxu0 0
    %7786 = vmatpush1.bf16.msra.mxu0 0
    %7787 = vmatprep.subr.bf16.mxu0 0
    %7788 = vmatpush1.bf16.msra.mxu0 %v5583
    %7789 = vmatprep.subr.bf16.mxu0 0
    %7790 = vmatpush1.bf16.msra.mxu0 %v5582
    %7791 = vmatprep.subr.bf16.mxu0 0
    %7792 = vmatpush1.bf16.msra.mxu0 %v5581
    %7793 = vmatprep.subr.bf16.mxu0 0
    %7794 = vmatpush1.bf16.msra.mxu0 %v5580
    %7795 = vmatprep.subr.bf16.mxu0 0
    %7796 = vmatpush2.bf16.msra.mxu0 0
    %7797 = vmatprep.subr.bf16.mxu0 0
    %7798 = vmatpush2.bf16.msra.mxu0 0
    %7799 = vmatprep.subr.bf16.mxu0 0
    %7800 = vmatpush2.bf16.msra.mxu0 0
    %7801 = vmatprep.subr.bf16.mxu0 0
    %7802 = vmatpush2.bf16.msra.mxu0 0
    %7803 = vmatprep.subr.bf16.mxu0 0
    %7804 = vmatpush2.bf16.msra.mxu0 0
    %7805 = vmatprep.subr.bf16.mxu0 0
    %7806 = vmatpush2.bf16.msra.mxu0 0
    %7807 = vmatprep.subr.bf16.mxu0 0
    %7808 = vmatpush2.bf16.msra.mxu0 0
    %7809 = vmatprep.subr.bf16.mxu0 0
    %7810 = vmatpush2.bf16.msra.mxu0 0
    %7811 = vmatprep.mubr.bf16.mxu0 0
    %7812 = vmatmul.mubr.bf16.gmra.mxu0 %v7732
    %v7813 = vpop.f32.mrf.mxu0
    %v7814 = vadd.f32 0.0, %v7813
    %v7815 = vpop.f32.mrf.mxu0
    %v7816 = vpop.f32.mrf.mxu0
    %v7817 = vadd.f32 0.0, %v7816
    %v7818 = vpop.f32.mrf.mxu0
    %7819 = vmatprep.mubr.bf16.mxu0 0
    %7820 = vmatmul.mubr.bf16.gmra.mxu0 %v7735
    %v7821 = vpop.f32.mrf.mxu0
    %v7822 = vadd.f32 0.0, %v7821
    %v7823 = vpop.f32.mrf.mxu0
    %v7824 = vpop.f32.mrf.mxu0
    %v7825 = vadd.f32 0.0, %v7824
    %v7826 = vpop.f32.mrf.mxu0
    %7827 = vmatprep.mubr.bf16.mxu0 0
    %7828 = vmatmul.mubr.bf16.gmra.mxu0 %v7738
    %v7829 = vpop.f32.mrf.mxu0
    %v7830 = vadd.f32 0.0, %v7829
    %v7831 = vpop.f32.mrf.mxu0
    %v7832 = vpop.f32.mrf.mxu0
    %v7833 = vadd.f32 0.0, %v7832
    %v7834 = vpop.f32.mrf.mxu0
    %7835 = vmatprep.mubr.bf16.mxu0 0
    %7836 = vmatmul.mubr.bf16.gmra.mxu0 %v7741
    %v7837 = vpop.f32.mrf.mxu0
    %v7838 = vadd.f32 0.0, %v7837
    %v7839 = vpop.f32.mrf.mxu0
    %v7840 = vpop.f32.mrf.mxu0
    %v7841 = vadd.f32 0.0, %v7840
    %v7842 = vpop.f32.mrf.mxu0
    %7843 = vmatprep.mubr.bf16.mxu0 0
    %7844 = vmatmul.mubr.bf16.gmra.mxu0 %v7744
    %v7845 = vpop.f32.mrf.mxu0
    %v7846 = vadd.f32 0.0, %v7845
    %v7847 = vpop.f32.mrf.mxu0
    %v7848 = vpop.f32.mrf.mxu0
    %v7849 = vadd.f32 0.0, %v7848
    %v7850 = vpop.f32.mrf.mxu0
    %7851 = vmatprep.mubr.bf16.mxu0 0
    %7852 = vmatmul.mubr.bf16.gmra.mxu0 %v7747
    %v7853 = vpop.f32.mrf.mxu0
    %v7854 = vadd.f32 0.0, %v7853
    %v7855 = vpop.f32.mrf.mxu0
    %v7856 = vpop.f32.mrf.mxu0
    %v7857 = vadd.f32 0.0, %v7856
    %v7858 = vpop.f32.mrf.mxu0
    %7859 = vmatprep.mubr.bf16.mxu0 0
    %7860 = vmatmul.mubr.bf16.gmra.mxu0 %v7750
    %v7861 = vpop.f32.mrf.mxu0
    %v7862 = vadd.f32 0.0, %v7861
    %v7863 = vpop.f32.mrf.mxu0
    %v7864 = vpop.f32.mrf.mxu0
    %v7865 = vadd.f32 0.0, %v7864
    %v7866 = vpop.f32.mrf.mxu0
    %7867 = vmatprep.mubr.bf16.mxu0 0
    %7868 = vmatmul.mubr.bf16.gmra.mxu0 %v7753
    %v7869 = vpop.f32.mrf.mxu0
    %v7870 = vadd.f32 0.0, %v7869
    %v7871 = vpop.f32.mrf.mxu0
    %v7872 = vpop.f32.mrf.mxu0
    %v7873 = vadd.f32 0.0, %v7872
    %v7874 = vpop.f32.mrf.mxu0
    %7875 = vmatprep.mubr.bf16.mxu0 0
    %7876 = vmatmul.mubr.bf16.gmra.mxu0 %v7756
    %v7877 = vpop.f32.mrf.mxu0
    %v7878 = vadd.f32 0.0, %v7877
    %v7879 = vpop.f32.mrf.mxu0
    %v7880 = vpop.f32.mrf.mxu0
    %v7881 = vadd.f32 0.0, %v7880
    %v7882 = vpop.f32.mrf.mxu0
    %7883 = vmatprep.mubr.bf16.mxu0 0
    %7884 = vmatmul.mubr.bf16.gmra.mxu0 %v7759
    %v7885 = vpop.f32.mrf.mxu0
    %v7886 = vadd.f32 0.0, %v7885
    %v7887 = vpop.f32.mrf.mxu0
    %v7888 = vpop.f32.mrf.mxu0
    %v7889 = vadd.f32 0.0, %v7888
    %v7890 = vpop.f32.mrf.mxu0
    %7891 = vmatprep.mubr.bf16.mxu0 0
    %7892 = vmatmul.mubr.bf16.gmra.mxu0 %v7762
    %v7893 = vpop.f32.mrf.mxu0
    %v7894 = vadd.f32 0.0, %v7893
    %v7895 = vpop.f32.mrf.mxu0
    %v7896 = vpop.f32.mrf.mxu0
    %v7897 = vadd.f32 0.0, %v7896
    %v7898 = vpop.f32.mrf.mxu0
    %7899 = vmatprep.mubr.bf16.mxu0 0
    %7900 = vmatmul.mubr.bf16.gmra.mxu0 %v7765
    %v7901 = vpop.f32.mrf.mxu0
    %v7902 = vadd.f32 0.0, %v7901
    %v7903 = vpop.f32.mrf.mxu0
    %v7904 = vpop.f32.mrf.mxu0
    %v7905 = vadd.f32 0.0, %v7904
    %v7906 = vpop.f32.mrf.mxu0
    %7907 = vmatprep.mubr.bf16.mxu0 0
    %7908 = vmatmul.mubr.bf16.gmra.mxu0 %v7768
    %v7909 = vpop.f32.mrf.mxu0
    %v7910 = vadd.f32 0.0, %v7909
    %v7911 = vpop.f32.mrf.mxu0
    %v7912 = vpop.f32.mrf.mxu0
    %v7913 = vadd.f32 0.0, %v7912
    %v7914 = vpop.f32.mrf.mxu0
    %7915 = vmatprep.mubr.bf16.mxu0 0
    %7916 = vmatmul.mubr.bf16.gmra.mxu0 %v7771
    %v7917 = vpop.f32.mrf.mxu0
    %v7918 = vadd.f32 0.0, %v7917
    %v7919 = vpop.f32.mrf.mxu0
    %v7920 = vpop.f32.mrf.mxu0
    %v7921 = vadd.f32 0.0, %v7920
    %v7922 = vpop.f32.mrf.mxu0
    %7923 = vmatprep.mubr.bf16.mxu0 0
    %7924 = vmatmul.mubr.bf16.gmra.mxu0 %v7774
    %v7925 = vpop.f32.mrf.mxu0
    %v7926 = vadd.f32 0.0, %v7925
    %v7927 = vpop.f32.mrf.mxu0
    %v7928 = vpop.f32.mrf.mxu0
    %v7929 = vadd.f32 0.0, %v7928
    %v7930 = vpop.f32.mrf.mxu0
    %7931 = vmatprep.mubr.bf16.mxu0 0
    %7932 = vmatmul.mubr.bf16.gmra.mxu0 %v7777
    %v7933 = vpop.f32.mrf.mxu0
    %v7934 = vadd.f32 0.0, %v7933
    %v7935 = vpop.f32.mrf.mxu0
    %v7936 = vpop.f32.mrf.mxu0
    %v7937 = vadd.f32 0.0, %v7936
    %v7938 = vpop.f32.mrf.mxu0
    %7939 = vdwg.mxu0
    %v7940 = vmax.f32 %v7814, %v7846
    %v7941 = vmax.f32 %v7817, %v7849
    %v7942 = vmax.f32 %v7822, %v7854
    %v7943 = vmax.f32 %v7825, %v7857
    %v7944 = vmax.f32 %v7830, %v7862
    %v7945 = vmax.f32 %v7833, %v7865
    %v7946 = vmax.f32 %v7838, %v7870
    %v7947 = vmax.f32 %v7841, %v7873
    %v7948 = vmax.f32 %v7940, %v7878
    %v7949 = vmax.f32 %v7941, %v7881
    %v7950 = vmax.f32 %v7942, %v7886
    %v7951 = vmax.f32 %v7943, %v7889
    %v7952 = vmax.f32 %v7944, %v7894
    %v7953 = vmax.f32 %v7945, %v7897
    %v7954 = vmax.f32 %v7946, %v7902
    %v7955 = vmax.f32 %v7947, %v7905
    %v7956 = vmax.f32 %v7948, %v7910
    %v7957 = vmax.f32 %v7949, %v7913
    %v7958 = vmax.f32 %v7950, %v7918
    %v7959 = vmax.f32 %v7951, %v7921
    %v7960 = vmax.f32 %v7952, %v7926
    %v7961 = vmax.f32 %v7953, %v7929
    %v7962 = vmax.f32 %v7954, %v7934
    %v7963 = vmax.f32 %v7955, %v7937
    %v7965 = vlaneseq
    %v7966 = vshrl.u32 %v7965, 7
    %v7967 = vsub.s32 0, %v7966
    %v7968 = vrot.slane %v5440, %v7967
    %v7972 = vunpack.c.l.b16 %v5436
    %v7973 = vunpack.c.l.b16 %v5437
    %v7974 = vpack.c.b16 %v7973, %v7972
    %7976 = vmatprep.subr.bf16.mxu0 0
    %7977 = vmatpush1.bf16.msra.mxu0 0
    %7978 = vmatprep.subr.bf16.mxu0 0
    %7979 = vmatpush1.bf16.msra.mxu0 0
    %7980 = vmatprep.subr.bf16.mxu0 0
    %7981 = vmatpush1.bf16.msra.mxu0 0
    %7982 = vmatprep.subr.bf16.mxu0 0
    %7983 = vmatpush1.bf16.msra.mxu0 0
    %7984 = vmatprep.subr.bf16.mxu0 0
    %7985 = vmatpush1.bf16.msra.mxu0 0
    %7986 = vmatprep.subr.bf16.mxu0 0
    %7987 = vmatpush1.bf16.msra.mxu0 0
    %7988 = vmatprep.subr.bf16.mxu0 0
    %7989 = vmatpush1.bf16.msra.mxu0 0
    %7990 = vmatprep.subr.bf16.mxu0 0
    %7991 = vmatpush1.bf16.msra.mxu0 %v7974
    %7992 = vmatprep.subr.bf16.mxu0 0
    %7993 = vmatpush2.bf16.msra.mxu0 0
    %7994 = vmatprep.subr.bf16.mxu0 0
    %7995 = vmatpush2.bf16.msra.mxu0 0
    %7996 = vmatprep.subr.bf16.mxu0 0
    %7997 = vmatpush2.bf16.msra.mxu0 0
    %7998 = vmatprep.subr.bf16.mxu0 0
    %7999 = vmatpush2.bf16.msra.mxu0 0
    %8000 = vmatprep.subr.bf16.mxu0 0
    %8001 = vmatpush2.bf16.msra.mxu0 0
    %8002 = vmatprep.subr.bf16.mxu0 0
    %8003 = vmatpush2.bf16.msra.mxu0 0
    %8004 = vmatprep.subr.bf16.mxu0 0
    %8005 = vmatpush2.bf16.msra.mxu0 0
    %8006 = vmatprep.subr.bf16.mxu0 0
    %8007 = vmatpush2.bf16.msra.mxu0 0
    %8008 = vmatprep.mubr.bf16.mxu0 0
    %8009 = vmatmul.mubr.bf16.gmra.mxu0 %v5456
    %v8010 = vpop.f32.mrf.mxu0
    %v8011 = vadd.f32 %v7968, %v8010
    %v8012 = vpop.f32.mrf.mxu0
    %v8013 = vpop.f32.mrf.mxu0
    %v8014 = vadd.f32 %v7968, %v8013
    %v8015 = vpop.f32.mrf.mxu0
    %8016 = vmatprep.mubr.bf16.mxu0 0
    %8017 = vmatmul.mubr.bf16.gmra.mxu0 %v5459
    %v8018 = vpop.f32.mrf.mxu0
    %v8019 = vadd.f32 %v7968, %v8018
    %v8020 = vpop.f32.mrf.mxu0
    %v8021 = vpop.f32.mrf.mxu0
    %v8022 = vadd.f32 %v7968, %v8021
    %v8023 = vpop.f32.mrf.mxu0
    %8024 = vmatprep.mubr.bf16.mxu0 0
    %8025 = vmatmul.mubr.bf16.gmra.mxu0 %v5462
    %v8026 = vpop.f32.mrf.mxu0
    %v8027 = vadd.f32 %v7968, %v8026
    %v8028 = vpop.f32.mrf.mxu0
    %v8029 = vpop.f32.mrf.mxu0
    %v8030 = vadd.f32 %v7968, %v8029
    %v8031 = vpop.f32.mrf.mxu0
    %8032 = vmatprep.mubr.bf16.mxu0 0
    %8033 = vmatmul.mubr.bf16.gmra.mxu0 %v5465
    %v8034 = vpop.f32.mrf.mxu0
    %v8035 = vadd.f32 %v7968, %v8034
    %v8036 = vpop.f32.mrf.mxu0
    %v8037 = vpop.f32.mrf.mxu0
    %v8038 = vadd.f32 %v7968, %v8037
    %v8039 = vpop.f32.mrf.mxu0
    %8040 = vmatprep.mubr.bf16.mxu0 0
    %8041 = vmatmul.mubr.bf16.gmra.mxu0 %v5468
    %v8042 = vpop.f32.mrf.mxu0
    %v8043 = vadd.f32 %v7968, %v8042
    %v8044 = vpop.f32.mrf.mxu0
    %v8045 = vpop.f32.mrf.mxu0
    %v8046 = vadd.f32 %v7968, %v8045
    %v8047 = vpop.f32.mrf.mxu0
    %8048 = vmatprep.mubr.bf16.mxu0 0
    %8049 = vmatmul.mubr.bf16.gmra.mxu0 %v5471
    %v8050 = vpop.f32.mrf.mxu0
    %v8051 = vadd.f32 %v7968, %v8050
    %v8052 = vpop.f32.mrf.mxu0
    %v8053 = vpop.f32.mrf.mxu0
    %v8054 = vadd.f32 %v7968, %v8053
    %v8055 = vpop.f32.mrf.mxu0
    %8056 = vmatprep.mubr.bf16.mxu0 0
    %8057 = vmatmul.mubr.bf16.gmra.mxu0 %v5474
    %v8058 = vpop.f32.mrf.mxu0
    %v8059 = vadd.f32 %v7968, %v8058
    %v8060 = vpop.f32.mrf.mxu0
    %v8061 = vpop.f32.mrf.mxu0
    %v8062 = vadd.f32 %v7968, %v8061
    %v8063 = vpop.f32.mrf.mxu0
    %8064 = vmatprep.mubr.bf16.mxu0 0
    %8065 = vmatmul.mubr.bf16.gmra.mxu0 %v5477
    %v8066 = vpop.f32.mrf.mxu0
    %v8067 = vadd.f32 %v7968, %v8066
    %v8068 = vpop.f32.mrf.mxu0
    %v8069 = vpop.f32.mrf.mxu0
    %v8070 = vadd.f32 %v7968, %v8069
    %v8071 = vpop.f32.mrf.mxu0
    %8072 = vdwg.mxu0
    %v8073 = vadd.f32 %v8011, %v6766
    %v8074 = vadd.f32 %v8014, %v6767
    %v8075 = vadd.f32 %v8019, %v6768
    %v8076 = vadd.f32 %v8022, %v6769
    %v8077 = vadd.f32 %v8027, %v6770
    %v8078 = vadd.f32 %v8030, %v6771
    %v8079 = vadd.f32 %v8035, %v6772
    %v8080 = vadd.f32 %v8038, %v6773
    %v8081 = vadd.f32 %v8043, %v7956
    %v8082 = vadd.f32 %v8046, %v7957
    %v8083 = vadd.f32 %v8051, %v7958
    %v8084 = vadd.f32 %v8054, %v7959
    %v8085 = vadd.f32 %v8059, %v7960
    %v8086 = vadd.f32 %v8062, %v7961
    %v8087 = vadd.f32 %v8067, %v7962
    %v8088 = vadd.f32 %v8070, %v7963
    %v8089 = vmax.f32 %v8073, 0.0
    %v8090 = vmax.f32 %v8074, 0.0
    %v8091 = vmax.f32 %v8075, 0.0
    %v8092 = vmax.f32 %v8076, 0.0
    %v8093 = vmax.f32 %v8077, 0.0
    %v8094 = vmax.f32 %v8078, 0.0
    %v8095 = vmax.f32 %v8079, 0.0
    %v8096 = vmax.f32 %v8080, 0.0
    %v8097 = vmax.f32 %v8081, 0.0
    %v8098 = vmax.f32 %v8082, 0.0
    %v8099 = vmax.f32 %v8083, 0.0
    %v8100 = vmax.f32 %v8084, 0.0
    %v8101 = vmax.f32 %v8085, 0.0
    %v8102 = vmax.f32 %v8086, 0.0
    %v8103 = vmax.f32 %v8087, 0.0
    %v8104 = vmax.f32 %v8088, 0.0
    %v8105 = vadd.f32 %v8089, %v5420
    %v8106 = vadd.f32 %v8090, %v5421
    %v8107 = vadd.f32 %v8091, %v5422
    %v8108 = vadd.f32 %v8092, %v5423
    %v8109 = vadd.f32 %v8093, %v5424
    %v8110 = vadd.f32 %v8094, %v5425
    %v8111 = vadd.f32 %v8095, %v5426
    %v8112 = vadd.f32 %v8096, %v5427
    %v8113 = vadd.f32 %v8097, %v5428
    %v8114 = vadd.f32 %v8098, %v5429
    %v8115 = vadd.f32 %v8099, %v5430
    %v8116 = vadd.f32 %v8100, %v5431
    %v8117 = vadd.f32 %v8101, %v5432
    %v8118 = vadd.f32 %v8102, %v5433
    %v8119 = vadd.f32 %v8103, %v5434
    %v8120 = vadd.f32 %v8104, %v5435
    %v8121 = vld [vmem:[%s10] sm:$0xf]
    %v8122 = vld [vmem:[%s10 + $0x4] sm:$0xf]
    %v8123 = vld [vmem:[%s11] sm:$0xf]
    %v8124 = vld [vmem:[%s11 + $0x4] sm:$0xf]
    %v8127 = vunpack.c.l.b16 %v8123
    %v8128 = vunpack.c.l.b16 %v8124
    %v8129 = vpack.c.b16 %v8128, %v8127
    %8131 = vmatprep.subr.bf16.mxu0 0
    %8132 = vmatpush1.bf16.msra.mxu0 0
    %8133 = vmatprep.subr.bf16.mxu0 0
    %8134 = vmatpush1.bf16.msra.mxu0 0
    %8135 = vmatprep.subr.bf16.mxu0 0
    %8136 = vmatpush1.bf16.msra.mxu0 0
    %8137 = vmatprep.subr.bf16.mxu0 0
    %8138 = vmatpush1.bf16.msra.mxu0 0
    %8139 = vmatprep.subr.bf16.mxu0 0
    %8140 = vmatpush1.bf16.msra.mxu0 0
    %8141 = vmatprep.subr.bf16.mxu0 0
    %8142 = vmatpush1.bf16.msra.mxu0 0
    %8143 = vmatprep.subr.bf16.mxu0 0
    %8144 = vmatpush1.bf16.msra.mxu0 0
    %8145 = vmatprep.subr.bf16.mxu0 0
    %8146 = vmatpush1.bf16.msra.mxu0 %v8129
    %8147 = vmatprep.subr.bf16.mxu0 0
    %8148 = vmatpush2.bf16.msra.mxu0 0
    %8149 = vmatprep.subr.bf16.mxu0 0
    %8150 = vmatpush2.bf16.msra.mxu0 0
    %8151 = vmatprep.subr.bf16.mxu0 0
    %8152 = vmatpush2.bf16.msra.mxu0 0
    %8153 = vmatprep.subr.bf16.mxu0 0
    %8154 = vmatpush2.bf16.msra.mxu0 0
    %8155 = vmatprep.subr.bf16.mxu0 0
    %8156 = vmatpush2.bf16.msra.mxu0 0
    %8157 = vmatprep.subr.bf16.mxu0 0
    %8158 = vmatpush2.bf16.msra.mxu0 0
    %8159 = vmatprep.subr.bf16.mxu0 0
    %8160 = vmatpush2.bf16.msra.mxu0 0
    %8161 = vmatprep.subr.bf16.mxu0 0
    %8162 = vmatpush2.bf16.msra.mxu0 0
    %8163 = vmatprep.mubr.bf16.mxu0 0
    %8164 = vmatmul.mubr.bf16.gmra.mxu0 %v5456
    %v8165 = vpop.f32.mrf.mxu0
    %v8166 = vadd.f32 0.0, %v8165
    %v8167 = vpop.f32.mrf.mxu0
    %v8168 = vpop.f32.mrf.mxu0
    %v8169 = vadd.f32 0.0, %v8168
    %v8170 = vpop.f32.mrf.mxu0
    %8171 = vmatprep.mubr.bf16.mxu0 0
    %8172 = vmatmul.mubr.bf16.gmra.mxu0 %v5459
    %v8173 = vpop.f32.mrf.mxu0
    %v8174 = vadd.f32 0.0, %v8173
    %v8175 = vpop.f32.mrf.mxu0
    %v8176 = vpop.f32.mrf.mxu0
    %v8177 = vadd.f32 0.0, %v8176
    %v8178 = vpop.f32.mrf.mxu0
    %8179 = vmatprep.mubr.bf16.mxu0 0
    %8180 = vmatmul.mubr.bf16.gmra.mxu0 %v5462
    %v8181 = vpop.f32.mrf.mxu0
    %v8182 = vadd.f32 0.0, %v8181
    %v8183 = vpop.f32.mrf.mxu0
    %v8184 = vpop.f32.mrf.mxu0
    %v8185 = vadd.f32 0.0, %v8184
    %v8186 = vpop.f32.mrf.mxu0
    %8187 = vmatprep.mubr.bf16.mxu0 0
    %8188 = vmatmul.mubr.bf16.gmra.mxu0 %v5465
    %v8189 = vpop.f32.mrf.mxu0
    %v8190 = vadd.f32 0.0, %v8189
    %v8191 = vpop.f32.mrf.mxu0
    %v8192 = vpop.f32.mrf.mxu0
    %v8193 = vadd.f32 0.0, %v8192
    %v8194 = vpop.f32.mrf.mxu0
    %8195 = vmatprep.mubr.bf16.mxu0 0
    %8196 = vmatmul.mubr.bf16.gmra.mxu0 %v5468
    %v8197 = vpop.f32.mrf.mxu0
    %v8198 = vadd.f32 0.0, %v8197
    %v8199 = vpop.f32.mrf.mxu0
    %v8200 = vpop.f32.mrf.mxu0
    %v8201 = vadd.f32 0.0, %v8200
    %v8202 = vpop.f32.mrf.mxu0
    %8203 = vmatprep.mubr.bf16.mxu0 0
    %8204 = vmatmul.mubr.bf16.gmra.mxu0 %v5471
    %v8205 = vpop.f32.mrf.mxu0
    %v8206 = vadd.f32 0.0, %v8205
    %v8207 = vpop.f32.mrf.mxu0
    %v8208 = vpop.f32.mrf.mxu0
    %v8209 = vadd.f32 0.0, %v8208
    %v8210 = vpop.f32.mrf.mxu0
    %8211 = vmatprep.mubr.bf16.mxu0 0
    %8212 = vmatmul.mubr.bf16.gmra.mxu0 %v5474
    %v8213 = vpop.f32.mrf.mxu0
    %v8214 = vadd.f32 0.0, %v8213
    %v8215 = vpop.f32.mrf.mxu0
    %v8216 = vpop.f32.mrf.mxu0
    %v8217 = vadd.f32 0.0, %v8216
    %v8218 = vpop.f32.mrf.mxu0
    %8219 = vmatprep.mubr.bf16.mxu0 0
    %8220 = vmatmul.mubr.bf16.gmra.mxu0 %v5477
    %v8221 = vpop.f32.mrf.mxu0
    %v8222 = vadd.f32 0.0, %v8221
    %v8223 = vpop.f32.mrf.mxu0
    %v8224 = vpop.f32.mrf.mxu0
    %v8225 = vadd.f32 0.0, %v8224
    %v8226 = vpop.f32.mrf.mxu0
    %8227 = vdwg.mxu0
    %v8230 = vunpack.c.l.b16 %v8121
    %v8231 = vunpack.c.l.b16 %v8122
    %v8232 = vpack.c.b16 %v8231, %v8230
    %8234 = vmatprep.subr.bf16.mxu0 0
    %8235 = vmatpush1.bf16.msra.mxu0 0
    %8236 = vmatprep.subr.bf16.mxu0 0
    %8237 = vmatpush1.bf16.msra.mxu0 0
    %8238 = vmatprep.subr.bf16.mxu0 0
    %8239 = vmatpush1.bf16.msra.mxu0 0
    %8240 = vmatprep.subr.bf16.mxu0 0
    %8241 = vmatpush1.bf16.msra.mxu0 0
    %8242 = vmatprep.subr.bf16.mxu0 0
    %8243 = vmatpush1.bf16.msra.mxu0 0
    %8244 = vmatprep.subr.bf16.mxu0 0
    %8245 = vmatpush1.bf16.msra.mxu0 0
    %8246 = vmatprep.subr.bf16.mxu0 0
    %8247 = vmatpush1.bf16.msra.mxu0 0
    %8248 = vmatprep.subr.bf16.mxu0 0
    %8249 = vmatpush1.bf16.msra.mxu0 %v8232
    %8250 = vmatprep.subr.bf16.mxu0 0
    %8251 = vmatpush2.bf16.msra.mxu0 0
    %8252 = vmatprep.subr.bf16.mxu0 0
    %8253 = vmatpush2.bf16.msra.mxu0 0
    %8254 = vmatprep.subr.bf16.mxu0 0
    %8255 = vmatpush2.bf16.msra.mxu0 0
    %8256 = vmatprep.subr.bf16.mxu0 0
    %8257 = vmatpush2.bf16.msra.mxu0 0
    %8258 = vmatprep.subr.bf16.mxu0 0
    %8259 = vmatpush2.bf16.msra.mxu0 0
    %8260 = vmatprep.subr.bf16.mxu0 0
    %8261 = vmatpush2.bf16.msra.mxu0 0
    %8262 = vmatprep.subr.bf16.mxu0 0
    %8263 = vmatpush2.bf16.msra.mxu0 0
    %8264 = vmatprep.subr.bf16.mxu0 0
    %8265 = vmatpush2.bf16.msra.mxu0 0
    %8266 = vmatprep.mubr.bf16.mxu0 0
    %8267 = vmatmul.mubr.bf16.gmra.mxu0 %v2771
    %v8268 = vpop.f32.mrf.mxu0
    %v8269 = vadd.f32 %v8166, %v8268
    %v8270 = vpop.f32.mrf.mxu0
    %v8271 = vpop.f32.mrf.mxu0
    %v8272 = vadd.f32 %v8169, %v8271
    %v8273 = vpop.f32.mrf.mxu0
    %8274 = vmatprep.mubr.bf16.mxu0 0
    %8275 = vmatmul.mubr.bf16.gmra.mxu0 %v2774
    %v8276 = vpop.f32.mrf.mxu0
    %v8277 = vadd.f32 %v8174, %v8276
    %v8278 = vpop.f32.mrf.mxu0
    %v8279 = vpop.f32.mrf.mxu0
    %v8280 = vadd.f32 %v8177, %v8279
    %v8281 = vpop.f32.mrf.mxu0
    %8282 = vmatprep.mubr.bf16.mxu0 0
    %8283 = vmatmul.mubr.bf16.gmra.mxu0 %v2777
    %v8284 = vpop.f32.mrf.mxu0
    %v8285 = vadd.f32 %v8182, %v8284
    %v8286 = vpop.f32.mrf.mxu0
    %v8287 = vpop.f32.mrf.mxu0
    %v8288 = vadd.f32 %v8185, %v8287
    %v8289 = vpop.f32.mrf.mxu0
    %8290 = vmatprep.mubr.bf16.mxu0 0
    %8291 = vmatmul.mubr.bf16.gmra.mxu0 %v2780
    %v8292 = vpop.f32.mrf.mxu0
    %v8293 = vadd.f32 %v8190, %v8292
    %v8294 = vpop.f32.mrf.mxu0
    %v8295 = vpop.f32.mrf.mxu0
    %v8296 = vadd.f32 %v8193, %v8295
    %v8297 = vpop.f32.mrf.mxu0
    %8298 = vmatprep.mubr.bf16.mxu0 0
    %8299 = vmatmul.mubr.bf16.gmra.mxu0 %v2783
    %v8300 = vpop.f32.mrf.mxu0
    %v8301 = vadd.f32 %v8198, %v8300
    %v8302 = vpop.f32.mrf.mxu0
    %v8303 = vpop.f32.mrf.mxu0
    %v8304 = vadd.f32 %v8201, %v8303
    %v8305 = vpop.f32.mrf.mxu0
    %8306 = vmatprep.mubr.bf16.mxu0 0
    %8307 = vmatmul.mubr.bf16.gmra.mxu0 %v2786
    %v8308 = vpop.f32.mrf.mxu0
    %v8309 = vadd.f32 %v8206, %v8308
    %v8310 = vpop.f32.mrf.mxu0
    %v8311 = vpop.f32.mrf.mxu0
    %v8312 = vadd.f32 %v8209, %v8311
    %v8313 = vpop.f32.mrf.mxu0
    %8314 = vmatprep.mubr.bf16.mxu0 0
    %8315 = vmatmul.mubr.bf16.gmra.mxu0 %v2789
    %v8316 = vpop.f32.mrf.mxu0
    %v8317 = vadd.f32 %v8214, %v8316
    %v8318 = vpop.f32.mrf.mxu0
    %v8319 = vpop.f32.mrf.mxu0
    %v8320 = vadd.f32 %v8217, %v8319
    %v8321 = vpop.f32.mrf.mxu0
    %8322 = vmatprep.mubr.bf16.mxu0 0
    %8323 = vmatmul.mubr.bf16.gmra.mxu0 %v2792
    %v8324 = vpop.f32.mrf.mxu0
    %v8325 = vadd.f32 %v8222, %v8324
    %v8326 = vpop.f32.mrf.mxu0
    %v8327 = vpop.f32.mrf.mxu0
    %v8328 = vadd.f32 %v8225, %v8327
    %v8329 = vpop.f32.mrf.mxu0
    %8330 = vdwg.mxu0
    %v8331 = vpack.c.bf16 %v8106, %v8105
    %v8332 = vpack.c.bf16 %v8108, %v8107
    %v8333 = vpack.c.bf16 %v8110, %v8109
    %v8334 = vpack.c.bf16 %v8112, %v8111
    %v8335 = vpack.c.bf16 %v8114, %v8113
    %v8336 = vpack.c.bf16 %v8116, %v8115
    %v8337 = vpack.c.bf16 %v8118, %v8117
    %v8338 = vpack.c.bf16 %v8120, %v8119
    %v8339 = vld [vmem:[%s12] sm:$0xf]
    %v8340 = vld [vmem:[%s12 + $0x4] sm:$0xf]
    %v8343 = vunpack.c.l.b16 %v8339
    %v8344 = vunpack.c.l.b16 %v8340
    %v8345 = vpack.c.b16 %v8344, %v8343
    %v8348 = vsel %vm2769, %v8331, 0
    %v8351 = vsel %vm2769, %v8332, 0
    %v8354 = vsel %vm2769, %v8333, 0
    %v8357 = vsel %vm2769, %v8334, 0
    %v8360 = vsel %vm2769, %v8335, 0
    %v8363 = vsel %vm2769, %v8336, 0
    %v8366 = vsel %vm2769, %v8337, 0
    %v8369 = vsel %vm2769, %v8338, 0
    %8371 = vmatprep.subr.bf16.mxu0 0
    %8372 = vmatpush1.bf16.msra.mxu0 0
    %8373 = vmatprep.subr.bf16.mxu0 0
    %8374 = vmatpush1.bf16.msra.mxu0 0
    %8375 = vmatprep.subr.bf16.mxu0 0
    %8376 = vmatpush1.bf16.msra.mxu0 0
    %8377 = vmatprep.subr.bf16.mxu0 0
    %8378 = vmatpush1.bf16.msra.mxu0 0
    %8379 = vmatprep.subr.bf16.mxu0 0
    %8380 = vmatpush1.bf16.msra.mxu0 0
    %8381 = vmatprep.subr.bf16.mxu0 0
    %8382 = vmatpush1.bf16.msra.mxu0 0
    %8383 = vmatprep.subr.bf16.mxu0 0
    %8384 = vmatpush1.bf16.msra.mxu0 0
    %8385 = vmatprep.subr.bf16.mxu0 0
    %8386 = vmatpush1.bf16.msra.mxu0 %v8345
    %8387 = vmatprep.subr.bf16.mxu0 0
    %8388 = vmatpush2.bf16.msra.mxu0 0
    %8389 = vmatprep.subr.bf16.mxu0 0
    %8390 = vmatpush2.bf16.msra.mxu0 0
    %8391 = vmatprep.subr.bf16.mxu0 0
    %8392 = vmatpush2.bf16.msra.mxu0 0
    %8393 = vmatprep.subr.bf16.mxu0 0
    %8394 = vmatpush2.bf16.msra.mxu0 0
    %8395 = vmatprep.subr.bf16.mxu0 0
    %8396 = vmatpush2.bf16.msra.mxu0 0
    %8397 = vmatprep.subr.bf16.mxu0 0
    %8398 = vmatpush2.bf16.msra.mxu0 0
    %8399 = vmatprep.subr.bf16.mxu0 0
    %8400 = vmatpush2.bf16.msra.mxu0 0
    %8401 = vmatprep.subr.bf16.mxu0 0
    %8402 = vmatpush2.bf16.msra.mxu0 0
    %8403 = vmatprep.mubr.bf16.mxu0 0
    %8404 = vmatmul.mubr.bf16.gmra.mxu0 %v8348
    %v8405 = vpop.f32.mrf.mxu0
    %v8406 = vadd.f32 0.0, %v8405
    %v8407 = vpop.f32.mrf.mxu0
    %v8408 = vpop.f32.mrf.mxu0
    %v8409 = vadd.f32 0.0, %v8408
    %v8410 = vpop.f32.mrf.mxu0
    %8411 = vmatprep.mubr.bf16.mxu0 0
    %8412 = vmatmul.mubr.bf16.gmra.mxu0 %v8351
    %v8413 = vpop.f32.mrf.mxu0
    %v8414 = vadd.f32 0.0, %v8413
    %v8415 = vpop.f32.mrf.mxu0
    %v8416 = vpop.f32.mrf.mxu0
    %v8417 = vadd.f32 0.0, %v8416
    %v8418 = vpop.f32.mrf.mxu0
    %8419 = vmatprep.mubr.bf16.mxu0 0
    %8420 = vmatmul.mubr.bf16.gmra.mxu0 %v8354
    %v8421 = vpop.f32.mrf.mxu0
    %v8422 = vadd.f32 0.0, %v8421
    %v8423 = vpop.f32.mrf.mxu0
    %v8424 = vpop.f32.mrf.mxu0
    %v8425 = vadd.f32 0.0, %v8424
    %v8426 = vpop.f32.mrf.mxu0
    %8427 = vmatprep.mubr.bf16.mxu0 0
    %8428 = vmatmul.mubr.bf16.gmra.mxu0 %v8357
    %v8429 = vpop.f32.mrf.mxu0
    %v8430 = vadd.f32 0.0, %v8429
    %v8431 = vpop.f32.mrf.mxu0
    %v8432 = vpop.f32.mrf.mxu0
    %v8433 = vadd.f32 0.0, %v8432
    %v8434 = vpop.f32.mrf.mxu0
    %8435 = vmatprep.mubr.bf16.mxu0 0
    %8436 = vmatmul.mubr.bf16.gmra.mxu0 %v8360
    %v8437 = vpop.f32.mrf.mxu0
    %v8438 = vadd.f32 0.0, %v8437
    %v8439 = vpop.f32.mrf.mxu0
    %v8440 = vpop.f32.mrf.mxu0
    %v8441 = vadd.f32 0.0, %v8440
    %v8442 = vpop.f32.mrf.mxu0
    %8443 = vmatprep.mubr.bf16.mxu0 0
    %8444 = vmatmul.mubr.bf16.gmra.mxu0 %v8363
    %v8445 = vpop.f32.mrf.mxu0
    %v8446 = vadd.f32 0.0, %v8445
    %v8447 = vpop.f32.mrf.mxu0
    %v8448 = vpop.f32.mrf.mxu0
    %v8449 = vadd.f32 0.0, %v8448
    %v8450 = vpop.f32.mrf.mxu0
    %8451 = vmatprep.mubr.bf16.mxu0 0
    %8452 = vmatmul.mubr.bf16.gmra.mxu0 %v8366
    %v8453 = vpop.f32.mrf.mxu0
    %v8454 = vadd.f32 0.0, %v8453
    %v8455 = vpop.f32.mrf.mxu0
    %v8456 = vpop.f32.mrf.mxu0
    %v8457 = vadd.f32 0.0, %v8456
    %v8458 = vpop.f32.mrf.mxu0
    %8459 = vmatprep.mubr.bf16.mxu0 0
    %8460 = vmatmul.mubr.bf16.gmra.mxu0 %v8369
    %v8461 = vpop.f32.mrf.mxu0
    %v8462 = vadd.f32 0.0, %v8461
    %v8463 = vpop.f32.mrf.mxu0
    %v8464 = vpop.f32.mrf.mxu0
    %v8465 = vadd.f32 0.0, %v8464
    %v8466 = vpop.f32.mrf.mxu0
    %8467 = vdwg.mxu0
    %v8468 = vadd.f32 %v8269, %v8406
    %v8469 = vadd.f32 %v8272, %v8409
    %v8470 = vadd.f32 %v8277, %v8414
    %v8471 = vadd.f32 %v8280, %v8417
    %v8472 = vadd.f32 %v8285, %v8422
    %v8473 = vadd.f32 %v8288, %v8425
    %v8474 = vadd.f32 %v8293, %v8430
    %v8475 = vadd.f32 %v8296, %v8433
    %v8476 = vadd.f32 %v8301, %v8438
    %v8477 = vadd.f32 %v8304, %v8441
    %v8478 = vadd.f32 %v8309, %v8446
    %v8479 = vadd.f32 %v8312, %v8449
    %v8480 = vadd.f32 %v8317, %v8454
    %v8481 = vadd.f32 %v8320, %v8457
    %v8482 = vadd.f32 %v8325, %v8462
    %v8483 = vadd.f32 %v8328, %v8465
    %vm8484 = vcmp.ge.f32.partialorder %v8468, 0.0
    %vm8485 = vcmp.ge.f32.partialorder %v8469, 0.0
    %vm8486 = vcmp.ge.f32.partialorder %v8470, 0.0
    %vm8487 = vcmp.ge.f32.partialorder %v8471, 0.0
    %vm8488 = vcmp.ge.f32.partialorder %v8472, 0.0
    %vm8489 = vcmp.ge.f32.partialorder %v8473, 0.0
    %vm8490 = vcmp.ge.f32.partialorder %v8474, 0.0
    %vm8491 = vcmp.ge.f32.partialorder %v8475, 0.0
    %vm8492 = vcmp.ge.f32.partialorder %v8476, 0.0
    %vm8493 = vcmp.ge.f32.partialorder %v8477, 0.0
    %vm8494 = vcmp.ge.f32.partialorder %v8478, 0.0
    %vm8495 = vcmp.ge.f32.partialorder %v8479, 0.0
    %vm8496 = vcmp.ge.f32.partialorder %v8480, 0.0
    %vm8497 = vcmp.ge.f32.partialorder %v8481, 0.0
    %vm8498 = vcmp.ge.f32.partialorder %v8482, 0.0
    %vm8499 = vcmp.ge.f32.partialorder %v8483, 0.0
    %v8500 = vmul.f32 %v8468, 0.2
    %v8501 = vmul.f32 %v8469, 0.2
    %v8502 = vmul.f32 %v8470, 0.2
    %v8503 = vmul.f32 %v8471, 0.2
    %v8504 = vmul.f32 %v8472, 0.2
    %v8505 = vmul.f32 %v8473, 0.2
    %v8506 = vmul.f32 %v8474, 0.2
    %v8507 = vmul.f32 %v8475, 0.2
    %v8508 = vmul.f32 %v8476, 0.2
    %v8509 = vmul.f32 %v8477, 0.2
    %v8510 = vmul.f32 %v8478, 0.2
    %v8511 = vmul.f32 %v8479, 0.2
    %v8512 = vmul.f32 %v8480, 0.2
    %v8513 = vmul.f32 %v8481, 0.2
    %v8514 = vmul.f32 %v8482, 0.2
    %v8515 = vmul.f32 %v8483, 0.2
    %v8516 = vsel %vm8484, %v8468, %v8500
    %v8517 = vsel %vm8485, %v8469, %v8501
    %v8518 = vsel %vm8486, %v8470, %v8502
    %v8519 = vsel %vm8487, %v8471, %v8503
    %v8520 = vsel %vm8488, %v8472, %v8504
    %v8521 = vsel %vm8489, %v8473, %v8505
    %v8522 = vsel %vm8490, %v8474, %v8506
    %v8523 = vsel %vm8491, %v8475, %v8507
    %v8524 = vsel %vm8492, %v8476, %v8508
    %v8525 = vsel %vm8493, %v8477, %v8509
    %v8526 = vsel %vm8494, %v8478, %v8510
    %v8527 = vsel %vm8495, %v8479, %v8511
    %v8528 = vsel %vm8496, %v8480, %v8512
    %v8529 = vsel %vm8497, %v8481, %v8513
    %v8530 = vsel %vm8498, %v8482, %v8514
    %v8531 = vsel %vm8499, %v8483, %v8515
    %v8532 = vsel %vm444, %v8516, -inf
    %v8533 = vsel %vm444, %v8517, -inf
    %v8534 = vsel %vm444, %v8518, -inf
    %v8535 = vsel %vm444, %v8519, -inf
    %v8536 = vsel %vm444, %v8520, -inf
    %v8537 = vmax.f32 %v8532, %v8536
    %v8538 = vsel %vm444, %v8521, -inf
    %v8539 = vmax.f32 %v8533, %v8538
    %v8540 = vsel %vm444, %v8522, -inf
    %v8541 = vmax.f32 %v8534, %v8540
    %v8542 = vsel %vm444, %v8523, -inf
    %v8543 = vmax.f32 %v8535, %v8542
    %v8544 = vmax.f32 %v8537, %v8539
    %v8545 = vmax.f32 %v8541, %v8543
    %v8546 = vmax.f32 %v8544, %v8545
    %v8547 = vrot.slane %v8546, 4
    %v8548 = vmax.f32 %v8546, %v8547
    %v8549 = vrot.slane %v8548, 2
    %v8550 = vmax.f32 %v8548, %v8549
    %v8551 = vrot.slane %v8550, 1
    %v8552 = vmax.f32 %v8550, %v8551
    %v8553 = vsel %vm444, %v8516, 0.0
    %v8554 = vsel %vm444, %v8517, 0.0
    %v8555 = vadd.f32 %v8553, %v8554
    %v8556 = vsel %vm444, %v8518, 0.0
    %v8557 = vadd.f32 %v8555, %v8556
    %v8558 = vsel %vm444, %v8519, 0.0
    %v8559 = vadd.f32 %v8557, %v8558
    %v8560 = vsel %vm444, %v8520, 0.0
    %v8561 = vadd.f32 %v8559, %v8560
    %v8562 = vsel %vm444, %v8521, 0.0
    %v8563 = vadd.f32 %v8561, %v8562
    %v8564 = vsel %vm444, %v8522, 0.0
    %v8565 = vadd.f32 %v8563, %v8564
    %v8566 = vsel %vm444, %v8523, 0.0
    %v8567 = vadd.f32 %v8565, %v8566
    %v8568 = vrot.slane %v8567, 4
    %v8569 = vadd.f32 %v8567, %v8568
    %v8570 = vrot.slane %v8569, 2
    %v8571 = vadd.f32 %v8569, %v8570
    %v8572 = vrot.slane %v8571, 1
    %v8573 = vadd.f32 %v8571, %v8572
    %v8574 = vrcp.pop 64.0
    %v8575 = vmul.f32 %v8573, %v8574
    %v8576 = vsel %vm444, %v8524, -inf
    %v8577 = vsel %vm444, %v8525, -inf
    %v8578 = vsel %vm444, %v8526, -inf
    %v8579 = vsel %vm444, %v8527, -inf
    %v8580 = vsel %vm444, %v8528, -inf
    %v8581 = vmax.f32 %v8576, %v8580
    %v8582 = vsel %vm444, %v8529, -inf
    %v8583 = vmax.f32 %v8577, %v8582
    %v8584 = vsel %vm444, %v8530, -inf
    %v8585 = vmax.f32 %v8578, %v8584
    %v8586 = vsel %vm444, %v8531, -inf
    %v8587 = vmax.f32 %v8579, %v8586
    %v8588 = vmax.f32 %v8581, %v8583
    %v8589 = vmax.f32 %v8585, %v8587
    %v8590 = vmax.f32 %v8588, %v8589
    %v8591 = vrot.slane %v8590, 4
    %v8592 = vmax.f32 %v8590, %v8591
    %v8593 = vrot.slane %v8592, 2
    %v8594 = vmax.f32 %v8592, %v8593
    %v8595 = vrot.slane %v8594, 1
    %v8596 = vmax.f32 %v8594, %v8595
    %v8597 = vsel %vm444, %v8524, 0.0
    %v8598 = vsel %vm444, %v8525, 0.0
    %v8599 = vadd.f32 %v8597, %v8598
    %v8600 = vsel %vm444, %v8526, 0.0
    %v8601 = vadd.f32 %v8599, %v8600
    %v8602 = vsel %vm444, %v8527, 0.0
    %v8603 = vadd.f32 %v8601, %v8602
    %v8604 = vsel %vm444, %v8528, 0.0
    %v8605 = vadd.f32 %v8603, %v8604
    %v8606 = vsel %vm444, %v8529, 0.0
    %v8607 = vadd.f32 %v8605, %v8606
    %v8608 = vsel %vm444, %v8530, 0.0
    %v8609 = vadd.f32 %v8607, %v8608
    %v8610 = vsel %vm444, %v8531, 0.0
    %v8611 = vadd.f32 %v8609, %v8610
    %v8612 = vrot.slane %v8611, 4
    %v8613 = vadd.f32 %v8611, %v8612
    %v8614 = vrot.slane %v8613, 2
    %v8615 = vadd.f32 %v8613, %v8614
    %v8616 = vrot.slane %v8615, 1
    %v8617 = vadd.f32 %v8615, %v8616
    %v8618 = vmul.f32 %v8617, %v8574
    %vm8619 = vcmask 1040384
    %v8620 = vsel %vm8619, %v8552, %v8596
    %v8621 = vsel %vm8619, %v8575, %v8618
    %v8622 = vpack.c.bf16 %v8620, %v8620
    %v8623 = vld [vmem:[%s13] sm:$0xff]
    %v8624 = vld [vmem:[%s13 + $0x8] sm:$0xff]
    %v8625 = vld [vmem:[%s13 + $0x10] sm:$0xff]
    %v8626 = vld [vmem:[%s13 + $0x18] sm:$0xff]
    %v8627 = vld [vmem:[%s13 + $0x20] sm:$0xff]
    %v8628 = vld [vmem:[%s13 + $0x28] sm:$0xff]
    %v8629 = vld [vmem:[%s13 + $0x30] sm:$0xff]
    %v8630 = vld [vmem:[%s13 + $0x38] sm:$0xff]
    %v8631 = vld [vmem:[%s13 + $0x40] sm:$0xff]
    %v8632 = vld [vmem:[%s13 + $0x48] sm:$0xff]
    %v8633 = vld [vmem:[%s13 + $0x50] sm:$0xff]
    %v8634 = vld [vmem:[%s13 + $0x58] sm:$0xff]
    %v8635 = vld [vmem:[%s13 + $0x60] sm:$0xff]
    %v8636 = vld [vmem:[%s13 + $0x68] sm:$0xff]
    %v8637 = vld [vmem:[%s13 + $0x70] sm:$0xff]
    %v8638 = vld [vmem:[%s13 + $0x78] sm:$0xff]
    %v8639 = vpack.c.bf16 %v8621, %v8621
    %v8640 = vld [vmem:[%s14] sm:$0xff]
    %v8641 = vld [vmem:[%s14 + $0x8] sm:$0xff]
    %v8642 = vld [vmem:[%s14 + $0x10] sm:$0xff]
    %v8643 = vld [vmem:[%s14 + $0x18] sm:$0xff]
    %v8644 = vld [vmem:[%s14 + $0x20] sm:$0xff]
    %v8645 = vld [vmem:[%s14 + $0x28] sm:$0xff]
    %v8646 = vld [vmem:[%s14 + $0x30] sm:$0xff]
    %v8647 = vld [vmem:[%s14 + $0x38] sm:$0xff]
    %v8648 = vld [vmem:[%s14 + $0x40] sm:$0xff]
    %v8649 = vld [vmem:[%s14 + $0x48] sm:$0xff]
    %v8650 = vld [vmem:[%s14 + $0x50] sm:$0xff]
    %v8651 = vld [vmem:[%s14 + $0x58] sm:$0xff]
    %v8652 = vld [vmem:[%s14 + $0x60] sm:$0xff]
    %v8653 = vld [vmem:[%s14 + $0x68] sm:$0xff]
    %v8654 = vld [vmem:[%s14 + $0x70] sm:$0xff]
    %v8655 = vld [vmem:[%s14 + $0x78] sm:$0xff]
    %v8672 = vunpack.c.l.b16 %v8640
    %v8673 = vunpack.c.h.b16 %v8640
    %v8674 = vunpack.c.l.b16 %v8641
    %v8675 = vunpack.c.h.b16 %v8641
    %v8676 = vunpack.c.l.b16 %v8642
    %v8677 = vunpack.c.h.b16 %v8642
    %v8678 = vunpack.c.l.b16 %v8643
    %v8679 = vunpack.c.h.b16 %v8643
    %v8680 = vunpack.c.l.b16 %v8644
    %v8681 = vunpack.c.h.b16 %v8644
    %v8682 = vunpack.c.l.b16 %v8645
    %v8683 = vunpack.c.h.b16 %v8645
    %v8684 = vunpack.c.l.b16 %v8646
    %v8685 = vunpack.c.h.b16 %v8646
    %v8686 = vunpack.c.l.b16 %v8647
    %v8687 = vunpack.c.h.b16 %v8647
    %v8688 = vunpack.c.l.b16 %v8648
    %v8689 = vunpack.c.h.b16 %v8648
    %v8690 = vunpack.c.l.b16 %v8649
    %v8691 = vunpack.c.h.b16 %v8649
    %v8692 = vunpack.c.l.b16 %v8650
    %v8693 = vunpack.c.h.b16 %v8650
    %v8694 = vunpack.c.l.b16 %v8651
    %v8695 = vunpack.c.h.b16 %v8651
    %v8696 = vunpack.c.l.b16 %v8652
    %v8697 = vunpack.c.h.b16 %v8652
    %v8698 = vunpack.c.l.b16 %v8653
    %v8699 = vunpack.c.h.b16 %v8653
    %v8700 = vunpack.c.l.b16 %v8654
    %v8701 = vunpack.c.h.b16 %v8654
    %v8702 = vunpack.c.l.b16 %v8655
    %v8703 = vunpack.c.h.b16 %v8655
    %v8704 = vpack.c.b16 %v8676, %v8672
    %v8705 = vpack.c.b16 %v8677, %v8673
    %v8706 = vpack.c.b16 %v8678, %v8674
    %v8707 = vpack.c.b16 %v8679, %v8675
    %v8708 = vpack.c.b16 %v8684, %v8680
    %v8709 = vpack.c.b16 %v8685, %v8681
    %v8710 = vpack.c.b16 %v8686, %v8682
    %v8711 = vpack.c.b16 %v8687, %v8683
    %v8712 = vpack.c.b16 %v8692, %v8688
    %v8713 = vpack.c.b16 %v8693, %v8689
    %v8714 = vpack.c.b16 %v8694, %v8690
    %v8715 = vpack.c.b16 %v8695, %v8691
    %v8716 = vpack.c.b16 %v8700, %v8696
    %v8717 = vpack.c.b16 %v8701, %v8697
    %v8718 = vpack.c.b16 %v8702, %v8698
    %v8719 = vpack.c.b16 %v8703, %v8699
    %v8737 = vsel %vm444, %v8639, 0
    %8739 = vmatprep.subr.bf16.mxu0 0
    %8740 = vmatpush1.bf16.msra.mxu0 0
    %8741 = vmatprep.subr.bf16.mxu0 0
    %8742 = vmatpush1.bf16.msra.mxu0 0
    %8743 = vmatprep.subr.bf16.mxu0 0
    %8744 = vmatpush1.bf16.msra.mxu0 0
    %8745 = vmatprep.subr.bf16.mxu0 0
    %8746 = vmatpush1.bf16.msra.mxu0 0
    %8747 = vmatprep.subr.bf16.mxu0 %v8717
    %8748 = vmatpush1.bf16.msra.mxu0 %v8716
    %8749 = vmatprep.subr.bf16.mxu0 %v8713
    %8750 = vmatpush1.bf16.msra.mxu0 %v8712
    %8751 = vmatprep.subr.bf16.mxu0 %v8709
    %8752 = vmatpush1.bf16.msra.mxu0 %v8708
    %8753 = vmatprep.subr.bf16.mxu0 %v8705
    %8754 = vmatpush1.bf16.msra.mxu0 %v8704
    %8755 = vmatprep.subr.bf16.mxu0 0
    %8756 = vmatpush2.bf16.msra.mxu0 0
    %8757 = vmatprep.subr.bf16.mxu0 0
    %8758 = vmatpush2.bf16.msra.mxu0 0
    %8759 = vmatprep.subr.bf16.mxu0 0
    %8760 = vmatpush2.bf16.msra.mxu0 0
    %8761 = vmatprep.subr.bf16.mxu0 0
    %8762 = vmatpush2.bf16.msra.mxu0 0
    %8763 = vmatprep.subr.bf16.mxu0 0
    %8764 = vmatpush2.bf16.msra.mxu0 0
    %8765 = vmatprep.subr.bf16.mxu0 0
    %8766 = vmatpush2.bf16.msra.mxu0 0
    %8767 = vmatprep.subr.bf16.mxu0 0
    %8768 = vmatpush2.bf16.msra.mxu0 0
    %8769 = vmatprep.subr.bf16.mxu0 0
    %8770 = vmatpush2.bf16.msra.mxu0 0
    %8771 = vmatprep.mubr.bf16.mxu0 0
    %8772 = vmatmul.mubr.bf16.gmra.mxu0 %v8737
    %v8773 = vpop.f32.mrf.mxu0
    %v8774 = vadd.f32 0.0, %v8773
    %v8775 = vpop.f32.mrf.mxu0
    %v8776 = vadd.f32 0.0, %v8775
    %v8777 = vpop.f32.mrf.mxu0
    %v8778 = vpop.f32.mrf.mxu0
    %8779 = vdwg.mxu0
    %8780 = vmatprep.subr.bf16.mxu0 0
    %8781 = vmatpush1.bf16.msra.mxu0 0
    %8782 = vmatprep.subr.bf16.mxu0 0
    %8783 = vmatpush1.bf16.msra.mxu0 0
    %8784 = vmatprep.subr.bf16.mxu0 0
    %8785 = vmatpush1.bf16.msra.mxu0 0
    %8786 = vmatprep.subr.bf16.mxu0 0
    %8787 = vmatpush1.bf16.msra.mxu0 0
    %8788 = vmatprep.subr.bf16.mxu0 %v8719
    %8789 = vmatpush1.bf16.msra.mxu0 %v8718
    %8790 = vmatprep.subr.bf16.mxu0 %v8715
    %8791 = vmatpush1.bf16.msra.mxu0 %v8714
    %8792 = vmatprep.subr.bf16.mxu0 %v8711
    %8793 = vmatpush1.bf16.msra.mxu0 %v8710
    %8794 = vmatprep.subr.bf16.mxu0 %v8707
    %8795 = vmatpush1.bf16.msra.mxu0 %v8706
    %8796 = vmatprep.subr.bf16.mxu0 0
    %8797 = vmatpush2.bf16.msra.mxu0 0
    %8798 = vmatprep.subr.bf16.mxu0 0
    %8799 = vmatpush2.bf16.msra.mxu0 0
    %8800 = vmatprep.subr.bf16.mxu0 0
    %8801 = vmatpush2.bf16.msra.mxu0 0
    %8802 = vmatprep.subr.bf16.mxu0 0
    %8803 = vmatpush2.bf16.msra.mxu0 0
    %8804 = vmatprep.subr.bf16.mxu0 0
    %8805 = vmatpush2.bf16.msra.mxu0 0
    %8806 = vmatprep.subr.bf16.mxu0 0
    %8807 = vmatpush2.bf16.msra.mxu0 0
    %8808 = vmatprep.subr.bf16.mxu0 0
    %8809 = vmatpush2.bf16.msra.mxu0 0
    %8810 = vmatprep.subr.bf16.mxu0 0
    %8811 = vmatpush2.bf16.msra.mxu0 0
    %8812 = vmatprep.mubr.bf16.mxu0 0
    %8813 = vmatmul.mubr.bf16.gmra.mxu0 %v8737
    %v8814 = vpop.f32.mrf.mxu0
    %v8815 = vadd.f32 0.0, %v8814
    %v8816 = vpop.f32.mrf.mxu0
    %v8817 = vadd.f32 0.0, %v8816
    %v8818 = vpop.f32.mrf.mxu0
    %v8819 = vpop.f32.mrf.mxu0
    %8820 = vdwg.mxu0
    %v8837 = vunpack.c.l.b16 %v8623
    %v8838 = vunpack.c.h.b16 %v8623
    %v8839 = vunpack.c.l.b16 %v8624
    %v8840 = vunpack.c.h.b16 %v8624
    %v8841 = vunpack.c.l.b16 %v8625
    %v8842 = vunpack.c.h.b16 %v8625
    %v8843 = vunpack.c.l.b16 %v8626
    %v8844 = vunpack.c.h.b16 %v8626
    %v8845 = vunpack.c.l.b16 %v8627
    %v8846 = vunpack.c.h.b16 %v8627
    %v8847 = vunpack.c.l.b16 %v8628
    %v8848 = vunpack.c.h.b16 %v8628
    %v8849 = vunpack.c.l.b16 %v8629
    %v8850 = vunpack.c.h.b16 %v8629
    %v8851 = vunpack.c.l.b16 %v8630
    %v8852 = vunpack.c.h.b16 %v8630
    %v8853 = vunpack.c.l.b16 %v8631
    %v8854 = vunpack.c.h.b16 %v8631
    %v8855 = vunpack.c.l.b16 %v8632
    %v8856 = vunpack.c.h.b16 %v8632
    %v8857 = vunpack.c.l.b16 %v8633
    %v8858 = vunpack.c.h.b16 %v8633
    %v8859 = vunpack.c.l.b16 %v8634
    %v8860 = vunpack.c.h.b16 %v8634
    %v8861 = vunpack.c.l.b16 %v8635
    %v8862 = vunpack.c.h.b16 %v8635
    %v8863 = vunpack.c.l.b16 %v8636
    %v8864 = vunpack.c.h.b16 %v8636
    %v8865 = vunpack.c.l.b16 %v8637
    %v8866 = vunpack.c.h.b16 %v8637
    %v8867 = vunpack.c.l.b16 %v8638
    %v8868 = vunpack.c.h.b16 %v8638
    %v8869 = vpack.c.b16 %v8841, %v8837
    %v8870 = vpack.c.b16 %v8842, %v8838
    %v8871 = vpack.c.b16 %v8843, %v8839
    %v8872 = vpack.c.b16 %v8844, %v8840
    %v8873 = vpack.c.b16 %v8849, %v8845
    %v8874 = vpack.c.b16 %v8850, %v8846
    %v8875 = vpack.c.b16 %v8851, %v8847
    %v8876 = vpack.c.b16 %v8852, %v8848
    %v8877 = vpack.c.b16 %v8857, %v8853
    %v8878 = vpack.c.b16 %v8858, %v8854
    %v8879 = vpack.c.b16 %v8859, %v8855
    %v8880 = vpack.c.b16 %v8860, %v8856
    %v8881 = vpack.c.b16 %v8865, %v8861
    %v8882 = vpack.c.b16 %v8866, %v8862
    %v8883 = vpack.c.b16 %v8867, %v8863
    %v8884 = vpack.c.b16 %v8868, %v8864
    %v8902 = vsel %vm444, %v8622, 0
    %8904 = vmatprep.subr.bf16.mxu0 0
    %8905 = vmatpush1.bf16.msra.mxu0 0
    %8906 = vmatprep.subr.bf16.mxu0 0
    %8907 = vmatpush1.bf16.msra.mxu0 0
    %8908 = vmatprep.subr.bf16.mxu0 0
    %8909 = vmatpush1.bf16.msra.mxu0 0
    %8910 = vmatprep.subr.bf16.mxu0 0
    %8911 = vmatpush1.bf16.msra.mxu0 0
    %8912 = vmatprep.subr.bf16.mxu0 %v8882
    %8913 = vmatpush1.bf16.msra.mxu0 %v8881
    %8914 = vmatprep.subr.bf16.mxu0 %v8878
    %8915 = vmatpush1.bf16.msra.mxu0 %v8877
    %8916 = vmatprep.subr.bf16.mxu0 %v8874
    %8917 = vmatpush1.bf16.msra.mxu0 %v8873
    %8918 = vmatprep.subr.bf16.mxu0 %v8870
    %8919 = vmatpush1.bf16.msra.mxu0 %v8869
    %8920 = vmatprep.subr.bf16.mxu0 0
    %8921 = vmatpush2.bf16.msra.mxu0 0
    %8922 = vmatprep.subr.bf16.mxu0 0
    %8923 = vmatpush2.bf16.msra.mxu0 0
    %8924 = vmatprep.subr.bf16.mxu0 0
    %8925 = vmatpush2.bf16.msra.mxu0 0
    %8926 = vmatprep.subr.bf16.mxu0 0
    %8927 = vmatpush2.bf16.msra.mxu0 0
    %8928 = vmatprep.subr.bf16.mxu0 0
    %8929 = vmatpush2.bf16.msra.mxu0 0
    %8930 = vmatprep.subr.bf16.mxu0 0
    %8931 = vmatpush2.bf16.msra.mxu0 0
    %8932 = vmatprep.subr.bf16.mxu0 0
    %8933 = vmatpush2.bf16.msra.mxu0 0
    %8934 = vmatprep.subr.bf16.mxu0 0
    %8935 = vmatpush2.bf16.msra.mxu0 0
    %8936 = vmatprep.mubr.bf16.mxu0 0
    %8937 = vmatmul.mubr.bf16.gmra.mxu0 %v8902
    %v8938 = vpop.f32.mrf.mxu0
    %v8939 = vadd.f32 %v8774, %v8938
    %v8940 = vpop.f32.mrf.mxu0
    %v8941 = vadd.f32 %v8776, %v8940
    %v8942 = vpop.f32.mrf.mxu0
    %v8943 = vpop.f32.mrf.mxu0
    %8944 = vdwg.mxu0
    %8945 = vmatprep.subr.bf16.mxu0 0
    %8946 = vmatpush1.bf16.msra.mxu0 0
    %8947 = vmatprep.subr.bf16.mxu0 0
    %8948 = vmatpush1.bf16.msra.mxu0 0
    %8949 = vmatprep.subr.bf16.mxu0 0
    %8950 = vmatpush1.bf16.msra.mxu0 0
    %8951 = vmatprep.subr.bf16.mxu0 0
    %8952 = vmatpush1.bf16.msra.mxu0 0
    %8953 = vmatprep.subr.bf16.mxu0 %v8884
    %8954 = vmatpush1.bf16.msra.mxu0 %v8883
    %8955 = vmatprep.subr.bf16.mxu0 %v8880
    %8956 = vmatpush1.bf16.msra.mxu0 %v8879
    %8957 = vmatprep.subr.bf16.mxu0 %v8876
    %8958 = vmatpush1.bf16.msra.mxu0 %v8875
    %8959 = vmatprep.subr.bf16.mxu0 %v8872
    %8960 = vmatpush1.bf16.msra.mxu0 %v8871
    %8961 = vmatprep.subr.bf16.mxu0 0
    %8962 = vmatpush2.bf16.msra.mxu0 0
    %8963 = vmatprep.subr.bf16.mxu0 0
    %8964 = vmatpush2.bf16.msra.mxu0 0
    %8965 = vmatprep.subr.bf16.mxu0 0
    %8966 = vmatpush2.bf16.msra.mxu0 0
    %8967 = vmatprep.subr.bf16.mxu0 0
    %8968 = vmatpush2.bf16.msra.mxu0 0
    %8969 = vmatprep.subr.bf16.mxu0 0
    %8970 = vmatpush2.bf16.msra.mxu0 0
    %8971 = vmatprep.subr.bf16.mxu0 0
    %8972 = vmatpush2.bf16.msra.mxu0 0
    %8973 = vmatprep.subr.bf16.mxu0 0
    %8974 = vmatpush2.bf16.msra.mxu0 0
    %8975 = vmatprep.subr.bf16.mxu0 0
    %8976 = vmatpush2.bf16.msra.mxu0 0
    %8977 = vmatprep.mubr.bf16.mxu0 0
    %8978 = vmatmul.mubr.bf16.gmra.mxu0 %v8902
    %v8979 = vpop.f32.mrf.mxu0
    %v8980 = vadd.f32 %v8815, %v8979
    %v8981 = vpop.f32.mrf.mxu0
    %v8982 = vadd.f32 %v8817, %v8981
    %v8983 = vpop.f32.mrf.mxu0
    %v8984 = vpop.f32.mrf.mxu0
    %8985 = vdwg.mxu0
    %v8986 = vld [vmem:[%s15] sm:$0xf]
    %v8988 = vlaneseq
    %v8989 = vshrl.u32 %v8988, 7
    %v8990 = vsub.s32 0, %v8989
    %v8991 = vrot.slane %v8986, %v8990
    %v8992 = vlaneseq
    %v8993 = vshrl.u32 %v8992, 7
    %v8994 = vsub.s32 1, %v8993
    %v8995 = vrot.slane %v8986, %v8994
    %v8996 = vlaneseq
    %v8997 = vshrl.u32 %v8996, 7
    %v8998 = vsub.s32 2, %v8997
    %v8999 = vrot.slane %v8986, %v8998
    %v9000 = vlaneseq
    %v9001 = vshrl.u32 %v9000, 7
    %v9002 = vsub.s32 3, %v9001
    %v9003 = vrot.slane %v8986, %v9002
    %v9008 = vadd.f32 %v8939, %v8991
    %v9009 = vadd.f32 %v8941, %v8995
    %v9010 = vadd.f32 %v8980, %v8999
    %v9011 = vadd.f32 %v8982, %v9003
    %vm9012 = vcmp.ge.f32.partialorder %v9008, 0.0
    %vm9013 = vcmp.ge.f32.partialorder %v9009, 0.0
    %vm9014 = vcmp.ge.f32.partialorder %v9010, 0.0
    %vm9015 = vcmp.ge.f32.partialorder %v9011, 0.0
    %v9016 = vmul.f32 %v9008, 0.2
    %v9017 = vmul.f32 %v9009, 0.2
    %v9018 = vmul.f32 %v9010, 0.2
    %v9019 = vmul.f32 %v9011, 0.2
    %v9020 = vsel %vm9012, %v9008, %v9016
    %v9021 = vsel %vm9013, %v9009, %v9017
    %v9022 = vsel %vm9014, %v9010, %v9018
    %v9023 = vsel %vm9015, %v9011, %v9019
    %v9024 = vpack.c.bf16 %v9020, %v9020
    %v9025 = vpack.c.bf16 %v9021, %v9021
    %v9026 = vpack.c.bf16 %v9022, %v9022
    %v9027 = vpack.c.bf16 %v9023, %v9023
    %v9028 = vld [vmem:[%s16] sm:$0xff]
    %v9029 = vld [vmem:[%s16 + $0x8] sm:$0xff]
    %v9030 = vld [vmem:[%s16 + $0x10] sm:$0xff]
    %v9031 = vld [vmem:[%s16 + $0x18] sm:$0xff]
    %v9032 = vld [vmem:[%s16 + $0x20] sm:$0xff]
    %v9033 = vld [vmem:[%s16 + $0x28] sm:$0xff]
    %v9034 = vld [vmem:[%s16 + $0x30] sm:$0xff]
    %v9035 = vld [vmem:[%s16 + $0x38] sm:$0xff]
    %v9036 = vld [vmem:[%s16 + $0x40] sm:$0xff]
    %v9037 = vld [vmem:[%s16 + $0x48] sm:$0xff]
    %v9038 = vld [vmem:[%s16 + $0x50] sm:$0xff]
    %v9039 = vld [vmem:[%s16 + $0x58] sm:$0xff]
    %v9040 = vld [vmem:[%s16 + $0x60] sm:$0xff]
    %v9041 = vld [vmem:[%s16 + $0x68] sm:$0xff]
    %v9042 = vld [vmem:[%s16 + $0x70] sm:$0xff]
    %v9043 = vld [vmem:[%s16 + $0x78] sm:$0xff]
    %v9044 = vld [vmem:[%s16 + $0x80] sm:$0xff]
    %v9045 = vld [vmem:[%s16 + $0x88] sm:$0xff]
    %v9046 = vld [vmem:[%s16 + $0x90] sm:$0xff]
    %v9047 = vld [vmem:[%s16 + $0x98] sm:$0xff]
    %v9048 = vld [vmem:[%s16 + $0xa0] sm:$0xff]
    %v9049 = vld [vmem:[%s16 + $0xa8] sm:$0xff]
    %v9050 = vld [vmem:[%s16 + $0xb0] sm:$0xff]
    %v9051 = vld [vmem:[%s16 + $0xb8] sm:$0xff]
    %v9052 = vld [vmem:[%s16 + $0xc0] sm:$0xff]
    %v9053 = vld [vmem:[%s16 + $0xc8] sm:$0xff]
    %v9054 = vld [vmem:[%s16 + $0xd0] sm:$0xff]
    %v9055 = vld [vmem:[%s16 + $0xd8] sm:$0xff]
    %v9056 = vld [vmem:[%s16 + $0xe0] sm:$0xff]
    %v9057 = vld [vmem:[%s16 + $0xe8] sm:$0xff]
    %v9058 = vld [vmem:[%s16 + $0xf0] sm:$0xff]
    %v9059 = vld [vmem:[%s16 + $0xf8] sm:$0xff]
    %v9060 = vld [vmem:[%s16 + $0x100] sm:$0xff]
    %v9061 = vld [vmem:[%s16 + $0x108] sm:$0xff]
    %v9062 = vld [vmem:[%s16 + $0x110] sm:$0xff]
    %v9063 = vld [vmem:[%s16 + $0x118] sm:$0xff]
    %v9064 = vld [vmem:[%s16 + $0x120] sm:$0xff]
    %v9065 = vld [vmem:[%s16 + $0x128] sm:$0xff]
    %v9066 = vld [vmem:[%s16 + $0x130] sm:$0xff]
    %v9067 = vld [vmem:[%s16 + $0x138] sm:$0xff]
    %v9068 = vld [vmem:[%s16 + $0x140] sm:$0xff]
    %v9069 = vld [vmem:[%s16 + $0x148] sm:$0xff]
    %v9070 = vld [vmem:[%s16 + $0x150] sm:$0xff]
    %v9071 = vld [vmem:[%s16 + $0x158] sm:$0xff]
    %v9072 = vld [vmem:[%s16 + $0x160] sm:$0xff]
    %v9073 = vld [vmem:[%s16 + $0x168] sm:$0xff]
    %v9074 = vld [vmem:[%s16 + $0x170] sm:$0xff]
    %v9075 = vld [vmem:[%s16 + $0x178] sm:$0xff]
    %v9076 = vld [vmem:[%s16 + $0x180] sm:$0xff]
    %v9077 = vld [vmem:[%s16 + $0x188] sm:$0xff]
    %v9078 = vld [vmem:[%s16 + $0x190] sm:$0xff]
    %v9079 = vld [vmem:[%s16 + $0x198] sm:$0xff]
    %v9080 = vld [vmem:[%s16 + $0x1a0] sm:$0xff]
    %v9081 = vld [vmem:[%s16 + $0x1a8] sm:$0xff]
    %v9082 = vld [vmem:[%s16 + $0x1b0] sm:$0xff]
    %v9083 = vld [vmem:[%s16 + $0x1b8] sm:$0xff]
    %v9084 = vld [vmem:[%s16 + $0x1c0] sm:$0xff]
    %v9085 = vld [vmem:[%s16 + $0x1c8] sm:$0xff]
    %v9086 = vld [vmem:[%s16 + $0x1d0] sm:$0xff]
    %v9087 = vld [vmem:[%s16 + $0x1d8] sm:$0xff]
    %v9088 = vld [vmem:[%s16 + $0x1e0] sm:$0xff]
    %v9089 = vld [vmem:[%s16 + $0x1e8] sm:$0xff]
    %v9090 = vld [vmem:[%s16 + $0x1f0] sm:$0xff]
    %v9091 = vld [vmem:[%s16 + $0x1f8] sm:$0xff]
    %v9092 = vld [vmem:[%s17] sm:$0x3]
    %v9094 = vlaneseq
    %v9095 = vshrl.u32 %v9094, 7
    %v9096 = vsub.s32 0, %v9095
    %v9097 = vrot.slane %v9092, %v9096
    %v9098 = vlaneseq
    %v9099 = vshrl.u32 %v9098, 7
    %v9100 = vsub.s32 1, %v9099
    %v9101 = vrot.slane %v9092, %v9100
    %v9168 = vunpack.c.l.b16 %v9028
    %v9169 = vunpack.c.h.b16 %v9028
    %v9170 = vunpack.c.l.b16 %v9029
    %v9171 = vunpack.c.h.b16 %v9029
    %v9172 = vunpack.c.l.b16 %v9030
    %v9173 = vunpack.c.h.b16 %v9030
    %v9174 = vunpack.c.l.b16 %v9031
    %v9175 = vunpack.c.h.b16 %v9031
    %v9176 = vunpack.c.l.b16 %v9032
    %v9177 = vunpack.c.h.b16 %v9032
    %v9178 = vunpack.c.l.b16 %v9033
    %v9179 = vunpack.c.h.b16 %v9033
    %v9180 = vunpack.c.l.b16 %v9034
    %v9181 = vunpack.c.h.b16 %v9034
    %v9182 = vunpack.c.l.b16 %v9035
    %v9183 = vunpack.c.h.b16 %v9035
    %v9184 = vunpack.c.l.b16 %v9036
    %v9185 = vunpack.c.h.b16 %v9036
    %v9186 = vunpack.c.l.b16 %v9037
    %v9187 = vunpack.c.h.b16 %v9037
    %v9188 = vunpack.c.l.b16 %v9038
    %v9189 = vunpack.c.h.b16 %v9038
    %v9190 = vunpack.c.l.b16 %v9039
    %v9191 = vunpack.c.h.b16 %v9039
    %v9192 = vunpack.c.l.b16 %v9040
    %v9193 = vunpack.c.h.b16 %v9040
    %v9194 = vunpack.c.l.b16 %v9041
    %v9195 = vunpack.c.h.b16 %v9041
    %v9196 = vunpack.c.l.b16 %v9042
    %v9197 = vunpack.c.h.b16 %v9042
    %v9198 = vunpack.c.l.b16 %v9043
    %v9199 = vunpack.c.h.b16 %v9043
    %v9200 = vunpack.c.l.b16 %v9044
    %v9201 = vunpack.c.h.b16 %v9044
    %v9202 = vunpack.c.l.b16 %v9045
    %v9203 = vunpack.c.h.b16 %v9045
    %v9204 = vunpack.c.l.b16 %v9046
    %v9205 = vunpack.c.h.b16 %v9046
    %v9206 = vunpack.c.l.b16 %v9047
    %v9207 = vunpack.c.h.b16 %v9047
    %v9208 = vunpack.c.l.b16 %v9048
    %v9209 = vunpack.c.h.b16 %v9048
    %v9210 = vunpack.c.l.b16 %v9049
    %v9211 = vunpack.c.h.b16 %v9049
    %v9212 = vunpack.c.l.b16 %v9050
    %v9213 = vunpack.c.h.b16 %v9050
    %v9214 = vunpack.c.l.b16 %v9051
    %v9215 = vunpack.c.h.b16 %v9051
    %v9216 = vunpack.c.l.b16 %v9052
    %v9217 = vunpack.c.h.b16 %v9052
    %v9218 = vunpack.c.l.b16 %v9053
    %v9219 = vunpack.c.h.b16 %v9053
    %v9220 = vunpack.c.l.b16 %v9054
    %v9221 = vunpack.c.h.b16 %v9054
    %v9222 = vunpack.c.l.b16 %v9055
    %v9223 = vunpack.c.h.b16 %v9055
    %v9224 = vunpack.c.l.b16 %v9056
    %v9225 = vunpack.c.h.b16 %v9056
    %v9226 = vunpack.c.l.b16 %v9057
    %v9227 = vunpack.c.h.b16 %v9057
    %v9228 = vunpack.c.l.b16 %v9058
    %v9229 = vunpack.c.h.b16 %v9058
    %v9230 = vunpack.c.l.b16 %v9059
    %v9231 = vunpack.c.h.b16 %v9059
    %v9232 = vunpack.c.l.b16 %v9060
    %v9233 = vunpack.c.h.b16 %v9060
    %v9234 = vunpack.c.l.b16 %v9061
    %v9235 = vunpack.c.h.b16 %v9061
    %v9236 = vunpack.c.l.b16 %v9062
    %v9237 = vunpack.c.h.b16 %v9062
    %v9238 = vunpack.c.l.b16 %v9063
    %v9239 = vunpack.c.h.b16 %v9063
    %v9240 = vunpack.c.l.b16 %v9064
    %v9241 = vunpack.c.h.b16 %v9064
    %v9242 = vunpack.c.l.b16 %v9065
    %v9243 = vunpack.c.h.b16 %v9065
    %v9244 = vunpack.c.l.b16 %v9066
    %v9245 = vunpack.c.h.b16 %v9066
    %v9246 = vunpack.c.l.b16 %v9067
    %v9247 = vunpack.c.h.b16 %v9067
    %v9248 = vunpack.c.l.b16 %v9068
    %v9249 = vunpack.c.h.b16 %v9068
    %v9250 = vunpack.c.l.b16 %v9069
    %v9251 = vunpack.c.h.b16 %v9069
    %v9252 = vunpack.c.l.b16 %v9070
    %v9253 = vunpack.c.h.b16 %v9070
    %v9254 = vunpack.c.l.b16 %v9071
    %v9255 = vunpack.c.h.b16 %v9071
    %v9256 = vunpack.c.l.b16 %v9072
    %v9257 = vunpack.c.h.b16 %v9072
    %v9258 = vunpack.c.l.b16 %v9073
    %v9259 = vunpack.c.h.b16 %v9073
    %v9260 = vunpack.c.l.b16 %v9074
    %v9261 = vunpack.c.h.b16 %v9074
    %v9262 = vunpack.c.l.b16 %v9075
    %v9263 = vunpack.c.h.b16 %v9075
    %v9264 = vunpack.c.l.b16 %v9076
    %v9265 = vunpack.c.h.b16 %v9076
    %v9266 = vunpack.c.l.b16 %v9077
    %v9267 = vunpack.c.h.b16 %v9077
    %v9268 = vunpack.c.l.b16 %v9078
    %v9269 = vunpack.c.h.b16 %v9078
    %v9270 = vunpack.c.l.b16 %v9079
    %v9271 = vunpack.c.h.b16 %v9079
    %v9272 = vunpack.c.l.b16 %v9080
    %v9273 = vunpack.c.h.b16 %v9080
    %v9274 = vunpack.c.l.b16 %v9081
    %v9275 = vunpack.c.h.b16 %v9081
    %v9276 = vunpack.c.l.b16 %v9082
    %v9277 = vunpack.c.h.b16 %v9082
    %v9278 = vunpack.c.l.b16 %v9083
    %v9279 = vunpack.c.h.b16 %v9083
    %v9280 = vunpack.c.l.b16 %v9084
    %v9281 = vunpack.c.h.b16 %v9084
    %v9282 = vunpack.c.l.b16 %v9085
    %v9283 = vunpack.c.h.b16 %v9085
    %v9284 = vunpack.c.l.b16 %v9086
    %v9285 = vunpack.c.h.b16 %v9086
    %v9286 = vunpack.c.l.b16 %v9087
    %v9287 = vunpack.c.h.b16 %v9087
    %v9288 = vunpack.c.l.b16 %v9088
    %v9289 = vunpack.c.h.b16 %v9088
    %v9290 = vunpack.c.l.b16 %v9089
    %v9291 = vunpack.c.h.b16 %v9089
    %v9292 = vunpack.c.l.b16 %v9090
    %v9293 = vunpack.c.h.b16 %v9090
    %v9294 = vunpack.c.l.b16 %v9091
    %v9295 = vunpack.c.h.b16 %v9091
    %v9296 = vpack.c.b16 %v9170, %v9168
    %v9297 = vpack.c.b16 %v9171, %v9169
    %v9298 = vpack.c.b16 %v9174, %v9172
    %v9299 = vpack.c.b16 %v9175, %v9173
    %v9300 = vpack.c.b16 %v9178, %v9176
    %v9301 = vpack.c.b16 %v9179, %v9177
    %v9302 = vpack.c.b16 %v9182, %v9180
    %v9303 = vpack.c.b16 %v9183, %v9181
    %v9304 = vpack.c.b16 %v9186, %v9184
    %v9305 = vpack.c.b16 %v9187, %v9185
    %v9306 = vpack.c.b16 %v9190, %v9188
    %v9307 = vpack.c.b16 %v9191, %v9189
    %v9308 = vpack.c.b16 %v9194, %v9192
    %v9309 = vpack.c.b16 %v9195, %v9193
    %v9310 = vpack.c.b16 %v9198, %v9196
    %v9311 = vpack.c.b16 %v9199, %v9197
    %v9312 = vpack.c.b16 %v9202, %v9200
    %v9313 = vpack.c.b16 %v9203, %v9201
    %v9314 = vpack.c.b16 %v9206, %v9204
    %v9315 = vpack.c.b16 %v9207, %v9205
    %v9316 = vpack.c.b16 %v9210, %v9208
    %v9317 = vpack.c.b16 %v9211, %v9209
    %v9318 = vpack.c.b16 %v9214, %v9212
    %v9319 = vpack.c.b16 %v9215, %v9213
    %v9320 = vpack.c.b16 %v9218, %v9216
    %v9321 = vpack.c.b16 %v9219, %v9217
    %v9322 = vpack.c.b16 %v9222, %v9220
    %v9323 = vpack.c.b16 %v9223, %v9221
    %v9324 = vpack.c.b16 %v9226, %v9224
    %v9325 = vpack.c.b16 %v9227, %v9225
    %v9326 = vpack.c.b16 %v9230, %v9228
    %v9327 = vpack.c.b16 %v9231, %v9229
    %v9328 = vpack.c.b16 %v9234, %v9232
    %v9329 = vpack.c.b16 %v9235, %v9233
    %v9330 = vpack.c.b16 %v9238, %v9236
    %v9331 = vpack.c.b16 %v9239, %v9237
    %v9332 = vpack.c.b16 %v9242, %v9240
    %v9333 = vpack.c.b16 %v9243, %v9241
    %v9334 = vpack.c.b16 %v9246, %v9244
    %v9335 = vpack.c.b16 %v9247, %v9245
    %v9336 = vpack.c.b16 %v9250, %v9248
    %v9337 = vpack.c.b16 %v9251, %v9249
    %v9338 = vpack.c.b16 %v9254, %v9252
    %v9339 = vpack.c.b16 %v9255, %v9253
    %v9340 = vpack.c.b16 %v9258, %v9256
    %v9341 = vpack.c.b16 %v9259, %v9257
    %v9342 = vpack.c.b16 %v9262, %v9260
    %v9343 = vpack.c.b16 %v9263, %v9261
    %v9344 = vpack.c.b16 %v9266, %v9264
    %v9345 = vpack.c.b16 %v9267, %v9265
    %v9346 = vpack.c.b16 %v9270, %v9268
    %v9347 = vpack.c.b16 %v9271, %v9269
    %v9348 = vpack.c.b16 %v9274, %v9272
    %v9349 = vpack.c.b16 %v9275, %v9273
    %v9350 = vpack.c.b16 %v9278, %v9276
    %v9351 = vpack.c.b16 %v9279, %v9277
    %v9352 = vpack.c.b16 %v9282, %v9280
    %v9353 = vpack.c.b16 %v9283, %v9281
    %v9354 = vpack.c.b16 %v9286, %v9284
    %v9355 = vpack.c.b16 %v9287, %v9285
    %v9356 = vpack.c.b16 %v9290, %v9288
    %v9357 = vpack.c.b16 %v9291, %v9289
    %v9358 = vpack.c.b16 %v9294, %v9292
    %v9359 = vpack.c.b16 %v9295, %v9293
    %9424 = vmatprep.subr.bf16.mxu0 %v9311
    %9425 = vmatpush1.bf16.msra.mxu0 %v9310
    %9426 = vmatprep.subr.bf16.mxu0 %v9309
    %9427 = vmatpush1.bf16.msra.mxu0 %v9308
    %9428 = vmatprep.subr.bf16.mxu0 %v9307
    %9429 = vmatpush1.bf16.msra.mxu0 %v9306
    %9430 = vmatprep.subr.bf16.mxu0 %v9305
    %9431 = vmatpush1.bf16.msra.mxu0 %v9304
    %9432 = vmatprep.subr.bf16.mxu0 %v9303
    %9433 = vmatpush1.bf16.msra.mxu0 %v9302
    %9434 = vmatprep.subr.bf16.mxu0 %v9301
    %9435 = vmatpush1.bf16.msra.mxu0 %v9300
    %9436 = vmatprep.subr.bf16.mxu0 %v9299
    %9437 = vmatpush1.bf16.msra.mxu0 %v9298
    %9438 = vmatprep.subr.bf16.mxu0 %v9297
    %9439 = vmatpush1.bf16.msra.mxu0 %v9296
    %9440 = vmatprep.subr.bf16.mxu0 %v9327
    %9441 = vmatpush2.bf16.msra.mxu0 %v9326
    %9442 = vmatprep.subr.bf16.mxu0 %v9325
    %9443 = vmatpush2.bf16.msra.mxu0 %v9324
    %9444 = vmatprep.subr.bf16.mxu0 %v9323
    %9445 = vmatpush2.bf16.msra.mxu0 %v9322
    %9446 = vmatprep.subr.bf16.mxu0 %v9321
    %9447 = vmatpush2.bf16.msra.mxu0 %v9320
    %9448 = vmatprep.subr.bf16.mxu0 %v9319
    %9449 = vmatpush2.bf16.msra.mxu0 %v9318
    %9450 = vmatprep.subr.bf16.mxu0 %v9317
    %9451 = vmatpush2.bf16.msra.mxu0 %v9316
    %9452 = vmatprep.subr.bf16.mxu0 %v9315
    %9453 = vmatpush2.bf16.msra.mxu0 %v9314
    %9454 = vmatprep.subr.bf16.mxu0 %v9313
    %9455 = vmatpush2.bf16.msra.mxu0 %v9312
    %9456 = vmatprep.mubr.bf16.mxu0 %v9025
    %9457 = vmatmul.mubr.bf16.gmra.mxu0 %v9024
    %v9458 = vpop.f32.mrf.mxu0
    %v9459 = vadd.f32 %v9097, %v9458
    %v9460 = vpop.f32.mrf.mxu0
    %v9461 = vadd.f32 %v9101, %v9460
    %v9462 = vpop.f32.mrf.mxu0
    %v9463 = vpop.f32.mrf.mxu0
    %9464 = vdwg.mxu0
    %9465 = vmatprep.subr.bf16.mxu0 %v9343
    %9466 = vmatpush1.bf16.msra.mxu0 %v9342
    %9467 = vmatprep.subr.bf16.mxu0 %v9341
    %9468 = vmatpush1.bf16.msra.mxu0 %v9340
    %9469 = vmatprep.subr.bf16.mxu0 %v9339
    %9470 = vmatpush1.bf16.msra.mxu0 %v9338
    %9471 = vmatprep.subr.bf16.mxu0 %v9337
    %9472 = vmatpush1.bf16.msra.mxu0 %v9336
    %9473 = vmatprep.subr.bf16.mxu0 %v9335
    %9474 = vmatpush1.bf16.msra.mxu0 %v9334
    %9475 = vmatprep.subr.bf16.mxu0 %v9333
    %9476 = vmatpush1.bf16.msra.mxu0 %v9332
    %9477 = vmatprep.subr.bf16.mxu0 %v9331
    %9478 = vmatpush1.bf16.msra.mxu0 %v9330
    %9479 = vmatprep.subr.bf16.mxu0 %v9329
    %9480 = vmatpush1.bf16.msra.mxu0 %v9328
    %9481 = vmatprep.subr.bf16.mxu0 %v9359
    %9482 = vmatpush2.bf16.msra.mxu0 %v9358
    %9483 = vmatprep.subr.bf16.mxu0 %v9357
    %9484 = vmatpush2.bf16.msra.mxu0 %v9356
    %9485 = vmatprep.subr.bf16.mxu0 %v9355
    %9486 = vmatpush2.bf16.msra.mxu0 %v9354
    %9487 = vmatprep.subr.bf16.mxu0 %v9353
    %9488 = vmatpush2.bf16.msra.mxu0 %v9352
    %9489 = vmatprep.subr.bf16.mxu0 %v9351
    %9490 = vmatpush2.bf16.msra.mxu0 %v9350
    %9491 = vmatprep.subr.bf16.mxu0 %v9349
    %9492 = vmatpush2.bf16.msra.mxu0 %v9348
    %9493 = vmatprep.subr.bf16.mxu0 %v9347
    %9494 = vmatpush2.bf16.msra.mxu0 %v9346
    %9495 = vmatprep.subr.bf16.mxu0 %v9345
    %9496 = vmatpush2.bf16.msra.mxu0 %v9344
    %9497 = vmatprep.mubr.bf16.mxu0 %v9027
    %9498 = vmatmul.mubr.bf16.gmra.mxu0 %v9026
    %v9499 = vpop.f32.mrf.mxu0
    %v9500 = vadd.f32 %v9459, %v9499
    %v9501 = vpop.f32.mrf.mxu0
    %v9502 = vadd.f32 %v9461, %v9501
    %v9503 = vpop.f32.mrf.mxu0
    %v9504 = vpop.f32.mrf.mxu0
    %9505 = vdwg.mxu0
    %vm9506 = vcmp.ge.f32.partialorder %v9500, 0.0
    %vm9507 = vcmp.ge.f32.partialorder %v9502, 0.0
    %v9508 = vmul.f32 %v9500, 0.2
    %v9509 = vmul.f32 %v9502, 0.2
    %v9510 = vsel %vm9506, %v9500, %v9508
    %v9511 = vsel %vm9507, %v9502, %v9509
    %v9512 = vpack.c.bf16 %v9510, %v9510
    %v9513 = vpack.c.bf16 %v9511, %v9511
    %v9514 = vld [vmem:[%s18] sm:$0xf]
    %v9515 = vld [vmem:[%s18 + $0x4] sm:$0xf]
    %v9516 = vld [vmem:[%s18 + $0x8] sm:$0xf]
    %v9517 = vld [vmem:[%s18 + $0xc] sm:$0xf]
    %v9518 = vld [vmem:[%s18 + $0x10] sm:$0xf]
    %v9519 = vld [vmem:[%s18 + $0x14] sm:$0xf]
    %v9520 = vld [vmem:[%s18 + $0x18] sm:$0xf]
    %v9521 = vld [vmem:[%s18 + $0x1c] sm:$0xf]
    %v9522 = vld [vmem:[%s18 + $0x20] sm:$0xf]
    %v9523 = vld [vmem:[%s18 + $0x24] sm:$0xf]
    %v9524 = vld [vmem:[%s18 + $0x28] sm:$0xf]
    %v9525 = vld [vmem:[%s18 + $0x2c] sm:$0xf]
    %v9526 = vld [vmem:[%s18 + $0x30] sm:$0xf]
    %v9527 = vld [vmem:[%s18 + $0x34] sm:$0xf]
    %v9528 = vld [vmem:[%s18 + $0x38] sm:$0xf]
    %v9529 = vld [vmem:[%s18 + $0x3c] sm:$0xf]
    %v9530 = vld [vmem:[%s18 + $0x40] sm:$0xf]
    %v9531 = vld [vmem:[%s18 + $0x44] sm:$0xf]
    %v9532 = vld [vmem:[%s18 + $0x48] sm:$0xf]
    %v9533 = vld [vmem:[%s18 + $0x4c] sm:$0xf]
    %v9534 = vld [vmem:[%s18 + $0x50] sm:$0xf]
    %v9535 = vld [vmem:[%s18 + $0x54] sm:$0xf]
    %v9536 = vld [vmem:[%s18 + $0x58] sm:$0xf]
    %v9537 = vld [vmem:[%s18 + $0x5c] sm:$0xf]
    %v9538 = vld [vmem:[%s18 + $0x60] sm:$0xf]
    %v9539 = vld [vmem:[%s18 + $0x64] sm:$0xf]
    %v9540 = vld [vmem:[%s18 + $0x68] sm:$0xf]
    %v9541 = vld [vmem:[%s18 + $0x6c] sm:$0xf]
    %v9542 = vld [vmem:[%s18 + $0x70] sm:$0xf]
    %v9543 = vld [vmem:[%s18 + $0x74] sm:$0xf]
    %v9544 = vld [vmem:[%s18 + $0x78] sm:$0xf]
    %v9545 = vld [vmem:[%s18 + $0x7c] sm:$0xf]
    %v9546 = vld [vmem:[%s19] sm:$0x1]
    %v9548 = vlaneseq
    %v9549 = vshrl.u32 %v9548, 7
    %v9550 = vsub.s32 0, %v9549
    %v9551 = vrot.slane %v9546, %v9550
    %v9585 = vunpack.c.l.b16 %v9514
    %v9586 = vunpack.c.l.b16 %v9515
    %v9587 = vunpack.c.l.b16 %v9516
    %v9588 = vunpack.c.l.b16 %v9517
    %v9589 = vunpack.c.l.b16 %v9518
    %v9590 = vunpack.c.l.b16 %v9519
    %v9591 = vunpack.c.l.b16 %v9520
    %v9592 = vunpack.c.l.b16 %v9521
    %v9593 = vunpack.c.l.b16 %v9522
    %v9594 = vunpack.c.l.b16 %v9523
    %v9595 = vunpack.c.l.b16 %v9524
    %v9596 = vunpack.c.l.b16 %v9525
    %v9597 = vunpack.c.l.b16 %v9526
    %v9598 = vunpack.c.l.b16 %v9527
    %v9599 = vunpack.c.l.b16 %v9528
    %v9600 = vunpack.c.l.b16 %v9529
    %v9601 = vunpack.c.l.b16 %v9530
    %v9602 = vunpack.c.l.b16 %v9531
    %v9603 = vunpack.c.l.b16 %v9532
    %v9604 = vunpack.c.l.b16 %v9533
    %v9605 = vunpack.c.l.b16 %v9534
    %v9606 = vunpack.c.l.b16 %v9535
    %v9607 = vunpack.c.l.b16 %v9536
    %v9608 = vunpack.c.l.b16 %v9537
    %v9609 = vunpack.c.l.b16 %v9538
    %v9610 = vunpack.c.l.b16 %v9539
    %v9611 = vunpack.c.l.b16 %v9540
    %v9612 = vunpack.c.l.b16 %v9541
    %v9613 = vunpack.c.l.b16 %v9542
    %v9614 = vunpack.c.l.b16 %v9543
    %v9615 = vunpack.c.l.b16 %v9544
    %v9616 = vunpack.c.l.b16 %v9545
    %v9617 = vpack.c.b16 %v9586, %v9585
    %v9618 = vpack.c.b16 %v9588, %v9587
    %v9619 = vpack.c.b16 %v9590, %v9589
    %v9620 = vpack.c.b16 %v9592, %v9591
    %v9621 = vpack.c.b16 %v9594, %v9593
    %v9622 = vpack.c.b16 %v9596, %v9595
    %v9623 = vpack.c.b16 %v9598, %v9597
    %v9624 = vpack.c.b16 %v9600, %v9599
    %v9625 = vpack.c.b16 %v9602, %v9601
    %v9626 = vpack.c.b16 %v9604, %v9603
    %v9627 = vpack.c.b16 %v9606, %v9605
    %v9628 = vpack.c.b16 %v9608, %v9607
    %v9629 = vpack.c.b16 %v9610, %v9609
    %v9630 = vpack.c.b16 %v9612, %v9611
    %v9631 = vpack.c.b16 %v9614, %v9613
    %v9632 = vpack.c.b16 %v9616, %v9615
    %9649 = vmatprep.subr.bf16.mxu0 0
    %9650 = vmatpush1.bf16.msra.mxu0 %v9624
    %9651 = vmatprep.subr.bf16.mxu0 0
    %9652 = vmatpush1.bf16.msra.mxu0 %v9623
    %9653 = vmatprep.subr.bf16.mxu0 0
    %9654 = vmatpush1.bf16.msra.mxu0 %v9622
    %9655 = vmatprep.subr.bf16.mxu0 0
    %9656 = vmatpush1.bf16.msra.mxu0 %v9621
    %9657 = vmatprep.subr.bf16.mxu0 0
    %9658 = vmatpush1.bf16.msra.mxu0 %v9620
    %9659 = vmatprep.subr.bf16.mxu0 0
    %9660 = vmatpush1.bf16.msra.mxu0 %v9619
    %9661 = vmatprep.subr.bf16.mxu0 0
    %9662 = vmatpush1.bf16.msra.mxu0 %v9618
    %9663 = vmatprep.subr.bf16.mxu0 0
    %9664 = vmatpush1.bf16.msra.mxu0 %v9617
    %9665 = vmatprep.subr.bf16.mxu0 0
    %9666 = vmatpush2.bf16.msra.mxu0 %v9632
    %9667 = vmatprep.subr.bf16.mxu0 0
    %9668 = vmatpush2.bf16.msra.mxu0 %v9631
    %9669 = vmatprep.subr.bf16.mxu0 0
    %9670 = vmatpush2.bf16.msra.mxu0 %v9630
    %9671 = vmatprep.subr.bf16.mxu0 0
    %9672 = vmatpush2.bf16.msra.mxu0 %v9629
    %9673 = vmatprep.subr.bf16.mxu0 0
    %9674 = vmatpush2.bf16.msra.mxu0 %v9628
    %9675 = vmatprep.subr.bf16.mxu0 0
    %9676 = vmatpush2.bf16.msra.mxu0 %v9627
    %9677 = vmatprep.subr.bf16.mxu0 0
    %9678 = vmatpush2.bf16.msra.mxu0 %v9626
    %9679 = vmatprep.subr.bf16.mxu0 0
    %9680 = vmatpush2.bf16.msra.mxu0 %v9625
    %9681 = vmatprep.mubr.bf16.mxu0 %v9513
    %9682 = vmatmul.mubr.bf16.gmra.mxu0 %v9512
    %v9683 = vpop.f32.mrf.mxu0
    %v9684 = vadd.f32 %v9551, %v9683
    %v9685 = vpop.f32.mrf.mxu0
    %v9686 = vpop.f32.mrf.mxu0
    %v9687 = vpop.f32.mrf.mxu0
    %9688 = vdwg.mxu0
    %9689 = vst [vmem:[#allocation2] sm:$0x3] %v9684
    // Predicated region
    $region82: #{deepgcn_forward.1} parent=1 // pred_check
      _
    $region83: #{deepgcn_forward.1} parent=1 // pred_check_branch
      %9691 = sbr.rel (0) target = $region85
    $region84: #{deepgcn_forward.1} parent=1 // pred_region
      %s9693 = ssub.s32 32, 32
      %9694 = vsyncadd [#allocation3], %s9693
      %s9696 = sshll.u32 [#allocation2], 4
      %s9697 = int_to_ptr.vmem [resolvable:$true] %s9696
      %9699 = dma.vmem_to_hbm [thread:$0]  %s9697, 32, %s20, [#allocation3]
    $region85: #{deepgcn_forward.1} parent=1 // pred_fallthru
      _
    // Predicated region
    $region86: #{deepgcn_forward.1} parent=1 // pred_check
      _
    $region87: #{deepgcn_forward.1} parent=1 // pred_check_branch
      %9701 = sbr.rel (0) target = $region89
    $region88: #{deepgcn_forward.1} parent=1 // pred_region
      %9702 = dma.done [#allocation3], 32
    $region89: #{deepgcn_forward.1} parent=1 // pred_fallthru
      _
    %9703 = vsyncpa [#allocation3], 1

</llo_original>
